<compile_context>
chip_gen: v7x
topology: tpu7x:2x2x1
jax: 0.10.0
libtpu: 0.0.40
codegen_flags: <defaults>
</compile_context>

<pallas_src>
import functools

import jax
import jax.numpy as jnp
from jax.experimental import pallas as pl
from jax.experimental.pallas import tpu as pltpu


# ---------------------------------------------------------------------------
# Pallas kernel: fused  W(Cout, K) @ X(K, M) + bias (+ReLU), f32 accumulation
# ---------------------------------------------------------------------------

def _matmul_bias_act_kernel(w_ref, x_ref, b_ref, o_ref, *, relu):
    acc = jnp.dot(w_ref[...], x_ref[...], preferred_element_type=jnp.float32)
    acc = acc + b_ref[...]                       # (Cout, tm) + (Cout, 1)
    if relu:
        acc = jnp.maximum(acc, 0.0)
    o_ref[...] = acc.astype(o_ref.dtype)


def matmul_bias_act(w, x, b, *, relu, out_dtype=jnp.bfloat16):
    """w: (Cout, K) bf16, x: (K, M) bf16, b: (Cout, 1) f32  ->  (Cout, M)."""
    Cout, K = w.shape
    K2, M = x.shape
    assert K == K2
    # Lane tile over M (output minor dim): biggest of 512/256/128 that divides
    # M, else the (small) full M.  Weights/bias blocks are reused across tiles.
    tm = M
    for cand in (512, 256, 128):
        if M % cand == 0:
            tm = cand
            break
    kernel = functools.partial(_matmul_bias_act_kernel, relu=relu)
    return pl.pallas_call(
        kernel,
        out_shape=jax.ShapeDtypeStruct((Cout, M), out_dtype),
        grid=(M // tm,),
        in_specs=[
            pl.BlockSpec((Cout, K), lambda i: (0, 0)),
            pl.BlockSpec((K, tm), lambda i: (0, i)),
            pl.BlockSpec((Cout, 1), lambda i: (0, 0)),
        ],
        out_specs=pl.BlockSpec((Cout, tm), lambda i: (0, i)),
        compiler_params=pltpu.CompilerParams(
            dimension_semantics=("parallel",)),   # v7x: M tiles split over TCs
    )(w, x, b)


# ---------------------------------------------------------------------------
# Layer wrappers (thin XLA glue feeding the fused Pallas matmul)
# ---------------------------------------------------------------------------

def conv3x3_same(x, wp, *, relu=True, out_dtype=jnp.bfloat16):
    """Conv3d(kernel=3, stride=1, padding=1) + bias (+ReLU).  x: (Cin,N,D,H,W)."""
    w2, b = wp                                   # (Cout, 27*Cin) bf16, (Cout,1) f32
    Cin, N, D, H, W = x.shape
    Cout = w2.shape[0]
    M = N * D * H * W
    xp = jnp.pad(x, ((0, 0), (0, 0), (1, 1), (1, 1), (1, 1)))
    cols = [xp[:, :, dz:dz + D, dy:dy + H, dx:dx + W].reshape(Cin, M)
            for dz in range(3) for dy in range(3) for dx in range(3)]
    patches = jnp.concatenate(cols, axis=0).astype(jnp.bfloat16)   # (27*Cin, M)
    out = matmul_bias_act(w2, patches, b, relu=relu, out_dtype=out_dtype)
    return out.reshape(Cout, N, D, H, W)


def conv1x1(x, wp, *, relu, out_dtype):
    """Conv3d(kernel=1) + bias (+ReLU).  x: (Cin, N, D, H, W)."""
    w2, b = wp
    Cin, N, D, H, W = x.shape
    out = matmul_bias_act(
        w2, x.reshape(Cin, N * D * H * W).astype(jnp.bfloat16),
        b, relu=relu, out_dtype=out_dtype)
    return out.reshape(w2.shape[0], N, D, H, W)


def conv_transpose3d_s2(x, wp, *, relu=True, out_dtype=jnp.bfloat16):
    """ConvTranspose3d(k=3, s=2, p=1, output_padding=1) + bias (+ReLU).

    8-phase sub-pixel decomposition, all phases in one block matmul:
      per dim:  out[2q]   = W[k=1] . x[q]
                out[2q+1] = W[k=2] . x[q] + W[k=0] . x[q+1]   (x[D] := 0)
    """
    w_big, b_big = wp                            # (8*Cout, 8*Cin) bf16, (8*Cout,1) f32
    Cin, N, D, H, W = x.shape
    Cout = w_big.shape[0] // 8
    M = N * D * H * W
    xp = jnp.pad(x, ((0, 0), (0, 0), (0, 1), (0, 1), (0, 1)))   # +1 taps read zero
    offs = [xp[:, :, dz:dz + D, dy:dy + H, dx:dx + W].reshape(Cin, M)
            for dz in range(2) for dy in range(2) for dx in range(2)]
    patches = jnp.concatenate(offs, axis=0).astype(jnp.bfloat16)  # (8*Cin, M)
    out = matmul_bias_act(w_big, patches, b_big, relu=relu, out_dtype=out_dtype)
    out = out.reshape(2, 2, 2, Cout, N, D, H, W)                 # (rz,ry,rx,C,N,D,H,W)
    out = jnp.transpose(out, (3, 4, 5, 0, 6, 1, 7, 2))           # (C,N,D,2,H,2,W,2)
    return out.reshape(Cout, N, 2 * D, 2 * H, 2 * W)


def maxpool3d_2x2x2(x):
    """MaxPool3d(2, 2) as a single reshape+max (XLA glue).  x: (C, N, D, H, W)."""
    C, N, D, H, W = x.shape
    assert D % 2 == 0 and H % 2 == 0 and W % 2 == 0
    return x.reshape(C, N, D // 2, 2, H // 2, 2, W // 2, 2).max(axis=(3, 5, 7))


# ---------------------------------------------------------------------------
# Parameters: PyTorch-layout init + one-time matmul-ready re-layout
# ---------------------------------------------------------------------------

def init_params(key, num_filters=8, num_in=1, num_out=1):
    """PyTorch layouts: Conv3d (Cout,Cin,k,k,k); ConvTranspose3d (Cin,Cout,k,k,k)."""
    nf = num_filters

    def conv_p(k, cin, cout, ksz):
        k1, k2 = jax.random.split(k)
        w = jax.random.normal(k1, (cout, cin, ksz, ksz, ksz), jnp.float32) * 0.05
        b = jax.random.normal(k2, (cout,), jnp.float32) * 0.05
        return w, b

    def tconv_p(k, cin, cout, ksz=3):
        k1, k2 = jax.random.split(k)
        w = jax.random.normal(k1, (cin, cout, ksz, ksz, ksz), jnp.float32) * 0.05
        b = jax.random.normal(k2, (cout,), jnp.float32) * 0.05
        return w, b

    keys = jax.random.split(key, 10)
    p = {}
    p["conv1"] = conv_p(keys[0], num_in, 2 * nf, 3)
    p["conv2"] = conv_p(keys[1], 2 * nf, 4 * nf, 3)
    p["conv3s"] = conv_p(keys[2], 4 * nf, 8 * nf, 3)
    p["conv3"] = conv_p(keys[3], 8 * nf, 8 * nf, 3)
    p["center_conv"] = conv_p(keys[4], 8 * nf, 2 * nf, 3)        # ConvRelu3d
    p["center_tconv"] = tconv_p(keys[5], 2 * nf, nf)             # ConvTranspose3d
    p["dec2_conv"] = conv_p(keys[6], 9 * nf, nf, 3)
    p["dec2_tconv"] = tconv_p(keys[7], nf, nf)
    p["dec1_conv"] = conv_p(keys[8], 5 * nf, nf // 2, 3)
    p["final"] = conv_p(keys[9], nf // 2, num_out, 1)
    return p


def _prep_conv(w, b):
    # (Cout, Cin, kD, kH, kW) -> (Cout, kD*kH*kW*Cin) bf16 with tap-major K
    # ordering (z, y, x, ci) matching the im2col patch construction.
    Cout, Cin, kD, kH, kW = w.shape
    w2 = jnp.transpose(w, (0, 2, 3, 4, 1)).reshape(Cout, kD * kH * kW * Cin)
    return w2.astype(jnp.bfloat16), b.reshape(Cout, 1).astype(jnp.float32)


def _prep_tconv(w, b):
    # (Cin, Cout, 3, 3, 3) -> block matrix (8*Cout, 8*Cin): rows = output phase
    # (rz,ry,rx), column blocks = input offset (dz,dy,dx).  Per dim: phase 0
    # uses offset 0 with kernel index 1; phase 1 uses offset 0 with index 2 and
    # offset 1 with index 0; every other (phase, offset) pair is a zero block.
    Cin, Cout = w.shape[0], w.shape[1]

    def kidx(r, d):
        if r == 0:
            return 1 if d == 0 else None
        return 2 if d == 0 else 0

    rows = []
    for rz in range(2):
        for ry in range(2):
            for rx in range(2):
                blocks = []
                for dz in range(2):
                    for dy in range(2):
                        for dx in range(2):
                            kz, ky, kx = kidx(rz, dz), kidx(ry, dy), kidx(rx, dx)
                            if kz is None or ky is None or kx is None:
                                blocks.append(jnp.zeros((Cout, Cin), jnp.float32))
                            else:
                                blocks.append(w[:, :, kz, ky, kx].T)   # (Cout, Cin)
                rows.append(jnp.concatenate(blocks, axis=1))            # (Cout, 8*Cin)
    w_big = jnp.concatenate(rows, axis=0).astype(jnp.bfloat16)          # (8*Cout, 8*Cin)
    b_big = jnp.tile(b.reshape(Cout, 1), (8, 1)).astype(jnp.float32)    # (8*Cout, 1)
    return w_big, b_big


def prepare_params(params):
    """One-time hoisted re-layout of PyTorch-style params into matmul-ready bf16."""
    pp = {}
    for name in ("conv1", "conv2", "conv3s", "conv3", "center_conv",
                 "dec2_conv", "dec1_conv", "final"):
        pp[name] = _prep_conv(*params[name])
    for name in ("center_tconv", "dec2_tconv"):
        pp[name] = _prep_tconv(*params[name])
    return pp


# ---------------------------------------------------------------------------
# Forward (mirrors UNetSim3dSRd2.forward exactly)
# ---------------------------------------------------------------------------

def _forward(x, pp):
    # x: (Cin, N, D, H, W) bf16
    conv1 = conv3x3_same(x, pp["conv1"])
    conv2 = conv3x3_same(maxpool3d_2x2x2(conv1), pp["conv2"])
    conv3s = conv3x3_same(maxpool3d_2x2x2(conv2), pp["conv3s"])
    conv3 = conv3x3_same(conv3s, pp["conv3"])

    # center = DecoderBlock3d(pool(conv3))
    c = conv3x3_same(maxpool3d_2x2x2(conv3), pp["center_conv"])
    center = conv_transpose3d_s2(c, pp["center_tconv"])

    # dec2 = DecoderBlock3d(cat([center, conv3], channel))
    d2 = conv3x3_same(jnp.concatenate([center, conv3], axis=0), pp["dec2_conv"])
    dec2 = conv_transpose3d_s2(d2, pp["dec2_tconv"])

    # dec1 = ConvRelu3d(cat([dec2, conv2], channel))
    dec1 = conv3x3_same(jnp.concatenate([dec2, conv2], axis=0), pp["dec1_conv"])

    # final 1x1x1 conv, no ReLU, f32 output
    return conv1x1(dec1, pp["final"], relu=False, out_dtype=jnp.float32)


def unet_sim3d_srd2(x_ncdhw, prepared_params):
    """Module I/O is PyTorch NCDHW; internally channel-first, batch folded in M."""
    x = jnp.transpose(x_ncdhw, (1, 0, 2, 3, 4)).astype(jnp.bfloat16)  # (C,N,D,H,W)
    y = _forward(x, prepared_params)                                  # (Cout,N,d,h,w)
    return jnp.transpose(y, (1, 0, 2, 3, 4))                          # (N,Cout,d,h,w)


# ---------------------------------------------------------------------------
# Demo
# ---------------------------------------------------------------------------

if __name__ == "__main__":
    key = jax.random.PRNGKey(0)
    kx, kp = jax.random.split(key)

    N, C, D, H, W = 2, 1, 8, 8, 8              # small shapes (num_in=1)
    num_filters, num_out = 8, 1

    x = jax.random.normal(kx, (N, C, D, H, W), jnp.float32)
    params = init_params(kp, num_filters=num_filters, num_in=C, num_out=num_out)
    prepared = prepare_params(params)          # one-time weight re-layout (hoisted)

    fwd = jax.jit(unet_sim3d_srd2)
    y = fwd(x, prepared)
    jax.block_until_ready(y)

    # output spatial resolution is input/2 ("SRd2"): (N, num_out, D/2, H/2, W/2)
    assert y.shape == (N, num_out, D // 2, H // 2, W // 2), y.shape
    assert bool(jnp.all(jnp.isfinite(y)))
    print("KERNEL_OK")
</pallas_src>

<mosaic_0001>
module attributes {stable_mosaic.version = 11 : i64} {
  func.func @_matmul_bias_act_kernel(%arg0: i32, %arg1: memref<16x27xbf16, #tpu.memory_space<vmem>>, %arg2: memref<27x512xbf16, #tpu.memory_space<vmem>>, %arg3: memref<16x1xf32, #tpu.memory_space<vmem>>, %arg4: memref<16x512xbf16, #tpu.memory_space<vmem>>) attributes {dimension_semantics = [#tpu.dimension_semantics<parallel>], iteration_bounds = array<i64: 2>, scalar_prefetch = 0 : i64, scratch_operands = 0 : i64, tpu.core_type = #tpu.core_type<tc>, window_params = [{pipeline_mode = #tpu.pipeline_mode<synchronous>, transform_indices = @transform_0, window_bounds = array<i64: 16, 27>}, {transform_indices = @transform_1, window_bounds = array<i64: 27, 512>}, {pipeline_mode = #tpu.pipeline_mode<synchronous>, transform_indices = @transform_2, window_bounds = array<i64: 16, 1>}, {transform_indices = @transform_3, window_bounds = array<i64: 16, 512>}]} {
    %c0 = arith.constant 0 : index
    %c0_0 = arith.constant 0 : index
    %0 = vector.load %arg1[%c0, %c0_0] : memref<16x27xbf16, #tpu.memory_space<vmem>>, vector<16x27xbf16>
    %c0_1 = arith.constant 0 : index
    %c0_2 = arith.constant 0 : index
    %1 = vector.load %arg2[%c0_1, %c0_2] : memref<27x512xbf16, #tpu.memory_space<vmem>>, vector<27x512xbf16>
    %cst = arith.constant dense<0.000000e+00> : vector<16x512xf32>
    %2 = tpu.matmul %0, %1, %cst {dimension_numbers = #tpu.dot_dimension_numbers<[1], [0], [0], [1], [0, 0, 1, 1], [], []>} : vector<16x27xbf16>, vector<27x512xbf16>, vector<16x512xf32> -> vector<16x512xf32>
    %c0_3 = arith.constant 0 : index
    %c0_4 = arith.constant 0 : index
    %3 = vector.load %arg3[%c0_3, %c0_4] : memref<16x1xf32, #tpu.memory_space<vmem>>, vector<16x1xf32>
    %4 = vector.broadcast %3 : vector<16x1xf32> to vector<16x512xf32>
    %5 = arith.addf %2, %4 : vector<16x512xf32>
    %cst_5 = arith.constant 0.000000e+00 : f32
    %6 = vector.broadcast %cst_5 : f32 to vector<16x512xf32>
    %7 = arith.maximumf %5, %6 : vector<16x512xf32>
    %8 = arith.truncf %7 : vector<16x512xf32> to vector<16x512xbf16>
    %c0_6 = arith.constant 0 : index
    %c0_7 = arith.constant 0 : index
    %9 = vector.load %arg4[%c0_6, %c0_7] : memref<16x512xbf16, #tpu.memory_space<vmem>>, vector<16x512xbf16>
    tpu.vector_store %arg4[%c0_6, %c0_7], %8 {strides = array<i32>} : memref<16x512xbf16, #tpu.memory_space<vmem>>, vector<16x512xbf16>,
    return
  }
  func.func @transform_0(%arg0: i32) -> (i32, i32) {
    %c0_i32 = arith.constant 0 : i32
    %c0_i32_0 = arith.constant 0 : i32
    %c0_i32_1 = arith.constant 0 : i32
    return %c0_i32, %c0_i32_0 : i32, i32
  }
  func.func @transform_1(%arg0: i32) -> (i32, i32) {
    %c0_i32 = arith.constant 0 : i32
    %c0_i32_0 = arith.constant 0 : i32
    return %c0_i32, %arg0 : i32, i32
  }
  func.func @transform_2(%arg0: i32) -> (i32, i32) {
    %c0_i32 = arith.constant 0 : i32
    %c0_i32_0 = arith.constant 0 : i32
    %c0_i32_1 = arith.constant 0 : i32
    return %c0_i32, %c0_i32_0 : i32, i32
  }
  func.func @transform_3(%arg0: i32) -> (i32, i32) {
    %c0_i32 = arith.constant 0 : i32
    %c0_i32_0 = arith.constant 0 : i32
    return %c0_i32, %arg0 : i32, i32
  }
}

module attributes {stable_mosaic.version = 11 : i64} {
  func.func @_matmul_bias_act_kernel(%arg0: i32, %arg1: memref<32x432xbf16, #tpu.memory_space<vmem>>, %arg2: memref<432x128xbf16, #tpu.memory_space<vmem>>, %arg3: memref<32x1xf32, #tpu.memory_space<vmem>>, %arg4: memref<32x128xbf16, #tpu.memory_space<vmem>>) attributes {dimension_semantics = [#tpu.dimension_semantics<parallel>], iteration_bounds = array<i64: 1>, scalar_prefetch = 0 : i64, scratch_operands = 0 : i64, tpu.core_type = #tpu.core_type<tc>, window_params = [{pipeline_mode = #tpu.pipeline_mode<synchronous>, transform_indices = @transform_0, window_bounds = array<i64: 32, 432>}, {transform_indices = @transform_1, window_bounds = array<i64: 432, 128>}, {pipeline_mode = #tpu.pipeline_mode<synchronous>, transform_indices = @transform_2, window_bounds = array<i64: 32, 1>}, {transform_indices = @transform_3, window_bounds = array<i64: 32, 128>}]} {
    %c0 = arith.constant 0 : index
    %c0_0 = arith.constant 0 : index
    %0 = vector.load %arg1[%c0, %c0_0] : memref<32x432xbf16, #tpu.memory_space<vmem>>, vector<32x432xbf16>
    %c0_1 = arith.constant 0 : index
    %c0_2 = arith.constant 0 : index
    %1 = vector.load %arg2[%c0_1, %c0_2] : memref<432x128xbf16, #tpu.memory_space<vmem>>, vector<432x128xbf16>
    %cst = arith.constant dense<0.000000e+00> : vector<32x128xf32>
    %2 = tpu.matmul %0, %1, %cst {dimension_numbers = #tpu.dot_dimension_numbers<[1], [0], [0], [1], [0, 0, 1, 1], [], []>} : vector<32x432xbf16>, vector<432x128xbf16>, vector<32x128xf32> -> vector<32x128xf32>
    %c0_3 = arith.constant 0 : index
    %c0_4 = arith.constant 0 : index
    %3 = vector.load %arg3[%c0_3, %c0_4] : memref<32x1xf32, #tpu.memory_space<vmem>>, vector<32x1xf32>
    %4 = vector.broadcast %3 : vector<32x1xf32> to vector<32x128xf32>
    %5 = arith.addf %2, %4 : vector<32x128xf32>
    %cst_5 = arith.constant 0.000000e+00 : f32
    %6 = vector.broadcast %cst_5 : f32 to vector<32x128xf32>
    %7 = arith.maximumf %5, %6 : vector<32x128xf32>
    %8 = arith.truncf %7 : vector<32x128xf32> to vector<32x128xbf16>
    %c0_6 = arith.constant 0 : index
    %c0_7 = arith.constant 0 : index
    %9 = vector.load %arg4[%c0_6, %c0_7] : memref<32x128xbf16, #tpu.memory_space<vmem>>, vector<32x128xbf16>
    tpu.vector_store %arg4[%c0_6, %c0_7], %8 {strides = array<i32>} : memref<32x128xbf16, #tpu.memory_space<vmem>>, vector<32x128xbf16>,
    return
  }
  func.func @transform_0(%arg0: i32) -> (i32, i32) {
    %c0_i32 = arith.constant 0 : i32
    %c0_i32_0 = arith.constant 0 : i32
    %c0_i32_1 = arith.constant 0 : i32
    return %c0_i32, %c0_i32_0 : i32, i32
  }
  func.func @transform_1(%arg0: i32) -> (i32, i32) {
    %c0_i32 = arith.constant 0 : i32
    %c0_i32_0 = arith.constant 0 : i32
    return %c0_i32, %arg0 : i32, i32
  }
  func.func @transform_2(%arg0: i32) -> (i32, i32) {
    %c0_i32 = arith.constant 0 : i32
    %c0_i32_0 = arith.constant 0 : i32
    %c0_i32_1 = arith.constant 0 : i32
    return %c0_i32, %c0_i32_0 : i32, i32
  }
  func.func @transform_3(%arg0: i32) -> (i32, i32) {
    %c0_i32 = arith.constant 0 : i32
    %c0_i32_0 = arith.constant 0 : i32
    return %c0_i32, %arg0 : i32, i32
  }
}

module attributes {stable_mosaic.version = 11 : i64} {
  func.func @_matmul_bias_act_kernel(%arg0: i32, %arg1: memref<64x864xbf16, #tpu.memory_space<vmem>>, %arg2: memref<864x16xbf16, #tpu.memory_space<vmem>>, %arg3: memref<64x1xf32, #tpu.memory_space<vmem>>, %arg4: memref<64x16xbf16, #tpu.memory_space<vmem>>) attributes {dimension_semantics = [#tpu.dimension_semantics<parallel>], iteration_bounds = array<i64: 1>, scalar_prefetch = 0 : i64, scratch_operands = 0 : i64, tpu.core_type = #tpu.core_type<tc>, window_params = [{pipeline_mode = #tpu.pipeline_mode<synchronous>, transform_indices = @transform_0, window_bounds = array<i64: 64, 864>}, {transform_indices = @transform_1, window_bounds = array<i64: 864, 16>}, {pipeline_mode = #tpu.pipeline_mode<synchronous>, transform_indices = @transform_2, window_bounds = array<i64: 64, 1>}, {transform_indices = @transform_3, window_bounds = array<i64: 64, 16>}]} {
    %c0 = arith.constant 0 : index
    %c0_0 = arith.constant 0 : index
    %0 = vector.load %arg1[%c0, %c0_0] : memref<64x864xbf16, #tpu.memory_space<vmem>>, vector<64x864xbf16>
    %c0_1 = arith.constant 0 : index
    %c0_2 = arith.constant 0 : index
    %1 = vector.load %arg2[%c0_1, %c0_2] : memref<864x16xbf16, #tpu.memory_space<vmem>>, vector<864x16xbf16>
    %cst = arith.constant dense<0.000000e+00> : vector<64x16xf32>
    %2 = tpu.matmul %0, %1, %cst {dimension_numbers = #tpu.dot_dimension_numbers<[1], [0], [0], [1], [0, 0, 1, 1], [], []>} : vector<64x864xbf16>, vector<864x16xbf16>, vector<64x16xf32> -> vector<64x16xf32>
    %c0_3 = arith.constant 0 : index
    %c0_4 = arith.constant 0 : index
    %3 = vector.load %arg3[%c0_3, %c0_4] : memref<64x1xf32, #tpu.memory_space<vmem>>, vector<64x1xf32>
    %4 = vector.broadcast %3 : vector<64x1xf32> to vector<64x16xf32>
    %5 = arith.addf %2, %4 : vector<64x16xf32>
    %cst_5 = arith.constant 0.000000e+00 : f32
    %6 = vector.broadcast %cst_5 : f32 to vector<64x16xf32>
    %7 = arith.maximumf %5, %6 : vector<64x16xf32>
    %8 = arith.truncf %7 : vector<64x16xf32> to vector<64x16xbf16>
    %c0_6 = arith.constant 0 : index
    %c0_7 = arith.constant 0 : index
    %9 = vector.load %arg4[%c0_6, %c0_7] : memref<64x16xbf16, #tpu.memory_space<vmem>>, vector<64x16xbf16>
    tpu.vector_store %arg4[%c0_6, %c0_7], %8 {strides = array<i32>} : memref<64x16xbf16, #tpu.memory_space<vmem>>, vector<64x16xbf16>,
    return
  }
  func.func @transform_0(%arg0: i32) -> (i32, i32) {
    %c0_i32 = arith.constant 0 : i32
    %c0_i32_0 = arith.constant 0 : i32
    %c0_i32_1 = arith.constant 0 : i32
    return %c0_i32, %c0_i32_0 : i32, i32
  }
  func.func @transform_1(%arg0: i32) -> (i32, i32) {
    %c0_i32 = arith.constant 0 : i32
    %c0_i32_0 = arith.constant 0 : i32
    return %c0_i32, %arg0 : i32, i32
  }
  func.func @transform_2(%arg0: i32) -> (i32, i32) {
    %c0_i32 = arith.constant 0 : i32
    %c0_i32_0 = arith.constant 0 : i32
    %c0_i32_1 = arith.constant 0 : i32
    return %c0_i32, %c0_i32_0 : i32, i32
  }
  func.func @transform_3(%arg0: i32) -> (i32, i32) {
    %c0_i32 = arith.constant 0 : i32
    %c0_i32_0 = arith.constant 0 : i32
    return %c0_i32, %arg0 : i32, i32
  }
}

module attributes {stable_mosaic.version = 11 : i64} {
  func.func @_matmul_bias_act_kernel(%arg0: i32, %arg1: memref<16x1728xbf16, #tpu.memory_space<vmem>>, %arg2: memref<1728x2xbf16, #tpu.memory_space<vmem>>, %arg3: memref<16x1xf32, #tpu.memory_space<vmem>>, %arg4: memref<16x2xbf16, #tpu.memory_space<vmem>>) attributes {dimension_semantics = [#tpu.dimension_semantics<parallel>], iteration_bounds = array<i64: 1>, scalar_prefetch = 0 : i64, scratch_operands = 0 : i64, tpu.core_type = #tpu.core_type<tc>, window_params = [{pipeline_mode = #tpu.pipeline_mode<synchronous>, transform_indices = @transform_0, window_bounds = array<i64: 16, 1728>}, {transform_indices = @transform_1, window_bounds = array<i64: 1728, 2>}, {pipeline_mode = #tpu.pipeline_mode<synchronous>, transform_indices = @transform_2, window_bounds = array<i64: 16, 1>}, {transform_indices = @transform_3, window_bounds = array<i64: 16, 2>}]} {
    %c0 = arith.constant 0 : index
    %c0_0 = arith.constant 0 : index
    %0 = vector.load %arg1[%c0, %c0_0] : memref<16x1728xbf16, #tpu.memory_space<vmem>>, vector<16x1728xbf16>
    %c0_1 = arith.constant 0 : index
    %c0_2 = arith.constant 0 : index
    %1 = vector.load %arg2[%c0_1, %c0_2] : memref<1728x2xbf16, #tpu.memory_space<vmem>>, vector<1728x2xbf16>
    %cst = arith.constant dense<0.000000e+00> : vector<16x2xf32>
    %2 = tpu.matmul %0, %1, %cst {dimension_numbers = #tpu.dot_dimension_numbers<[1], [0], [0], [1], [0, 0, 1, 1], [], []>} : vector<16x1728xbf16>, vector<1728x2xbf16>, vector<16x2xf32> -> vector<16x2xf32>
    %c0_3 = arith.constant 0 : index
    %c0_4 = arith.constant 0 : index
    %3 = vector.load %arg3[%c0_3, %c0_4] : memref<16x1xf32, #tpu.memory_space<vmem>>, vector<16x1xf32>
    %4 = vector.broadcast %3 : vector<16x1xf32> to vector<16x2xf32>
    %5 = arith.addf %2, %4 : vector<16x2xf32>
    %cst_5 = arith.constant 0.000000e+00 : f32
    %6 = vector.broadcast %cst_5 : f32 to vector<16x2xf32>
    %7 = arith.maximumf %5, %6 : vector<16x2xf32>
    %8 = arith.truncf %7 : vector<16x2xf32> to vector<16x2xbf16>
    %c0_6 = arith.constant 0 : index
    %c0_7 = arith.constant 0 : index
    %9 = vector.load %arg4[%c0_6, %c0_7] : memref<16x2xbf16, #tpu.memory_space<vmem>>, vector<16x2xbf16>
    tpu.vector_store %arg4[%c0_6, %c0_7], %8 {strides = array<i32>} : memref<16x2xbf16, #tpu.memory_space<vmem>>, vector<16x2xbf16>,
    return
  }
  func.func @transform_0(%arg0: i32) -> (i32, i32) {
    %c0_i32 = arith.constant 0 : i32
    %c0_i32_0 = arith.constant 0 : i32
    %c0_i32_1 = arith.constant 0 : i32
    return %c0_i32, %c0_i32_0 : i32, i32
  }
  func.func @transform_1(%arg0: i32) -> (i32, i32) {
    %c0_i32 = arith.constant 0 : i32
    %c0_i32_0 = arith.constant 0 : i32
    return %c0_i32, %arg0 : i32, i32
  }
  func.func @transform_2(%arg0: i32) -> (i32, i32) {
    %c0_i32 = arith.constant 0 : i32
    %c0_i32_0 = arith.constant 0 : i32
    %c0_i32_1 = arith.constant 0 : i32
    return %c0_i32, %c0_i32_0 : i32, i32
  }
  func.func @transform_3(%arg0: i32) -> (i32, i32) {
    %c0_i32 = arith.constant 0 : i32
    %c0_i32_0 = arith.constant 0 : i32
    return %c0_i32, %arg0 : i32, i32
  }
}

module attributes {stable_mosaic.version = 11 : i64} {
  func.func @_matmul_bias_act_kernel(%arg0: i32, %arg1: memref<64x1728xbf16, #tpu.memory_space<vmem>>, %arg2: memref<1728x16xbf16, #tpu.memory_space<vmem>>, %arg3: memref<64x1xf32, #tpu.memory_space<vmem>>, %arg4: memref<64x16xbf16, #tpu.memory_space<vmem>>) attributes {dimension_semantics = [#tpu.dimension_semantics<parallel>], iteration_bounds = array<i64: 1>, scalar_prefetch = 0 : i64, scratch_operands = 0 : i64, tpu.core_type = #tpu.core_type<tc>, window_params = [{pipeline_mode = #tpu.pipeline_mode<synchronous>, transform_indices = @transform_0, window_bounds = array<i64: 64, 1728>}, {transform_indices = @transform_1, window_bounds = array<i64: 1728, 16>}, {pipeline_mode = #tpu.pipeline_mode<synchronous>, transform_indices = @transform_2, window_bounds = array<i64: 64, 1>}, {transform_indices = @transform_3, window_bounds = array<i64: 64, 16>}]} {
    %c0 = arith.constant 0 : index
    %c0_0 = arith.constant 0 : index
    %0 = vector.load %arg1[%c0, %c0_0] : memref<64x1728xbf16, #tpu.memory_space<vmem>>, vector<64x1728xbf16>
    %c0_1 = arith.constant 0 : index
    %c0_2 = arith.constant 0 : index
    %1 = vector.load %arg2[%c0_1, %c0_2] : memref<1728x16xbf16, #tpu.memory_space<vmem>>, vector<1728x16xbf16>
    %cst = arith.constant dense<0.000000e+00> : vector<64x16xf32>
    %2 = tpu.matmul %0, %1, %cst {dimension_numbers = #tpu.dot_dimension_numbers<[1], [0], [0], [1], [0, 0, 1, 1], [], []>} : vector<64x1728xbf16>, vector<1728x16xbf16>, vector<64x16xf32> -> vector<64x16xf32>
    %c0_3 = arith.constant 0 : index
    %c0_4 = arith.constant 0 : index
    %3 = vector.load %arg3[%c0_3, %c0_4] : memref<64x1xf32, #tpu.memory_space<vmem>>, vector<64x1xf32>
    %4 = vector.broadcast %3 : vector<64x1xf32> to vector<64x16xf32>
    %5 = arith.addf %2, %4 : vector<64x16xf32>
    %cst_5 = arith.constant 0.000000e+00 : f32
    %6 = vector.broadcast %cst_5 : f32 to vector<64x16xf32>
    %7 = arith.maximumf %5, %6 : vector<64x16xf32>
    %8 = arith.truncf %7 : vector<64x16xf32> to vector<64x16xbf16>
    %c0_6 = arith.constant 0 : index
    %c0_7 = arith.constant 0 : index
    %9 = vector.load %arg4[%c0_6, %c0_7] : memref<64x16xbf16, #tpu.memory_space<vmem>>, vector<64x16xbf16>
    tpu.vector_store %arg4[%c0_6, %c0_7], %8 {strides = array<i32>} : memref<64x16xbf16, #tpu.memory_space<vmem>>, vector<64x16xbf16>,
    return
  }
  func.func @transform_0(%arg0: i32) -> (i32, i32) {
    %c0_i32 = arith.constant 0 : i32
    %c0_i32_0 = arith.constant 0 : i32
    %c0_i32_1 = arith.constant 0 : i32
    return %c0_i32, %c0_i32_0 : i32, i32
  }
  func.func @transform_1(%arg0: i32) -> (i32, i32) {
    %c0_i32 = arith.constant 0 : i32
    %c0_i32_0 = arith.constant 0 : i32
    return %c0_i32, %arg0 : i32, i32
  }
  func.func @transform_2(%arg0: i32) -> (i32, i32) {
    %c0_i32 = arith.constant 0 : i32
    %c0_i32_0 = arith.constant 0 : i32
    %c0_i32_1 = arith.constant 0 : i32
    return %c0_i32, %c0_i32_0 : i32, i32
  }
  func.func @transform_3(%arg0: i32) -> (i32, i32) {
    %c0_i32 = arith.constant 0 : i32
    %c0_i32_0 = arith.constant 0 : i32
    return %c0_i32, %arg0 : i32, i32
  }
}

module attributes {stable_mosaic.version = 11 : i64} {
  func.func @_matmul_bias_act_kernel(%arg0: i32, %arg1: memref<64x128xbf16, #tpu.memory_space<vmem>>, %arg2: memref<128x2xbf16, #tpu.memory_space<vmem>>, %arg3: memref<64x1xf32, #tpu.memory_space<vmem>>, %arg4: memref<64x2xbf16, #tpu.memory_space<vmem>>) attributes {dimension_semantics = [#tpu.dimension_semantics<parallel>], iteration_bounds = array<i64: 1>, scalar_prefetch = 0 : i64, scratch_operands = 0 : i64, tpu.core_type = #tpu.core_type<tc>, window_params = [{pipeline_mode = #tpu.pipeline_mode<synchronous>, transform_indices = @transform_0, window_bounds = array<i64: 64, 128>}, {transform_indices = @transform_1, window_bounds = array<i64: 128, 2>}, {pipeline_mode = #tpu.pipeline_mode<synchronous>, transform_indices = @transform_2, window_bounds = array<i64: 64, 1>}, {transform_indices = @transform_3, window_bounds = array<i64: 64, 2>}]} {
    %c0 = arith.constant 0 : index
    %c0_0 = arith.constant 0 : index
    %0 = vector.load %arg1[%c0, %c0_0] : memref<64x128xbf16, #tpu.memory_space<vmem>>, vector<64x128xbf16>
    %c0_1 = arith.constant 0 : index
    %c0_2 = arith.constant 0 : index
    %1 = vector.load %arg2[%c0_1, %c0_2] : memref<128x2xbf16, #tpu.memory_space<vmem>>, vector<128x2xbf16>
    %cst = arith.constant dense<0.000000e+00> : vector<64x2xf32>
    %2 = tpu.matmul %0, %1, %cst {dimension_numbers = #tpu.dot_dimension_numbers<[1], [0], [0], [1], [0, 0, 1, 1], [], []>} : vector<64x128xbf16>, vector<128x2xbf16>, vector<64x2xf32> -> vector<64x2xf32>
    %c0_3 = arith.constant 0 : index
    %c0_4 = arith.constant 0 : index
    %3 = vector.load %arg3[%c0_3, %c0_4] : memref<64x1xf32, #tpu.memory_space<vmem>>, vector<64x1xf32>
    %4 = vector.broadcast %3 : vector<64x1xf32> to vector<64x2xf32>
    %5 = arith.addf %2, %4 : vector<64x2xf32>
    %cst_5 = arith.constant 0.000000e+00 : f32
    %6 = vector.broadcast %cst_5 : f32 to vector<64x2xf32>
    %7 = arith.maximumf %5, %6 : vector<64x2xf32>
    %8 = arith.truncf %7 : vector<64x2xf32> to vector<64x2xbf16>
    %c0_6 = arith.constant 0 : index
    %c0_7 = arith.constant 0 : index
    %9 = vector.load %arg4[%c0_6, %c0_7] : memref<64x2xbf16, #tpu.memory_space<vmem>>, vector<64x2xbf16>
    tpu.vector_store %arg4[%c0_6, %c0_7], %8 {strides = array<i32>} : memref<64x2xbf16, #tpu.memory_space<vmem>>, vector<64x2xbf16>,
    return
  }
  func.func @transform_0(%arg0: i32) -> (i32, i32) {
    %c0_i32 = arith.constant 0 : i32
    %c0_i32_0 = arith.constant 0 : i32
    %c0_i32_1 = arith.constant 0 : i32
    return %c0_i32, %c0_i32_0 : i32, i32
  }
  func.func @transform_1(%arg0: i32) -> (i32, i32) {
    %c0_i32 = arith.constant 0 : i32
    %c0_i32_0 = arith.constant 0 : i32
    return %c0_i32, %arg0 : i32, i32
  }
  func.func @transform_2(%arg0: i32) -> (i32, i32) {
    %c0_i32 = arith.constant 0 : i32
    %c0_i32_0 = arith.constant 0 : i32
    %c0_i32_1 = arith.constant 0 : i32
    return %c0_i32, %c0_i32_0 : i32, i32
  }
  func.func @transform_3(%arg0: i32) -> (i32, i32) {
    %c0_i32 = arith.constant 0 : i32
    %c0_i32_0 = arith.constant 0 : i32
    return %c0_i32, %arg0 : i32, i32
  }
}

module attributes {stable_mosaic.version = 11 : i64} {
  func.func @_matmul_bias_act_kernel(%arg0: i32, %arg1: memref<8x1944xbf16, #tpu.memory_space<vmem>>, %arg2: memref<1944x16xbf16, #tpu.memory_space<vmem>>, %arg3: memref<8x1xf32, #tpu.memory_space<vmem>>, %arg4: memref<8x16xbf16, #tpu.memory_space<vmem>>) attributes {dimension_semantics = [#tpu.dimension_semantics<parallel>], iteration_bounds = array<i64: 1>, scalar_prefetch = 0 : i64, scratch_operands = 0 : i64, tpu.core_type = #tpu.core_type<tc>, window_params = [{pipeline_mode = #tpu.pipeline_mode<synchronous>, transform_indices = @transform_0, window_bounds = array<i64: 8, 1944>}, {transform_indices = @transform_1, window_bounds = array<i64: 1944, 16>}, {pipeline_mode = #tpu.pipeline_mode<synchronous>, transform_indices = @transform_2, window_bounds = array<i64: 8, 1>}, {transform_indices = @transform_3, window_bounds = array<i64: 8, 16>}]} {
    %c0 = arith.constant 0 : index
    %c0_0 = arith.constant 0 : index
    %0 = vector.load %arg1[%c0, %c0_0] : memref<8x1944xbf16, #tpu.memory_space<vmem>>, vector<8x1944xbf16>
    %c0_1 = arith.constant 0 : index
    %c0_2 = arith.constant 0 : index
    %1 = vector.load %arg2[%c0_1, %c0_2] : memref<1944x16xbf16, #tpu.memory_space<vmem>>, vector<1944x16xbf16>
    %cst = arith.constant dense<0.000000e+00> : vector<8x16xf32>
    %2 = tpu.matmul %0, %1, %cst {dimension_numbers = #tpu.dot_dimension_numbers<[1], [0], [0], [1], [0, 0, 1, 1], [], []>} : vector<8x1944xbf16>, vector<1944x16xbf16>, vector<8x16xf32> -> vector<8x16xf32>
    %c0_3 = arith.constant 0 : index
    %c0_4 = arith.constant 0 : index
    %3 = vector.load %arg3[%c0_3, %c0_4] : memref<8x1xf32, #tpu.memory_space<vmem>>, vector<8x1xf32>
    %4 = vector.broadcast %3 : vector<8x1xf32> to vector<8x16xf32>
    %5 = arith.addf %2, %4 : vector<8x16xf32>
    %cst_5 = arith.constant 0.000000e+00 : f32
    %6 = vector.broadcast %cst_5 : f32 to vector<8x16xf32>
    %7 = arith.maximumf %5, %6 : vector<8x16xf32>
    %8 = arith.truncf %7 : vector<8x16xf32> to vector<8x16xbf16>
    %c0_6 = arith.constant 0 : index
    %c0_7 = arith.constant 0 : index
    %9 = vector.load %arg4[%c0_6, %c0_7] : memref<8x16xbf16, #tpu.memory_space<vmem>>, vector<8x16xbf16>
    tpu.vector_store %arg4[%c0_6, %c0_7], %8 {strides = array<i32>} : memref<8x16xbf16, #tpu.memory_space<vmem>>, vector<8x16xbf16>,
    return
  }
  func.func @transform_0(%arg0: i32) -> (i32, i32) {
    %c0_i32 = arith.constant 0 : i32
    %c0_i32_0 = arith.constant 0 : i32
    %c0_i32_1 = arith.constant 0 : i32
    return %c0_i32, %c0_i32_0 : i32, i32
  }
  func.func @transform_1(%arg0: i32) -> (i32, i32) {
    %c0_i32 = arith.constant 0 : i32
    %c0_i32_0 = arith.constant 0 : i32
    return %c0_i32, %arg0 : i32, i32
  }
  func.func @transform_2(%arg0: i32) -> (i32, i32) {
    %c0_i32 = arith.constant 0 : i32
    %c0_i32_0 = arith.constant 0 : i32
    %c0_i32_1 = arith.constant 0 : i32
    return %c0_i32, %c0_i32_0 : i32, i32
  }
  func.func @transform_3(%arg0: i32) -> (i32, i32) {
    %c0_i32 = arith.constant 0 : i32
    %c0_i32_0 = arith.constant 0 : i32
    return %c0_i32, %arg0 : i32, i32
  }
}

module attributes {stable_mosaic.version = 11 : i64} {
  func.func @_matmul_bias_act_kernel(%arg0: i32, %arg1: memref<64x64xbf16, #tpu.memory_space<vmem>>, %arg2: memref<64x16xbf16, #tpu.memory_space<vmem>>, %arg3: memref<64x1xf32, #tpu.memory_space<vmem>>, %arg4: memref<64x16xbf16, #tpu.memory_space<vmem>>) attributes {dimension_semantics = [#tpu.dimension_semantics<parallel>], iteration_bounds = array<i64: 1>, scalar_prefetch = 0 : i64, scratch_operands = 0 : i64, tpu.core_type = #tpu.core_type<tc>, window_params = [{pipeline_mode = #tpu.pipeline_mode<synchronous>, transform_indices = @transform_0, window_bounds = array<i64: 64, 64>}, {transform_indices = @transform_1, window_bounds = array<i64: 64, 16>}, {pipeline_mode = #tpu.pipeline_mode<synchronous>, transform_indices = @transform_2, window_bounds = array<i64: 64, 1>}, {transform_indices = @transform_3, window_bounds = array<i64: 64, 16>}]} {
    %c0 = arith.constant 0 : index
    %c0_0 = arith.constant 0 : index
    %0 = vector.load %arg1[%c0, %c0_0] : memref<64x64xbf16, #tpu.memory_space<vmem>>, vector<64x64xbf16>
    %c0_1 = arith.constant 0 : index
    %c0_2 = arith.constant 0 : index
    %1 = vector.load %arg2[%c0_1, %c0_2] : memref<64x16xbf16, #tpu.memory_space<vmem>>, vector<64x16xbf16>
    %cst = arith.constant dense<0.000000e+00> : vector<64x16xf32>
    %2 = tpu.matmul %0, %1, %cst {dimension_numbers = #tpu.dot_dimension_numbers<[1], [0], [0], [1], [0, 0, 1, 1], [], []>} : vector<64x64xbf16>, vector<64x16xbf16>, vector<64x16xf32> -> vector<64x16xf32>
    %c0_3 = arith.constant 0 : index
    %c0_4 = arith.constant 0 : index
    %3 = vector.load %arg3[%c0_3, %c0_4] : memref<64x1xf32, #tpu.memory_space<vmem>>, vector<64x1xf32>
    %4 = vector.broadcast %3 : vector<64x1xf32> to vector<64x16xf32>
    %5 = arith.addf %2, %4 : vector<64x16xf32>
    %cst_5 = arith.constant 0.000000e+00 : f32
    %6 = vector.broadcast %cst_5 : f32 to vector<64x16xf32>
    %7 = arith.maximumf %5, %6 : vector<64x16xf32>
    %8 = arith.truncf %7 : vector<64x16xf32> to vector<64x16xbf16>
    %c0_6 = arith.constant 0 : index
    %c0_7 = arith.constant 0 : index
    %9 = vector.load %arg4[%c0_6, %c0_7] : memref<64x16xbf16, #tpu.memory_space<vmem>>, vector<64x16xbf16>
    tpu.vector_store %arg4[%c0_6, %c0_7], %8 {strides = array<i32>} : memref<64x16xbf16, #tpu.memory_space<vmem>>, vector<64x16xbf16>,
    return
  }
  func.func @transform_0(%arg0: i32) -> (i32, i32) {
    %c0_i32 = arith.constant 0 : i32
    %c0_i32_0 = arith.constant 0 : i32
    %c0_i32_1 = arith.constant 0 : i32
    return %c0_i32, %c0_i32_0 : i32, i32
  }
  func.func @transform_1(%arg0: i32) -> (i32, i32) {
    %c0_i32 = arith.constant 0 : i32
    %c0_i32_0 = arith.constant 0 : i32
    return %c0_i32, %arg0 : i32, i32
  }
  func.func @transform_2(%arg0: i32) -> (i32, i32) {
    %c0_i32 = arith.constant 0 : i32
    %c0_i32_0 = arith.constant 0 : i32
    %c0_i32_1 = arith.constant 0 : i32
    return %c0_i32, %c0_i32_0 : i32, i32
  }
  func.func @transform_3(%arg0: i32) -> (i32, i32) {
    %c0_i32 = arith.constant 0 : i32
    %c0_i32_0 = arith.constant 0 : i32
    return %c0_i32, %arg0 : i32, i32
  }
}

module attributes {stable_mosaic.version = 11 : i64} {
  func.func @_matmul_bias_act_kernel(%arg0: i32, %arg1: memref<1x4xbf16, #tpu.memory_space<vmem>>, %arg2: memref<4x128xbf16, #tpu.memory_space<vmem>>, %arg3: memref<1x1xf32, #tpu.memory_space<vmem>>, %arg4: memref<1x128xf32, #tpu.memory_space<vmem>>) attributes {dimension_semantics = [#tpu.dimension_semantics<parallel>], iteration_bounds = array<i64: 1>, scalar_prefetch = 0 : i64, scratch_operands = 0 : i64, tpu.core_type = #tpu.core_type<tc>, window_params = [{pipeline_mode = #tpu.pipeline_mode<synchronous>, transform_indices = @transform_0, window_bounds = array<i64: 1, 4>}, {transform_indices = @transform_1, window_bounds = array<i64: 4, 128>}, {pipeline_mode = #tpu.pipeline_mode<synchronous>, transform_indices = @transform_2, window_bounds = array<i64: 1, 1>}, {transform_indices = @transform_3, window_bounds = array<i64: 1, 128>}]} {
    %c0 = arith.constant 0 : index
    %c0_0 = arith.constant 0 : index
    %0 = vector.load %arg1[%c0, %c0_0] : memref<1x4xbf16, #tpu.memory_space<vmem>>, vector<1x4xbf16>
    %c0_1 = arith.constant 0 : index
    %c0_2 = arith.constant 0 : index
    %1 = vector.load %arg2[%c0_1, %c0_2] : memref<4x128xbf16, #tpu.memory_space<vmem>>, vector<4x128xbf16>
    %cst = arith.constant dense<0.000000e+00> : vector<1x128xf32>
    %2 = tpu.matmul %0, %1, %cst {dimension_numbers = #tpu.dot_dimension_numbers<[1], [0], [0], [1], [0, 0, 1, 1], [], []>} : vector<1x4xbf16>, vector<4x128xbf16>, vector<1x128xf32> -> vector<1x128xf32>
    %c0_3 = arith.constant 0 : index
    %c0_4 = arith.constant 0 : index
    %3 = vector.load %arg3[%c0_3, %c0_4] : memref<1x1xf32, #tpu.memory_space<vmem>>, vector<1x1xf32>
    %4 = vector.broadcast %3 : vector<1x1xf32> to vector<1x128xf32>
    %5 = arith.addf %2, %4 : vector<1x128xf32>
    %c0_5 = arith.constant 0 : index
    %c0_6 = arith.constant 0 : index
    %6 = vector.load %arg4[%c0_5, %c0_6] : memref<1x128xf32, #tpu.memory_space<vmem>>, vector<1x128xf32>
    tpu.vector_store %arg4[%c0_5, %c0_6], %5 {strides = array<i32>} : memref<1x128xf32, #tpu.memory_space<vmem>>, vector<1x128xf32>,
    return
  }
  func.func @transform_0(%arg0: i32) -> (i32, i32) {
    %c0_i32 = arith.constant 0 : i32
    %c0_i32_0 = arith.constant 0 : i32
    %c0_i32_1 = arith.constant 0 : i32
    return %c0_i32, %c0_i32_0 : i32, i32
  }
  func.func @transform_1(%arg0: i32) -> (i32, i32) {
    %c0_i32 = arith.constant 0 : i32
    %c0_i32_0 = arith.constant 0 : i32
    return %c0_i32, %arg0 : i32, i32
  }
  func.func @transform_2(%arg0: i32) -> (i32, i32) {
    %c0_i32 = arith.constant 0 : i32
    %c0_i32_0 = arith.constant 0 : i32
    %c0_i32_1 = arith.constant 0 : i32
    return %c0_i32, %c0_i32_0 : i32, i32
  }
  func.func @transform_3(%arg0: i32) -> (i32, i32) {
    %c0_i32 = arith.constant 0 : i32
    %c0_i32_0 = arith.constant 0 : i32
    return %c0_i32, %arg0 : i32, i32
  }
}

module attributes {stable_mosaic.version = 11 : i64} {
  func.func @_matmul_bias_act_kernel(%arg0: i32, %arg1: memref<4x1080xbf16, #tpu.memory_space<vmem>>, %arg2: memref<1080x128xbf16, #tpu.memory_space<vmem>>, %arg3: memref<4x1xf32, #tpu.memory_space<vmem>>, %arg4: memref<4x128xbf16, #tpu.memory_space<vmem>>) attributes {dimension_semantics = [#tpu.dimension_semantics<parallel>], iteration_bounds = array<i64: 1>, scalar_prefetch = 0 : i64, scratch_operands = 0 : i64, tpu.core_type = #tpu.core_type<tc>, window_params = [{pipeline_mode = #tpu.pipeline_mode<synchronous>, transform_indices = @transform_0, window_bounds = array<i64: 4, 1080>}, {transform_indices = @transform_1, window_bounds = array<i64: 1080, 128>}, {pipeline_mode = #tpu.pipeline_mode<synchronous>, transform_indices = @transform_2, window_bounds = array<i64: 4, 1>}, {transform_indices = @transform_3, window_bounds = array<i64: 4, 128>}]} {
    %c0 = arith.constant 0 : index
    %c0_0 = arith.constant 0 : index
    %0 = vector.load %arg1[%c0, %c0_0] : memref<4x1080xbf16, #tpu.memory_space<vmem>>, vector<4x1080xbf16>
    %c0_1 = arith.constant 0 : index
    %c0_2 = arith.constant 0 : index
    %1 = vector.load %arg2[%c0_1, %c0_2] : memref<1080x128xbf16, #tpu.memory_space<vmem>>, vector<1080x128xbf16>
    %cst = arith.constant dense<0.000000e+00> : vector<4x128xf32>
    %2 = tpu.matmul %0, %1, %cst {dimension_numbers = #tpu.dot_dimension_numbers<[1], [0], [0], [1], [0, 0, 1, 1], [], []>} : vector<4x1080xbf16>, vector<1080x128xbf16>, vector<4x128xf32> -> vector<4x128xf32>
    %c0_3 = arith.constant 0 : index
    %c0_4 = arith.constant 0 : index
    %3 = vector.load %arg3[%c0_3, %c0_4] : memref<4x1xf32, #tpu.memory_space<vmem>>, vector<4x1xf32>
    %4 = vector.broadcast %3 : vector<4x1xf32> to vector<4x128xf32>
    %5 = arith.addf %2, %4 : vector<4x128xf32>
    %cst_5 = arith.constant 0.000000e+00 : f32
    %6 = vector.broadcast %cst_5 : f32 to vector<4x128xf32>
    %7 = arith.maximumf %5, %6 : vector<4x128xf32>
    %8 = arith.truncf %7 : vector<4x128xf32> to vector<4x128xbf16>
    %c0_6 = arith.constant 0 : index
    %c0_7 = arith.constant 0 : index
    %9 = vector.load %arg4[%c0_6, %c0_7] : memref<4x128xbf16, #tpu.memory_space<vmem>>, vector<4x128xbf16>
    tpu.vector_store %arg4[%c0_6, %c0_7], %8 {strides = array<i32>} : memref<4x128xbf16, #tpu.memory_space<vmem>>, vector<4x128xbf16>,
    return
  }
  func.func @transform_0(%arg0: i32) -> (i32, i32) {
    %c0_i32 = arith.constant 0 : i32
    %c0_i32_0 = arith.constant 0 : i32
    %c0_i32_1 = arith.constant 0 : i32
    return %c0_i32, %c0_i32_0 : i32, i32
  }
  func.func @transform_1(%arg0: i32) -> (i32, i32) {
    %c0_i32 = arith.constant 0 : i32
    %c0_i32_0 = arith.constant 0 : i32
    return %c0_i32, %arg0 : i32, i32
  }
  func.func @transform_2(%arg0: i32) -> (i32, i32) {
    %c0_i32 = arith.constant 0 : i32
    %c0_i32_0 = arith.constant 0 : i32
    %c0_i32_1 = arith.constant 0 : i32
    return %c0_i32, %c0_i32_0 : i32, i32
  }
  func.func @transform_3(%arg0: i32) -> (i32, i32) {
    %c0_i32 = arith.constant 0 : i32
    %c0_i32_0 = arith.constant 0 : i32
    return %c0_i32, %arg0 : i32, i32
  }
}

</mosaic_0001>

<llo_original>
// kernel: unet_sim3d_srd2.10
$region0: #{unet_sim3d_srd2.10}
  #allocation0 [shape = 'u32[]', space=smem, size = 0x4, offset = 0x4, fixed_abs, tag = 'smem constant byte address 0x4 - core index']
  #allocation1 [shape = 'u32[144,128]{1,0:T(1,128)}', space=vmem, size = 0x12000, scoped, tag = 'internal scratch']
  %s0 = inlined_call_operand.vmem [shape: bf16[16,27], index: 0, kind: input, shape index: {}]
  %s1 = inlined_call_operand.vmem [shape: bf16[27,1024], index: 1, kind: input, shape index: {}]
  %s2 = inlined_call_operand.vmem [shape: f32[16,1], index: 2, kind: input, shape index: {}]
  %s3 = inlined_call_operand.vmem [shape: bf16[16,1024], index: 3, kind: output, shape index: {}]
  %s4 = sld [smem:[#allocation0]]
  $region87: #{unet_sim3d_srd2.10} parent=0
    _
  %s6 = ssub.s32 1, %s4
  %s7 = scalar_select 0, %s6, %s4
  $region1: #{unet_sim3d_srd2.10} parent=0
    #allocation2 [shape = 'u8[65536]{0}', space=vmem, size = 0x10000, scoped, tag = 'input window, operand 1']
    #allocation3 [shape = 'u8[32768]{0}', space=vmem, size = 0x8000, scoped, tag = 'output window, operand 0']
    loop: start=0, step=1, limit=4
    $region2: #{unet_sim3d_srd2.10} parent=1 // loop_pre_header
      _
    $region3: #{unet_sim3d_srd2.10} parent=1 // loop_header
      %s9 = sphi 0, %s13
      %p10 = scmp.ge.s32.totalorder %s9, 4
      %s17 = sphi 0, %s17
      %s19 = sphi 0, %s17
      %s20 = sphi 0, %s19
      %s34 = sphi 0, %s20
      %s40 = sphi 0, %s42
      %s43 = sphi 0, %s40
      %s44 = sphi 0, %s43
      %s60 = sphi 0, %s44
      %s64 = sphi 0, %s64
      %s66 = sphi 0, %s64
      %s67 = sphi 0, %s66
      %s81 = sphi 0, %s67
      %s87 = sphi 0, %s89
      %s90 = sphi 0, %s87
      %s91 = sphi 0, %s90
      %s107 = sphi 0, %s91
    $region4: #{unet_sim3d_srd2.10} parent=1 // loop_header_branch
      %12 = sbr.rel (%p10) target = $region8
    $region5: #{unet_sim3d_srd2.10} parent=1 // loop_body
      %s14 = ssub.s32 %s9, 1
      %s15 = ssub.s32 %s9, 2
      %s16 = sadd.s32 %s9, 1
      %s18 = sadd.s32 %s17, 1
      %p21 = scmp.eq.s32.totalorder %s9, 1
      %p22 = scmp.ne.s32.totalorder %s17, %s19
      %p23 = scmp.eq.s32.totalorder %s9, 0
      %p24 = por %p22, %p23
      %p25 = scmp.ne.s32.totalorder %s17, %s19
      %p26 = scmp.eq.s32.totalorder %s14, 1
      %p27 = por %p25, %p26
      %p28 = scmp.ne.s32.totalorder %s19, %s20
      %p29 = scmp.eq.s32.totalorder %s14, 0
      %p30 = por %p28, %p29
      %p31 = scmp.ne.s32.totalorder %s19, %s20
      %p32 = scmp.eq.s32.totalorder %s15, 1
      %p33 = por %p31, %p32
      %p35 = scmp.ne.s32.totalorder %s20, %s34
      %p36 = scmp.eq.s32.totalorder %s15, 0
      %p37 = por %p35, %p36
      %s38 = ssub.s32 %s9, %s16
      %p39 = scmp.eq.s32.totalorder %s38, 0
      %s41 = sadd.s32 %s40, 1
      %s42 = scalar_select %p39, %s40, %s41
      %p45 = pneg %p39
      %p46 = scmp.eq.s32.totalorder %s9, 1
      %p47 = por %p45, %p46
      %p48 = scmp.ne.s32.totalorder %s40, %s43
      %p49 = scmp.eq.s32.totalorder %s9, 0
      %p50 = por %p48, %p49
      %p51 = scmp.ne.s32.totalorder %s40, %s43
      %p52 = scmp.eq.s32.totalorder %s14, 1
      %p53 = por %p51, %p52
      %p54 = scmp.ne.s32.totalorder %s43, %s44
      %p55 = scmp.eq.s32.totalorder %s14, 0
      %p56 = por %p54, %p55
      %p57 = scmp.ne.s32.totalorder %s43, %s44
      %p58 = scmp.eq.s32.totalorder %s15, 1
      %p59 = por %p57, %p58
      %p61 = scmp.ne.s32.totalorder %s44, %s60
      %p62 = scmp.eq.s32.totalorder %s15, 0
      %p63 = por %p61, %p62
      %s65 = sadd.s32 %s64, 1
      %p68 = scmp.eq.s32.totalorder %s9, 1
      %p69 = scmp.ne.s32.totalorder %s64, %s66
      %p70 = scmp.eq.s32.totalorder %s9, 0
      %p71 = por %p69, %p70
      %p72 = scmp.ne.s32.totalorder %s64, %s66
      %p73 = scmp.eq.s32.totalorder %s14, 1
      %p74 = por %p72, %p73
      %p75 = scmp.ne.s32.totalorder %s66, %s67
      %p76 = scmp.eq.s32.totalorder %s14, 0
      %p77 = por %p75, %p76
      %p78 = scmp.ne.s32.totalorder %s66, %s67
      %p79 = scmp.eq.s32.totalorder %s15, 1
      %p80 = por %p78, %p79
      %p82 = scmp.ne.s32.totalorder %s67, %s81
      %p83 = scmp.eq.s32.totalorder %s15, 0
      %p84 = por %p82, %p83
      %s85 = ssub.s32 %s9, %s16
      %p86 = scmp.eq.s32.totalorder %s85, 0
      %s88 = sadd.s32 %s87, 1
      %s89 = scalar_select %p86, %s87, %s88
      %p92 = pneg %p86
      %p93 = scmp.eq.s32.totalorder %s9, 1
      %p94 = por %p92, %p93
      %p95 = scmp.ne.s32.totalorder %s87, %s90
      %p96 = scmp.eq.s32.totalorder %s9, 0
      %p97 = por %p95, %p96
      %p98 = scmp.ne.s32.totalorder %s87, %s90
      %p99 = scmp.eq.s32.totalorder %s14, 1
      %p100 = por %p98, %p99
      %p101 = scmp.ne.s32.totalorder %s90, %s91
      %p102 = scmp.eq.s32.totalorder %s14, 0
      %p103 = por %p101, %p102
      %p104 = scmp.ne.s32.totalorder %s90, %s91
      %p105 = scmp.eq.s32.totalorder %s15, 1
      %p106 = por %p104, %p105
      %p108 = scmp.ne.s32.totalorder %s91, %s107
      %p109 = scmp.eq.s32.totalorder %s15, 0
      %p110 = por %p108, %p109
      %p111 = scmp.le.s32.totalorder 1, %s9
      %p112 = scmp.lt.s32.totalorder %s9, 3
      %p113 = pnand %p111, %p112
      %p114 = pneg %p113
      // Predicated region
      $region9: #{unet_sim3d_srd2.10} parent=5 // pred_check
        _
      $region10: #{unet_sim3d_srd2.10} parent=5 // pred_check_branch
        %116 = sbr.rel (%p113) target = $region12
      $region11: #{unet_sim3d_srd2.10} parent=5 // pred_region
        %s117 = ssub.s32 %s9, 1
        // Predicated region
        $region13: #{unet_sim3d_srd2.10} parent=11 // pred_check
          %p118 = pneg %p30
        $region14: #{unet_sim3d_srd2.10} parent=11 // pred_check_branch
          %120 = sbr.rel (%p118) target = $region16
        $region15: #{unet_sim3d_srd2.10} parent=11 // pred_region
          _
        $region16: #{unet_sim3d_srd2.10} parent=11 // pred_fallthru
          _
        // Predicated region
        $region17: #{unet_sim3d_srd2.10} parent=11 // pred_check
          %p121 = pneg %p77
        $region18: #{unet_sim3d_srd2.10} parent=11 // pred_check_branch
          %123 = sbr.rel (%p121) target = $region20
        $region19: #{unet_sim3d_srd2.10} parent=11 // pred_region
          _
        $region20: #{unet_sim3d_srd2.10} parent=11 // pred_fallthru
          _
      $region12: #{unet_sim3d_srd2.10} parent=5 // pred_fallthru
        _
      %p124 = scmp.lt.s32.totalorder %s9, 2
      // Predicated region
      $region21: #{unet_sim3d_srd2.10} parent=5 // pred_check
        %p125 = pneg %p124
      $region22: #{unet_sim3d_srd2.10} parent=5 // pred_check_branch
        %127 = sbr.rel (%p125) target = $region24
      $region23: #{unet_sim3d_srd2.10} parent=5 // pred_region
        // Predicated region
        $region25: #{unet_sim3d_srd2.10} parent=23 // pred_check
          %p128 = pneg %p50
        $region26: #{unet_sim3d_srd2.10} parent=23 // pred_check_branch
          %130 = sbr.rel (%p128) target = $region28
        $region27: #{unet_sim3d_srd2.10} parent=23 // pred_region
          %s131 = sand.u32 %s40, 1
          %s132 = sand.u32 %s40, 1
          %s133 = smul.addr %s132, 64
          %s134 = scalar_lea.vmem [#allocation2], %s133
          %s135 = smul.u32 4, %s9
          %s136 = smul.addr %s135, 4
          %s137 = scalar_lea.vmem %s1, %s136
          // Predicated region
          $region29: #{unet_sim3d_srd2.10} parent=27 // pred_check
            _
          $region30: #{unet_sim3d_srd2.10} parent=27 // pred_check_branch
            %139 = sbr.rel (0) target = $region32
          $region31: #{unet_sim3d_srd2.10} parent=27 // pred_region
            // Predicated region
            $region33: #{unet_sim3d_srd2.10} parent=31 // pred_check
              _
            $region34: #{unet_sim3d_srd2.10} parent=31 // pred_check_branch
              %141 = sbr.rel (0) target = $region36
            $region35: #{unet_sim3d_srd2.10} parent=31 // pred_region
              loop: start=0, step=1, limit=1
              $region37: #{unet_sim3d_srd2.10} parent=35 // loop_pre_header
                _
              $region38: #{unet_sim3d_srd2.10} parent=35 // loop_header
                %s143 = sphi 0, %s147
                %p144 = scmp.ge.s32.totalorder %s143, 1
                %s148 = sphi %s137, %s137
                %s149 = sphi %s134, %s134
              $region39: #{unet_sim3d_srd2.10} parent=35 // loop_header_branch
                %146 = sbr.rel (%p144) target = $region43
              $region40: #{unet_sim3d_srd2.10} parent=35 // loop_body
                %v150 = vld [vmem:[%s148] sm:$0xff]
                %151 = vst [vmem:[%s149] sm:$0xff] %v150
                %v152 = vld [vmem:[%s148 + $0x8] sm:$0xff]
                %153 = vst [vmem:[%s149 + $0x8] sm:$0xff] %v152
                %v154 = vld [vmem:[%s148 + $0x20] sm:$0xff]
                %155 = vst [vmem:[%s149 + $0x10] sm:$0xff] %v154
                %v156 = vld [vmem:[%s148 + $0x28] sm:$0xff]
                %157 = vst [vmem:[%s149 + $0x18] sm:$0xff] %v156
                %v158 = vld [vmem:[%s148 + $0x40] sm:$0xff]
                %159 = vst [vmem:[%s149 + $0x20] sm:$0xff] %v158
                %v160 = vld [vmem:[%s148 + $0x48] sm:$0xff]
                %161 = vst [vmem:[%s149 + $0x28] sm:$0xff] %v160
                %v162 = vld [vmem:[%s148 + $0x60] sm:$0xff]
                %163 = vst [vmem:[%s149 + $0x30] sm:$0xff] %v162
                %v164 = vld [vmem:[%s148 + $0x68] sm:$0xff]
                %165 = vst [vmem:[%s149 + $0x38] sm:$0xff] %v164
              $region41: #{unet_sim3d_srd2.10} parent=35 // loop_footer
                %s147 = sadd.s32 1, %s143
              $region42: #{unet_sim3d_srd2.10} parent=35 // loop_footer_branch
                %142 = sbr.rel target = $region38
              $region43: #{unet_sim3d_srd2.10} parent=35 // loop_exit
                _
            $region36: #{unet_sim3d_srd2.10} parent=31 // pred_fallthru
              _
            // Predicated region
            $region44: #{unet_sim3d_srd2.10} parent=31 // pred_check
              _
            $region45: #{unet_sim3d_srd2.10} parent=31 // pred_check_branch
              %167 = sbr.rel target = $region47
            $region46: #{unet_sim3d_srd2.10} parent=31 // pred_region
              _
            $region47: #{unet_sim3d_srd2.10} parent=31 // pred_fallthru
              _
          $region32: #{unet_sim3d_srd2.10} parent=27 // pred_fallthru
            _
          %168 = vnop
        $region28: #{unet_sim3d_srd2.10} parent=23 // pred_fallthru
          _
      $region24: #{unet_sim3d_srd2.10} parent=5 // pred_fallthru
        _
      %p169 = scmp.le.s32.totalorder 1, %s9
      %p170 = scmp.lt.s32.totalorder %s9, 3
      %p171 = pnand %p169, %p170
      %p172 = pneg %p171
      // Predicated region
      $region48: #{unet_sim3d_srd2.10} parent=5 // pred_check
        _
      $region49: #{unet_sim3d_srd2.10} parent=5 // pred_check_branch
        %174 = sbr.rel (%p171) target = $region51
      $region50: #{unet_sim3d_srd2.10} parent=5 // pred_region
        %s175 = ssub.s32 %s9, 1
        %s176 = sand.u32 %s43, 1
        %s177 = sand.u32 %s43, 1
        %s178 = smul.addr %s177, 64
        %s179 = scalar_lea.vmem [#allocation2], %s178
        // Predicated region
        $region52: #{unet_sim3d_srd2.10} parent=50 // pred_check
          %p180 = pneg %p56
        $region53: #{unet_sim3d_srd2.10} parent=50 // pred_check_branch
          %182 = sbr.rel (%p180) target = $region55
        $region54: #{unet_sim3d_srd2.10} parent=50 // pred_region
          _
        $region55: #{unet_sim3d_srd2.10} parent=50 // pred_fallthru
          _
        %p183 = pneg %p30
        %p184 = pneg %p27
        %s185 = sand.u32 %s43, 1
        %s186 = sand.u32 %s43, 1
        %s187 = smul.addr %s186, 64
        %s188 = scalar_lea.vmem [#allocation2], %s187
        %p189 = pneg %p56
        %p190 = pneg %p53
        %p191 = pneg %p77
        %p192 = pneg %p74
        %p193 = pneg %p103
        %p194 = pneg %p100
        %s195 = sand.u32 %s90, 1
        %s196 = sand.u32 %s90, 1
        %s197 = smul.addr %s196, 32
        %s198 = scalar_lea.vmem [#allocation3], %s197
        %s199 = smul.u32 4, %s14
        %s200 = smul.u32 4, %s14
        %v202 = vld [vmem:[%s0] sm:$0xf]
        %v203 = vld [vmem:[%s0 + $0x4] sm:$0xf]
        %v204 = vld [vmem:[%s179] sm:$0xff]
        %v205 = vld [vmem:[%s179 + $0x8] sm:$0xff]
        %v206 = vld [vmem:[%s179 + $0x10] sm:$0xff]
        %v207 = vld [vmem:[%s179 + $0x18] sm:$0xff]
        %v208 = vld [vmem:[%s179 + $0x20] sm:$0xff]
        %v209 = vld [vmem:[%s179 + $0x28] sm:$0xff]
        %v210 = vld [vmem:[%s179 + $0x30] sm:$0x33]
        %v211 = vld [vmem:[%s179 + $0x38] sm:$0x33]
        %v212 = vld [vmem:[%s2] sm:$0xff]
        %v213 = vld [vmem:[%s2 + $0x8] sm:$0xff]
        %215 = vset.pattern.permute.xlu0 0
        %216 = vperm.xlu0 %215, %v212
        %v217 = vpop.permute.xlu0 %216
        %220 = vset.pattern.permute.xlu0 0
        %221 = vperm.xlu0 %220, %v213
        %v222 = vpop.permute.xlu0 %221
        %v226 = vunpack.c.l.b16 %v202
        %v227 = vunpack.c.l.b16 %v203
        %v228 = vpack.c.b16 %v227, %v226
        %v237 = vunpack.c.l.b16 %v204
        %v238 = vunpack.c.h.b16 %v204
        %v239 = vunpack.c.l.b16 %v205
        %v240 = vunpack.c.h.b16 %v205
        %v241 = vunpack.c.l.b16 %v206
        %v242 = vunpack.c.h.b16 %v206
        %v243 = vunpack.c.l.b16 %v207
        %v244 = vunpack.c.h.b16 %v207
        %v245 = vunpack.c.l.b16 %v208
        %v246 = vunpack.c.h.b16 %v208
        %v247 = vunpack.c.l.b16 %v209
        %v248 = vunpack.c.h.b16 %v209
        %v249 = vunpack.c.l.b16 %v210
        %v250 = vunpack.c.h.b16 %v210
        %v251 = vunpack.c.l.b16 %v211
        %v252 = vunpack.c.h.b16 %v211
        %v253 = vpack.c.b16 %v241, %v237
        %v254 = vpack.c.b16 %v242, %v238
        %v255 = vpack.c.b16 %v243, %v239
        %v256 = vpack.c.b16 %v244, %v240
        %v257 = vpack.c.b16 %v249, %v245
        %v258 = vpack.c.b16 %v250, %v246
        %v259 = vpack.c.b16 %v251, %v247
        %v260 = vpack.c.b16 %v252, %v248
        %vm265 = vcmask 220160
        %v267 = vsel %vm265, %v228, 0
        %vm269 = vcmask 1044480
        %vm270 = vcmask 1045504
        %v271 = vsel %vm269, 4294967295, 65535
        %v272 = vsel %vm270, %v271, 0
        %v274 = vand.u32 %v257, %v272
        %v277 = vand.u32 %v258, %v272
        %v280 = vand.u32 %v259, %v272
        %v283 = vand.u32 %v260, %v272
        %285 = vmatprep.subr.bf16.mxu0 %v254
        %286 = vmatpush1.bf16.msra.mxu0 %v253
        %287 = vmatprep.subr.bf16.mxu0 %v277
        %288 = vmatpush1.bf16.msra.mxu0 %v274
        %289 = vmatprep.subr.bf16.mxu0 0
        %290 = vmatpush1.bf16.msra.mxu0 0
        %291 = vmatprep.subr.bf16.mxu0 0
        %292 = vmatpush1.bf16.msra.mxu0 0
        %293 = vmatprep.subr.bf16.mxu0 0
        %294 = vmatpush1.bf16.msra.mxu0 0
        %295 = vmatprep.subr.bf16.mxu0 0
        %296 = vmatpush1.bf16.msra.mxu0 0
        %297 = vmatprep.subr.bf16.mxu0 0
        %298 = vmatpush1.bf16.msra.mxu0 0
        %299 = vmatprep.subr.bf16.mxu0 0
        %300 = vmatpush1.bf16.msra.mxu0 0
        %301 = vmatprep.subr.bf16.mxu0 0
        %302 = vmatpush1.bf16.msra.mxu0 0
        %303 = vmatprep.subr.bf16.mxu0 0
        %304 = vmatpush1.bf16.msra.mxu0 0
        %305 = vmatprep.subr.bf16.mxu0 0
        %306 = vmatpush1.bf16.msra.mxu0 0
        %307 = vmatprep.subr.bf16.mxu0 0
        %308 = vmatpush1.bf16.msra.mxu0 0
        %309 = vmatprep.subr.bf16.mxu0 0
        %310 = vmatpush1.bf16.msra.mxu0 0
        %311 = vmatprep.subr.bf16.mxu0 0
        %312 = vmatpush1.bf16.msra.mxu0 0
        %313 = vmatprep.subr.bf16.mxu0 0
        %314 = vmatpush1.bf16.msra.mxu0 0
        %315 = vmatprep.subr.bf16.mxu0 0
        %316 = vmatpush1.bf16.msra.mxu0 0
        %317 = vmatprep.mubr.bf16.mxu0 0
        %318 = vmatmul.mubr.bf16.gmra.mrb[0].mxu0 %v267
        %v319 = vpop.f32.mrb[0].mxu0
        %v320 = vadd.f32 %v217, %v319
        %v321 = vpop.f32.mrb[0].mxu0
        %v322 = vadd.f32 %v217, %v321
        %v323 = vpop.f32.mrb[0].mxu0
        %v324 = vadd.f32 %v222, %v323
        %v325 = vpop.f32.mrb[0].mxu0
        %v326 = vadd.f32 %v222, %v325
        %327 = vdwg.mxu0
        %328 = vmatprep.subr.bf16.mxu0 %v256
        %329 = vmatpush1.bf16.msra.mxu0 %v255
        %330 = vmatprep.subr.bf16.mxu0 %v283
        %331 = vmatpush1.bf16.msra.mxu0 %v280
        %332 = vmatprep.subr.bf16.mxu0 0
        %333 = vmatpush1.bf16.msra.mxu0 0
        %334 = vmatprep.subr.bf16.mxu0 0
        %335 = vmatpush1.bf16.msra.mxu0 0
        %336 = vmatprep.subr.bf16.mxu0 0
        %337 = vmatpush1.bf16.msra.mxu0 0
        %338 = vmatprep.subr.bf16.mxu0 0
        %339 = vmatpush1.bf16.msra.mxu0 0
        %340 = vmatprep.subr.bf16.mxu0 0
        %341 = vmatpush1.bf16.msra.mxu0 0
        %342 = vmatprep.subr.bf16.mxu0 0
        %343 = vmatpush1.bf16.msra.mxu0 0
        %344 = vmatprep.subr.bf16.mxu0 0
        %345 = vmatpush1.bf16.msra.mxu0 0
        %346 = vmatprep.subr.bf16.mxu0 0
        %347 = vmatpush1.bf16.msra.mxu0 0
        %348 = vmatprep.subr.bf16.mxu0 0
        %349 = vmatpush1.bf16.msra.mxu0 0
        %350 = vmatprep.subr.bf16.mxu0 0
        %351 = vmatpush1.bf16.msra.mxu0 0
        %352 = vmatprep.subr.bf16.mxu0 0
        %353 = vmatpush1.bf16.msra.mxu0 0
        %354 = vmatprep.subr.bf16.mxu0 0
        %355 = vmatpush1.bf16.msra.mxu0 0
        %356 = vmatprep.subr.bf16.mxu0 0
        %357 = vmatpush1.bf16.msra.mxu0 0
        %358 = vmatprep.subr.bf16.mxu0 0
        %359 = vmatpush1.bf16.msra.mxu0 0
        %360 = vmatprep.mubr.bf16.mxu0 0
        %361 = vmatmul.mubr.bf16.gmra.mrb[0].mxu0 %v267
        %v362 = vpop.f32.mrb[0].mxu0
        %v363 = vadd.f32 %v217, %v362
        %v364 = vpop.f32.mrb[0].mxu0
        %v365 = vadd.f32 %v217, %v364
        %v366 = vpop.f32.mrb[0].mxu0
        %v367 = vadd.f32 %v222, %v366
        %v368 = vpop.f32.mrb[0].mxu0
        %v369 = vadd.f32 %v222, %v368
        %370 = vdwg.mxu0
        %v371 = vmax.f32 %v320, 0.0
        %v372 = vmax.f32 %v322, 0.0
        %v373 = vmax.f32 %v363, 0.0
        %v374 = vmax.f32 %v365, 0.0
        %v375 = vmax.f32 %v324, 0.0
        %v376 = vmax.f32 %v326, 0.0
        %v377 = vmax.f32 %v367, 0.0
        %v378 = vmax.f32 %v369, 0.0
        %v379 = vpack.c.bf16 %v375, %v371
        %v380 = vpack.c.bf16 %v376, %v372
        %v381 = vpack.c.bf16 %v377, %v373
        %v382 = vpack.c.bf16 %v378, %v374
        %v387 = vunpack.c.l.b16 %v379
        %v388 = vunpack.c.l.b16 %v380
        %v389 = vunpack.c.l.b16 %v381
        %v390 = vunpack.c.l.b16 %v382
        %v391 = vunpack.c.h.b16 %v379
        %v392 = vunpack.c.h.b16 %v380
        %v393 = vunpack.c.h.b16 %v381
        %v394 = vunpack.c.h.b16 %v382
        %v395 = vpack.c.b16 %v388, %v387
        %v396 = vpack.c.b16 %v390, %v389
        %v397 = vpack.c.b16 %v392, %v391
        %v398 = vpack.c.b16 %v394, %v393
        %403 = vst [vmem:[%s198] sm:$0xff] %v395
        %404 = vst [vmem:[%s198 + $0x8] sm:$0xff] %v396
        %405 = vst [vmem:[%s198 + $0x10] sm:$0xff] %v397
        %406 = vst [vmem:[%s198 + $0x18] sm:$0xff] %v398
        %s407 = sand.u32 %s90, 1
        %s408 = sand.u32 %s90, 1
        %s409 = smul.addr %s408, 32
        %s410 = scalar_lea.vmem [#allocation3], %s409
        // Predicated region
        $region56: #{unet_sim3d_srd2.10} parent=50 // pred_check
          %p411 = pneg %p100
        $region57: #{unet_sim3d_srd2.10} parent=50 // pred_check_branch
          %413 = sbr.rel (%p411) target = $region59
        $region58: #{unet_sim3d_srd2.10} parent=50 // pred_region
          %s414 = smul.u32 4, %s14
          %s415 = smul.addr %s414, 4
          %s416 = scalar_lea.vmem %s3, %s415
          // Predicated region
          $region60: #{unet_sim3d_srd2.10} parent=58 // pred_check
            _
          $region61: #{unet_sim3d_srd2.10} parent=58 // pred_check_branch
            %418 = sbr.rel (0) target = $region63
          $region62: #{unet_sim3d_srd2.10} parent=58 // pred_region
            // Predicated region
            $region64: #{unet_sim3d_srd2.10} parent=62 // pred_check
              _
            $region65: #{unet_sim3d_srd2.10} parent=62 // pred_check_branch
              %420 = sbr.rel (0) target = $region67
            $region66: #{unet_sim3d_srd2.10} parent=62 // pred_region
              loop: start=0, step=1, limit=1
              $region68: #{unet_sim3d_srd2.10} parent=66 // loop_pre_header
                _
              $region69: #{unet_sim3d_srd2.10} parent=66 // loop_header
                %s422 = sphi 0, %s426
                %p423 = scmp.ge.s32.totalorder %s422, 1
                %s427 = sphi %s410, %s410
                %s428 = sphi %s416, %s416
              $region70: #{unet_sim3d_srd2.10} parent=66 // loop_header_branch
                %425 = sbr.rel (%p423) target = $region74
              $region71: #{unet_sim3d_srd2.10} parent=66 // loop_body
                %v429 = vld [vmem:[%s427] sm:$0xff]
                %430 = vst [vmem:[%s428] sm:$0xff] %v429
                %v431 = vld [vmem:[%s427 + $0x8] sm:$0xff]
                %432 = vst [vmem:[%s428 + $0x8] sm:$0xff] %v431
                %v433 = vld [vmem:[%s427 + $0x10] sm:$0xff]
                %434 = vst [vmem:[%s428 + $0x20] sm:$0xff] %v433
                %v435 = vld [vmem:[%s427 + $0x18] sm:$0xff]
                %436 = vst [vmem:[%s428 + $0x28] sm:$0xff] %v435
              $region72: #{unet_sim3d_srd2.10} parent=66 // loop_footer
                %s426 = sadd.s32 1, %s422
              $region73: #{unet_sim3d_srd2.10} parent=66 // loop_footer_branch
                %421 = sbr.rel target = $region69
              $region74: #{unet_sim3d_srd2.10} parent=66 // loop_exit
                _
            $region67: #{unet_sim3d_srd2.10} parent=62 // pred_fallthru
              _
            // Predicated region
            $region75: #{unet_sim3d_srd2.10} parent=62 // pred_check
              _
            $region76: #{unet_sim3d_srd2.10} parent=62 // pred_check_branch
              %438 = sbr.rel target = $region78
            $region77: #{unet_sim3d_srd2.10} parent=62 // pred_region
              _
            $region78: #{unet_sim3d_srd2.10} parent=62 // pred_fallthru
              _
          $region63: #{unet_sim3d_srd2.10} parent=58 // pred_fallthru
            _
          %439 = vnop
        $region59: #{unet_sim3d_srd2.10} parent=50 // pred_fallthru
          _
      $region51: #{unet_sim3d_srd2.10} parent=5 // pred_fallthru
        _
      %p440 = scmp.le.s32.totalorder 2, %s9
      // Predicated region
      $region79: #{unet_sim3d_srd2.10} parent=5 // pred_check
        %p441 = pneg %p440
      $region80: #{unet_sim3d_srd2.10} parent=5 // pred_check_branch
        %443 = sbr.rel (%p441) target = $region82
      $region81: #{unet_sim3d_srd2.10} parent=5 // pred_region
        %s444 = ssub.s32 %s9, 2
        // Predicated region
        $region83: #{unet_sim3d_srd2.10} parent=81 // pred_check
          %p445 = pneg %p106
        $region84: #{unet_sim3d_srd2.10} parent=81 // pred_check_branch
          %447 = sbr.rel (%p445) target = $region86
        $region85: #{unet_sim3d_srd2.10} parent=81 // pred_region
          %s448 = sand.u32 %s91, 1
          %s449 = sand.u32 %s91, 1
          %s450 = smul.addr %s449, 32
          %s451 = scalar_lea.vmem [#allocation3], %s450
        $region86: #{unet_sim3d_srd2.10} parent=81 // pred_fallthru
          _
      $region82: #{unet_sim3d_srd2.10} parent=5 // pred_fallthru
        _
    $region6: #{unet_sim3d_srd2.10} parent=1 // loop_footer
      %s13 = sadd.s32 1, %s9
    $region7: #{unet_sim3d_srd2.10} parent=1 // loop_footer_branch
      %8 = sbr.rel target = $region3
    $region8: #{unet_sim3d_srd2.10} parent=1 // loop_exit
      _

// kernel: unet_sim3d_srd2.11
$region0: #{unet_sim3d_srd2.11}
  #allocation0 [shape = 'u32[]', space=smem, size = 0x4, offset = 0x4, fixed_abs, tag = 'smem constant byte address 0x4 - core index']
  #allocation1 [shape = 'u32[144,128]{1,0:T(1,128)}', space=vmem, size = 0x12000, scoped, tag = 'internal scratch']
  %s0 = inlined_call_operand.vmem [shape: bf16[32,432], index: 0, kind: input, shape index: {}]
  %s1 = inlined_call_operand.vmem [shape: bf16[432,128], index: 1, kind: input, shape index: {}]
  %s2 = inlined_call_operand.vmem [shape: f32[32,1], index: 2, kind: input, shape index: {}]
  %s3 = inlined_call_operand.vmem [shape: bf16[32,128], index: 3, kind: output, shape index: {}]
  %s4 = sld [smem:[#allocation0]]
  $region22: #{unet_sim3d_srd2.11} parent=0
    _
  %s6 = ssub.s32 1, %s4
  %s7 = scalar_select 0, %s6, %s4
  // Predicated region
  $region2: #{unet_sim3d_srd2.11} parent=0 // pred_check
    _
  $region3: #{unet_sim3d_srd2.11} parent=0 // pred_check_branch
    %9 = sbr.rel (0) target = $region5
  $region4: #{unet_sim3d_srd2.11} parent=0 // pred_region
    _
  $region5: #{unet_sim3d_srd2.11} parent=0 // pred_fallthru
    _
  // Predicated region
  $region6: #{unet_sim3d_srd2.11} parent=0 // pred_check
    _
  $region7: #{unet_sim3d_srd2.11} parent=0 // pred_check_branch
    %11 = sbr.rel (0) target = $region9
  $region8: #{unet_sim3d_srd2.11} parent=0 // pred_region
    _
  $region9: #{unet_sim3d_srd2.11} parent=0 // pred_fallthru
    _
  // Predicated region
  $region10: #{unet_sim3d_srd2.11} parent=0 // pred_check
    _
  $region11: #{unet_sim3d_srd2.11} parent=0 // pred_check_branch
    %13 = sbr.rel (0) target = $region13
  $region12: #{unet_sim3d_srd2.11} parent=0 // pred_region
    _
  $region13: #{unet_sim3d_srd2.11} parent=0 // pred_fallthru
    _
  %v15 = vld [vmem:[%s0] sm:$0xff]
  %v16 = vld [vmem:[%s0 + $0x8] sm:$0xff]
  %v17 = vld [vmem:[%s0 + $0x10] sm:$0xff]
  %v18 = vld [vmem:[%s0 + $0x18] sm:$0xff]
  %v19 = vld [vmem:[%s0 + $0x20] sm:$0xff]
  %v20 = vld [vmem:[%s0 + $0x28] sm:$0xff]
  %v21 = vld [vmem:[%s0 + $0x30] sm:$0xff]
  %v22 = vld [vmem:[%s0 + $0x38] sm:$0xff]
  %v23 = vld [vmem:[%s1] sm:$0xf]
  %v24 = vld [vmem:[%s1 + $0x4] sm:$0xf]
  %v25 = vld [vmem:[%s1 + $0x8] sm:$0xf]
  %v26 = vld [vmem:[%s1 + $0xc] sm:$0xf]
  %v27 = vld [vmem:[%s1 + $0x10] sm:$0xf]
  %v28 = vld [vmem:[%s1 + $0x14] sm:$0xf]
  %v29 = vld [vmem:[%s1 + $0x18] sm:$0xf]
  %v30 = vld [vmem:[%s1 + $0x1c] sm:$0xf]
  %v31 = vld [vmem:[%s1 + $0x20] sm:$0xf]
  %v32 = vld [vmem:[%s1 + $0x24] sm:$0xf]
  %v33 = vld [vmem:[%s1 + $0x28] sm:$0xf]
  %v34 = vld [vmem:[%s1 + $0x2c] sm:$0xf]
  %v35 = vld [vmem:[%s1 + $0x30] sm:$0xf]
  %v36 = vld [vmem:[%s1 + $0x34] sm:$0xf]
  %v37 = vld [vmem:[%s1 + $0x38] sm:$0xf]
  %v38 = vld [vmem:[%s1 + $0x3c] sm:$0xf]
  %v39 = vld [vmem:[%s1 + $0x40] sm:$0xf]
  %v40 = vld [vmem:[%s1 + $0x44] sm:$0xf]
  %v41 = vld [vmem:[%s1 + $0x48] sm:$0xf]
  %v42 = vld [vmem:[%s1 + $0x4c] sm:$0xf]
  %v43 = vld [vmem:[%s1 + $0x50] sm:$0xf]
  %v44 = vld [vmem:[%s1 + $0x54] sm:$0xf]
  %v45 = vld [vmem:[%s1 + $0x58] sm:$0xf]
  %v46 = vld [vmem:[%s1 + $0x5c] sm:$0xf]
  %v47 = vld [vmem:[%s1 + $0x60] sm:$0xf]
  %v48 = vld [vmem:[%s1 + $0x64] sm:$0xf]
  %v49 = vld [vmem:[%s1 + $0x68] sm:$0xf]
  %v50 = vld [vmem:[%s1 + $0x6c] sm:$0xf]
  %v51 = vld [vmem:[%s1 + $0x70] sm:$0xf]
  %v52 = vld [vmem:[%s1 + $0x74] sm:$0xf]
  %v53 = vld [vmem:[%s1 + $0x78] sm:$0xf]
  %v54 = vld [vmem:[%s1 + $0x7c] sm:$0xf]
  %v55 = vld [vmem:[%s1 + $0x80] sm:$0xf]
  %v56 = vld [vmem:[%s1 + $0x84] sm:$0xf]
  %v57 = vld [vmem:[%s1 + $0x88] sm:$0xf]
  %v58 = vld [vmem:[%s1 + $0x8c] sm:$0xf]
  %v59 = vld [vmem:[%s1 + $0x90] sm:$0xf]
  %v60 = vld [vmem:[%s1 + $0x94] sm:$0xf]
  %v61 = vld [vmem:[%s1 + $0x98] sm:$0xf]
  %v62 = vld [vmem:[%s1 + $0x9c] sm:$0xf]
  %v63 = vld [vmem:[%s1 + $0xa0] sm:$0xf]
  %v64 = vld [vmem:[%s1 + $0xa4] sm:$0xf]
  %v65 = vld [vmem:[%s1 + $0xa8] sm:$0xf]
  %v66 = vld [vmem:[%s1 + $0xac] sm:$0xf]
  %v67 = vld [vmem:[%s1 + $0xb0] sm:$0xf]
  %v68 = vld [vmem:[%s1 + $0xb4] sm:$0xf]
  %v69 = vld [vmem:[%s1 + $0xb8] sm:$0xf]
  %v70 = vld [vmem:[%s1 + $0xbc] sm:$0xf]
  %v71 = vld [vmem:[%s1 + $0xc0] sm:$0xf]
  %v72 = vld [vmem:[%s1 + $0xc4] sm:$0xf]
  %v73 = vld [vmem:[%s1 + $0xc8] sm:$0xf]
  %v74 = vld [vmem:[%s1 + $0xcc] sm:$0xf]
  %v75 = vld [vmem:[%s1 + $0xd0] sm:$0xf]
  %v76 = vld [vmem:[%s1 + $0xd4] sm:$0xf]
  %v77 = vld [vmem:[%s2] sm:$0xff]
  %v78 = vld [vmem:[%s2 + $0x8] sm:$0xff]
  %v79 = vld [vmem:[%s2 + $0x10] sm:$0xff]
  %v80 = vld [vmem:[%s2 + $0x18] sm:$0xff]
  %82 = vset.pattern.permute.xlu0 0
  %83 = vperm.xlu0 %82, %v77
  %v84 = vpop.permute.xlu0 %83
  %87 = vset.pattern.permute.xlu0 0
  %88 = vperm.xlu0 %87, %v78
  %v89 = vpop.permute.xlu0 %88
  %92 = vset.pattern.permute.xlu0 0
  %93 = vperm.xlu0 %92, %v79
  %v94 = vpop.permute.xlu0 %93
  %97 = vset.pattern.permute.xlu0 0
  %98 = vperm.xlu0 %97, %v80
  %v99 = vpop.permute.xlu0 %98
  %v109 = vunpack.c.l.b16 %v15
  %v110 = vunpack.c.h.b16 %v15
  %v111 = vunpack.c.l.b16 %v16
  %v112 = vunpack.c.h.b16 %v16
  %v113 = vunpack.c.l.b16 %v17
  %v114 = vunpack.c.h.b16 %v17
  %v115 = vunpack.c.l.b16 %v18
  %v116 = vunpack.c.h.b16 %v18
  %v117 = vunpack.c.l.b16 %v19
  %v118 = vunpack.c.h.b16 %v19
  %v119 = vunpack.c.l.b16 %v20
  %v120 = vunpack.c.h.b16 %v20
  %v121 = vunpack.c.l.b16 %v21
  %v122 = vunpack.c.h.b16 %v21
  %v123 = vunpack.c.l.b16 %v22
  %v124 = vunpack.c.h.b16 %v22
  %v125 = vpack.c.b16 %v113, %v109
  %v126 = vpack.c.b16 %v114, %v110
  %v127 = vpack.c.b16 %v115, %v111
  %v128 = vpack.c.b16 %v116, %v112
  %v129 = vpack.c.b16 %v121, %v117
  %v130 = vpack.c.b16 %v122, %v118
  %v131 = vpack.c.b16 %v123, %v119
  %v132 = vpack.c.b16 %v124, %v120
  %v193 = vunpack.c.l.b16 %v23
  %v194 = vunpack.c.l.b16 %v24
  %v195 = vunpack.c.l.b16 %v25
  %v196 = vunpack.c.l.b16 %v26
  %v197 = vunpack.c.l.b16 %v27
  %v198 = vunpack.c.l.b16 %v28
  %v199 = vunpack.c.l.b16 %v29
  %v200 = vunpack.c.l.b16 %v30
  %v201 = vunpack.c.l.b16 %v31
  %v202 = vunpack.c.l.b16 %v32
  %v203 = vunpack.c.l.b16 %v33
  %v204 = vunpack.c.l.b16 %v34
  %v205 = vunpack.c.l.b16 %v35
  %v206 = vunpack.c.l.b16 %v36
  %v207 = vunpack.c.l.b16 %v37
  %v208 = vunpack.c.l.b16 %v38
  %v209 = vunpack.c.l.b16 %v39
  %v210 = vunpack.c.l.b16 %v40
  %v211 = vunpack.c.l.b16 %v41
  %v212 = vunpack.c.l.b16 %v42
  %v213 = vunpack.c.l.b16 %v43
  %v214 = vunpack.c.l.b16 %v44
  %v215 = vunpack.c.l.b16 %v45
  %v216 = vunpack.c.l.b16 %v46
  %v217 = vunpack.c.l.b16 %v47
  %v218 = vunpack.c.l.b16 %v48
  %v219 = vunpack.c.l.b16 %v49
  %v220 = vunpack.c.l.b16 %v50
  %v221 = vunpack.c.l.b16 %v51
  %v222 = vunpack.c.l.b16 %v52
  %v223 = vunpack.c.l.b16 %v53
  %v224 = vunpack.c.l.b16 %v54
  %v225 = vunpack.c.l.b16 %v55
  %v226 = vunpack.c.l.b16 %v56
  %v227 = vunpack.c.l.b16 %v57
  %v228 = vunpack.c.l.b16 %v58
  %v229 = vunpack.c.l.b16 %v59
  %v230 = vunpack.c.l.b16 %v60
  %v231 = vunpack.c.l.b16 %v61
  %v232 = vunpack.c.l.b16 %v62
  %v233 = vunpack.c.l.b16 %v63
  %v234 = vunpack.c.l.b16 %v64
  %v235 = vunpack.c.l.b16 %v65
  %v236 = vunpack.c.l.b16 %v66
  %v237 = vunpack.c.l.b16 %v67
  %v238 = vunpack.c.l.b16 %v68
  %v239 = vunpack.c.l.b16 %v69
  %v240 = vunpack.c.l.b16 %v70
  %v241 = vunpack.c.l.b16 %v71
  %v242 = vunpack.c.l.b16 %v72
  %v243 = vunpack.c.l.b16 %v73
  %v244 = vunpack.c.l.b16 %v74
  %v245 = vunpack.c.l.b16 %v75
  %v246 = vunpack.c.l.b16 %v76
  %v247 = vpack.c.b16 %v194, %v193
  %v248 = vpack.c.b16 %v196, %v195
  %v249 = vpack.c.b16 %v198, %v197
  %v250 = vpack.c.b16 %v200, %v199
  %v251 = vpack.c.b16 %v202, %v201
  %v252 = vpack.c.b16 %v204, %v203
  %v253 = vpack.c.b16 %v206, %v205
  %v254 = vpack.c.b16 %v208, %v207
  %v255 = vpack.c.b16 %v210, %v209
  %v256 = vpack.c.b16 %v212, %v211
  %v257 = vpack.c.b16 %v214, %v213
  %v258 = vpack.c.b16 %v216, %v215
  %v259 = vpack.c.b16 %v218, %v217
  %v260 = vpack.c.b16 %v220, %v219
  %v261 = vpack.c.b16 %v222, %v221
  %v262 = vpack.c.b16 %v224, %v223
  %v263 = vpack.c.b16 %v226, %v225
  %v264 = vpack.c.b16 %v228, %v227
  %v265 = vpack.c.b16 %v230, %v229
  %v266 = vpack.c.b16 %v232, %v231
  %v267 = vpack.c.b16 %v234, %v233
  %v268 = vpack.c.b16 %v236, %v235
  %v269 = vpack.c.b16 %v238, %v237
  %v270 = vpack.c.b16 %v240, %v239
  %v271 = vpack.c.b16 %v242, %v241
  %v272 = vpack.c.b16 %v244, %v243
  %v273 = vpack.c.b16 %v246, %v245
  %vm301 = vcmask 392192
  %v303 = vsel %vm301, %v128, 0
  %v306 = vsel %vm301, %v132, 0
  %308 = vmatprep.subr.bf16.mxu0 0
  %309 = vmatpush1.bf16.msra.mxu0 %v247
  %310 = vmatprep.subr.bf16.mxu0 0
  %311 = vmatpush1.bf16.msra.mxu0 %v248
  %312 = vmatprep.subr.bf16.mxu0 0
  %313 = vmatpush1.bf16.msra.mxu0 %v249
  %314 = vmatprep.subr.bf16.mxu0 0
  %315 = vmatpush1.bf16.msra.mxu0 %v250
  %316 = vmatprep.subr.bf16.mxu0 0
  %317 = vmatpush1.bf16.msra.mxu0 %v251
  %318 = vmatprep.subr.bf16.mxu0 0
  %319 = vmatpush1.bf16.msra.mxu0 %v252
  %320 = vmatprep.subr.bf16.mxu0 0
  %321 = vmatpush1.bf16.msra.mxu0 %v253
  %322 = vmatprep.subr.bf16.mxu0 0
  %323 = vmatpush1.bf16.msra.mxu0 %v254
  %324 = vmatprep.subr.bf16.mxu0 0
  %325 = vmatpush1.bf16.msra.mxu0 %v255
  %326 = vmatprep.subr.bf16.mxu0 0
  %327 = vmatpush1.bf16.msra.mxu0 %v256
  %328 = vmatprep.subr.bf16.mxu0 0
  %329 = vmatpush1.bf16.msra.mxu0 %v257
  %330 = vmatprep.subr.bf16.mxu0 0
  %331 = vmatpush1.bf16.msra.mxu0 %v258
  %332 = vmatprep.subr.bf16.mxu0 0
  %333 = vmatpush1.bf16.msra.mxu0 %v259
  %334 = vmatprep.subr.bf16.mxu0 0
  %335 = vmatpush1.bf16.msra.mxu0 %v260
  %336 = vmatprep.subr.bf16.mxu0 0
  %337 = vmatpush1.bf16.msra.mxu0 %v261
  %338 = vmatprep.subr.bf16.mxu0 0
  %339 = vmatpush1.bf16.msra.mxu0 %v262
  %340 = vmatprep.mubr.bf16.mxu0 %v126
  %341 = vmatmul.mubr.bf16.gmra.mrb[0].mxu0 %v125
  %v342 = vpop.f32.mrb[0].mxu0
  %v343 = vadd.f32 %v84, %v342
  %v344 = vpop.f32.mrb[0].mxu0
  %v345 = vpop.f32.mrb[0].mxu0
  %v346 = vadd.f32 %v89, %v345
  %v347 = vpop.f32.mrb[0].mxu0
  %348 = vmatprep.mubr.bf16.mxu0 %v130
  %349 = vmatmul.mubr.bf16.gmra.mrb[0].mxu0 %v129
  %v350 = vpop.f32.mrb[0].mxu0
  %v351 = vadd.f32 %v94, %v350
  %v352 = vpop.f32.mrb[0].mxu0
  %v353 = vpop.f32.mrb[0].mxu0
  %v354 = vadd.f32 %v99, %v353
  %v355 = vpop.f32.mrb[0].mxu0
  %356 = vdwg.mxu0
  %357 = vmatprep.subr.bf16.mxu0 0
  %358 = vmatpush1.bf16.msra.mxu0 %v263
  %359 = vmatprep.subr.bf16.mxu0 0
  %360 = vmatpush1.bf16.msra.mxu0 %v264
  %361 = vmatprep.subr.bf16.mxu0 0
  %362 = vmatpush1.bf16.msra.mxu0 %v265
  %363 = vmatprep.subr.bf16.mxu0 0
  %364 = vmatpush1.bf16.msra.mxu0 %v266
  %365 = vmatprep.subr.bf16.mxu0 0
  %366 = vmatpush1.bf16.msra.mxu0 %v267
  %367 = vmatprep.subr.bf16.mxu0 0
  %368 = vmatpush1.bf16.msra.mxu0 %v268
  %369 = vmatprep.subr.bf16.mxu0 0
  %370 = vmatpush1.bf16.msra.mxu0 %v269
  %371 = vmatprep.subr.bf16.mxu0 0
  %372 = vmatpush1.bf16.msra.mxu0 %v270
  %373 = vmatprep.subr.bf16.mxu0 0
  %374 = vmatpush1.bf16.msra.mxu0 %v271
  %375 = vmatprep.subr.bf16.mxu0 0
  %376 = vmatpush1.bf16.msra.mxu0 %v272
  %377 = vmatprep.subr.bf16.mxu0 0
  %378 = vmatpush1.bf16.msra.mxu0 %v273
  %379 = vmatprep.subr.bf16.mxu0 0
  %380 = vmatpush1.bf16.msra.mxu0 0
  %381 = vmatprep.subr.bf16.mxu0 0
  %382 = vmatpush1.bf16.msra.mxu0 0
  %383 = vmatprep.subr.bf16.mxu0 0
  %384 = vmatpush1.bf16.msra.mxu0 0
  %385 = vmatprep.subr.bf16.mxu0 0
  %386 = vmatpush1.bf16.msra.mxu0 0
  %387 = vmatprep.subr.bf16.mxu0 0
  %388 = vmatpush1.bf16.msra.mxu0 0
  %389 = vmatprep.mubr.bf16.mxu0 %v303
  %390 = vmatmul.mubr.bf16.gmra.mrb[0].mxu0 %v127
  %v391 = vpop.f32.mrb[0].mxu0
  %v392 = vadd.f32 %v343, %v391
  %v393 = vpop.f32.mrb[0].mxu0
  %v394 = vpop.f32.mrb[0].mxu0
  %v395 = vadd.f32 %v346, %v394
  %v396 = vpop.f32.mrb[0].mxu0
  %397 = vmatprep.mubr.bf16.mxu0 %v306
  %398 = vmatmul.mubr.bf16.gmra.mrb[0].mxu0 %v131
  %v399 = vpop.f32.mrb[0].mxu0
  %v400 = vadd.f32 %v351, %v399
  %v401 = vpop.f32.mrb[0].mxu0
  %v402 = vpop.f32.mrb[0].mxu0
  %v403 = vadd.f32 %v354, %v402
  %v404 = vpop.f32.mrb[0].mxu0
  %405 = vdwg.mxu0
  %v406 = vmax.f32 %v392, 0.0
  %v407 = vmax.f32 %v395, 0.0
  %v408 = vmax.f32 %v400, 0.0
  %v409 = vmax.f32 %v403, 0.0
  %v410 = vpack.c.bf16 %v407, %v406
  %v411 = vpack.c.bf16 %v409, %v408
  %v414 = vunpack.c.l.b16 %v410
  %v415 = vunpack.c.h.b16 %v410
  %v416 = vunpack.c.l.b16 %v411
  %v417 = vunpack.c.h.b16 %v411
  %v418 = vpack.c.b16 %v414, %v414
  %v419 = vpack.c.b16 %v415, %v415
  %v420 = vpack.c.b16 %v416, %v416
  %v421 = vpack.c.b16 %v417, %v417
  %426 = vst [vmem:[%s3] sm:$0xf] %v418
  %427 = vst [vmem:[%s3 + $0x4] sm:$0xf] %v419
  %428 = vst [vmem:[%s3 + $0x8] sm:$0xf] %v420
  %429 = vst [vmem:[%s3 + $0xc] sm:$0xf] %v421
  // Predicated region
  $region14: #{unet_sim3d_srd2.11} parent=0 // pred_check
    _
  $region15: #{unet_sim3d_srd2.11} parent=0 // pred_check_branch
    %431 = sbr.rel (0) target = $region17
  $region16: #{unet_sim3d_srd2.11} parent=0 // pred_region
    _
  $region17: #{unet_sim3d_srd2.11} parent=0 // pred_fallthru
    _
  // Predicated region
  $region18: #{unet_sim3d_srd2.11} parent=0 // pred_check
    _
  $region19: #{unet_sim3d_srd2.11} parent=0 // pred_check_branch
    %433 = sbr.rel (0) target = $region21
  $region20: #{unet_sim3d_srd2.11} parent=0 // pred_region
    _
  $region21: #{unet_sim3d_srd2.11} parent=0 // pred_fallthru
    _

// kernel: unet_sim3d_srd2.12
$region0: #{unet_sim3d_srd2.12}
  #allocation0 [shape = 'u32[]', space=smem, size = 0x4, offset = 0x4, fixed_abs, tag = 'smem constant byte address 0x4 - core index']
  #allocation1 [shape = 'u32[144,128]{1,0:T(1,128)}', space=vmem, size = 0x12000, scoped, tag = 'internal scratch']
  %s0 = inlined_call_operand.vmem [shape: bf16[64,864], index: 0, kind: input, shape index: {}]
  %s1 = inlined_call_operand.vmem [shape: bf16[864,16], index: 1, kind: input, shape index: {}]
  %s2 = inlined_call_operand.vmem [shape: f32[64,1], index: 2, kind: input, shape index: {}]
  %s3 = inlined_call_operand.vmem [shape: bf16[64,16], index: 3, kind: output, shape index: {}]
  %s4 = sld [smem:[#allocation0]]
  $region22: #{unet_sim3d_srd2.12} parent=0
    _
  %s6 = ssub.s32 1, %s4
  %s7 = scalar_select 0, %s6, %s4
  // Predicated region
  $region2: #{unet_sim3d_srd2.12} parent=0 // pred_check
    _
  $region3: #{unet_sim3d_srd2.12} parent=0 // pred_check_branch
    %9 = sbr.rel (0) target = $region5
  $region4: #{unet_sim3d_srd2.12} parent=0 // pred_region
    _
  $region5: #{unet_sim3d_srd2.12} parent=0 // pred_fallthru
    _
  // Predicated region
  $region6: #{unet_sim3d_srd2.12} parent=0 // pred_check
    _
  $region7: #{unet_sim3d_srd2.12} parent=0 // pred_check_branch
    %11 = sbr.rel (0) target = $region9
  $region8: #{unet_sim3d_srd2.12} parent=0 // pred_region
    _
  $region9: #{unet_sim3d_srd2.12} parent=0 // pred_fallthru
    _
  // Predicated region
  $region10: #{unet_sim3d_srd2.12} parent=0 // pred_check
    _
  $region11: #{unet_sim3d_srd2.12} parent=0 // pred_check_branch
    %13 = sbr.rel (0) target = $region13
  $region12: #{unet_sim3d_srd2.12} parent=0 // pred_region
    _
  $region13: #{unet_sim3d_srd2.12} parent=0 // pred_fallthru
    _
  %v15 = vld [vmem:[%s0] sm:$0xff]
  %v16 = vld [vmem:[%s0 + $0x8] sm:$0xff]
  %v17 = vld [vmem:[%s0 + $0x10] sm:$0xff]
  %v18 = vld [vmem:[%s0 + $0x18] sm:$0xf]
  %v19 = vld [vmem:[%s0 + $0x1c] sm:$0xff]
  %v20 = vld [vmem:[%s0 + $0x24] sm:$0xff]
  %v21 = vld [vmem:[%s0 + $0x2c] sm:$0xff]
  %v22 = vld [vmem:[%s0 + $0x34] sm:$0xf]
  %v23 = vld [vmem:[%s0 + $0x38] sm:$0xff]
  %v24 = vld [vmem:[%s0 + $0x40] sm:$0xff]
  %v25 = vld [vmem:[%s0 + $0x48] sm:$0xff]
  %v26 = vld [vmem:[%s0 + $0x50] sm:$0xf]
  %v27 = vld [vmem:[%s0 + $0x54] sm:$0xff]
  %v28 = vld [vmem:[%s0 + $0x5c] sm:$0xff]
  %v29 = vld [vmem:[%s0 + $0x64] sm:$0xff]
  %v30 = vld [vmem:[%s0 + $0x6c] sm:$0xf]
  %v31 = vld [vmem:[%s0 + $0x70] sm:$0xff]
  %v32 = vld [vmem:[%s0 + $0x78] sm:$0xff]
  %v33 = vld [vmem:[%s0 + $0x80] sm:$0xff]
  %v34 = vld [vmem:[%s0 + $0x88] sm:$0xf]
  %v35 = vld [vmem:[%s0 + $0x8c] sm:$0xff]
  %v36 = vld [vmem:[%s0 + $0x94] sm:$0xff]
  %v37 = vld [vmem:[%s0 + $0x9c] sm:$0xff]
  %v38 = vld [vmem:[%s0 + $0xa4] sm:$0xf]
  %v39 = vld [vmem:[%s0 + $0xa8] sm:$0xff]
  %v40 = vld [vmem:[%s0 + $0xb0] sm:$0xff]
  %v41 = vld [vmem:[%s0 + $0xb8] sm:$0xff]
  %v42 = vld [vmem:[%s0 + $0xc0] sm:$0xf]
  %v43 = vld [vmem:[%s0 + $0xc4] sm:$0xff]
  %v44 = vld [vmem:[%s0 + $0xcc] sm:$0xff]
  %v45 = vld [vmem:[%s0 + $0xd4] sm:$0xff]
  %v46 = vld [vmem:[%s0 + $0xdc] sm:$0xf]
  %v47 = vld [vmem:[%s1] sm:$0xf]
  %v48 = vld [vmem:[%s1 + $0x4] sm:$0xf]
  %v49 = vld [vmem:[%s1 + $0x8] sm:$0xf]
  %v50 = vld [vmem:[%s1 + $0xc] sm:$0xf]
  %v51 = vld [vmem:[%s1 + $0x10] sm:$0xf]
  %v52 = vld [vmem:[%s1 + $0x14] sm:$0xf]
  %v53 = vld [vmem:[%s1 + $0x18] sm:$0xf]
  %v54 = vld [vmem:[%s1 + $0x1c] sm:$0xf]
  %v55 = vld [vmem:[%s1 + $0x20] sm:$0xf]
  %v56 = vld [vmem:[%s1 + $0x24] sm:$0xf]
  %v57 = vld [vmem:[%s1 + $0x28] sm:$0xf]
  %v58 = vld [vmem:[%s1 + $0x2c] sm:$0xf]
  %v59 = vld [vmem:[%s1 + $0x30] sm:$0xf]
  %v60 = vld [vmem:[%s1 + $0x34] sm:$0xf]
  %v61 = vld [vmem:[%s1 + $0x38] sm:$0xf]
  %v62 = vld [vmem:[%s1 + $0x3c] sm:$0xf]
  %v63 = vld [vmem:[%s1 + $0x40] sm:$0xf]
  %v64 = vld [vmem:[%s1 + $0x44] sm:$0xf]
  %v65 = vld [vmem:[%s1 + $0x48] sm:$0xf]
  %v66 = vld [vmem:[%s1 + $0x4c] sm:$0xf]
  %v67 = vld [vmem:[%s1 + $0x50] sm:$0xf]
  %v68 = vld [vmem:[%s1 + $0x54] sm:$0xf]
  %v69 = vld [vmem:[%s1 + $0x58] sm:$0xf]
  %v70 = vld [vmem:[%s1 + $0x5c] sm:$0xf]
  %v71 = vld [vmem:[%s1 + $0x60] sm:$0xf]
  %v72 = vld [vmem:[%s1 + $0x64] sm:$0xf]
  %v73 = vld [vmem:[%s1 + $0x68] sm:$0xf]
  %v74 = vld [vmem:[%s1 + $0x6c] sm:$0xf]
  %v75 = vld [vmem:[%s1 + $0x70] sm:$0xf]
  %v76 = vld [vmem:[%s1 + $0x74] sm:$0xf]
  %v77 = vld [vmem:[%s1 + $0x78] sm:$0xf]
  %v78 = vld [vmem:[%s1 + $0x7c] sm:$0xf]
  %v79 = vld [vmem:[%s1 + $0x80] sm:$0xf]
  %v80 = vld [vmem:[%s1 + $0x84] sm:$0xf]
  %v81 = vld [vmem:[%s1 + $0x88] sm:$0xf]
  %v82 = vld [vmem:[%s1 + $0x8c] sm:$0xf]
  %v83 = vld [vmem:[%s1 + $0x90] sm:$0xf]
  %v84 = vld [vmem:[%s1 + $0x94] sm:$0xf]
  %v85 = vld [vmem:[%s1 + $0x98] sm:$0xf]
  %v86 = vld [vmem:[%s1 + $0x9c] sm:$0xf]
  %v87 = vld [vmem:[%s1 + $0xa0] sm:$0xf]
  %v88 = vld [vmem:[%s1 + $0xa4] sm:$0xf]
  %v89 = vld [vmem:[%s1 + $0xa8] sm:$0xf]
  %v90 = vld [vmem:[%s1 + $0xac] sm:$0xf]
  %v91 = vld [vmem:[%s1 + $0xb0] sm:$0xf]
  %v92 = vld [vmem:[%s1 + $0xb4] sm:$0xf]
  %v93 = vld [vmem:[%s1 + $0xb8] sm:$0xf]
  %v94 = vld [vmem:[%s1 + $0xbc] sm:$0xf]
  %v95 = vld [vmem:[%s1 + $0xc0] sm:$0xf]
  %v96 = vld [vmem:[%s1 + $0xc4] sm:$0xf]
  %v97 = vld [vmem:[%s1 + $0xc8] sm:$0xf]
  %v98 = vld [vmem:[%s1 + $0xcc] sm:$0xf]
  %v99 = vld [vmem:[%s1 + $0xd0] sm:$0xf]
  %v100 = vld [vmem:[%s1 + $0xd4] sm:$0xf]
  %v101 = vld [vmem:[%s1 + $0xd8] sm:$0xf]
  %v102 = vld [vmem:[%s1 + $0xdc] sm:$0xf]
  %v103 = vld [vmem:[%s1 + $0xe0] sm:$0xf]
  %v104 = vld [vmem:[%s1 + $0xe4] sm:$0xf]
  %v105 = vld [vmem:[%s1 + $0xe8] sm:$0xf]
  %v106 = vld [vmem:[%s1 + $0xec] sm:$0xf]
  %v107 = vld [vmem:[%s1 + $0xf0] sm:$0xf]
  %v108 = vld [vmem:[%s1 + $0xf4] sm:$0xf]
  %v109 = vld [vmem:[%s1 + $0xf8] sm:$0xf]
  %v110 = vld [vmem:[%s1 + $0xfc] sm:$0xf]
  %v111 = vld [vmem:[%s1 + $0x100] sm:$0xf]
  %v112 = vld [vmem:[%s1 + $0x104] sm:$0xf]
  %v113 = vld [vmem:[%s1 + $0x108] sm:$0xf]
  %v114 = vld [vmem:[%s1 + $0x10c] sm:$0xf]
  %v115 = vld [vmem:[%s1 + $0x110] sm:$0xf]
  %v116 = vld [vmem:[%s1 + $0x114] sm:$0xf]
  %v117 = vld [vmem:[%s1 + $0x118] sm:$0xf]
  %v118 = vld [vmem:[%s1 + $0x11c] sm:$0xf]
  %v119 = vld [vmem:[%s1 + $0x120] sm:$0xf]
  %v120 = vld [vmem:[%s1 + $0x124] sm:$0xf]
  %v121 = vld [vmem:[%s1 + $0x128] sm:$0xf]
  %v122 = vld [vmem:[%s1 + $0x12c] sm:$0xf]
  %v123 = vld [vmem:[%s1 + $0x130] sm:$0xf]
  %v124 = vld [vmem:[%s1 + $0x134] sm:$0xf]
  %v125 = vld [vmem:[%s1 + $0x138] sm:$0xf]
  %v126 = vld [vmem:[%s1 + $0x13c] sm:$0xf]
  %v127 = vld [vmem:[%s1 + $0x140] sm:$0xf]
  %v128 = vld [vmem:[%s1 + $0x144] sm:$0xf]
  %v129 = vld [vmem:[%s1 + $0x148] sm:$0xf]
  %v130 = vld [vmem:[%s1 + $0x14c] sm:$0xf]
  %v131 = vld [vmem:[%s1 + $0x150] sm:$0xf]
  %v132 = vld [vmem:[%s1 + $0x154] sm:$0xf]
  %v133 = vld [vmem:[%s1 + $0x158] sm:$0xf]
  %v134 = vld [vmem:[%s1 + $0x15c] sm:$0xf]
  %v135 = vld [vmem:[%s1 + $0x160] sm:$0xf]
  %v136 = vld [vmem:[%s1 + $0x164] sm:$0xf]
  %v137 = vld [vmem:[%s1 + $0x168] sm:$0xf]
  %v138 = vld [vmem:[%s1 + $0x16c] sm:$0xf]
  %v139 = vld [vmem:[%s1 + $0x170] sm:$0xf]
  %v140 = vld [vmem:[%s1 + $0x174] sm:$0xf]
  %v141 = vld [vmem:[%s1 + $0x178] sm:$0xf]
  %v142 = vld [vmem:[%s1 + $0x17c] sm:$0xf]
  %v143 = vld [vmem:[%s1 + $0x180] sm:$0xf]
  %v144 = vld [vmem:[%s1 + $0x184] sm:$0xf]
  %v145 = vld [vmem:[%s1 + $0x188] sm:$0xf]
  %v146 = vld [vmem:[%s1 + $0x18c] sm:$0xf]
  %v147 = vld [vmem:[%s1 + $0x190] sm:$0xf]
  %v148 = vld [vmem:[%s1 + $0x194] sm:$0xf]
  %v149 = vld [vmem:[%s1 + $0x198] sm:$0xf]
  %v150 = vld [vmem:[%s1 + $0x19c] sm:$0xf]
  %v151 = vld [vmem:[%s1 + $0x1a0] sm:$0xf]
  %v152 = vld [vmem:[%s1 + $0x1a4] sm:$0xf]
  %v153 = vld [vmem:[%s1 + $0x1a8] sm:$0xf]
  %v154 = vld [vmem:[%s1 + $0x1ac] sm:$0xf]
  %v155 = vld [vmem:[%s2] sm:$0xff]
  %v156 = vld [vmem:[%s2 + $0x8] sm:$0xff]
  %v157 = vld [vmem:[%s2 + $0x10] sm:$0xff]
  %v158 = vld [vmem:[%s2 + $0x18] sm:$0xff]
  %v159 = vld [vmem:[%s2 + $0x20] sm:$0xff]
  %v160 = vld [vmem:[%s2 + $0x28] sm:$0xff]
  %v161 = vld [vmem:[%s2 + $0x30] sm:$0xff]
  %v162 = vld [vmem:[%s2 + $0x38] sm:$0xff]
  %164 = vset.pattern.permute.xlu0 0
  %165 = vperm.xlu0 %164, %v155
  %v166 = vpop.permute.xlu0 %165
  %169 = vset.pattern.permute.xlu0 0
  %170 = vperm.xlu0 %169, %v156
  %v171 = vpop.permute.xlu0 %170
  %174 = vset.pattern.permute.xlu0 0
  %175 = vperm.xlu0 %174, %v157
  %v176 = vpop.permute.xlu0 %175
  %179 = vset.pattern.permute.xlu0 0
  %180 = vperm.xlu0 %179, %v158
  %v181 = vpop.permute.xlu0 %180
  %184 = vset.pattern.permute.xlu0 0
  %185 = vperm.xlu0 %184, %v159
  %v186 = vpop.permute.xlu0 %185
  %189 = vset.pattern.permute.xlu0 0
  %190 = vperm.xlu0 %189, %v160
  %v191 = vpop.permute.xlu0 %190
  %194 = vset.pattern.permute.xlu0 0
  %195 = vperm.xlu0 %194, %v161
  %v196 = vpop.permute.xlu0 %195
  %199 = vset.pattern.permute.xlu0 0
  %200 = vperm.xlu0 %199, %v162
  %v201 = vpop.permute.xlu0 %200
  %v235 = vunpack.c.l.b16 %v15
  %v236 = vunpack.c.h.b16 %v15
  %v237 = vunpack.c.l.b16 %v16
  %v238 = vunpack.c.h.b16 %v16
  %v239 = vunpack.c.l.b16 %v17
  %v240 = vunpack.c.h.b16 %v17
  %v241 = vunpack.c.l.b16 %v18
  %v242 = vunpack.c.l.b16 %v19
  %v243 = vunpack.c.h.b16 %v19
  %v244 = vunpack.c.l.b16 %v20
  %v245 = vunpack.c.h.b16 %v20
  %v246 = vunpack.c.l.b16 %v21
  %v247 = vunpack.c.h.b16 %v21
  %v248 = vunpack.c.l.b16 %v22
  %v249 = vunpack.c.l.b16 %v23
  %v250 = vunpack.c.h.b16 %v23
  %v251 = vunpack.c.l.b16 %v24
  %v252 = vunpack.c.h.b16 %v24
  %v253 = vunpack.c.l.b16 %v25
  %v254 = vunpack.c.h.b16 %v25
  %v255 = vunpack.c.l.b16 %v26
  %v256 = vunpack.c.l.b16 %v27
  %v257 = vunpack.c.h.b16 %v27
  %v258 = vunpack.c.l.b16 %v28
  %v259 = vunpack.c.h.b16 %v28
  %v260 = vunpack.c.l.b16 %v29
  %v261 = vunpack.c.h.b16 %v29
  %v262 = vunpack.c.l.b16 %v30
  %v263 = vunpack.c.l.b16 %v31
  %v264 = vunpack.c.h.b16 %v31
  %v265 = vunpack.c.l.b16 %v32
  %v266 = vunpack.c.h.b16 %v32
  %v267 = vunpack.c.l.b16 %v33
  %v268 = vunpack.c.h.b16 %v33
  %v269 = vunpack.c.l.b16 %v34
  %v270 = vunpack.c.l.b16 %v35
  %v271 = vunpack.c.h.b16 %v35
  %v272 = vunpack.c.l.b16 %v36
  %v273 = vunpack.c.h.b16 %v36
  %v274 = vunpack.c.l.b16 %v37
  %v275 = vunpack.c.h.b16 %v37
  %v276 = vunpack.c.l.b16 %v38
  %v277 = vunpack.c.l.b16 %v39
  %v278 = vunpack.c.h.b16 %v39
  %v279 = vunpack.c.l.b16 %v40
  %v280 = vunpack.c.h.b16 %v40
  %v281 = vunpack.c.l.b16 %v41
  %v282 = vunpack.c.h.b16 %v41
  %v283 = vunpack.c.l.b16 %v42
  %v284 = vunpack.c.l.b16 %v43
  %v285 = vunpack.c.h.b16 %v43
  %v286 = vunpack.c.l.b16 %v44
  %v287 = vunpack.c.h.b16 %v44
  %v288 = vunpack.c.l.b16 %v45
  %v289 = vunpack.c.h.b16 %v45
  %v290 = vunpack.c.l.b16 %v46
  %v291 = vpack.c.b16 %v242, %v235
  %v292 = vpack.c.b16 %v243, %v236
  %v293 = vpack.c.b16 %v244, %v237
  %v294 = vpack.c.b16 %v245, %v238
  %v295 = vpack.c.b16 %v246, %v239
  %v296 = vpack.c.b16 %v247, %v240
  %v297 = vpack.c.b16 %v248, %v241
  %v298 = vpack.c.b16 %v256, %v249
  %v299 = vpack.c.b16 %v257, %v250
  %v300 = vpack.c.b16 %v258, %v251
  %v301 = vpack.c.b16 %v259, %v252
  %v302 = vpack.c.b16 %v260, %v253
  %v303 = vpack.c.b16 %v261, %v254
  %v304 = vpack.c.b16 %v262, %v255
  %v305 = vpack.c.b16 %v270, %v263
  %v306 = vpack.c.b16 %v271, %v264
  %v307 = vpack.c.b16 %v272, %v265
  %v308 = vpack.c.b16 %v273, %v266
  %v309 = vpack.c.b16 %v274, %v267
  %v310 = vpack.c.b16 %v275, %v268
  %v311 = vpack.c.b16 %v276, %v269
  %v312 = vpack.c.b16 %v284, %v277
  %v313 = vpack.c.b16 %v285, %v278
  %v314 = vpack.c.b16 %v286, %v279
  %v315 = vpack.c.b16 %v287, %v280
  %v316 = vpack.c.b16 %v288, %v281
  %v317 = vpack.c.b16 %v289, %v282
  %v318 = vpack.c.b16 %v290, %v283
  %v451 = vunpack.c.l.b16 %v47
  %v452 = vunpack.c.l.b16 %v48
  %v453 = vunpack.c.l.b16 %v49
  %v454 = vunpack.c.l.b16 %v50
  %v455 = vunpack.c.l.b16 %v51
  %v456 = vunpack.c.l.b16 %v52
  %v457 = vunpack.c.l.b16 %v53
  %v458 = vunpack.c.l.b16 %v54
  %v459 = vunpack.c.l.b16 %v55
  %v460 = vunpack.c.l.b16 %v56
  %v461 = vunpack.c.l.b16 %v57
  %v462 = vunpack.c.l.b16 %v58
  %v463 = vunpack.c.l.b16 %v59
  %v464 = vunpack.c.l.b16 %v60
  %v465 = vunpack.c.l.b16 %v61
  %v466 = vunpack.c.l.b16 %v62
  %v467 = vunpack.c.l.b16 %v63
  %v468 = vunpack.c.l.b16 %v64
  %v469 = vunpack.c.l.b16 %v65
  %v470 = vunpack.c.l.b16 %v66
  %v471 = vunpack.c.l.b16 %v67
  %v472 = vunpack.c.l.b16 %v68
  %v473 = vunpack.c.l.b16 %v69
  %v474 = vunpack.c.l.b16 %v70
  %v475 = vunpack.c.l.b16 %v71
  %v476 = vunpack.c.l.b16 %v72
  %v477 = vunpack.c.l.b16 %v73
  %v478 = vunpack.c.l.b16 %v74
  %v479 = vunpack.c.l.b16 %v75
  %v480 = vunpack.c.l.b16 %v76
  %v481 = vunpack.c.l.b16 %v77
  %v482 = vunpack.c.l.b16 %v78
  %v483 = vunpack.c.l.b16 %v79
  %v484 = vunpack.c.l.b16 %v80
  %v485 = vunpack.c.l.b16 %v81
  %v486 = vunpack.c.l.b16 %v82
  %v487 = vunpack.c.l.b16 %v83
  %v488 = vunpack.c.l.b16 %v84
  %v489 = vunpack.c.l.b16 %v85
  %v490 = vunpack.c.l.b16 %v86
  %v491 = vunpack.c.l.b16 %v87
  %v492 = vunpack.c.l.b16 %v88
  %v493 = vunpack.c.l.b16 %v89
  %v494 = vunpack.c.l.b16 %v90
  %v495 = vunpack.c.l.b16 %v91
  %v496 = vunpack.c.l.b16 %v92
  %v497 = vunpack.c.l.b16 %v93
  %v498 = vunpack.c.l.b16 %v94
  %v499 = vunpack.c.l.b16 %v95
  %v500 = vunpack.c.l.b16 %v96
  %v501 = vunpack.c.l.b16 %v97
  %v502 = vunpack.c.l.b16 %v98
  %v503 = vunpack.c.l.b16 %v99
  %v504 = vunpack.c.l.b16 %v100
  %v505 = vunpack.c.l.b16 %v101
  %v506 = vunpack.c.l.b16 %v102
  %v507 = vunpack.c.l.b16 %v103
  %v508 = vunpack.c.l.b16 %v104
  %v509 = vunpack.c.l.b16 %v105
  %v510 = vunpack.c.l.b16 %v106
  %v511 = vunpack.c.l.b16 %v107
  %v512 = vunpack.c.l.b16 %v108
  %v513 = vunpack.c.l.b16 %v109
  %v514 = vunpack.c.l.b16 %v110
  %v515 = vunpack.c.l.b16 %v111
  %v516 = vunpack.c.l.b16 %v112
  %v517 = vunpack.c.l.b16 %v113
  %v518 = vunpack.c.l.b16 %v114
  %v519 = vunpack.c.l.b16 %v115
  %v520 = vunpack.c.l.b16 %v116
  %v521 = vunpack.c.l.b16 %v117
  %v522 = vunpack.c.l.b16 %v118
  %v523 = vunpack.c.l.b16 %v119
  %v524 = vunpack.c.l.b16 %v120
  %v525 = vunpack.c.l.b16 %v121
  %v526 = vunpack.c.l.b16 %v122
  %v527 = vunpack.c.l.b16 %v123
  %v528 = vunpack.c.l.b16 %v124
  %v529 = vunpack.c.l.b16 %v125
  %v530 = vunpack.c.l.b16 %v126
  %v531 = vunpack.c.l.b16 %v127
  %v532 = vunpack.c.l.b16 %v128
  %v533 = vunpack.c.l.b16 %v129
  %v534 = vunpack.c.l.b16 %v130
  %v535 = vunpack.c.l.b16 %v131
  %v536 = vunpack.c.l.b16 %v132
  %v537 = vunpack.c.l.b16 %v133
  %v538 = vunpack.c.l.b16 %v134
  %v539 = vunpack.c.l.b16 %v135
  %v540 = vunpack.c.l.b16 %v136
  %v541 = vunpack.c.l.b16 %v137
  %v542 = vunpack.c.l.b16 %v138
  %v543 = vunpack.c.l.b16 %v139
  %v544 = vunpack.c.l.b16 %v140
  %v545 = vunpack.c.l.b16 %v141
  %v546 = vunpack.c.l.b16 %v142
  %v547 = vunpack.c.l.b16 %v143
  %v548 = vunpack.c.l.b16 %v144
  %v549 = vunpack.c.l.b16 %v145
  %v550 = vunpack.c.l.b16 %v146
  %v551 = vunpack.c.l.b16 %v147
  %v552 = vunpack.c.l.b16 %v148
  %v553 = vunpack.c.l.b16 %v149
  %v554 = vunpack.c.l.b16 %v150
  %v555 = vunpack.c.l.b16 %v151
  %v556 = vunpack.c.l.b16 %v152
  %v557 = vunpack.c.l.b16 %v153
  %v558 = vunpack.c.l.b16 %v154
  %v559 = vpack.c.b16 %v452, %v451
  %v560 = vpack.c.b16 %v454, %v453
  %v561 = vpack.c.b16 %v456, %v455
  %v562 = vpack.c.b16 %v458, %v457
  %v563 = vpack.c.b16 %v460, %v459
  %v564 = vpack.c.b16 %v462, %v461
  %v565 = vpack.c.b16 %v464, %v463
  %v566 = vpack.c.b16 %v466, %v465
  %v567 = vpack.c.b16 %v468, %v467
  %v568 = vpack.c.b16 %v470, %v469
  %v569 = vpack.c.b16 %v472, %v471
  %v570 = vpack.c.b16 %v474, %v473
  %v571 = vpack.c.b16 %v476, %v475
  %v572 = vpack.c.b16 %v478, %v477
  %v573 = vpack.c.b16 %v480, %v479
  %v574 = vpack.c.b16 %v482, %v481
  %v575 = vpack.c.b16 %v484, %v483
  %v576 = vpack.c.b16 %v486, %v485
  %v577 = vpack.c.b16 %v488, %v487
  %v578 = vpack.c.b16 %v490, %v489
  %v579 = vpack.c.b16 %v492, %v491
  %v580 = vpack.c.b16 %v494, %v493
  %v581 = vpack.c.b16 %v496, %v495
  %v582 = vpack.c.b16 %v498, %v497
  %v583 = vpack.c.b16 %v500, %v499
  %v584 = vpack.c.b16 %v502, %v501
  %v585 = vpack.c.b16 %v504, %v503
  %v586 = vpack.c.b16 %v506, %v505
  %v587 = vpack.c.b16 %v508, %v507
  %v588 = vpack.c.b16 %v510, %v509
  %v589 = vpack.c.b16 %v512, %v511
  %v590 = vpack.c.b16 %v514, %v513
  %v591 = vpack.c.b16 %v516, %v515
  %v592 = vpack.c.b16 %v518, %v517
  %v593 = vpack.c.b16 %v520, %v519
  %v594 = vpack.c.b16 %v522, %v521
  %v595 = vpack.c.b16 %v524, %v523
  %v596 = vpack.c.b16 %v526, %v525
  %v597 = vpack.c.b16 %v528, %v527
  %v598 = vpack.c.b16 %v530, %v529
  %v599 = vpack.c.b16 %v532, %v531
  %v600 = vpack.c.b16 %v534, %v533
  %v601 = vpack.c.b16 %v536, %v535
  %v602 = vpack.c.b16 %v538, %v537
  %v603 = vpack.c.b16 %v540, %v539
  %v604 = vpack.c.b16 %v542, %v541
  %v605 = vpack.c.b16 %v544, %v543
  %v606 = vpack.c.b16 %v546, %v545
  %v607 = vpack.c.b16 %v548, %v547
  %v608 = vpack.c.b16 %v550, %v549
  %v609 = vpack.c.b16 %v552, %v551
  %v610 = vpack.c.b16 %v554, %v553
  %v611 = vpack.c.b16 %v556, %v555
  %v612 = vpack.c.b16 %v558, %v557
  %vm667 = vcmask 785408
  %v669 = vsel %vm667, %v297, 0
  %v672 = vsel %vm667, %v304, 0
  %v675 = vsel %vm667, %v311, 0
  %v678 = vsel %vm667, %v318, 0
  %680 = vmatprep.subr.bf16.mxu0 0
  %681 = vmatpush1.bf16.msra.mxu0 %v559
  %682 = vmatprep.subr.bf16.mxu0 0
  %683 = vmatpush1.bf16.msra.mxu0 %v560
  %684 = vmatprep.subr.bf16.mxu0 0
  %685 = vmatpush1.bf16.msra.mxu0 %v561
  %686 = vmatprep.subr.bf16.mxu0 0
  %687 = vmatpush1.bf16.msra.mxu0 %v562
  %688 = vmatprep.subr.bf16.mxu0 0
  %689 = vmatpush1.bf16.msra.mxu0 %v563
  %690 = vmatprep.subr.bf16.mxu0 0
  %691 = vmatpush1.bf16.msra.mxu0 %v564
  %692 = vmatprep.subr.bf16.mxu0 0
  %693 = vmatpush1.bf16.msra.mxu0 %v565
  %694 = vmatprep.subr.bf16.mxu0 0
  %695 = vmatpush1.bf16.msra.mxu0 %v566
  %696 = vmatprep.subr.bf16.mxu0 0
  %697 = vmatpush1.bf16.msra.mxu0 %v567
  %698 = vmatprep.subr.bf16.mxu0 0
  %699 = vmatpush1.bf16.msra.mxu0 %v568
  %700 = vmatprep.subr.bf16.mxu0 0
  %701 = vmatpush1.bf16.msra.mxu0 %v569
  %702 = vmatprep.subr.bf16.mxu0 0
  %703 = vmatpush1.bf16.msra.mxu0 %v570
  %704 = vmatprep.subr.bf16.mxu0 0
  %705 = vmatpush1.bf16.msra.mxu0 %v571
  %706 = vmatprep.subr.bf16.mxu0 0
  %707 = vmatpush1.bf16.msra.mxu0 %v572
  %708 = vmatprep.subr.bf16.mxu0 0
  %709 = vmatpush1.bf16.msra.mxu0 %v573
  %710 = vmatprep.subr.bf16.mxu0 0
  %711 = vmatpush1.bf16.msra.mxu0 %v574
  %712 = vmatprep.mubr.bf16.mxu0 %v292
  %713 = vmatmul.mubr.bf16.gmra.mrb[0].mxu0 %v291
  %v714 = vpop.f32.mrb[0].mxu0
  %v715 = vadd.f32 %v166, %v714
  %v716 = vpop.f32.mrb[0].mxu0
  %v717 = vpop.f32.mrb[0].mxu0
  %v718 = vadd.f32 %v171, %v717
  %v719 = vpop.f32.mrb[0].mxu0
  %720 = vmatprep.mubr.bf16.mxu0 %v299
  %721 = vmatmul.mubr.bf16.gmra.mrb[0].mxu0 %v298
  %v722 = vpop.f32.mrb[0].mxu0
  %v723 = vadd.f32 %v176, %v722
  %v724 = vpop.f32.mrb[0].mxu0
  %v725 = vpop.f32.mrb[0].mxu0
  %v726 = vadd.f32 %v181, %v725
  %v727 = vpop.f32.mrb[0].mxu0
  %728 = vmatprep.mubr.bf16.mxu0 %v306
  %729 = vmatmul.mubr.bf16.gmra.mrb[0].mxu0 %v305
  %v730 = vpop.f32.mrb[0].mxu0
  %v731 = vadd.f32 %v186, %v730
  %v732 = vpop.f32.mrb[0].mxu0
  %v733 = vpop.f32.mrb[0].mxu0
  %v734 = vadd.f32 %v191, %v733
  %v735 = vpop.f32.mrb[0].mxu0
  %736 = vmatprep.mubr.bf16.mxu0 %v313
  %737 = vmatmul.mubr.bf16.gmra.mrb[0].mxu0 %v312
  %v738 = vpop.f32.mrb[0].mxu0
  %v739 = vadd.f32 %v196, %v738
  %v740 = vpop.f32.mrb[0].mxu0
  %v741 = vpop.f32.mrb[0].mxu0
  %v742 = vadd.f32 %v201, %v741
  %v743 = vpop.f32.mrb[0].mxu0
  %744 = vdwg.mxu0
  %745 = vmatprep.subr.bf16.mxu0 0
  %746 = vmatpush1.bf16.msra.mxu0 %v575
  %747 = vmatprep.subr.bf16.mxu0 0
  %748 = vmatpush1.bf16.msra.mxu0 %v576
  %749 = vmatprep.subr.bf16.mxu0 0
  %750 = vmatpush1.bf16.msra.mxu0 %v577
  %751 = vmatprep.subr.bf16.mxu0 0
  %752 = vmatpush1.bf16.msra.mxu0 %v578
  %753 = vmatprep.subr.bf16.mxu0 0
  %754 = vmatpush1.bf16.msra.mxu0 %v579
  %755 = vmatprep.subr.bf16.mxu0 0
  %756 = vmatpush1.bf16.msra.mxu0 %v580
  %757 = vmatprep.subr.bf16.mxu0 0
  %758 = vmatpush1.bf16.msra.mxu0 %v581
  %759 = vmatprep.subr.bf16.mxu0 0
  %760 = vmatpush1.bf16.msra.mxu0 %v582
  %761 = vmatprep.subr.bf16.mxu0 0
  %762 = vmatpush1.bf16.msra.mxu0 %v583
  %763 = vmatprep.subr.bf16.mxu0 0
  %764 = vmatpush1.bf16.msra.mxu0 %v584
  %765 = vmatprep.subr.bf16.mxu0 0
  %766 = vmatpush1.bf16.msra.mxu0 %v585
  %767 = vmatprep.subr.bf16.mxu0 0
  %768 = vmatpush1.bf16.msra.mxu0 %v586
  %769 = vmatprep.subr.bf16.mxu0 0
  %770 = vmatpush1.bf16.msra.mxu0 %v587
  %771 = vmatprep.subr.bf16.mxu0 0
  %772 = vmatpush1.bf16.msra.mxu0 %v588
  %773 = vmatprep.subr.bf16.mxu0 0
  %774 = vmatpush1.bf16.msra.mxu0 %v589
  %775 = vmatprep.subr.bf16.mxu0 0
  %776 = vmatpush1.bf16.msra.mxu0 %v590
  %777 = vmatprep.mubr.bf16.mxu0 %v294
  %778 = vmatmul.mubr.bf16.gmra.mrb[0].mxu0 %v293
  %v779 = vpop.f32.mrb[0].mxu0
  %v780 = vadd.f32 %v715, %v779
  %v781 = vpop.f32.mrb[0].mxu0
  %v782 = vpop.f32.mrb[0].mxu0
  %v783 = vadd.f32 %v718, %v782
  %v784 = vpop.f32.mrb[0].mxu0
  %785 = vmatprep.mubr.bf16.mxu0 %v301
  %786 = vmatmul.mubr.bf16.gmra.mrb[0].mxu0 %v300
  %v787 = vpop.f32.mrb[0].mxu0
  %v788 = vadd.f32 %v723, %v787
  %v789 = vpop.f32.mrb[0].mxu0
  %v790 = vpop.f32.mrb[0].mxu0
  %v791 = vadd.f32 %v726, %v790
  %v792 = vpop.f32.mrb[0].mxu0
  %793 = vmatprep.mubr.bf16.mxu0 %v308
  %794 = vmatmul.mubr.bf16.gmra.mrb[0].mxu0 %v307
  %v795 = vpop.f32.mrb[0].mxu0
  %v796 = vadd.f32 %v731, %v795
  %v797 = vpop.f32.mrb[0].mxu0
  %v798 = vpop.f32.mrb[0].mxu0
  %v799 = vadd.f32 %v734, %v798
  %v800 = vpop.f32.mrb[0].mxu0
  %801 = vmatprep.mubr.bf16.mxu0 %v315
  %802 = vmatmul.mubr.bf16.gmra.mrb[0].mxu0 %v314
  %v803 = vpop.f32.mrb[0].mxu0
  %v804 = vadd.f32 %v739, %v803
  %v805 = vpop.f32.mrb[0].mxu0
  %v806 = vpop.f32.mrb[0].mxu0
  %v807 = vadd.f32 %v742, %v806
  %v808 = vpop.f32.mrb[0].mxu0
  %809 = vdwg.mxu0
  %810 = vmatprep.subr.bf16.mxu0 0
  %811 = vmatpush1.bf16.msra.mxu0 %v591
  %812 = vmatprep.subr.bf16.mxu0 0
  %813 = vmatpush1.bf16.msra.mxu0 %v592
  %814 = vmatprep.subr.bf16.mxu0 0
  %815 = vmatpush1.bf16.msra.mxu0 %v593
  %816 = vmatprep.subr.bf16.mxu0 0
  %817 = vmatpush1.bf16.msra.mxu0 %v594
  %818 = vmatprep.subr.bf16.mxu0 0
  %819 = vmatpush1.bf16.msra.mxu0 %v595
  %820 = vmatprep.subr.bf16.mxu0 0
  %821 = vmatpush1.bf16.msra.mxu0 %v596
  %822 = vmatprep.subr.bf16.mxu0 0
  %823 = vmatpush1.bf16.msra.mxu0 %v597
  %824 = vmatprep.subr.bf16.mxu0 0
  %825 = vmatpush1.bf16.msra.mxu0 %v598
  %826 = vmatprep.subr.bf16.mxu0 0
  %827 = vmatpush1.bf16.msra.mxu0 %v599
  %828 = vmatprep.subr.bf16.mxu0 0
  %829 = vmatpush1.bf16.msra.mxu0 %v600
  %830 = vmatprep.subr.bf16.mxu0 0
  %831 = vmatpush1.bf16.msra.mxu0 %v601
  %832 = vmatprep.subr.bf16.mxu0 0
  %833 = vmatpush1.bf16.msra.mxu0 %v602
  %834 = vmatprep.subr.bf16.mxu0 0
  %835 = vmatpush1.bf16.msra.mxu0 %v603
  %836 = vmatprep.subr.bf16.mxu0 0
  %837 = vmatpush1.bf16.msra.mxu0 %v604
  %838 = vmatprep.subr.bf16.mxu0 0
  %839 = vmatpush1.bf16.msra.mxu0 %v605
  %840 = vmatprep.subr.bf16.mxu0 0
  %841 = vmatpush1.bf16.msra.mxu0 %v606
  %842 = vmatprep.mubr.bf16.mxu0 %v296
  %843 = vmatmul.mubr.bf16.gmra.mrb[0].mxu0 %v295
  %v844 = vpop.f32.mrb[0].mxu0
  %v845 = vadd.f32 %v780, %v844
  %v846 = vpop.f32.mrb[0].mxu0
  %v847 = vpop.f32.mrb[0].mxu0
  %v848 = vadd.f32 %v783, %v847
  %v849 = vpop.f32.mrb[0].mxu0
  %850 = vmatprep.mubr.bf16.mxu0 %v303
  %851 = vmatmul.mubr.bf16.gmra.mrb[0].mxu0 %v302
  %v852 = vpop.f32.mrb[0].mxu0
  %v853 = vadd.f32 %v788, %v852
  %v854 = vpop.f32.mrb[0].mxu0
  %v855 = vpop.f32.mrb[0].mxu0
  %v856 = vadd.f32 %v791, %v855
  %v857 = vpop.f32.mrb[0].mxu0
  %858 = vmatprep.mubr.bf16.mxu0 %v310
  %859 = vmatmul.mubr.bf16.gmra.mrb[0].mxu0 %v309
  %v860 = vpop.f32.mrb[0].mxu0
  %v861 = vadd.f32 %v796, %v860
  %v862 = vpop.f32.mrb[0].mxu0
  %v863 = vpop.f32.mrb[0].mxu0
  %v864 = vadd.f32 %v799, %v863
  %v865 = vpop.f32.mrb[0].mxu0
  %866 = vmatprep.mubr.bf16.mxu0 %v317
  %867 = vmatmul.mubr.bf16.gmra.mrb[0].mxu0 %v316
  %v868 = vpop.f32.mrb[0].mxu0
  %v869 = vadd.f32 %v804, %v868
  %v870 = vpop.f32.mrb[0].mxu0
  %v871 = vpop.f32.mrb[0].mxu0
  %v872 = vadd.f32 %v807, %v871
  %v873 = vpop.f32.mrb[0].mxu0
  %874 = vdwg.mxu0
  %875 = vmatprep.subr.bf16.mxu0 0
  %876 = vmatpush1.bf16.msra.mxu0 %v607
  %877 = vmatprep.subr.bf16.mxu0 0
  %878 = vmatpush1.bf16.msra.mxu0 %v608
  %879 = vmatprep.subr.bf16.mxu0 0
  %880 = vmatpush1.bf16.msra.mxu0 %v609
  %881 = vmatprep.subr.bf16.mxu0 0
  %882 = vmatpush1.bf16.msra.mxu0 %v610
  %883 = vmatprep.subr.bf16.mxu0 0
  %884 = vmatpush1.bf16.msra.mxu0 %v611
  %885 = vmatprep.subr.bf16.mxu0 0
  %886 = vmatpush1.bf16.msra.mxu0 %v612
  %887 = vmatprep.subr.bf16.mxu0 0
  %888 = vmatpush1.bf16.msra.mxu0 0
  %889 = vmatprep.subr.bf16.mxu0 0
  %890 = vmatpush1.bf16.msra.mxu0 0
  %891 = vmatprep.subr.bf16.mxu0 0
  %892 = vmatpush1.bf16.msra.mxu0 0
  %893 = vmatprep.subr.bf16.mxu0 0
  %894 = vmatpush1.bf16.msra.mxu0 0
  %895 = vmatprep.subr.bf16.mxu0 0
  %896 = vmatpush1.bf16.msra.mxu0 0
  %897 = vmatprep.subr.bf16.mxu0 0
  %898 = vmatpush1.bf16.msra.mxu0 0
  %899 = vmatprep.subr.bf16.mxu0 0
  %900 = vmatpush1.bf16.msra.mxu0 0
  %901 = vmatprep.subr.bf16.mxu0 0
  %902 = vmatpush1.bf16.msra.mxu0 0
  %903 = vmatprep.subr.bf16.mxu0 0
  %904 = vmatpush1.bf16.msra.mxu0 0
  %905 = vmatprep.subr.bf16.mxu0 0
  %906 = vmatpush1.bf16.msra.mxu0 0
  %907 = vmatprep.mubr.bf16.mxu0 0
  %908 = vmatmul.mubr.bf16.gmra.mrb[0].mxu0 %v669
  %v909 = vpop.f32.mrb[0].mxu0
  %v910 = vadd.f32 %v845, %v909
  %v911 = vpop.f32.mrb[0].mxu0
  %v912 = vpop.f32.mrb[0].mxu0
  %v913 = vadd.f32 %v848, %v912
  %v914 = vpop.f32.mrb[0].mxu0
  %915 = vmatprep.mubr.bf16.mxu0 0
  %916 = vmatmul.mubr.bf16.gmra.mrb[0].mxu0 %v672
  %v917 = vpop.f32.mrb[0].mxu0
  %v918 = vadd.f32 %v853, %v917
  %v919 = vpop.f32.mrb[0].mxu0
  %v920 = vpop.f32.mrb[0].mxu0
  %v921 = vadd.f32 %v856, %v920
  %v922 = vpop.f32.mrb[0].mxu0
  %923 = vmatprep.mubr.bf16.mxu0 0
  %924 = vmatmul.mubr.bf16.gmra.mrb[0].mxu0 %v675
  %v925 = vpop.f32.mrb[0].mxu0
  %v926 = vadd.f32 %v861, %v925
  %v927 = vpop.f32.mrb[0].mxu0
  %v928 = vpop.f32.mrb[0].mxu0
  %v929 = vadd.f32 %v864, %v928
  %v930 = vpop.f32.mrb[0].mxu0
  %931 = vmatprep.mubr.bf16.mxu0 0
  %932 = vmatmul.mubr.bf16.gmra.mrb[0].mxu0 %v678
  %v933 = vpop.f32.mrb[0].mxu0
  %v934 = vadd.f32 %v869, %v933
  %v935 = vpop.f32.mrb[0].mxu0
  %v936 = vpop.f32.mrb[0].mxu0
  %v937 = vadd.f32 %v872, %v936
  %v938 = vpop.f32.mrb[0].mxu0
  %939 = vdwg.mxu0
  %v940 = vmax.f32 %v910, 0.0
  %v941 = vmax.f32 %v913, 0.0
  %v942 = vmax.f32 %v918, 0.0
  %v943 = vmax.f32 %v921, 0.0
  %v944 = vmax.f32 %v926, 0.0
  %v945 = vmax.f32 %v929, 0.0
  %v946 = vmax.f32 %v934, 0.0
  %v947 = vmax.f32 %v937, 0.0
  %v948 = vpack.c.bf16 %v941, %v940
  %v949 = vpack.c.bf16 %v943, %v942
  %v950 = vpack.c.bf16 %v945, %v944
  %v951 = vpack.c.bf16 %v947, %v946
  %v956 = vunpack.c.l.b16 %v948
  %v957 = vunpack.c.h.b16 %v948
  %v958 = vunpack.c.l.b16 %v949
  %v959 = vunpack.c.h.b16 %v949
  %v960 = vunpack.c.l.b16 %v950
  %v961 = vunpack.c.h.b16 %v950
  %v962 = vunpack.c.l.b16 %v951
  %v963 = vunpack.c.h.b16 %v951
  %v964 = vpack.c.b16 %v956, %v956
  %v965 = vpack.c.b16 %v957, %v957
  %v966 = vpack.c.b16 %v958, %v958
  %v967 = vpack.c.b16 %v959, %v959
  %v968 = vpack.c.b16 %v960, %v960
  %v969 = vpack.c.b16 %v961, %v961
  %v970 = vpack.c.b16 %v962, %v962
  %v971 = vpack.c.b16 %v963, %v963
  %vm980 = vcmask 125952
  %981 = vst.msk [vmem:[%s3] sm:$0xf] %vm980, %v964
  %982 = vst.msk [vmem:[%s3 + $0x4] sm:$0xf] %vm980, %v965
  %983 = vst.msk [vmem:[%s3 + $0x8] sm:$0xf] %vm980, %v966
  %984 = vst.msk [vmem:[%s3 + $0xc] sm:$0xf] %vm980, %v967
  %985 = vst.msk [vmem:[%s3 + $0x10] sm:$0xf] %vm980, %v968
  %986 = vst.msk [vmem:[%s3 + $0x14] sm:$0xf] %vm980, %v969
  %987 = vst.msk [vmem:[%s3 + $0x18] sm:$0xf] %vm980, %v970
  %988 = vst.msk [vmem:[%s3 + $0x1c] sm:$0xf] %vm980, %v971
  // Predicated region
  $region14: #{unet_sim3d_srd2.12} parent=0 // pred_check
    _
  $region15: #{unet_sim3d_srd2.12} parent=0 // pred_check_branch
    %990 = sbr.rel (0) target = $region17
  $region16: #{unet_sim3d_srd2.12} parent=0 // pred_region
    _
  $region17: #{unet_sim3d_srd2.12} parent=0 // pred_fallthru
    _
  // Predicated region
  $region18: #{unet_sim3d_srd2.12} parent=0 // pred_check
    _
  $region19: #{unet_sim3d_srd2.12} parent=0 // pred_check_branch
    %992 = sbr.rel (0) target = $region21
  $region20: #{unet_sim3d_srd2.12} parent=0 // pred_region
    _
  $region21: #{unet_sim3d_srd2.12} parent=0 // pred_fallthru
    _

// kernel: unet_sim3d_srd2.15
$region0: #{unet_sim3d_srd2.15}
  #allocation0 [shape = 'u32[]', space=smem, size = 0x4, offset = 0x4, fixed_abs, tag = 'smem constant byte address 0x4 - core index']
  #allocation1 [shape = 'u32[144,128]{1,0:T(1,128)}', space=vmem, size = 0x12000, scoped, tag = 'internal scratch']
  %s0 = inlined_call_operand.vmem [shape: bf16[64,128], index: 0, kind: input, shape index: {}]
  %s1 = inlined_call_operand.vmem [shape: bf16[128,2], index: 1, kind: input, shape index: {}]
  %s2 = inlined_call_operand.vmem [shape: f32[64,1], index: 2, kind: input, shape index: {}]
  %s3 = inlined_call_operand.vmem [shape: bf16[64,2], index: 3, kind: output, shape index: {}]
  %s4 = sld [smem:[#allocation0]]
  $region22: #{unet_sim3d_srd2.15} parent=0
    _
  %s6 = ssub.s32 1, %s4
  %s7 = scalar_select 0, %s6, %s4
  // Predicated region
  $region2: #{unet_sim3d_srd2.15} parent=0 // pred_check
    _
  $region3: #{unet_sim3d_srd2.15} parent=0 // pred_check_branch
    %9 = sbr.rel (0) target = $region5
  $region4: #{unet_sim3d_srd2.15} parent=0 // pred_region
    _
  $region5: #{unet_sim3d_srd2.15} parent=0 // pred_fallthru
    _
  // Predicated region
  $region6: #{unet_sim3d_srd2.15} parent=0 // pred_check
    _
  $region7: #{unet_sim3d_srd2.15} parent=0 // pred_check_branch
    %11 = sbr.rel (0) target = $region9
  $region8: #{unet_sim3d_srd2.15} parent=0 // pred_region
    _
  $region9: #{unet_sim3d_srd2.15} parent=0 // pred_fallthru
    _
  // Predicated region
  $region10: #{unet_sim3d_srd2.15} parent=0 // pred_check
    _
  $region11: #{unet_sim3d_srd2.15} parent=0 // pred_check_branch
    %13 = sbr.rel (0) target = $region13
  $region12: #{unet_sim3d_srd2.15} parent=0 // pred_region
    _
  $region13: #{unet_sim3d_srd2.15} parent=0 // pred_fallthru
    _
  %v15 = vld [vmem:[%s0] sm:$0xf]
  %v16 = vld [vmem:[%s0 + $0x4] sm:$0xf]
  %v17 = vld [vmem:[%s0 + $0x8] sm:$0xf]
  %v18 = vld [vmem:[%s0 + $0xc] sm:$0xf]
  %v19 = vld [vmem:[%s0 + $0x10] sm:$0xf]
  %v20 = vld [vmem:[%s0 + $0x14] sm:$0xf]
  %v21 = vld [vmem:[%s0 + $0x18] sm:$0xf]
  %v22 = vld [vmem:[%s0 + $0x1c] sm:$0xf]
  %v23 = vld [vmem:[%s1] sm:$0xf]
  %v24 = vld [vmem:[%s1 + $0x4] sm:$0xf]
  %v25 = vld [vmem:[%s1 + $0x8] sm:$0xf]
  %v26 = vld [vmem:[%s1 + $0xc] sm:$0xf]
  %v27 = vld [vmem:[%s1 + $0x10] sm:$0xf]
  %v28 = vld [vmem:[%s1 + $0x14] sm:$0xf]
  %v29 = vld [vmem:[%s1 + $0x18] sm:$0xf]
  %v30 = vld [vmem:[%s1 + $0x1c] sm:$0xf]
  %v31 = vld [vmem:[%s1 + $0x20] sm:$0xf]
  %v32 = vld [vmem:[%s1 + $0x24] sm:$0xf]
  %v33 = vld [vmem:[%s1 + $0x28] sm:$0xf]
  %v34 = vld [vmem:[%s1 + $0x2c] sm:$0xf]
  %v35 = vld [vmem:[%s1 + $0x30] sm:$0xf]
  %v36 = vld [vmem:[%s1 + $0x34] sm:$0xf]
  %v37 = vld [vmem:[%s1 + $0x38] sm:$0xf]
  %v38 = vld [vmem:[%s1 + $0x3c] sm:$0xf]
  %v39 = vld [vmem:[%s2] sm:$0xff]
  %v40 = vld [vmem:[%s2 + $0x8] sm:$0xff]
  %v41 = vld [vmem:[%s2 + $0x10] sm:$0xff]
  %v42 = vld [vmem:[%s2 + $0x18] sm:$0xff]
  %v43 = vld [vmem:[%s2 + $0x20] sm:$0xff]
  %v44 = vld [vmem:[%s2 + $0x28] sm:$0xff]
  %v45 = vld [vmem:[%s2 + $0x30] sm:$0xff]
  %v46 = vld [vmem:[%s2 + $0x38] sm:$0xff]
  %48 = vset.pattern.permute.xlu0 0
  %49 = vperm.xlu0 %48, %v39
  %v50 = vpop.permute.xlu0 %49
  %53 = vset.pattern.permute.xlu0 0
  %54 = vperm.xlu0 %53, %v40
  %v55 = vpop.permute.xlu0 %54
  %58 = vset.pattern.permute.xlu0 0
  %59 = vperm.xlu0 %58, %v41
  %v60 = vpop.permute.xlu0 %59
  %63 = vset.pattern.permute.xlu0 0
  %64 = vperm.xlu0 %63, %v42
  %v65 = vpop.permute.xlu0 %64
  %68 = vset.pattern.permute.xlu0 0
  %69 = vperm.xlu0 %68, %v43
  %v70 = vpop.permute.xlu0 %69
  %73 = vset.pattern.permute.xlu0 0
  %74 = vperm.xlu0 %73, %v44
  %v75 = vpop.permute.xlu0 %74
  %78 = vset.pattern.permute.xlu0 0
  %79 = vperm.xlu0 %78, %v45
  %v80 = vpop.permute.xlu0 %79
  %83 = vset.pattern.permute.xlu0 0
  %84 = vperm.xlu0 %83, %v46
  %v85 = vpop.permute.xlu0 %84
  %v95 = vunpack.c.l.b16 %v15
  %v96 = vunpack.c.l.b16 %v16
  %v97 = vunpack.c.l.b16 %v17
  %v98 = vunpack.c.l.b16 %v18
  %v99 = vunpack.c.l.b16 %v19
  %v100 = vunpack.c.l.b16 %v20
  %v101 = vunpack.c.l.b16 %v21
  %v102 = vunpack.c.l.b16 %v22
  %v103 = vpack.c.b16 %v96, %v95
  %v104 = vpack.c.b16 %v98, %v97
  %v105 = vpack.c.b16 %v100, %v99
  %v106 = vpack.c.b16 %v102, %v101
  %v127 = vunpack.c.l.b16 %v23
  %v128 = vunpack.c.l.b16 %v24
  %v129 = vunpack.c.l.b16 %v25
  %v130 = vunpack.c.l.b16 %v26
  %v131 = vunpack.c.l.b16 %v27
  %v132 = vunpack.c.l.b16 %v28
  %v133 = vunpack.c.l.b16 %v29
  %v134 = vunpack.c.l.b16 %v30
  %v135 = vunpack.c.l.b16 %v31
  %v136 = vunpack.c.l.b16 %v32
  %v137 = vunpack.c.l.b16 %v33
  %v138 = vunpack.c.l.b16 %v34
  %v139 = vunpack.c.l.b16 %v35
  %v140 = vunpack.c.l.b16 %v36
  %v141 = vunpack.c.l.b16 %v37
  %v142 = vunpack.c.l.b16 %v38
  %v143 = vpack.c.b16 %v128, %v127
  %v144 = vpack.c.b16 %v130, %v129
  %v145 = vpack.c.b16 %v132, %v131
  %v146 = vpack.c.b16 %v134, %v133
  %v147 = vpack.c.b16 %v136, %v135
  %v148 = vpack.c.b16 %v138, %v137
  %v149 = vpack.c.b16 %v140, %v139
  %v150 = vpack.c.b16 %v142, %v141
  %159 = vmatprep.subr.bf16.mxu0 0
  %160 = vmatpush1.bf16.msra.mxu0 %v143
  %161 = vmatprep.subr.bf16.mxu0 0
  %162 = vmatpush1.bf16.msra.mxu0 %v144
  %163 = vmatprep.subr.bf16.mxu0 0
  %164 = vmatpush1.bf16.msra.mxu0 %v145
  %165 = vmatprep.subr.bf16.mxu0 0
  %166 = vmatpush1.bf16.msra.mxu0 %v146
  %167 = vmatprep.subr.bf16.mxu0 0
  %168 = vmatpush1.bf16.msra.mxu0 %v147
  %169 = vmatprep.subr.bf16.mxu0 0
  %170 = vmatpush1.bf16.msra.mxu0 %v148
  %171 = vmatprep.subr.bf16.mxu0 0
  %172 = vmatpush1.bf16.msra.mxu0 %v149
  %173 = vmatprep.subr.bf16.mxu0 0
  %174 = vmatpush1.bf16.msra.mxu0 %v150
  %175 = vmatprep.subr.bf16.mxu0 0
  %176 = vmatpush1.bf16.msra.mxu0 0
  %177 = vmatprep.subr.bf16.mxu0 0
  %178 = vmatpush1.bf16.msra.mxu0 0
  %179 = vmatprep.subr.bf16.mxu0 0
  %180 = vmatpush1.bf16.msra.mxu0 0
  %181 = vmatprep.subr.bf16.mxu0 0
  %182 = vmatpush1.bf16.msra.mxu0 0
  %183 = vmatprep.subr.bf16.mxu0 0
  %184 = vmatpush1.bf16.msra.mxu0 0
  %185 = vmatprep.subr.bf16.mxu0 0
  %186 = vmatpush1.bf16.msra.mxu0 0
  %187 = vmatprep.subr.bf16.mxu0 0
  %188 = vmatpush1.bf16.msra.mxu0 0
  %189 = vmatprep.subr.bf16.mxu0 0
  %190 = vmatpush1.bf16.msra.mxu0 0
  %191 = vmatprep.mubr.bf16.mxu0 0
  %192 = vmatmul.mubr.bf16.gmra.mrb[0].mxu0 %v103
  %v193 = vpop.f32.mrb[0].mxu0
  %v194 = vadd.f32 %v50, %v193
  %v195 = vpop.f32.mrb[0].mxu0
  %v196 = vpop.f32.mrb[0].mxu0
  %v197 = vadd.f32 %v55, %v196
  %v198 = vpop.f32.mrb[0].mxu0
  %199 = vmatprep.mubr.bf16.mxu0 0
  %200 = vmatmul.mubr.bf16.gmra.mrb[0].mxu0 %v104
  %v201 = vpop.f32.mrb[0].mxu0
  %v202 = vadd.f32 %v60, %v201
  %v203 = vpop.f32.mrb[0].mxu0
  %v204 = vpop.f32.mrb[0].mxu0
  %v205 = vadd.f32 %v65, %v204
  %v206 = vpop.f32.mrb[0].mxu0
  %207 = vmatprep.mubr.bf16.mxu0 0
  %208 = vmatmul.mubr.bf16.gmra.mrb[0].mxu0 %v105
  %v209 = vpop.f32.mrb[0].mxu0
  %v210 = vadd.f32 %v70, %v209
  %v211 = vpop.f32.mrb[0].mxu0
  %v212 = vpop.f32.mrb[0].mxu0
  %v213 = vadd.f32 %v75, %v212
  %v214 = vpop.f32.mrb[0].mxu0
  %215 = vmatprep.mubr.bf16.mxu0 0
  %216 = vmatmul.mubr.bf16.gmra.mrb[0].mxu0 %v106
  %v217 = vpop.f32.mrb[0].mxu0
  %v218 = vadd.f32 %v80, %v217
  %v219 = vpop.f32.mrb[0].mxu0
  %v220 = vpop.f32.mrb[0].mxu0
  %v221 = vadd.f32 %v85, %v220
  %v222 = vpop.f32.mrb[0].mxu0
  %223 = vdwg.mxu0
  %v224 = vmax.f32 %v194, 0.0
  %v225 = vmax.f32 %v197, 0.0
  %v226 = vmax.f32 %v202, 0.0
  %v227 = vmax.f32 %v205, 0.0
  %v228 = vmax.f32 %v210, 0.0
  %v229 = vmax.f32 %v213, 0.0
  %v230 = vmax.f32 %v218, 0.0
  %v231 = vmax.f32 %v221, 0.0
  %v232 = vpack.c.bf16 %v225, %v224
  %v233 = vpack.c.bf16 %v227, %v226
  %v234 = vpack.c.bf16 %v229, %v228
  %v235 = vpack.c.bf16 %v231, %v230
  %v240 = vunpack.c.l.b16 %v232
  %v241 = vunpack.c.h.b16 %v232
  %v242 = vunpack.c.l.b16 %v233
  %v243 = vunpack.c.h.b16 %v233
  %v244 = vunpack.c.l.b16 %v234
  %v245 = vunpack.c.h.b16 %v234
  %v246 = vunpack.c.l.b16 %v235
  %v247 = vunpack.c.h.b16 %v235
  %v248 = vpack.c.b16 %v240, %v240
  %v249 = vpack.c.b16 %v241, %v241
  %v250 = vpack.c.b16 %v242, %v242
  %v251 = vpack.c.b16 %v243, %v243
  %v252 = vpack.c.b16 %v244, %v244
  %v253 = vpack.c.b16 %v245, %v245
  %v254 = vpack.c.b16 %v246, %v246
  %v255 = vpack.c.b16 %v247, %v247
  %vm264 = vcmask 11264
  %265 = vst.msk [vmem:[%s3] sm:$0xf] %vm264, %v248
  %266 = vst.msk [vmem:[%s3 + $0x4] sm:$0xf] %vm264, %v249
  %267 = vst.msk [vmem:[%s3 + $0x8] sm:$0xf] %vm264, %v250
  %268 = vst.msk [vmem:[%s3 + $0xc] sm:$0xf] %vm264, %v251
  %269 = vst.msk [vmem:[%s3 + $0x10] sm:$0xf] %vm264, %v252
  %270 = vst.msk [vmem:[%s3 + $0x14] sm:$0xf] %vm264, %v253
  %271 = vst.msk [vmem:[%s3 + $0x18] sm:$0xf] %vm264, %v254
  %272 = vst.msk [vmem:[%s3 + $0x1c] sm:$0xf] %vm264, %v255
  // Predicated region
  $region14: #{unet_sim3d_srd2.15} parent=0 // pred_check
    _
  $region15: #{unet_sim3d_srd2.15} parent=0 // pred_check_branch
    %274 = sbr.rel (0) target = $region17
  $region16: #{unet_sim3d_srd2.15} parent=0 // pred_region
    _
  $region17: #{unet_sim3d_srd2.15} parent=0 // pred_fallthru
    _
  // Predicated region
  $region18: #{unet_sim3d_srd2.15} parent=0 // pred_check
    _
  $region19: #{unet_sim3d_srd2.15} parent=0 // pred_check_branch
    %276 = sbr.rel (0) target = $region21
  $region20: #{unet_sim3d_srd2.15} parent=0 // pred_region
    _
  $region21: #{unet_sim3d_srd2.15} parent=0 // pred_fallthru
    _

// kernel: unet_sim3d_srd2.14
$region0: #{unet_sim3d_srd2.14}
  #allocation0 [shape = 'u32[]', space=smem, size = 0x4, offset = 0x4, fixed_abs, tag = 'smem constant byte address 0x4 - core index']
  #allocation1 [shape = 'u32[144,128]{1,0:T(1,128)}', space=vmem, size = 0x12000, scoped, tag = 'internal scratch']
  %s0 = inlined_call_operand.vmem [shape: bf16[16,1728], index: 0, kind: input, shape index: {}]
  %s1 = inlined_call_operand.vmem [shape: bf16[1728,2], index: 1, kind: input, shape index: {}]
  %s2 = inlined_call_operand.vmem [shape: f32[16,1], index: 2, kind: input, shape index: {}]
  %s3 = inlined_call_operand.vmem [shape: bf16[16,2], index: 3, kind: output, shape index: {}]
  %s4 = sld [smem:[#allocation0]]
  $region22: #{unet_sim3d_srd2.14} parent=0
    _
  %s6 = ssub.s32 1, %s4
  %s7 = scalar_select 0, %s6, %s4
  // Predicated region
  $region2: #{unet_sim3d_srd2.14} parent=0 // pred_check
    _
  $region3: #{unet_sim3d_srd2.14} parent=0 // pred_check_branch
    %9 = sbr.rel (0) target = $region5
  $region4: #{unet_sim3d_srd2.14} parent=0 // pred_region
    _
  $region5: #{unet_sim3d_srd2.14} parent=0 // pred_fallthru
    _
  // Predicated region
  $region6: #{unet_sim3d_srd2.14} parent=0 // pred_check
    _
  $region7: #{unet_sim3d_srd2.14} parent=0 // pred_check_branch
    %11 = sbr.rel (0) target = $region9
  $region8: #{unet_sim3d_srd2.14} parent=0 // pred_region
    _
  $region9: #{unet_sim3d_srd2.14} parent=0 // pred_fallthru
    _
  // Predicated region
  $region10: #{unet_sim3d_srd2.14} parent=0 // pred_check
    _
  $region11: #{unet_sim3d_srd2.14} parent=0 // pred_check_branch
    %13 = sbr.rel (0) target = $region13
  $region12: #{unet_sim3d_srd2.14} parent=0 // pred_region
    _
  $region13: #{unet_sim3d_srd2.14} parent=0 // pred_fallthru
    _
  %v15 = vld [vmem:[%s0] sm:$0xff]
  %v16 = vld [vmem:[%s0 + $0x8] sm:$0xff]
  %v17 = vld [vmem:[%s0 + $0x10] sm:$0xff]
  %v18 = vld [vmem:[%s0 + $0x18] sm:$0xff]
  %v19 = vld [vmem:[%s0 + $0x20] sm:$0xff]
  %v20 = vld [vmem:[%s0 + $0x28] sm:$0xff]
  %v21 = vld [vmem:[%s0 + $0x30] sm:$0xff]
  %v22 = vld [vmem:[%s0 + $0x38] sm:$0xff]
  %v23 = vld [vmem:[%s0 + $0x40] sm:$0xff]
  %v24 = vld [vmem:[%s0 + $0x48] sm:$0xff]
  %v25 = vld [vmem:[%s0 + $0x50] sm:$0xff]
  %v26 = vld [vmem:[%s0 + $0x58] sm:$0xff]
  %v27 = vld [vmem:[%s0 + $0x60] sm:$0xff]
  %v28 = vld [vmem:[%s0 + $0x68] sm:$0xff]
  %v29 = vld [vmem:[%s1] sm:$0xf]
  %v30 = vld [vmem:[%s1 + $0x4] sm:$0xf]
  %v31 = vld [vmem:[%s1 + $0x8] sm:$0xf]
  %v32 = vld [vmem:[%s1 + $0xc] sm:$0xf]
  %v33 = vld [vmem:[%s1 + $0x10] sm:$0xf]
  %v34 = vld [vmem:[%s1 + $0x14] sm:$0xf]
  %v35 = vld [vmem:[%s1 + $0x18] sm:$0xf]
  %v36 = vld [vmem:[%s1 + $0x1c] sm:$0xf]
  %v37 = vld [vmem:[%s1 + $0x20] sm:$0xf]
  %v38 = vld [vmem:[%s1 + $0x24] sm:$0xf]
  %v39 = vld [vmem:[%s1 + $0x28] sm:$0xf]
  %v40 = vld [vmem:[%s1 + $0x2c] sm:$0xf]
  %v41 = vld [vmem:[%s1 + $0x30] sm:$0xf]
  %v42 = vld [vmem:[%s1 + $0x34] sm:$0xf]
  %v43 = vld [vmem:[%s1 + $0x38] sm:$0xf]
  %v44 = vld [vmem:[%s1 + $0x3c] sm:$0xf]
  %v45 = vld [vmem:[%s1 + $0x40] sm:$0xf]
  %v46 = vld [vmem:[%s1 + $0x44] sm:$0xf]
  %v47 = vld [vmem:[%s1 + $0x48] sm:$0xf]
  %v48 = vld [vmem:[%s1 + $0x4c] sm:$0xf]
  %v49 = vld [vmem:[%s1 + $0x50] sm:$0xf]
  %v50 = vld [vmem:[%s1 + $0x54] sm:$0xf]
  %v51 = vld [vmem:[%s1 + $0x58] sm:$0xf]
  %v52 = vld [vmem:[%s1 + $0x5c] sm:$0xf]
  %v53 = vld [vmem:[%s1 + $0x60] sm:$0xf]
  %v54 = vld [vmem:[%s1 + $0x64] sm:$0xf]
  %v55 = vld [vmem:[%s1 + $0x68] sm:$0xf]
  %v56 = vld [vmem:[%s1 + $0x6c] sm:$0xf]
  %v57 = vld [vmem:[%s1 + $0x70] sm:$0xf]
  %v58 = vld [vmem:[%s1 + $0x74] sm:$0xf]
  %v59 = vld [vmem:[%s1 + $0x78] sm:$0xf]
  %v60 = vld [vmem:[%s1 + $0x7c] sm:$0xf]
  %v61 = vld [vmem:[%s1 + $0x80] sm:$0xf]
  %v62 = vld [vmem:[%s1 + $0x84] sm:$0xf]
  %v63 = vld [vmem:[%s1 + $0x88] sm:$0xf]
  %v64 = vld [vmem:[%s1 + $0x8c] sm:$0xf]
  %v65 = vld [vmem:[%s1 + $0x90] sm:$0xf]
  %v66 = vld [vmem:[%s1 + $0x94] sm:$0xf]
  %v67 = vld [vmem:[%s1 + $0x98] sm:$0xf]
  %v68 = vld [vmem:[%s1 + $0x9c] sm:$0xf]
  %v69 = vld [vmem:[%s1 + $0xa0] sm:$0xf]
  %v70 = vld [vmem:[%s1 + $0xa4] sm:$0xf]
  %v71 = vld [vmem:[%s1 + $0xa8] sm:$0xf]
  %v72 = vld [vmem:[%s1 + $0xac] sm:$0xf]
  %v73 = vld [vmem:[%s1 + $0xb0] sm:$0xf]
  %v74 = vld [vmem:[%s1 + $0xb4] sm:$0xf]
  %v75 = vld [vmem:[%s1 + $0xb8] sm:$0xf]
  %v76 = vld [vmem:[%s1 + $0xbc] sm:$0xf]
  %v77 = vld [vmem:[%s1 + $0xc0] sm:$0xf]
  %v78 = vld [vmem:[%s1 + $0xc4] sm:$0xf]
  %v79 = vld [vmem:[%s1 + $0xc8] sm:$0xf]
  %v80 = vld [vmem:[%s1 + $0xcc] sm:$0xf]
  %v81 = vld [vmem:[%s1 + $0xd0] sm:$0xf]
  %v82 = vld [vmem:[%s1 + $0xd4] sm:$0xf]
  %v83 = vld [vmem:[%s1 + $0xd8] sm:$0xf]
  %v84 = vld [vmem:[%s1 + $0xdc] sm:$0xf]
  %v85 = vld [vmem:[%s1 + $0xe0] sm:$0xf]
  %v86 = vld [vmem:[%s1 + $0xe4] sm:$0xf]
  %v87 = vld [vmem:[%s1 + $0xe8] sm:$0xf]
  %v88 = vld [vmem:[%s1 + $0xec] sm:$0xf]
  %v89 = vld [vmem:[%s1 + $0xf0] sm:$0xf]
  %v90 = vld [vmem:[%s1 + $0xf4] sm:$0xf]
  %v91 = vld [vmem:[%s1 + $0xf8] sm:$0xf]
  %v92 = vld [vmem:[%s1 + $0xfc] sm:$0xf]
  %v93 = vld [vmem:[%s1 + $0x100] sm:$0xf]
  %v94 = vld [vmem:[%s1 + $0x104] sm:$0xf]
  %v95 = vld [vmem:[%s1 + $0x108] sm:$0xf]
  %v96 = vld [vmem:[%s1 + $0x10c] sm:$0xf]
  %v97 = vld [vmem:[%s1 + $0x110] sm:$0xf]
  %v98 = vld [vmem:[%s1 + $0x114] sm:$0xf]
  %v99 = vld [vmem:[%s1 + $0x118] sm:$0xf]
  %v100 = vld [vmem:[%s1 + $0x11c] sm:$0xf]
  %v101 = vld [vmem:[%s1 + $0x120] sm:$0xf]
  %v102 = vld [vmem:[%s1 + $0x124] sm:$0xf]
  %v103 = vld [vmem:[%s1 + $0x128] sm:$0xf]
  %v104 = vld [vmem:[%s1 + $0x12c] sm:$0xf]
  %v105 = vld [vmem:[%s1 + $0x130] sm:$0xf]
  %v106 = vld [vmem:[%s1 + $0x134] sm:$0xf]
  %v107 = vld [vmem:[%s1 + $0x138] sm:$0xf]
  %v108 = vld [vmem:[%s1 + $0x13c] sm:$0xf]
  %v109 = vld [vmem:[%s1 + $0x140] sm:$0xf]
  %v110 = vld [vmem:[%s1 + $0x144] sm:$0xf]
  %v111 = vld [vmem:[%s1 + $0x148] sm:$0xf]
  %v112 = vld [vmem:[%s1 + $0x14c] sm:$0xf]
  %v113 = vld [vmem:[%s1 + $0x150] sm:$0xf]
  %v114 = vld [vmem:[%s1 + $0x154] sm:$0xf]
  %v115 = vld [vmem:[%s1 + $0x158] sm:$0xf]
  %v116 = vld [vmem:[%s1 + $0x15c] sm:$0xf]
  %v117 = vld [vmem:[%s1 + $0x160] sm:$0xf]
  %v118 = vld [vmem:[%s1 + $0x164] sm:$0xf]
  %v119 = vld [vmem:[%s1 + $0x168] sm:$0xf]
  %v120 = vld [vmem:[%s1 + $0x16c] sm:$0xf]
  %v121 = vld [vmem:[%s1 + $0x170] sm:$0xf]
  %v122 = vld [vmem:[%s1 + $0x174] sm:$0xf]
  %v123 = vld [vmem:[%s1 + $0x178] sm:$0xf]
  %v124 = vld [vmem:[%s1 + $0x17c] sm:$0xf]
  %v125 = vld [vmem:[%s1 + $0x180] sm:$0xf]
  %v126 = vld [vmem:[%s1 + $0x184] sm:$0xf]
  %v127 = vld [vmem:[%s1 + $0x188] sm:$0xf]
  %v128 = vld [vmem:[%s1 + $0x18c] sm:$0xf]
  %v129 = vld [vmem:[%s1 + $0x190] sm:$0xf]
  %v130 = vld [vmem:[%s1 + $0x194] sm:$0xf]
  %v131 = vld [vmem:[%s1 + $0x198] sm:$0xf]
  %v132 = vld [vmem:[%s1 + $0x19c] sm:$0xf]
  %v133 = vld [vmem:[%s1 + $0x1a0] sm:$0xf]
  %v134 = vld [vmem:[%s1 + $0x1a4] sm:$0xf]
  %v135 = vld [vmem:[%s1 + $0x1a8] sm:$0xf]
  %v136 = vld [vmem:[%s1 + $0x1ac] sm:$0xf]
  %v137 = vld [vmem:[%s1 + $0x1b0] sm:$0xf]
  %v138 = vld [vmem:[%s1 + $0x1b4] sm:$0xf]
  %v139 = vld [vmem:[%s1 + $0x1b8] sm:$0xf]
  %v140 = vld [vmem:[%s1 + $0x1bc] sm:$0xf]
  %v141 = vld [vmem:[%s1 + $0x1c0] sm:$0xf]
  %v142 = vld [vmem:[%s1 + $0x1c4] sm:$0xf]
  %v143 = vld [vmem:[%s1 + $0x1c8] sm:$0xf]
  %v144 = vld [vmem:[%s1 + $0x1cc] sm:$0xf]
  %v145 = vld [vmem:[%s1 + $0x1d0] sm:$0xf]
  %v146 = vld [vmem:[%s1 + $0x1d4] sm:$0xf]
  %v147 = vld [vmem:[%s1 + $0x1d8] sm:$0xf]
  %v148 = vld [vmem:[%s1 + $0x1dc] sm:$0xf]
  %v149 = vld [vmem:[%s1 + $0x1e0] sm:$0xf]
  %v150 = vld [vmem:[%s1 + $0x1e4] sm:$0xf]
  %v151 = vld [vmem:[%s1 + $0x1e8] sm:$0xf]
  %v152 = vld [vmem:[%s1 + $0x1ec] sm:$0xf]
  %v153 = vld [vmem:[%s1 + $0x1f0] sm:$0xf]
  %v154 = vld [vmem:[%s1 + $0x1f4] sm:$0xf]
  %v155 = vld [vmem:[%s1 + $0x1f8] sm:$0xf]
  %v156 = vld [vmem:[%s1 + $0x1fc] sm:$0xf]
  %v157 = vld [vmem:[%s1 + $0x200] sm:$0xf]
  %v158 = vld [vmem:[%s1 + $0x204] sm:$0xf]
  %v159 = vld [vmem:[%s1 + $0x208] sm:$0xf]
  %v160 = vld [vmem:[%s1 + $0x20c] sm:$0xf]
  %v161 = vld [vmem:[%s1 + $0x210] sm:$0xf]
  %v162 = vld [vmem:[%s1 + $0x214] sm:$0xf]
  %v163 = vld [vmem:[%s1 + $0x218] sm:$0xf]
  %v164 = vld [vmem:[%s1 + $0x21c] sm:$0xf]
  %v165 = vld [vmem:[%s1 + $0x220] sm:$0xf]
  %v166 = vld [vmem:[%s1 + $0x224] sm:$0xf]
  %v167 = vld [vmem:[%s1 + $0x228] sm:$0xf]
  %v168 = vld [vmem:[%s1 + $0x22c] sm:$0xf]
  %v169 = vld [vmem:[%s1 + $0x230] sm:$0xf]
  %v170 = vld [vmem:[%s1 + $0x234] sm:$0xf]
  %v171 = vld [vmem:[%s1 + $0x238] sm:$0xf]
  %v172 = vld [vmem:[%s1 + $0x23c] sm:$0xf]
  %v173 = vld [vmem:[%s1 + $0x240] sm:$0xf]
  %v174 = vld [vmem:[%s1 + $0x244] sm:$0xf]
  %v175 = vld [vmem:[%s1 + $0x248] sm:$0xf]
  %v176 = vld [vmem:[%s1 + $0x24c] sm:$0xf]
  %v177 = vld [vmem:[%s1 + $0x250] sm:$0xf]
  %v178 = vld [vmem:[%s1 + $0x254] sm:$0xf]
  %v179 = vld [vmem:[%s1 + $0x258] sm:$0xf]
  %v180 = vld [vmem:[%s1 + $0x25c] sm:$0xf]
  %v181 = vld [vmem:[%s1 + $0x260] sm:$0xf]
  %v182 = vld [vmem:[%s1 + $0x264] sm:$0xf]
  %v183 = vld [vmem:[%s1 + $0x268] sm:$0xf]
  %v184 = vld [vmem:[%s1 + $0x26c] sm:$0xf]
  %v185 = vld [vmem:[%s1 + $0x270] sm:$0xf]
  %v186 = vld [vmem:[%s1 + $0x274] sm:$0xf]
  %v187 = vld [vmem:[%s1 + $0x278] sm:$0xf]
  %v188 = vld [vmem:[%s1 + $0x27c] sm:$0xf]
  %v189 = vld [vmem:[%s1 + $0x280] sm:$0xf]
  %v190 = vld [vmem:[%s1 + $0x284] sm:$0xf]
  %v191 = vld [vmem:[%s1 + $0x288] sm:$0xf]
  %v192 = vld [vmem:[%s1 + $0x28c] sm:$0xf]
  %v193 = vld [vmem:[%s1 + $0x290] sm:$0xf]
  %v194 = vld [vmem:[%s1 + $0x294] sm:$0xf]
  %v195 = vld [vmem:[%s1 + $0x298] sm:$0xf]
  %v196 = vld [vmem:[%s1 + $0x29c] sm:$0xf]
  %v197 = vld [vmem:[%s1 + $0x2a0] sm:$0xf]
  %v198 = vld [vmem:[%s1 + $0x2a4] sm:$0xf]
  %v199 = vld [vmem:[%s1 + $0x2a8] sm:$0xf]
  %v200 = vld [vmem:[%s1 + $0x2ac] sm:$0xf]
  %v201 = vld [vmem:[%s1 + $0x2b0] sm:$0xf]
  %v202 = vld [vmem:[%s1 + $0x2b4] sm:$0xf]
  %v203 = vld [vmem:[%s1 + $0x2b8] sm:$0xf]
  %v204 = vld [vmem:[%s1 + $0x2bc] sm:$0xf]
  %v205 = vld [vmem:[%s1 + $0x2c0] sm:$0xf]
  %v206 = vld [vmem:[%s1 + $0x2c4] sm:$0xf]
  %v207 = vld [vmem:[%s1 + $0x2c8] sm:$0xf]
  %v208 = vld [vmem:[%s1 + $0x2cc] sm:$0xf]
  %v209 = vld [vmem:[%s1 + $0x2d0] sm:$0xf]
  %v210 = vld [vmem:[%s1 + $0x2d4] sm:$0xf]
  %v211 = vld [vmem:[%s1 + $0x2d8] sm:$0xf]
  %v212 = vld [vmem:[%s1 + $0x2dc] sm:$0xf]
  %v213 = vld [vmem:[%s1 + $0x2e0] sm:$0xf]
  %v214 = vld [vmem:[%s1 + $0x2e4] sm:$0xf]
  %v215 = vld [vmem:[%s1 + $0x2e8] sm:$0xf]
  %v216 = vld [vmem:[%s1 + $0x2ec] sm:$0xf]
  %v217 = vld [vmem:[%s1 + $0x2f0] sm:$0xf]
  %v218 = vld [vmem:[%s1 + $0x2f4] sm:$0xf]
  %v219 = vld [vmem:[%s1 + $0x2f8] sm:$0xf]
  %v220 = vld [vmem:[%s1 + $0x2fc] sm:$0xf]
  %v221 = vld [vmem:[%s1 + $0x300] sm:$0xf]
  %v222 = vld [vmem:[%s1 + $0x304] sm:$0xf]
  %v223 = vld [vmem:[%s1 + $0x308] sm:$0xf]
  %v224 = vld [vmem:[%s1 + $0x30c] sm:$0xf]
  %v225 = vld [vmem:[%s1 + $0x310] sm:$0xf]
  %v226 = vld [vmem:[%s1 + $0x314] sm:$0xf]
  %v227 = vld [vmem:[%s1 + $0x318] sm:$0xf]
  %v228 = vld [vmem:[%s1 + $0x31c] sm:$0xf]
  %v229 = vld [vmem:[%s1 + $0x320] sm:$0xf]
  %v230 = vld [vmem:[%s1 + $0x324] sm:$0xf]
  %v231 = vld [vmem:[%s1 + $0x328] sm:$0xf]
  %v232 = vld [vmem:[%s1 + $0x32c] sm:$0xf]
  %v233 = vld [vmem:[%s1 + $0x330] sm:$0xf]
  %v234 = vld [vmem:[%s1 + $0x334] sm:$0xf]
  %v235 = vld [vmem:[%s1 + $0x338] sm:$0xf]
  %v236 = vld [vmem:[%s1 + $0x33c] sm:$0xf]
  %v237 = vld [vmem:[%s1 + $0x340] sm:$0xf]
  %v238 = vld [vmem:[%s1 + $0x344] sm:$0xf]
  %v239 = vld [vmem:[%s1 + $0x348] sm:$0xf]
  %v240 = vld [vmem:[%s1 + $0x34c] sm:$0xf]
  %v241 = vld [vmem:[%s1 + $0x350] sm:$0xf]
  %v242 = vld [vmem:[%s1 + $0x354] sm:$0xf]
  %v243 = vld [vmem:[%s1 + $0x358] sm:$0xf]
  %v244 = vld [vmem:[%s1 + $0x35c] sm:$0xf]
  %v245 = vld [vmem:[%s2] sm:$0xff]
  %v246 = vld [vmem:[%s2 + $0x8] sm:$0xff]
  %248 = vset.pattern.permute.xlu0 0
  %249 = vperm.xlu0 %248, %v245
  %v250 = vpop.permute.xlu0 %249
  %253 = vset.pattern.permute.xlu0 0
  %254 = vperm.xlu0 %253, %v246
  %v255 = vpop.permute.xlu0 %254
  %v271 = vunpack.c.l.b16 %v15
  %v272 = vunpack.c.h.b16 %v15
  %v273 = vunpack.c.l.b16 %v16
  %v274 = vunpack.c.h.b16 %v16
  %v275 = vunpack.c.l.b16 %v17
  %v276 = vunpack.c.h.b16 %v17
  %v277 = vunpack.c.l.b16 %v18
  %v278 = vunpack.c.h.b16 %v18
  %v279 = vunpack.c.l.b16 %v19
  %v280 = vunpack.c.h.b16 %v19
  %v281 = vunpack.c.l.b16 %v20
  %v282 = vunpack.c.h.b16 %v20
  %v283 = vunpack.c.l.b16 %v21
  %v284 = vunpack.c.h.b16 %v21
  %v285 = vunpack.c.l.b16 %v22
  %v286 = vunpack.c.h.b16 %v22
  %v287 = vunpack.c.l.b16 %v23
  %v288 = vunpack.c.h.b16 %v23
  %v289 = vunpack.c.l.b16 %v24
  %v290 = vunpack.c.h.b16 %v24
  %v291 = vunpack.c.l.b16 %v25
  %v292 = vunpack.c.h.b16 %v25
  %v293 = vunpack.c.l.b16 %v26
  %v294 = vunpack.c.h.b16 %v26
  %v295 = vunpack.c.l.b16 %v27
  %v296 = vunpack.c.h.b16 %v27
  %v297 = vunpack.c.l.b16 %v28
  %v298 = vunpack.c.h.b16 %v28
  %v299 = vpack.c.b16 %v285, %v271
  %v300 = vpack.c.b16 %v286, %v272
  %v301 = vpack.c.b16 %v287, %v273
  %v302 = vpack.c.b16 %v288, %v274
  %v303 = vpack.c.b16 %v289, %v275
  %v304 = vpack.c.b16 %v290, %v276
  %v305 = vpack.c.b16 %v291, %v277
  %v306 = vpack.c.b16 %v292, %v278
  %v307 = vpack.c.b16 %v293, %v279
  %v308 = vpack.c.b16 %v294, %v280
  %v309 = vpack.c.b16 %v295, %v281
  %v310 = vpack.c.b16 %v296, %v282
  %v311 = vpack.c.b16 %v297, %v283
  %v312 = vpack.c.b16 %v298, %v284
  %v542 = vunpack.c.l.b16 %v29
  %v543 = vunpack.c.l.b16 %v30
  %v544 = vunpack.c.l.b16 %v31
  %v545 = vunpack.c.l.b16 %v32
  %v546 = vunpack.c.l.b16 %v33
  %v547 = vunpack.c.l.b16 %v34
  %v548 = vunpack.c.l.b16 %v35
  %v549 = vunpack.c.l.b16 %v36
  %v550 = vunpack.c.l.b16 %v37
  %v551 = vunpack.c.l.b16 %v38
  %v552 = vunpack.c.l.b16 %v39
  %v553 = vunpack.c.l.b16 %v40
  %v554 = vunpack.c.l.b16 %v41
  %v555 = vunpack.c.l.b16 %v42
  %v556 = vunpack.c.l.b16 %v43
  %v557 = vunpack.c.l.b16 %v44
  %v558 = vunpack.c.l.b16 %v45
  %v559 = vunpack.c.l.b16 %v46
  %v560 = vunpack.c.l.b16 %v47
  %v561 = vunpack.c.l.b16 %v48
  %v562 = vunpack.c.l.b16 %v49
  %v563 = vunpack.c.l.b16 %v50
  %v564 = vunpack.c.l.b16 %v51
  %v565 = vunpack.c.l.b16 %v52
  %v566 = vunpack.c.l.b16 %v53
  %v567 = vunpack.c.l.b16 %v54
  %v568 = vunpack.c.l.b16 %v55
  %v569 = vunpack.c.l.b16 %v56
  %v570 = vunpack.c.l.b16 %v57
  %v571 = vunpack.c.l.b16 %v58
  %v572 = vunpack.c.l.b16 %v59
  %v573 = vunpack.c.l.b16 %v60
  %v574 = vunpack.c.l.b16 %v61
  %v575 = vunpack.c.l.b16 %v62
  %v576 = vunpack.c.l.b16 %v63
  %v577 = vunpack.c.l.b16 %v64
  %v578 = vunpack.c.l.b16 %v65
  %v579 = vunpack.c.l.b16 %v66
  %v580 = vunpack.c.l.b16 %v67
  %v581 = vunpack.c.l.b16 %v68
  %v582 = vunpack.c.l.b16 %v69
  %v583 = vunpack.c.l.b16 %v70
  %v584 = vunpack.c.l.b16 %v71
  %v585 = vunpack.c.l.b16 %v72
  %v586 = vunpack.c.l.b16 %v73
  %v587 = vunpack.c.l.b16 %v74
  %v588 = vunpack.c.l.b16 %v75
  %v589 = vunpack.c.l.b16 %v76
  %v590 = vunpack.c.l.b16 %v77
  %v591 = vunpack.c.l.b16 %v78
  %v592 = vunpack.c.l.b16 %v79
  %v593 = vunpack.c.l.b16 %v80
  %v594 = vunpack.c.l.b16 %v81
  %v595 = vunpack.c.l.b16 %v82
  %v596 = vunpack.c.l.b16 %v83
  %v597 = vunpack.c.l.b16 %v84
  %v598 = vunpack.c.l.b16 %v85
  %v599 = vunpack.c.l.b16 %v86
  %v600 = vunpack.c.l.b16 %v87
  %v601 = vunpack.c.l.b16 %v88
  %v602 = vunpack.c.l.b16 %v89
  %v603 = vunpack.c.l.b16 %v90
  %v604 = vunpack.c.l.b16 %v91
  %v605 = vunpack.c.l.b16 %v92
  %v606 = vunpack.c.l.b16 %v93
  %v607 = vunpack.c.l.b16 %v94
  %v608 = vunpack.c.l.b16 %v95
  %v609 = vunpack.c.l.b16 %v96
  %v610 = vunpack.c.l.b16 %v97
  %v611 = vunpack.c.l.b16 %v98
  %v612 = vunpack.c.l.b16 %v99
  %v613 = vunpack.c.l.b16 %v100
  %v614 = vunpack.c.l.b16 %v101
  %v615 = vunpack.c.l.b16 %v102
  %v616 = vunpack.c.l.b16 %v103
  %v617 = vunpack.c.l.b16 %v104
  %v618 = vunpack.c.l.b16 %v105
  %v619 = vunpack.c.l.b16 %v106
  %v620 = vunpack.c.l.b16 %v107
  %v621 = vunpack.c.l.b16 %v108
  %v622 = vunpack.c.l.b16 %v109
  %v623 = vunpack.c.l.b16 %v110
  %v624 = vunpack.c.l.b16 %v111
  %v625 = vunpack.c.l.b16 %v112
  %v626 = vunpack.c.l.b16 %v113
  %v627 = vunpack.c.l.b16 %v114
  %v628 = vunpack.c.l.b16 %v115
  %v629 = vunpack.c.l.b16 %v116
  %v630 = vunpack.c.l.b16 %v117
  %v631 = vunpack.c.l.b16 %v118
  %v632 = vunpack.c.l.b16 %v119
  %v633 = vunpack.c.l.b16 %v120
  %v634 = vunpack.c.l.b16 %v121
  %v635 = vunpack.c.l.b16 %v122
  %v636 = vunpack.c.l.b16 %v123
  %v637 = vunpack.c.l.b16 %v124
  %v638 = vunpack.c.l.b16 %v125
  %v639 = vunpack.c.l.b16 %v126
  %v640 = vunpack.c.l.b16 %v127
  %v641 = vunpack.c.l.b16 %v128
  %v642 = vunpack.c.l.b16 %v129
  %v643 = vunpack.c.l.b16 %v130
  %v644 = vunpack.c.l.b16 %v131
  %v645 = vunpack.c.l.b16 %v132
  %v646 = vunpack.c.l.b16 %v133
  %v647 = vunpack.c.l.b16 %v134
  %v648 = vunpack.c.l.b16 %v135
  %v649 = vunpack.c.l.b16 %v136
  %v650 = vunpack.c.l.b16 %v137
  %v651 = vunpack.c.l.b16 %v138
  %v652 = vunpack.c.l.b16 %v139
  %v653 = vunpack.c.l.b16 %v140
  %v654 = vunpack.c.l.b16 %v141
  %v655 = vunpack.c.l.b16 %v142
  %v656 = vunpack.c.l.b16 %v143
  %v657 = vunpack.c.l.b16 %v144
  %v658 = vunpack.c.l.b16 %v145
  %v659 = vunpack.c.l.b16 %v146
  %v660 = vunpack.c.l.b16 %v147
  %v661 = vunpack.c.l.b16 %v148
  %v662 = vunpack.c.l.b16 %v149
  %v663 = vunpack.c.l.b16 %v150
  %v664 = vunpack.c.l.b16 %v151
  %v665 = vunpack.c.l.b16 %v152
  %v666 = vunpack.c.l.b16 %v153
  %v667 = vunpack.c.l.b16 %v154
  %v668 = vunpack.c.l.b16 %v155
  %v669 = vunpack.c.l.b16 %v156
  %v670 = vunpack.c.l.b16 %v157
  %v671 = vunpack.c.l.b16 %v158
  %v672 = vunpack.c.l.b16 %v159
  %v673 = vunpack.c.l.b16 %v160
  %v674 = vunpack.c.l.b16 %v161
  %v675 = vunpack.c.l.b16 %v162
  %v676 = vunpack.c.l.b16 %v163
  %v677 = vunpack.c.l.b16 %v164
  %v678 = vunpack.c.l.b16 %v165
  %v679 = vunpack.c.l.b16 %v166
  %v680 = vunpack.c.l.b16 %v167
  %v681 = vunpack.c.l.b16 %v168
  %v682 = vunpack.c.l.b16 %v169
  %v683 = vunpack.c.l.b16 %v170
  %v684 = vunpack.c.l.b16 %v171
  %v685 = vunpack.c.l.b16 %v172
  %v686 = vunpack.c.l.b16 %v173
  %v687 = vunpack.c.l.b16 %v174
  %v688 = vunpack.c.l.b16 %v175
  %v689 = vunpack.c.l.b16 %v176
  %v690 = vunpack.c.l.b16 %v177
  %v691 = vunpack.c.l.b16 %v178
  %v692 = vunpack.c.l.b16 %v179
  %v693 = vunpack.c.l.b16 %v180
  %v694 = vunpack.c.l.b16 %v181
  %v695 = vunpack.c.l.b16 %v182
  %v696 = vunpack.c.l.b16 %v183
  %v697 = vunpack.c.l.b16 %v184
  %v698 = vunpack.c.l.b16 %v185
  %v699 = vunpack.c.l.b16 %v186
  %v700 = vunpack.c.l.b16 %v187
  %v701 = vunpack.c.l.b16 %v188
  %v702 = vunpack.c.l.b16 %v189
  %v703 = vunpack.c.l.b16 %v190
  %v704 = vunpack.c.l.b16 %v191
  %v705 = vunpack.c.l.b16 %v192
  %v706 = vunpack.c.l.b16 %v193
  %v707 = vunpack.c.l.b16 %v194
  %v708 = vunpack.c.l.b16 %v195
  %v709 = vunpack.c.l.b16 %v196
  %v710 = vunpack.c.l.b16 %v197
  %v711 = vunpack.c.l.b16 %v198
  %v712 = vunpack.c.l.b16 %v199
  %v713 = vunpack.c.l.b16 %v200
  %v714 = vunpack.c.l.b16 %v201
  %v715 = vunpack.c.l.b16 %v202
  %v716 = vunpack.c.l.b16 %v203
  %v717 = vunpack.c.l.b16 %v204
  %v718 = vunpack.c.l.b16 %v205
  %v719 = vunpack.c.l.b16 %v206
  %v720 = vunpack.c.l.b16 %v207
  %v721 = vunpack.c.l.b16 %v208
  %v722 = vunpack.c.l.b16 %v209
  %v723 = vunpack.c.l.b16 %v210
  %v724 = vunpack.c.l.b16 %v211
  %v725 = vunpack.c.l.b16 %v212
  %v726 = vunpack.c.l.b16 %v213
  %v727 = vunpack.c.l.b16 %v214
  %v728 = vunpack.c.l.b16 %v215
  %v729 = vunpack.c.l.b16 %v216
  %v730 = vunpack.c.l.b16 %v217
  %v731 = vunpack.c.l.b16 %v218
  %v732 = vunpack.c.l.b16 %v219
  %v733 = vunpack.c.l.b16 %v220
  %v734 = vunpack.c.l.b16 %v221
  %v735 = vunpack.c.l.b16 %v222
  %v736 = vunpack.c.l.b16 %v223
  %v737 = vunpack.c.l.b16 %v224
  %v738 = vunpack.c.l.b16 %v225
  %v739 = vunpack.c.l.b16 %v226
  %v740 = vunpack.c.l.b16 %v227
  %v741 = vunpack.c.l.b16 %v228
  %v742 = vunpack.c.l.b16 %v229
  %v743 = vunpack.c.l.b16 %v230
  %v744 = vunpack.c.l.b16 %v231
  %v745 = vunpack.c.l.b16 %v232
  %v746 = vunpack.c.l.b16 %v233
  %v747 = vunpack.c.l.b16 %v234
  %v748 = vunpack.c.l.b16 %v235
  %v749 = vunpack.c.l.b16 %v236
  %v750 = vunpack.c.l.b16 %v237
  %v751 = vunpack.c.l.b16 %v238
  %v752 = vunpack.c.l.b16 %v239
  %v753 = vunpack.c.l.b16 %v240
  %v754 = vunpack.c.l.b16 %v241
  %v755 = vunpack.c.l.b16 %v242
  %v756 = vunpack.c.l.b16 %v243
  %v757 = vunpack.c.l.b16 %v244
  %v758 = vpack.c.b16 %v543, %v542
  %v759 = vpack.c.b16 %v545, %v544
  %v760 = vpack.c.b16 %v547, %v546
  %v761 = vpack.c.b16 %v549, %v548
  %v762 = vpack.c.b16 %v551, %v550
  %v763 = vpack.c.b16 %v553, %v552
  %v764 = vpack.c.b16 %v555, %v554
  %v765 = vpack.c.b16 %v557, %v556
  %v766 = vpack.c.b16 %v559, %v558
  %v767 = vpack.c.b16 %v561, %v560
  %v768 = vpack.c.b16 %v563, %v562
  %v769 = vpack.c.b16 %v565, %v564
  %v770 = vpack.c.b16 %v567, %v566
  %v771 = vpack.c.b16 %v569, %v568
  %v772 = vpack.c.b16 %v571, %v570
  %v773 = vpack.c.b16 %v573, %v572
  %v774 = vpack.c.b16 %v575, %v574
  %v775 = vpack.c.b16 %v577, %v576
  %v776 = vpack.c.b16 %v579, %v578
  %v777 = vpack.c.b16 %v581, %v580
  %v778 = vpack.c.b16 %v583, %v582
  %v779 = vpack.c.b16 %v585, %v584
  %v780 = vpack.c.b16 %v587, %v586
  %v781 = vpack.c.b16 %v589, %v588
  %v782 = vpack.c.b16 %v591, %v590
  %v783 = vpack.c.b16 %v593, %v592
  %v784 = vpack.c.b16 %v595, %v594
  %v785 = vpack.c.b16 %v597, %v596
  %v786 = vpack.c.b16 %v599, %v598
  %v787 = vpack.c.b16 %v601, %v600
  %v788 = vpack.c.b16 %v603, %v602
  %v789 = vpack.c.b16 %v605, %v604
  %v790 = vpack.c.b16 %v607, %v606
  %v791 = vpack.c.b16 %v609, %v608
  %v792 = vpack.c.b16 %v611, %v610
  %v793 = vpack.c.b16 %v613, %v612
  %v794 = vpack.c.b16 %v615, %v614
  %v795 = vpack.c.b16 %v617, %v616
  %v796 = vpack.c.b16 %v619, %v618
  %v797 = vpack.c.b16 %v621, %v620
  %v798 = vpack.c.b16 %v623, %v622
  %v799 = vpack.c.b16 %v625, %v624
  %v800 = vpack.c.b16 %v627, %v626
  %v801 = vpack.c.b16 %v629, %v628
  %v802 = vpack.c.b16 %v631, %v630
  %v803 = vpack.c.b16 %v633, %v632
  %v804 = vpack.c.b16 %v635, %v634
  %v805 = vpack.c.b16 %v637, %v636
  %v806 = vpack.c.b16 %v639, %v638
  %v807 = vpack.c.b16 %v641, %v640
  %v808 = vpack.c.b16 %v643, %v642
  %v809 = vpack.c.b16 %v645, %v644
  %v810 = vpack.c.b16 %v647, %v646
  %v811 = vpack.c.b16 %v649, %v648
  %v812 = vpack.c.b16 %v651, %v650
  %v813 = vpack.c.b16 %v653, %v652
  %v814 = vpack.c.b16 %v655, %v654
  %v815 = vpack.c.b16 %v657, %v656
  %v816 = vpack.c.b16 %v659, %v658
  %v817 = vpack.c.b16 %v661, %v660
  %v818 = vpack.c.b16 %v663, %v662
  %v819 = vpack.c.b16 %v665, %v664
  %v820 = vpack.c.b16 %v667, %v666
  %v821 = vpack.c.b16 %v669, %v668
  %v822 = vpack.c.b16 %v671, %v670
  %v823 = vpack.c.b16 %v673, %v672
  %v824 = vpack.c.b16 %v675, %v674
  %v825 = vpack.c.b16 %v677, %v676
  %v826 = vpack.c.b16 %v679, %v678
  %v827 = vpack.c.b16 %v681, %v680
  %v828 = vpack.c.b16 %v683, %v682
  %v829 = vpack.c.b16 %v685, %v684
  %v830 = vpack.c.b16 %v687, %v686
  %v831 = vpack.c.b16 %v689, %v688
  %v832 = vpack.c.b16 %v691, %v690
  %v833 = vpack.c.b16 %v693, %v692
  %v834 = vpack.c.b16 %v695, %v694
  %v835 = vpack.c.b16 %v697, %v696
  %v836 = vpack.c.b16 %v699, %v698
  %v837 = vpack.c.b16 %v701, %v700
  %v838 = vpack.c.b16 %v703, %v702
  %v839 = vpack.c.b16 %v705, %v704
  %v840 = vpack.c.b16 %v707, %v706
  %v841 = vpack.c.b16 %v709, %v708
  %v842 = vpack.c.b16 %v711, %v710
  %v843 = vpack.c.b16 %v713, %v712
  %v844 = vpack.c.b16 %v715, %v714
  %v845 = vpack.c.b16 %v717, %v716
  %v846 = vpack.c.b16 %v719, %v718
  %v847 = vpack.c.b16 %v721, %v720
  %v848 = vpack.c.b16 %v723, %v722
  %v849 = vpack.c.b16 %v725, %v724
  %v850 = vpack.c.b16 %v727, %v726
  %v851 = vpack.c.b16 %v729, %v728
  %v852 = vpack.c.b16 %v731, %v730
  %v853 = vpack.c.b16 %v733, %v732
  %v854 = vpack.c.b16 %v735, %v734
  %v855 = vpack.c.b16 %v737, %v736
  %v856 = vpack.c.b16 %v739, %v738
  %v857 = vpack.c.b16 %v741, %v740
  %v858 = vpack.c.b16 %v743, %v742
  %v859 = vpack.c.b16 %v745, %v744
  %v860 = vpack.c.b16 %v747, %v746
  %v861 = vpack.c.b16 %v749, %v748
  %v862 = vpack.c.b16 %v751, %v750
  %v863 = vpack.c.b16 %v753, %v752
  %v864 = vpack.c.b16 %v755, %v754
  %v865 = vpack.c.b16 %v757, %v756
  %vm974 = vcmask 523264
  %v976 = vsel %vm974, %v312, 0
  %978 = vmatprep.subr.bf16.mxu0 0
  %979 = vmatpush1.bf16.msra.mxu0 %v758
  %980 = vmatprep.subr.bf16.mxu0 0
  %981 = vmatpush1.bf16.msra.mxu0 %v759
  %982 = vmatprep.subr.bf16.mxu0 0
  %983 = vmatpush1.bf16.msra.mxu0 %v760
  %984 = vmatprep.subr.bf16.mxu0 0
  %985 = vmatpush1.bf16.msra.mxu0 %v761
  %986 = vmatprep.subr.bf16.mxu0 0
  %987 = vmatpush1.bf16.msra.mxu0 %v762
  %988 = vmatprep.subr.bf16.mxu0 0
  %989 = vmatpush1.bf16.msra.mxu0 %v763
  %990 = vmatprep.subr.bf16.mxu0 0
  %991 = vmatpush1.bf16.msra.mxu0 %v764
  %992 = vmatprep.subr.bf16.mxu0 0
  %993 = vmatpush1.bf16.msra.mxu0 %v765
  %994 = vmatprep.subr.bf16.mxu0 0
  %995 = vmatpush1.bf16.msra.mxu0 %v766
  %996 = vmatprep.subr.bf16.mxu0 0
  %997 = vmatpush1.bf16.msra.mxu0 %v767
  %998 = vmatprep.subr.bf16.mxu0 0
  %999 = vmatpush1.bf16.msra.mxu0 %v768
  %1000 = vmatprep.subr.bf16.mxu0 0
  %1001 = vmatpush1.bf16.msra.mxu0 %v769
  %1002 = vmatprep.subr.bf16.mxu0 0
  %1003 = vmatpush1.bf16.msra.mxu0 %v770
  %1004 = vmatprep.subr.bf16.mxu0 0
  %1005 = vmatpush1.bf16.msra.mxu0 %v771
  %1006 = vmatprep.subr.bf16.mxu0 0
  %1007 = vmatpush1.bf16.msra.mxu0 %v772
  %1008 = vmatprep.subr.bf16.mxu0 0
  %1009 = vmatpush1.bf16.msra.mxu0 %v773
  %1010 = vmatprep.mubr.bf16.mxu0 %v300
  %1011 = vmatmul.mubr.bf16.gmra.mrb[0].mxu0 %v299
  %v1012 = vpop.f32.mrb[0].mxu0
  %v1013 = vadd.f32 %v250, %v1012
  %v1014 = vpop.f32.mrb[0].mxu0
  %v1015 = vpop.f32.mrb[0].mxu0
  %v1016 = vadd.f32 %v255, %v1015
  %v1017 = vpop.f32.mrb[0].mxu0
  %1018 = vdwg.mxu0
  %1019 = vmatprep.subr.bf16.mxu0 0
  %1020 = vmatpush1.bf16.msra.mxu0 %v774
  %1021 = vmatprep.subr.bf16.mxu0 0
  %1022 = vmatpush1.bf16.msra.mxu0 %v775
  %1023 = vmatprep.subr.bf16.mxu0 0
  %1024 = vmatpush1.bf16.msra.mxu0 %v776
  %1025 = vmatprep.subr.bf16.mxu0 0
  %1026 = vmatpush1.bf16.msra.mxu0 %v777
  %1027 = vmatprep.subr.bf16.mxu0 0
  %1028 = vmatpush1.bf16.msra.mxu0 %v778
  %1029 = vmatprep.subr.bf16.mxu0 0
  %1030 = vmatpush1.bf16.msra.mxu0 %v779
  %1031 = vmatprep.subr.bf16.mxu0 0
  %1032 = vmatpush1.bf16.msra.mxu0 %v780
  %1033 = vmatprep.subr.bf16.mxu0 0
  %1034 = vmatpush1.bf16.msra.mxu0 %v781
  %1035 = vmatprep.subr.bf16.mxu0 0
  %1036 = vmatpush1.bf16.msra.mxu0 %v782
  %1037 = vmatprep.subr.bf16.mxu0 0
  %1038 = vmatpush1.bf16.msra.mxu0 %v783
  %1039 = vmatprep.subr.bf16.mxu0 0
  %1040 = vmatpush1.bf16.msra.mxu0 %v784
  %1041 = vmatprep.subr.bf16.mxu0 0
  %1042 = vmatpush1.bf16.msra.mxu0 %v785
  %1043 = vmatprep.subr.bf16.mxu0 0
  %1044 = vmatpush1.bf16.msra.mxu0 %v786
  %1045 = vmatprep.subr.bf16.mxu0 0
  %1046 = vmatpush1.bf16.msra.mxu0 %v787
  %1047 = vmatprep.subr.bf16.mxu0 0
  %1048 = vmatpush1.bf16.msra.mxu0 %v788
  %1049 = vmatprep.subr.bf16.mxu0 0
  %1050 = vmatpush1.bf16.msra.mxu0 %v789
  %1051 = vmatprep.mubr.bf16.mxu0 %v302
  %1052 = vmatmul.mubr.bf16.gmra.mrb[0].mxu0 %v301
  %v1053 = vpop.f32.mrb[0].mxu0
  %v1054 = vadd.f32 %v1013, %v1053
  %v1055 = vpop.f32.mrb[0].mxu0
  %v1056 = vpop.f32.mrb[0].mxu0
  %v1057 = vadd.f32 %v1016, %v1056
  %v1058 = vpop.f32.mrb[0].mxu0
  %1059 = vdwg.mxu0
  %1060 = vmatprep.subr.bf16.mxu0 0
  %1061 = vmatpush1.bf16.msra.mxu0 %v790
  %1062 = vmatprep.subr.bf16.mxu0 0
  %1063 = vmatpush1.bf16.msra.mxu0 %v791
  %1064 = vmatprep.subr.bf16.mxu0 0
  %1065 = vmatpush1.bf16.msra.mxu0 %v792
  %1066 = vmatprep.subr.bf16.mxu0 0
  %1067 = vmatpush1.bf16.msra.mxu0 %v793
  %1068 = vmatprep.subr.bf16.mxu0 0
  %1069 = vmatpush1.bf16.msra.mxu0 %v794
  %1070 = vmatprep.subr.bf16.mxu0 0
  %1071 = vmatpush1.bf16.msra.mxu0 %v795
  %1072 = vmatprep.subr.bf16.mxu0 0
  %1073 = vmatpush1.bf16.msra.mxu0 %v796
  %1074 = vmatprep.subr.bf16.mxu0 0
  %1075 = vmatpush1.bf16.msra.mxu0 %v797
  %1076 = vmatprep.subr.bf16.mxu0 0
  %1077 = vmatpush1.bf16.msra.mxu0 %v798
  %1078 = vmatprep.subr.bf16.mxu0 0
  %1079 = vmatpush1.bf16.msra.mxu0 %v799
  %1080 = vmatprep.subr.bf16.mxu0 0
  %1081 = vmatpush1.bf16.msra.mxu0 %v800
  %1082 = vmatprep.subr.bf16.mxu0 0
  %1083 = vmatpush1.bf16.msra.mxu0 %v801
  %1084 = vmatprep.subr.bf16.mxu0 0
  %1085 = vmatpush1.bf16.msra.mxu0 %v802
  %1086 = vmatprep.subr.bf16.mxu0 0
  %1087 = vmatpush1.bf16.msra.mxu0 %v803
  %1088 = vmatprep.subr.bf16.mxu0 0
  %1089 = vmatpush1.bf16.msra.mxu0 %v804
  %1090 = vmatprep.subr.bf16.mxu0 0
  %1091 = vmatpush1.bf16.msra.mxu0 %v805
  %1092 = vmatprep.mubr.bf16.mxu0 %v304
  %1093 = vmatmul.mubr.bf16.gmra.mrb[0].mxu0 %v303
  %v1094 = vpop.f32.mrb[0].mxu0
  %v1095 = vadd.f32 %v1054, %v1094
  %v1096 = vpop.f32.mrb[0].mxu0
  %v1097 = vpop.f32.mrb[0].mxu0
  %v1098 = vadd.f32 %v1057, %v1097
  %v1099 = vpop.f32.mrb[0].mxu0
  %1100 = vdwg.mxu0
  %1101 = vmatprep.subr.bf16.mxu0 0
  %1102 = vmatpush1.bf16.msra.mxu0 %v806
  %1103 = vmatprep.subr.bf16.mxu0 0
  %1104 = vmatpush1.bf16.msra.mxu0 %v807
  %1105 = vmatprep.subr.bf16.mxu0 0
  %1106 = vmatpush1.bf16.msra.mxu0 %v808
  %1107 = vmatprep.subr.bf16.mxu0 0
  %1108 = vmatpush1.bf16.msra.mxu0 %v809
  %1109 = vmatprep.subr.bf16.mxu0 0
  %1110 = vmatpush1.bf16.msra.mxu0 %v810
  %1111 = vmatprep.subr.bf16.mxu0 0
  %1112 = vmatpush1.bf16.msra.mxu0 %v811
  %1113 = vmatprep.subr.bf16.mxu0 0
  %1114 = vmatpush1.bf16.msra.mxu0 %v812
  %1115 = vmatprep.subr.bf16.mxu0 0
  %1116 = vmatpush1.bf16.msra.mxu0 %v813
  %1117 = vmatprep.subr.bf16.mxu0 0
  %1118 = vmatpush1.bf16.msra.mxu0 %v814
  %1119 = vmatprep.subr.bf16.mxu0 0
  %1120 = vmatpush1.bf16.msra.mxu0 %v815
  %1121 = vmatprep.subr.bf16.mxu0 0
  %1122 = vmatpush1.bf16.msra.mxu0 %v816
  %1123 = vmatprep.subr.bf16.mxu0 0
  %1124 = vmatpush1.bf16.msra.mxu0 %v817
  %1125 = vmatprep.subr.bf16.mxu0 0
  %1126 = vmatpush1.bf16.msra.mxu0 %v818
  %1127 = vmatprep.subr.bf16.mxu0 0
  %1128 = vmatpush1.bf16.msra.mxu0 %v819
  %1129 = vmatprep.subr.bf16.mxu0 0
  %1130 = vmatpush1.bf16.msra.mxu0 %v820
  %1131 = vmatprep.subr.bf16.mxu0 0
  %1132 = vmatpush1.bf16.msra.mxu0 %v821
  %1133 = vmatprep.mubr.bf16.mxu0 %v306
  %1134 = vmatmul.mubr.bf16.gmra.mrb[0].mxu0 %v305
  %v1135 = vpop.f32.mrb[0].mxu0
  %v1136 = vadd.f32 %v1095, %v1135
  %v1137 = vpop.f32.mrb[0].mxu0
  %v1138 = vpop.f32.mrb[0].mxu0
  %v1139 = vadd.f32 %v1098, %v1138
  %v1140 = vpop.f32.mrb[0].mxu0
  %1141 = vdwg.mxu0
  %1142 = vmatprep.subr.bf16.mxu0 0
  %1143 = vmatpush1.bf16.msra.mxu0 %v822
  %1144 = vmatprep.subr.bf16.mxu0 0
  %1145 = vmatpush1.bf16.msra.mxu0 %v823
  %1146 = vmatprep.subr.bf16.mxu0 0
  %1147 = vmatpush1.bf16.msra.mxu0 %v824
  %1148 = vmatprep.subr.bf16.mxu0 0
  %1149 = vmatpush1.bf16.msra.mxu0 %v825
  %1150 = vmatprep.subr.bf16.mxu0 0
  %1151 = vmatpush1.bf16.msra.mxu0 %v826
  %1152 = vmatprep.subr.bf16.mxu0 0
  %1153 = vmatpush1.bf16.msra.mxu0 %v827
  %1154 = vmatprep.subr.bf16.mxu0 0
  %1155 = vmatpush1.bf16.msra.mxu0 %v828
  %1156 = vmatprep.subr.bf16.mxu0 0
  %1157 = vmatpush1.bf16.msra.mxu0 %v829
  %1158 = vmatprep.subr.bf16.mxu0 0
  %1159 = vmatpush1.bf16.msra.mxu0 %v830
  %1160 = vmatprep.subr.bf16.mxu0 0
  %1161 = vmatpush1.bf16.msra.mxu0 %v831
  %1162 = vmatprep.subr.bf16.mxu0 0
  %1163 = vmatpush1.bf16.msra.mxu0 %v832
  %1164 = vmatprep.subr.bf16.mxu0 0
  %1165 = vmatpush1.bf16.msra.mxu0 %v833
  %1166 = vmatprep.subr.bf16.mxu0 0
  %1167 = vmatpush1.bf16.msra.mxu0 %v834
  %1168 = vmatprep.subr.bf16.mxu0 0
  %1169 = vmatpush1.bf16.msra.mxu0 %v835
  %1170 = vmatprep.subr.bf16.mxu0 0
  %1171 = vmatpush1.bf16.msra.mxu0 %v836
  %1172 = vmatprep.subr.bf16.mxu0 0
  %1173 = vmatpush1.bf16.msra.mxu0 %v837
  %1174 = vmatprep.mubr.bf16.mxu0 %v308
  %1175 = vmatmul.mubr.bf16.gmra.mrb[0].mxu0 %v307
  %v1176 = vpop.f32.mrb[0].mxu0
  %v1177 = vadd.f32 %v1136, %v1176
  %v1178 = vpop.f32.mrb[0].mxu0
  %v1179 = vpop.f32.mrb[0].mxu0
  %v1180 = vadd.f32 %v1139, %v1179
  %v1181 = vpop.f32.mrb[0].mxu0
  %1182 = vdwg.mxu0
  %1183 = vmatprep.subr.bf16.mxu0 0
  %1184 = vmatpush1.bf16.msra.mxu0 %v838
  %1185 = vmatprep.subr.bf16.mxu0 0
  %1186 = vmatpush1.bf16.msra.mxu0 %v839
  %1187 = vmatprep.subr.bf16.mxu0 0
  %1188 = vmatpush1.bf16.msra.mxu0 %v840
  %1189 = vmatprep.subr.bf16.mxu0 0
  %1190 = vmatpush1.bf16.msra.mxu0 %v841
  %1191 = vmatprep.subr.bf16.mxu0 0
  %1192 = vmatpush1.bf16.msra.mxu0 %v842
  %1193 = vmatprep.subr.bf16.mxu0 0
  %1194 = vmatpush1.bf16.msra.mxu0 %v843
  %1195 = vmatprep.subr.bf16.mxu0 0
  %1196 = vmatpush1.bf16.msra.mxu0 %v844
  %1197 = vmatprep.subr.bf16.mxu0 0
  %1198 = vmatpush1.bf16.msra.mxu0 %v845
  %1199 = vmatprep.subr.bf16.mxu0 0
  %1200 = vmatpush1.bf16.msra.mxu0 %v846
  %1201 = vmatprep.subr.bf16.mxu0 0
  %1202 = vmatpush1.bf16.msra.mxu0 %v847
  %1203 = vmatprep.subr.bf16.mxu0 0
  %1204 = vmatpush1.bf16.msra.mxu0 %v848
  %1205 = vmatprep.subr.bf16.mxu0 0
  %1206 = vmatpush1.bf16.msra.mxu0 %v849
  %1207 = vmatprep.subr.bf16.mxu0 0
  %1208 = vmatpush1.bf16.msra.mxu0 %v850
  %1209 = vmatprep.subr.bf16.mxu0 0
  %1210 = vmatpush1.bf16.msra.mxu0 %v851
  %1211 = vmatprep.subr.bf16.mxu0 0
  %1212 = vmatpush1.bf16.msra.mxu0 %v852
  %1213 = vmatprep.subr.bf16.mxu0 0
  %1214 = vmatpush1.bf16.msra.mxu0 %v853
  %1215 = vmatprep.mubr.bf16.mxu0 %v310
  %1216 = vmatmul.mubr.bf16.gmra.mrb[0].mxu0 %v309
  %v1217 = vpop.f32.mrb[0].mxu0
  %v1218 = vadd.f32 %v1177, %v1217
  %v1219 = vpop.f32.mrb[0].mxu0
  %v1220 = vpop.f32.mrb[0].mxu0
  %v1221 = vadd.f32 %v1180, %v1220
  %v1222 = vpop.f32.mrb[0].mxu0
  %1223 = vdwg.mxu0
  %1224 = vmatprep.subr.bf16.mxu0 0
  %1225 = vmatpush1.bf16.msra.mxu0 %v854
  %1226 = vmatprep.subr.bf16.mxu0 0
  %1227 = vmatpush1.bf16.msra.mxu0 %v855
  %1228 = vmatprep.subr.bf16.mxu0 0
  %1229 = vmatpush1.bf16.msra.mxu0 %v856
  %1230 = vmatprep.subr.bf16.mxu0 0
  %1231 = vmatpush1.bf16.msra.mxu0 %v857
  %1232 = vmatprep.subr.bf16.mxu0 0
  %1233 = vmatpush1.bf16.msra.mxu0 %v858
  %1234 = vmatprep.subr.bf16.mxu0 0
  %1235 = vmatpush1.bf16.msra.mxu0 %v859
  %1236 = vmatprep.subr.bf16.mxu0 0
  %1237 = vmatpush1.bf16.msra.mxu0 %v860
  %1238 = vmatprep.subr.bf16.mxu0 0
  %1239 = vmatpush1.bf16.msra.mxu0 %v861
  %1240 = vmatprep.subr.bf16.mxu0 0
  %1241 = vmatpush1.bf16.msra.mxu0 %v862
  %1242 = vmatprep.subr.bf16.mxu0 0
  %1243 = vmatpush1.bf16.msra.mxu0 %v863
  %1244 = vmatprep.subr.bf16.mxu0 0
  %1245 = vmatpush1.bf16.msra.mxu0 %v864
  %1246 = vmatprep.subr.bf16.mxu0 0
  %1247 = vmatpush1.bf16.msra.mxu0 %v865
  %1248 = vmatprep.subr.bf16.mxu0 0
  %1249 = vmatpush1.bf16.msra.mxu0 0
  %1250 = vmatprep.subr.bf16.mxu0 0
  %1251 = vmatpush1.bf16.msra.mxu0 0
  %1252 = vmatprep.subr.bf16.mxu0 0
  %1253 = vmatpush1.bf16.msra.mxu0 0
  %1254 = vmatprep.subr.bf16.mxu0 0
  %1255 = vmatpush1.bf16.msra.mxu0 0
  %1256 = vmatprep.mubr.bf16.mxu0 %v976
  %1257 = vmatmul.mubr.bf16.gmra.mrb[0].mxu0 %v311
  %v1258 = vpop.f32.mrb[0].mxu0
  %v1259 = vadd.f32 %v1218, %v1258
  %v1260 = vpop.f32.mrb[0].mxu0
  %v1261 = vpop.f32.mrb[0].mxu0
  %v1262 = vadd.f32 %v1221, %v1261
  %v1263 = vpop.f32.mrb[0].mxu0
  %1264 = vdwg.mxu0
  %v1265 = vmax.f32 %v1259, 0.0
  %v1266 = vmax.f32 %v1262, 0.0
  %v1267 = vpack.c.bf16 %v1266, %v1265
  %v1269 = vunpack.c.l.b16 %v1267
  %v1270 = vunpack.c.h.b16 %v1267
  %v1271 = vpack.c.b16 %v1269, %v1269
  %v1272 = vpack.c.b16 %v1270, %v1270
  %vm1275 = vcmask 11264
  %1276 = vst.msk [vmem:[%s3] sm:$0xf] %vm1275, %v1271
  %1277 = vst.msk [vmem:[%s3 + $0x4] sm:$0xf] %vm1275, %v1272
  // Predicated region
  $region14: #{unet_sim3d_srd2.14} parent=0 // pred_check
    _
  $region15: #{unet_sim3d_srd2.14} parent=0 // pred_check_branch
    %1279 = sbr.rel (0) target = $region17
  $region16: #{unet_sim3d_srd2.14} parent=0 // pred_region
    _
  $region17: #{unet_sim3d_srd2.14} parent=0 // pred_fallthru
    _
  // Predicated region
  $region18: #{unet_sim3d_srd2.14} parent=0 // pred_check
    _
  $region19: #{unet_sim3d_srd2.14} parent=0 // pred_check_branch
    %1281 = sbr.rel (0) target = $region21
  $region20: #{unet_sim3d_srd2.14} parent=0 // pred_region
    _
  $region21: #{unet_sim3d_srd2.14} parent=0 // pred_fallthru
    _

// kernel: unet_sim3d_srd2.13
$region0: #{unet_sim3d_srd2.13}
  #allocation0 [shape = 'u32[]', space=smem, size = 0x4, offset = 0x4, fixed_abs, tag = 'smem constant byte address 0x4 - core index']
  #allocation1 [shape = 'u32[144,128]{1,0:T(1,128)}', space=vmem, size = 0x12000, scoped, tag = 'internal scratch']
  %s0 = inlined_call_operand.vmem [shape: bf16[64,1728], index: 0, kind: input, shape index: {}]
  %s1 = inlined_call_operand.vmem [shape: bf16[1728,16], index: 1, kind: input, shape index: {}]
  %s2 = inlined_call_operand.vmem [shape: f32[64,1], index: 2, kind: input, shape index: {}]
  %s3 = inlined_call_operand.vmem [shape: bf16[64,16], index: 3, kind: output, shape index: {}]
  %s4 = sld [smem:[#allocation0]]
  $region22: #{unet_sim3d_srd2.13} parent=0
    _
  %s6 = ssub.s32 1, %s4
  %s7 = scalar_select 0, %s6, %s4
  // Predicated region
  $region2: #{unet_sim3d_srd2.13} parent=0 // pred_check
    _
  $region3: #{unet_sim3d_srd2.13} parent=0 // pred_check_branch
    %9 = sbr.rel (0) target = $region5
  $region4: #{unet_sim3d_srd2.13} parent=0 // pred_region
    _
  $region5: #{unet_sim3d_srd2.13} parent=0 // pred_fallthru
    _
  // Predicated region
  $region6: #{unet_sim3d_srd2.13} parent=0 // pred_check
    _
  $region7: #{unet_sim3d_srd2.13} parent=0 // pred_check_branch
    %11 = sbr.rel (0) target = $region9
  $region8: #{unet_sim3d_srd2.13} parent=0 // pred_region
    _
  $region9: #{unet_sim3d_srd2.13} parent=0 // pred_fallthru
    _
  // Predicated region
  $region10: #{unet_sim3d_srd2.13} parent=0 // pred_check
    _
  $region11: #{unet_sim3d_srd2.13} parent=0 // pred_check_branch
    %13 = sbr.rel (0) target = $region13
  $region12: #{unet_sim3d_srd2.13} parent=0 // pred_region
    _
  $region13: #{unet_sim3d_srd2.13} parent=0 // pred_fallthru
    _
  %v15 = vld [vmem:[%s0] sm:$0xff]
  %v16 = vld [vmem:[%s0 + $0x8] sm:$0xff]
  %v17 = vld [vmem:[%s0 + $0x10] sm:$0xff]
  %v18 = vld [vmem:[%s0 + $0x18] sm:$0xff]
  %v19 = vld [vmem:[%s0 + $0x20] sm:$0xff]
  %v20 = vld [vmem:[%s0 + $0x28] sm:$0xff]
  %v21 = vld [vmem:[%s0 + $0x30] sm:$0xff]
  %v22 = vld [vmem:[%s0 + $0x38] sm:$0xff]
  %v23 = vld [vmem:[%s0 + $0x40] sm:$0xff]
  %v24 = vld [vmem:[%s0 + $0x48] sm:$0xff]
  %v25 = vld [vmem:[%s0 + $0x50] sm:$0xff]
  %v26 = vld [vmem:[%s0 + $0x58] sm:$0xff]
  %v27 = vld [vmem:[%s0 + $0x60] sm:$0xff]
  %v28 = vld [vmem:[%s0 + $0x68] sm:$0xff]
  %v29 = vld [vmem:[%s0 + $0x70] sm:$0xff]
  %v30 = vld [vmem:[%s0 + $0x78] sm:$0xff]
  %v31 = vld [vmem:[%s0 + $0x80] sm:$0xff]
  %v32 = vld [vmem:[%s0 + $0x88] sm:$0xff]
  %v33 = vld [vmem:[%s0 + $0x90] sm:$0xff]
  %v34 = vld [vmem:[%s0 + $0x98] sm:$0xff]
  %v35 = vld [vmem:[%s0 + $0xa0] sm:$0xff]
  %v36 = vld [vmem:[%s0 + $0xa8] sm:$0xff]
  %v37 = vld [vmem:[%s0 + $0xb0] sm:$0xff]
  %v38 = vld [vmem:[%s0 + $0xb8] sm:$0xff]
  %v39 = vld [vmem:[%s0 + $0xc0] sm:$0xff]
  %v40 = vld [vmem:[%s0 + $0xc8] sm:$0xff]
  %v41 = vld [vmem:[%s0 + $0xd0] sm:$0xff]
  %v42 = vld [vmem:[%s0 + $0xd8] sm:$0xff]
  %v43 = vld [vmem:[%s0 + $0xe0] sm:$0xff]
  %v44 = vld [vmem:[%s0 + $0xe8] sm:$0xff]
  %v45 = vld [vmem:[%s0 + $0xf0] sm:$0xff]
  %v46 = vld [vmem:[%s0 + $0xf8] sm:$0xff]
  %v47 = vld [vmem:[%s0 + $0x100] sm:$0xff]
  %v48 = vld [vmem:[%s0 + $0x108] sm:$0xff]
  %v49 = vld [vmem:[%s0 + $0x110] sm:$0xff]
  %v50 = vld [vmem:[%s0 + $0x118] sm:$0xff]
  %v51 = vld [vmem:[%s0 + $0x120] sm:$0xff]
  %v52 = vld [vmem:[%s0 + $0x128] sm:$0xff]
  %v53 = vld [vmem:[%s0 + $0x130] sm:$0xff]
  %v54 = vld [vmem:[%s0 + $0x138] sm:$0xff]
  %v55 = vld [vmem:[%s0 + $0x140] sm:$0xff]
  %v56 = vld [vmem:[%s0 + $0x148] sm:$0xff]
  %v57 = vld [vmem:[%s0 + $0x150] sm:$0xff]
  %v58 = vld [vmem:[%s0 + $0x158] sm:$0xff]
  %v59 = vld [vmem:[%s0 + $0x160] sm:$0xff]
  %v60 = vld [vmem:[%s0 + $0x168] sm:$0xff]
  %v61 = vld [vmem:[%s0 + $0x170] sm:$0xff]
  %v62 = vld [vmem:[%s0 + $0x178] sm:$0xff]
  %v63 = vld [vmem:[%s0 + $0x180] sm:$0xff]
  %v64 = vld [vmem:[%s0 + $0x188] sm:$0xff]
  %v65 = vld [vmem:[%s0 + $0x190] sm:$0xff]
  %v66 = vld [vmem:[%s0 + $0x198] sm:$0xff]
  %v67 = vld [vmem:[%s0 + $0x1a0] sm:$0xff]
  %v68 = vld [vmem:[%s0 + $0x1a8] sm:$0xff]
  %v69 = vld [vmem:[%s0 + $0x1b0] sm:$0xff]
  %v70 = vld [vmem:[%s0 + $0x1b8] sm:$0xff]
  %v71 = vld [vmem:[%s1] sm:$0xf]
  %v72 = vld [vmem:[%s1 + $0x4] sm:$0xf]
  %v73 = vld [vmem:[%s1 + $0x8] sm:$0xf]
  %v74 = vld [vmem:[%s1 + $0xc] sm:$0xf]
  %v75 = vld [vmem:[%s1 + $0x10] sm:$0xf]
  %v76 = vld [vmem:[%s1 + $0x14] sm:$0xf]
  %v77 = vld [vmem:[%s1 + $0x18] sm:$0xf]
  %v78 = vld [vmem:[%s1 + $0x1c] sm:$0xf]
  %v79 = vld [vmem:[%s1 + $0x20] sm:$0xf]
  %v80 = vld [vmem:[%s1 + $0x24] sm:$0xf]
  %v81 = vld [vmem:[%s1 + $0x28] sm:$0xf]
  %v82 = vld [vmem:[%s1 + $0x2c] sm:$0xf]
  %v83 = vld [vmem:[%s1 + $0x30] sm:$0xf]
  %v84 = vld [vmem:[%s1 + $0x34] sm:$0xf]
  %v85 = vld [vmem:[%s1 + $0x38] sm:$0xf]
  %v86 = vld [vmem:[%s1 + $0x3c] sm:$0xf]
  %v87 = vld [vmem:[%s1 + $0x40] sm:$0xf]
  %v88 = vld [vmem:[%s1 + $0x44] sm:$0xf]
  %v89 = vld [vmem:[%s1 + $0x48] sm:$0xf]
  %v90 = vld [vmem:[%s1 + $0x4c] sm:$0xf]
  %v91 = vld [vmem:[%s1 + $0x50] sm:$0xf]
  %v92 = vld [vmem:[%s1 + $0x54] sm:$0xf]
  %v93 = vld [vmem:[%s1 + $0x58] sm:$0xf]
  %v94 = vld [vmem:[%s1 + $0x5c] sm:$0xf]
  %v95 = vld [vmem:[%s1 + $0x60] sm:$0xf]
  %v96 = vld [vmem:[%s1 + $0x64] sm:$0xf]
  %v97 = vld [vmem:[%s1 + $0x68] sm:$0xf]
  %v98 = vld [vmem:[%s1 + $0x6c] sm:$0xf]
  %v99 = vld [vmem:[%s1 + $0x70] sm:$0xf]
  %v100 = vld [vmem:[%s1 + $0x74] sm:$0xf]
  %v101 = vld [vmem:[%s1 + $0x78] sm:$0xf]
  %v102 = vld [vmem:[%s1 + $0x7c] sm:$0xf]
  %v103 = vld [vmem:[%s1 + $0x80] sm:$0xf]
  %v104 = vld [vmem:[%s1 + $0x84] sm:$0xf]
  %v105 = vld [vmem:[%s1 + $0x88] sm:$0xf]
  %v106 = vld [vmem:[%s1 + $0x8c] sm:$0xf]
  %v107 = vld [vmem:[%s1 + $0x90] sm:$0xf]
  %v108 = vld [vmem:[%s1 + $0x94] sm:$0xf]
  %v109 = vld [vmem:[%s1 + $0x98] sm:$0xf]
  %v110 = vld [vmem:[%s1 + $0x9c] sm:$0xf]
  %v111 = vld [vmem:[%s1 + $0xa0] sm:$0xf]
  %v112 = vld [vmem:[%s1 + $0xa4] sm:$0xf]
  %v113 = vld [vmem:[%s1 + $0xa8] sm:$0xf]
  %v114 = vld [vmem:[%s1 + $0xac] sm:$0xf]
  %v115 = vld [vmem:[%s1 + $0xb0] sm:$0xf]
  %v116 = vld [vmem:[%s1 + $0xb4] sm:$0xf]
  %v117 = vld [vmem:[%s1 + $0xb8] sm:$0xf]
  %v118 = vld [vmem:[%s1 + $0xbc] sm:$0xf]
  %v119 = vld [vmem:[%s1 + $0xc0] sm:$0xf]
  %v120 = vld [vmem:[%s1 + $0xc4] sm:$0xf]
  %v121 = vld [vmem:[%s1 + $0xc8] sm:$0xf]
  %v122 = vld [vmem:[%s1 + $0xcc] sm:$0xf]
  %v123 = vld [vmem:[%s1 + $0xd0] sm:$0xf]
  %v124 = vld [vmem:[%s1 + $0xd4] sm:$0xf]
  %v125 = vld [vmem:[%s1 + $0xd8] sm:$0xf]
  %v126 = vld [vmem:[%s1 + $0xdc] sm:$0xf]
  %v127 = vld [vmem:[%s1 + $0xe0] sm:$0xf]
  %v128 = vld [vmem:[%s1 + $0xe4] sm:$0xf]
  %v129 = vld [vmem:[%s1 + $0xe8] sm:$0xf]
  %v130 = vld [vmem:[%s1 + $0xec] sm:$0xf]
  %v131 = vld [vmem:[%s1 + $0xf0] sm:$0xf]
  %v132 = vld [vmem:[%s1 + $0xf4] sm:$0xf]
  %v133 = vld [vmem:[%s1 + $0xf8] sm:$0xf]
  %v134 = vld [vmem:[%s1 + $0xfc] sm:$0xf]
  %v135 = vld [vmem:[%s1 + $0x100] sm:$0xf]
  %v136 = vld [vmem:[%s1 + $0x104] sm:$0xf]
  %v137 = vld [vmem:[%s1 + $0x108] sm:$0xf]
  %v138 = vld [vmem:[%s1 + $0x10c] sm:$0xf]
  %v139 = vld [vmem:[%s1 + $0x110] sm:$0xf]
  %v140 = vld [vmem:[%s1 + $0x114] sm:$0xf]
  %v141 = vld [vmem:[%s1 + $0x118] sm:$0xf]
  %v142 = vld [vmem:[%s1 + $0x11c] sm:$0xf]
  %v143 = vld [vmem:[%s1 + $0x120] sm:$0xf]
  %v144 = vld [vmem:[%s1 + $0x124] sm:$0xf]
  %v145 = vld [vmem:[%s1 + $0x128] sm:$0xf]
  %v146 = vld [vmem:[%s1 + $0x12c] sm:$0xf]
  %v147 = vld [vmem:[%s1 + $0x130] sm:$0xf]
  %v148 = vld [vmem:[%s1 + $0x134] sm:$0xf]
  %v149 = vld [vmem:[%s1 + $0x138] sm:$0xf]
  %v150 = vld [vmem:[%s1 + $0x13c] sm:$0xf]
  %v151 = vld [vmem:[%s1 + $0x140] sm:$0xf]
  %v152 = vld [vmem:[%s1 + $0x144] sm:$0xf]
  %v153 = vld [vmem:[%s1 + $0x148] sm:$0xf]
  %v154 = vld [vmem:[%s1 + $0x14c] sm:$0xf]
  %v155 = vld [vmem:[%s1 + $0x150] sm:$0xf]
  %v156 = vld [vmem:[%s1 + $0x154] sm:$0xf]
  %v157 = vld [vmem:[%s1 + $0x158] sm:$0xf]
  %v158 = vld [vmem:[%s1 + $0x15c] sm:$0xf]
  %v159 = vld [vmem:[%s1 + $0x160] sm:$0xf]
  %v160 = vld [vmem:[%s1 + $0x164] sm:$0xf]
  %v161 = vld [vmem:[%s1 + $0x168] sm:$0xf]
  %v162 = vld [vmem:[%s1 + $0x16c] sm:$0xf]
  %v163 = vld [vmem:[%s1 + $0x170] sm:$0xf]
  %v164 = vld [vmem:[%s1 + $0x174] sm:$0xf]
  %v165 = vld [vmem:[%s1 + $0x178] sm:$0xf]
  %v166 = vld [vmem:[%s1 + $0x17c] sm:$0xf]
  %v167 = vld [vmem:[%s1 + $0x180] sm:$0xf]
  %v168 = vld [vmem:[%s1 + $0x184] sm:$0xf]
  %v169 = vld [vmem:[%s1 + $0x188] sm:$0xf]
  %v170 = vld [vmem:[%s1 + $0x18c] sm:$0xf]
  %v171 = vld [vmem:[%s1 + $0x190] sm:$0xf]
  %v172 = vld [vmem:[%s1 + $0x194] sm:$0xf]
  %v173 = vld [vmem:[%s1 + $0x198] sm:$0xf]
  %v174 = vld [vmem:[%s1 + $0x19c] sm:$0xf]
  %v175 = vld [vmem:[%s1 + $0x1a0] sm:$0xf]
  %v176 = vld [vmem:[%s1 + $0x1a4] sm:$0xf]
  %v177 = vld [vmem:[%s1 + $0x1a8] sm:$0xf]
  %v178 = vld [vmem:[%s1 + $0x1ac] sm:$0xf]
  %v179 = vld [vmem:[%s1 + $0x1b0] sm:$0xf]
  %v180 = vld [vmem:[%s1 + $0x1b4] sm:$0xf]
  %v181 = vld [vmem:[%s1 + $0x1b8] sm:$0xf]
  %v182 = vld [vmem:[%s1 + $0x1bc] sm:$0xf]
  %v183 = vld [vmem:[%s1 + $0x1c0] sm:$0xf]
  %v184 = vld [vmem:[%s1 + $0x1c4] sm:$0xf]
  %v185 = vld [vmem:[%s1 + $0x1c8] sm:$0xf]
  %v186 = vld [vmem:[%s1 + $0x1cc] sm:$0xf]
  %v187 = vld [vmem:[%s1 + $0x1d0] sm:$0xf]
  %v188 = vld [vmem:[%s1 + $0x1d4] sm:$0xf]
  %v189 = vld [vmem:[%s1 + $0x1d8] sm:$0xf]
  %v190 = vld [vmem:[%s1 + $0x1dc] sm:$0xf]
  %v191 = vld [vmem:[%s1 + $0x1e0] sm:$0xf]
  %v192 = vld [vmem:[%s1 + $0x1e4] sm:$0xf]
  %v193 = vld [vmem:[%s1 + $0x1e8] sm:$0xf]
  %v194 = vld [vmem:[%s1 + $0x1ec] sm:$0xf]
  %v195 = vld [vmem:[%s1 + $0x1f0] sm:$0xf]
  %v196 = vld [vmem:[%s1 + $0x1f4] sm:$0xf]
  %v197 = vld [vmem:[%s1 + $0x1f8] sm:$0xf]
  %v198 = vld [vmem:[%s1 + $0x1fc] sm:$0xf]
  %v199 = vld [vmem:[%s1 + $0x200] sm:$0xf]
  %v200 = vld [vmem:[%s1 + $0x204] sm:$0xf]
  %v201 = vld [vmem:[%s1 + $0x208] sm:$0xf]
  %v202 = vld [vmem:[%s1 + $0x20c] sm:$0xf]
  %v203 = vld [vmem:[%s1 + $0x210] sm:$0xf]
  %v204 = vld [vmem:[%s1 + $0x214] sm:$0xf]
  %v205 = vld [vmem:[%s1 + $0x218] sm:$0xf]
  %v206 = vld [vmem:[%s1 + $0x21c] sm:$0xf]
  %v207 = vld [vmem:[%s1 + $0x220] sm:$0xf]
  %v208 = vld [vmem:[%s1 + $0x224] sm:$0xf]
  %v209 = vld [vmem:[%s1 + $0x228] sm:$0xf]
  %v210 = vld [vmem:[%s1 + $0x22c] sm:$0xf]
  %v211 = vld [vmem:[%s1 + $0x230] sm:$0xf]
  %v212 = vld [vmem:[%s1 + $0x234] sm:$0xf]
  %v213 = vld [vmem:[%s1 + $0x238] sm:$0xf]
  %v214 = vld [vmem:[%s1 + $0x23c] sm:$0xf]
  %v215 = vld [vmem:[%s1 + $0x240] sm:$0xf]
  %v216 = vld [vmem:[%s1 + $0x244] sm:$0xf]
  %v217 = vld [vmem:[%s1 + $0x248] sm:$0xf]
  %v218 = vld [vmem:[%s1 + $0x24c] sm:$0xf]
  %v219 = vld [vmem:[%s1 + $0x250] sm:$0xf]
  %v220 = vld [vmem:[%s1 + $0x254] sm:$0xf]
  %v221 = vld [vmem:[%s1 + $0x258] sm:$0xf]
  %v222 = vld [vmem:[%s1 + $0x25c] sm:$0xf]
  %v223 = vld [vmem:[%s1 + $0x260] sm:$0xf]
  %v224 = vld [vmem:[%s1 + $0x264] sm:$0xf]
  %v225 = vld [vmem:[%s1 + $0x268] sm:$0xf]
  %v226 = vld [vmem:[%s1 + $0x26c] sm:$0xf]
  %v227 = vld [vmem:[%s1 + $0x270] sm:$0xf]
  %v228 = vld [vmem:[%s1 + $0x274] sm:$0xf]
  %v229 = vld [vmem:[%s1 + $0x278] sm:$0xf]
  %v230 = vld [vmem:[%s1 + $0x27c] sm:$0xf]
  %v231 = vld [vmem:[%s1 + $0x280] sm:$0xf]
  %v232 = vld [vmem:[%s1 + $0x284] sm:$0xf]
  %v233 = vld [vmem:[%s1 + $0x288] sm:$0xf]
  %v234 = vld [vmem:[%s1 + $0x28c] sm:$0xf]
  %v235 = vld [vmem:[%s1 + $0x290] sm:$0xf]
  %v236 = vld [vmem:[%s1 + $0x294] sm:$0xf]
  %v237 = vld [vmem:[%s1 + $0x298] sm:$0xf]
  %v238 = vld [vmem:[%s1 + $0x29c] sm:$0xf]
  %v239 = vld [vmem:[%s1 + $0x2a0] sm:$0xf]
  %v240 = vld [vmem:[%s1 + $0x2a4] sm:$0xf]
  %v241 = vld [vmem:[%s1 + $0x2a8] sm:$0xf]
  %v242 = vld [vmem:[%s1 + $0x2ac] sm:$0xf]
  %v243 = vld [vmem:[%s1 + $0x2b0] sm:$0xf]
  %v244 = vld [vmem:[%s1 + $0x2b4] sm:$0xf]
  %v245 = vld [vmem:[%s1 + $0x2b8] sm:$0xf]
  %v246 = vld [vmem:[%s1 + $0x2bc] sm:$0xf]
  %v247 = vld [vmem:[%s1 + $0x2c0] sm:$0xf]
  %v248 = vld [vmem:[%s1 + $0x2c4] sm:$0xf]
  %v249 = vld [vmem:[%s1 + $0x2c8] sm:$0xf]
  %v250 = vld [vmem:[%s1 + $0x2cc] sm:$0xf]
  %v251 = vld [vmem:[%s1 + $0x2d0] sm:$0xf]
  %v252 = vld [vmem:[%s1 + $0x2d4] sm:$0xf]
  %v253 = vld [vmem:[%s1 + $0x2d8] sm:$0xf]
  %v254 = vld [vmem:[%s1 + $0x2dc] sm:$0xf]
  %v255 = vld [vmem:[%s1 + $0x2e0] sm:$0xf]
  %v256 = vld [vmem:[%s1 + $0x2e4] sm:$0xf]
  %v257 = vld [vmem:[%s1 + $0x2e8] sm:$0xf]
  %v258 = vld [vmem:[%s1 + $0x2ec] sm:$0xf]
  %v259 = vld [vmem:[%s1 + $0x2f0] sm:$0xf]
  %v260 = vld [vmem:[%s1 + $0x2f4] sm:$0xf]
  %v261 = vld [vmem:[%s1 + $0x2f8] sm:$0xf]
  %v262 = vld [vmem:[%s1 + $0x2fc] sm:$0xf]
  %v263 = vld [vmem:[%s1 + $0x300] sm:$0xf]
  %v264 = vld [vmem:[%s1 + $0x304] sm:$0xf]
  %v265 = vld [vmem:[%s1 + $0x308] sm:$0xf]
  %v266 = vld [vmem:[%s1 + $0x30c] sm:$0xf]
  %v267 = vld [vmem:[%s1 + $0x310] sm:$0xf]
  %v268 = vld [vmem:[%s1 + $0x314] sm:$0xf]
  %v269 = vld [vmem:[%s1 + $0x318] sm:$0xf]
  %v270 = vld [vmem:[%s1 + $0x31c] sm:$0xf]
  %v271 = vld [vmem:[%s1 + $0x320] sm:$0xf]
  %v272 = vld [vmem:[%s1 + $0x324] sm:$0xf]
  %v273 = vld [vmem:[%s1 + $0x328] sm:$0xf]
  %v274 = vld [vmem:[%s1 + $0x32c] sm:$0xf]
  %v275 = vld [vmem:[%s1 + $0x330] sm:$0xf]
  %v276 = vld [vmem:[%s1 + $0x334] sm:$0xf]
  %v277 = vld [vmem:[%s1 + $0x338] sm:$0xf]
  %v278 = vld [vmem:[%s1 + $0x33c] sm:$0xf]
  %v279 = vld [vmem:[%s1 + $0x340] sm:$0xf]
  %v280 = vld [vmem:[%s1 + $0x344] sm:$0xf]
  %v281 = vld [vmem:[%s1 + $0x348] sm:$0xf]
  %v282 = vld [vmem:[%s1 + $0x34c] sm:$0xf]
  %v283 = vld [vmem:[%s1 + $0x350] sm:$0xf]
  %v284 = vld [vmem:[%s1 + $0x354] sm:$0xf]
  %v285 = vld [vmem:[%s1 + $0x358] sm:$0xf]
  %v286 = vld [vmem:[%s1 + $0x35c] sm:$0xf]
  %v287 = vld [vmem:[%s2] sm:$0xff]
  %v288 = vld [vmem:[%s2 + $0x8] sm:$0xff]
  %v289 = vld [vmem:[%s2 + $0x10] sm:$0xff]
  %v290 = vld [vmem:[%s2 + $0x18] sm:$0xff]
  %v291 = vld [vmem:[%s2 + $0x20] sm:$0xff]
  %v292 = vld [vmem:[%s2 + $0x28] sm:$0xff]
  %v293 = vld [vmem:[%s2 + $0x30] sm:$0xff]
  %v294 = vld [vmem:[%s2 + $0x38] sm:$0xff]
  %296 = vset.pattern.permute.xlu0 0
  %297 = vperm.xlu0 %296, %v287
  %v298 = vpop.permute.xlu0 %297
  %301 = vset.pattern.permute.xlu0 0
  %302 = vperm.xlu0 %301, %v288
  %v303 = vpop.permute.xlu0 %302
  %306 = vset.pattern.permute.xlu0 0
  %307 = vperm.xlu0 %306, %v289
  %v308 = vpop.permute.xlu0 %307
  %311 = vset.pattern.permute.xlu0 0
  %312 = vperm.xlu0 %311, %v290
  %v313 = vpop.permute.xlu0 %312
  %316 = vset.pattern.permute.xlu0 0
  %317 = vperm.xlu0 %316, %v291
  %v318 = vpop.permute.xlu0 %317
  %321 = vset.pattern.permute.xlu0 0
  %322 = vperm.xlu0 %321, %v292
  %v323 = vpop.permute.xlu0 %322
  %326 = vset.pattern.permute.xlu0 0
  %327 = vperm.xlu0 %326, %v293
  %v328 = vpop.permute.xlu0 %327
  %331 = vset.pattern.permute.xlu0 0
  %332 = vperm.xlu0 %331, %v294
  %v333 = vpop.permute.xlu0 %332
  %v391 = vunpack.c.l.b16 %v15
  %v392 = vunpack.c.h.b16 %v15
  %v393 = vunpack.c.l.b16 %v16
  %v394 = vunpack.c.h.b16 %v16
  %v395 = vunpack.c.l.b16 %v17
  %v396 = vunpack.c.h.b16 %v17
  %v397 = vunpack.c.l.b16 %v18
  %v398 = vunpack.c.h.b16 %v18
  %v399 = vunpack.c.l.b16 %v19
  %v400 = vunpack.c.h.b16 %v19
  %v401 = vunpack.c.l.b16 %v20
  %v402 = vunpack.c.h.b16 %v20
  %v403 = vunpack.c.l.b16 %v21
  %v404 = vunpack.c.h.b16 %v21
  %v405 = vunpack.c.l.b16 %v22
  %v406 = vunpack.c.h.b16 %v22
  %v407 = vunpack.c.l.b16 %v23
  %v408 = vunpack.c.h.b16 %v23
  %v409 = vunpack.c.l.b16 %v24
  %v410 = vunpack.c.h.b16 %v24
  %v411 = vunpack.c.l.b16 %v25
  %v412 = vunpack.c.h.b16 %v25
  %v413 = vunpack.c.l.b16 %v26
  %v414 = vunpack.c.h.b16 %v26
  %v415 = vunpack.c.l.b16 %v27
  %v416 = vunpack.c.h.b16 %v27
  %v417 = vunpack.c.l.b16 %v28
  %v418 = vunpack.c.h.b16 %v28
  %v419 = vunpack.c.l.b16 %v29
  %v420 = vunpack.c.h.b16 %v29
  %v421 = vunpack.c.l.b16 %v30
  %v422 = vunpack.c.h.b16 %v30
  %v423 = vunpack.c.l.b16 %v31
  %v424 = vunpack.c.h.b16 %v31
  %v425 = vunpack.c.l.b16 %v32
  %v426 = vunpack.c.h.b16 %v32
  %v427 = vunpack.c.l.b16 %v33
  %v428 = vunpack.c.h.b16 %v33
  %v429 = vunpack.c.l.b16 %v34
  %v430 = vunpack.c.h.b16 %v34
  %v431 = vunpack.c.l.b16 %v35
  %v432 = vunpack.c.h.b16 %v35
  %v433 = vunpack.c.l.b16 %v36
  %v434 = vunpack.c.h.b16 %v36
  %v435 = vunpack.c.l.b16 %v37
  %v436 = vunpack.c.h.b16 %v37
  %v437 = vunpack.c.l.b16 %v38
  %v438 = vunpack.c.h.b16 %v38
  %v439 = vunpack.c.l.b16 %v39
  %v440 = vunpack.c.h.b16 %v39
  %v441 = vunpack.c.l.b16 %v40
  %v442 = vunpack.c.h.b16 %v40
  %v443 = vunpack.c.l.b16 %v41
  %v444 = vunpack.c.h.b16 %v41
  %v445 = vunpack.c.l.b16 %v42
  %v446 = vunpack.c.h.b16 %v42
  %v447 = vunpack.c.l.b16 %v43
  %v448 = vunpack.c.h.b16 %v43
  %v449 = vunpack.c.l.b16 %v44
  %v450 = vunpack.c.h.b16 %v44
  %v451 = vunpack.c.l.b16 %v45
  %v452 = vunpack.c.h.b16 %v45
  %v453 = vunpack.c.l.b16 %v46
  %v454 = vunpack.c.h.b16 %v46
  %v455 = vunpack.c.l.b16 %v47
  %v456 = vunpack.c.h.b16 %v47
  %v457 = vunpack.c.l.b16 %v48
  %v458 = vunpack.c.h.b16 %v48
  %v459 = vunpack.c.l.b16 %v49
  %v460 = vunpack.c.h.b16 %v49
  %v461 = vunpack.c.l.b16 %v50
  %v462 = vunpack.c.h.b16 %v50
  %v463 = vunpack.c.l.b16 %v51
  %v464 = vunpack.c.h.b16 %v51
  %v465 = vunpack.c.l.b16 %v52
  %v466 = vunpack.c.h.b16 %v52
  %v467 = vunpack.c.l.b16 %v53
  %v468 = vunpack.c.h.b16 %v53
  %v469 = vunpack.c.l.b16 %v54
  %v470 = vunpack.c.h.b16 %v54
  %v471 = vunpack.c.l.b16 %v55
  %v472 = vunpack.c.h.b16 %v55
  %v473 = vunpack.c.l.b16 %v56
  %v474 = vunpack.c.h.b16 %v56
  %v475 = vunpack.c.l.b16 %v57
  %v476 = vunpack.c.h.b16 %v57
  %v477 = vunpack.c.l.b16 %v58
  %v478 = vunpack.c.h.b16 %v58
  %v479 = vunpack.c.l.b16 %v59
  %v480 = vunpack.c.h.b16 %v59
  %v481 = vunpack.c.l.b16 %v60
  %v482 = vunpack.c.h.b16 %v60
  %v483 = vunpack.c.l.b16 %v61
  %v484 = vunpack.c.h.b16 %v61
  %v485 = vunpack.c.l.b16 %v62
  %v486 = vunpack.c.h.b16 %v62
  %v487 = vunpack.c.l.b16 %v63
  %v488 = vunpack.c.h.b16 %v63
  %v489 = vunpack.c.l.b16 %v64
  %v490 = vunpack.c.h.b16 %v64
  %v491 = vunpack.c.l.b16 %v65
  %v492 = vunpack.c.h.b16 %v65
  %v493 = vunpack.c.l.b16 %v66
  %v494 = vunpack.c.h.b16 %v66
  %v495 = vunpack.c.l.b16 %v67
  %v496 = vunpack.c.h.b16 %v67
  %v497 = vunpack.c.l.b16 %v68
  %v498 = vunpack.c.h.b16 %v68
  %v499 = vunpack.c.l.b16 %v69
  %v500 = vunpack.c.h.b16 %v69
  %v501 = vunpack.c.l.b16 %v70
  %v502 = vunpack.c.h.b16 %v70
  %v503 = vpack.c.b16 %v405, %v391
  %v504 = vpack.c.b16 %v406, %v392
  %v505 = vpack.c.b16 %v407, %v393
  %v506 = vpack.c.b16 %v408, %v394
  %v507 = vpack.c.b16 %v409, %v395
  %v508 = vpack.c.b16 %v410, %v396
  %v509 = vpack.c.b16 %v411, %v397
  %v510 = vpack.c.b16 %v412, %v398
  %v511 = vpack.c.b16 %v413, %v399
  %v512 = vpack.c.b16 %v414, %v400
  %v513 = vpack.c.b16 %v415, %v401
  %v514 = vpack.c.b16 %v416, %v402
  %v515 = vpack.c.b16 %v417, %v403
  %v516 = vpack.c.b16 %v418, %v404
  %v517 = vpack.c.b16 %v433, %v419
  %v518 = vpack.c.b16 %v434, %v420
  %v519 = vpack.c.b16 %v435, %v421
  %v520 = vpack.c.b16 %v436, %v422
  %v521 = vpack.c.b16 %v437, %v423
  %v522 = vpack.c.b16 %v438, %v424
  %v523 = vpack.c.b16 %v439, %v425
  %v524 = vpack.c.b16 %v440, %v426
  %v525 = vpack.c.b16 %v441, %v427
  %v526 = vpack.c.b16 %v442, %v428
  %v527 = vpack.c.b16 %v443, %v429
  %v528 = vpack.c.b16 %v444, %v430
  %v529 = vpack.c.b16 %v445, %v431
  %v530 = vpack.c.b16 %v446, %v432
  %v531 = vpack.c.b16 %v461, %v447
  %v532 = vpack.c.b16 %v462, %v448
  %v533 = vpack.c.b16 %v463, %v449
  %v534 = vpack.c.b16 %v464, %v450
  %v535 = vpack.c.b16 %v465, %v451
  %v536 = vpack.c.b16 %v466, %v452
  %v537 = vpack.c.b16 %v467, %v453
  %v538 = vpack.c.b16 %v468, %v454
  %v539 = vpack.c.b16 %v469, %v455
  %v540 = vpack.c.b16 %v470, %v456
  %v541 = vpack.c.b16 %v471, %v457
  %v542 = vpack.c.b16 %v472, %v458
  %v543 = vpack.c.b16 %v473, %v459
  %v544 = vpack.c.b16 %v474, %v460
  %v545 = vpack.c.b16 %v489, %v475
  %v546 = vpack.c.b16 %v490, %v476
  %v547 = vpack.c.b16 %v491, %v477
  %v548 = vpack.c.b16 %v492, %v478
  %v549 = vpack.c.b16 %v493, %v479
  %v550 = vpack.c.b16 %v494, %v480
  %v551 = vpack.c.b16 %v495, %v481
  %v552 = vpack.c.b16 %v496, %v482
  %v553 = vpack.c.b16 %v497, %v483
  %v554 = vpack.c.b16 %v498, %v484
  %v555 = vpack.c.b16 %v499, %v485
  %v556 = vpack.c.b16 %v500, %v486
  %v557 = vpack.c.b16 %v501, %v487
  %v558 = vpack.c.b16 %v502, %v488
  %v827 = vunpack.c.l.b16 %v71
  %v828 = vunpack.c.l.b16 %v72
  %v829 = vunpack.c.l.b16 %v73
  %v830 = vunpack.c.l.b16 %v74
  %v831 = vunpack.c.l.b16 %v75
  %v832 = vunpack.c.l.b16 %v76
  %v833 = vunpack.c.l.b16 %v77
  %v834 = vunpack.c.l.b16 %v78
  %v835 = vunpack.c.l.b16 %v79
  %v836 = vunpack.c.l.b16 %v80
  %v837 = vunpack.c.l.b16 %v81
  %v838 = vunpack.c.l.b16 %v82
  %v839 = vunpack.c.l.b16 %v83
  %v840 = vunpack.c.l.b16 %v84
  %v841 = vunpack.c.l.b16 %v85
  %v842 = vunpack.c.l.b16 %v86
  %v843 = vunpack.c.l.b16 %v87
  %v844 = vunpack.c.l.b16 %v88
  %v845 = vunpack.c.l.b16 %v89
  %v846 = vunpack.c.l.b16 %v90
  %v847 = vunpack.c.l.b16 %v91
  %v848 = vunpack.c.l.b16 %v92
  %v849 = vunpack.c.l.b16 %v93
  %v850 = vunpack.c.l.b16 %v94
  %v851 = vunpack.c.l.b16 %v95
  %v852 = vunpack.c.l.b16 %v96
  %v853 = vunpack.c.l.b16 %v97
  %v854 = vunpack.c.l.b16 %v98
  %v855 = vunpack.c.l.b16 %v99
  %v856 = vunpack.c.l.b16 %v100
  %v857 = vunpack.c.l.b16 %v101
  %v858 = vunpack.c.l.b16 %v102
  %v859 = vunpack.c.l.b16 %v103
  %v860 = vunpack.c.l.b16 %v104
  %v861 = vunpack.c.l.b16 %v105
  %v862 = vunpack.c.l.b16 %v106
  %v863 = vunpack.c.l.b16 %v107
  %v864 = vunpack.c.l.b16 %v108
  %v865 = vunpack.c.l.b16 %v109
  %v866 = vunpack.c.l.b16 %v110
  %v867 = vunpack.c.l.b16 %v111
  %v868 = vunpack.c.l.b16 %v112
  %v869 = vunpack.c.l.b16 %v113
  %v870 = vunpack.c.l.b16 %v114
  %v871 = vunpack.c.l.b16 %v115
  %v872 = vunpack.c.l.b16 %v116
  %v873 = vunpack.c.l.b16 %v117
  %v874 = vunpack.c.l.b16 %v118
  %v875 = vunpack.c.l.b16 %v119
  %v876 = vunpack.c.l.b16 %v120
  %v877 = vunpack.c.l.b16 %v121
  %v878 = vunpack.c.l.b16 %v122
  %v879 = vunpack.c.l.b16 %v123
  %v880 = vunpack.c.l.b16 %v124
  %v881 = vunpack.c.l.b16 %v125
  %v882 = vunpack.c.l.b16 %v126
  %v883 = vunpack.c.l.b16 %v127
  %v884 = vunpack.c.l.b16 %v128
  %v885 = vunpack.c.l.b16 %v129
  %v886 = vunpack.c.l.b16 %v130
  %v887 = vunpack.c.l.b16 %v131
  %v888 = vunpack.c.l.b16 %v132
  %v889 = vunpack.c.l.b16 %v133
  %v890 = vunpack.c.l.b16 %v134
  %v891 = vunpack.c.l.b16 %v135
  %v892 = vunpack.c.l.b16 %v136
  %v893 = vunpack.c.l.b16 %v137
  %v894 = vunpack.c.l.b16 %v138
  %v895 = vunpack.c.l.b16 %v139
  %v896 = vunpack.c.l.b16 %v140
  %v897 = vunpack.c.l.b16 %v141
  %v898 = vunpack.c.l.b16 %v142
  %v899 = vunpack.c.l.b16 %v143
  %v900 = vunpack.c.l.b16 %v144
  %v901 = vunpack.c.l.b16 %v145
  %v902 = vunpack.c.l.b16 %v146
  %v903 = vunpack.c.l.b16 %v147
  %v904 = vunpack.c.l.b16 %v148
  %v905 = vunpack.c.l.b16 %v149
  %v906 = vunpack.c.l.b16 %v150
  %v907 = vunpack.c.l.b16 %v151
  %v908 = vunpack.c.l.b16 %v152
  %v909 = vunpack.c.l.b16 %v153
  %v910 = vunpack.c.l.b16 %v154
  %v911 = vunpack.c.l.b16 %v155
  %v912 = vunpack.c.l.b16 %v156
  %v913 = vunpack.c.l.b16 %v157
  %v914 = vunpack.c.l.b16 %v158
  %v915 = vunpack.c.l.b16 %v159
  %v916 = vunpack.c.l.b16 %v160
  %v917 = vunpack.c.l.b16 %v161
  %v918 = vunpack.c.l.b16 %v162
  %v919 = vunpack.c.l.b16 %v163
  %v920 = vunpack.c.l.b16 %v164
  %v921 = vunpack.c.l.b16 %v165
  %v922 = vunpack.c.l.b16 %v166
  %v923 = vunpack.c.l.b16 %v167
  %v924 = vunpack.c.l.b16 %v168
  %v925 = vunpack.c.l.b16 %v169
  %v926 = vunpack.c.l.b16 %v170
  %v927 = vunpack.c.l.b16 %v171
  %v928 = vunpack.c.l.b16 %v172
  %v929 = vunpack.c.l.b16 %v173
  %v930 = vunpack.c.l.b16 %v174
  %v931 = vunpack.c.l.b16 %v175
  %v932 = vunpack.c.l.b16 %v176
  %v933 = vunpack.c.l.b16 %v177
  %v934 = vunpack.c.l.b16 %v178
  %v935 = vunpack.c.l.b16 %v179
  %v936 = vunpack.c.l.b16 %v180
  %v937 = vunpack.c.l.b16 %v181
  %v938 = vunpack.c.l.b16 %v182
  %v939 = vunpack.c.l.b16 %v183
  %v940 = vunpack.c.l.b16 %v184
  %v941 = vunpack.c.l.b16 %v185
  %v942 = vunpack.c.l.b16 %v186
  %v943 = vunpack.c.l.b16 %v187
  %v944 = vunpack.c.l.b16 %v188
  %v945 = vunpack.c.l.b16 %v189
  %v946 = vunpack.c.l.b16 %v190
  %v947 = vunpack.c.l.b16 %v191
  %v948 = vunpack.c.l.b16 %v192
  %v949 = vunpack.c.l.b16 %v193
  %v950 = vunpack.c.l.b16 %v194
  %v951 = vunpack.c.l.b16 %v195
  %v952 = vunpack.c.l.b16 %v196
  %v953 = vunpack.c.l.b16 %v197
  %v954 = vunpack.c.l.b16 %v198
  %v955 = vunpack.c.l.b16 %v199
  %v956 = vunpack.c.l.b16 %v200
  %v957 = vunpack.c.l.b16 %v201
  %v958 = vunpack.c.l.b16 %v202
  %v959 = vunpack.c.l.b16 %v203
  %v960 = vunpack.c.l.b16 %v204
  %v961 = vunpack.c.l.b16 %v205
  %v962 = vunpack.c.l.b16 %v206
  %v963 = vunpack.c.l.b16 %v207
  %v964 = vunpack.c.l.b16 %v208
  %v965 = vunpack.c.l.b16 %v209
  %v966 = vunpack.c.l.b16 %v210
  %v967 = vunpack.c.l.b16 %v211
  %v968 = vunpack.c.l.b16 %v212
  %v969 = vunpack.c.l.b16 %v213
  %v970 = vunpack.c.l.b16 %v214
  %v971 = vunpack.c.l.b16 %v215
  %v972 = vunpack.c.l.b16 %v216
  %v973 = vunpack.c.l.b16 %v217
  %v974 = vunpack.c.l.b16 %v218
  %v975 = vunpack.c.l.b16 %v219
  %v976 = vunpack.c.l.b16 %v220
  %v977 = vunpack.c.l.b16 %v221
  %v978 = vunpack.c.l.b16 %v222
  %v979 = vunpack.c.l.b16 %v223
  %v980 = vunpack.c.l.b16 %v224
  %v981 = vunpack.c.l.b16 %v225
  %v982 = vunpack.c.l.b16 %v226
  %v983 = vunpack.c.l.b16 %v227
  %v984 = vunpack.c.l.b16 %v228
  %v985 = vunpack.c.l.b16 %v229
  %v986 = vunpack.c.l.b16 %v230
  %v987 = vunpack.c.l.b16 %v231
  %v988 = vunpack.c.l.b16 %v232
  %v989 = vunpack.c.l.b16 %v233
  %v990 = vunpack.c.l.b16 %v234
  %v991 = vunpack.c.l.b16 %v235
  %v992 = vunpack.c.l.b16 %v236
  %v993 = vunpack.c.l.b16 %v237
  %v994 = vunpack.c.l.b16 %v238
  %v995 = vunpack.c.l.b16 %v239
  %v996 = vunpack.c.l.b16 %v240
  %v997 = vunpack.c.l.b16 %v241
  %v998 = vunpack.c.l.b16 %v242
  %v999 = vunpack.c.l.b16 %v243
  %v1000 = vunpack.c.l.b16 %v244
  %v1001 = vunpack.c.l.b16 %v245
  %v1002 = vunpack.c.l.b16 %v246
  %v1003 = vunpack.c.l.b16 %v247
  %v1004 = vunpack.c.l.b16 %v248
  %v1005 = vunpack.c.l.b16 %v249
  %v1006 = vunpack.c.l.b16 %v250
  %v1007 = vunpack.c.l.b16 %v251
  %v1008 = vunpack.c.l.b16 %v252
  %v1009 = vunpack.c.l.b16 %v253
  %v1010 = vunpack.c.l.b16 %v254
  %v1011 = vunpack.c.l.b16 %v255
  %v1012 = vunpack.c.l.b16 %v256
  %v1013 = vunpack.c.l.b16 %v257
  %v1014 = vunpack.c.l.b16 %v258
  %v1015 = vunpack.c.l.b16 %v259
  %v1016 = vunpack.c.l.b16 %v260
  %v1017 = vunpack.c.l.b16 %v261
  %v1018 = vunpack.c.l.b16 %v262
  %v1019 = vunpack.c.l.b16 %v263
  %v1020 = vunpack.c.l.b16 %v264
  %v1021 = vunpack.c.l.b16 %v265
  %v1022 = vunpack.c.l.b16 %v266
  %v1023 = vunpack.c.l.b16 %v267
  %v1024 = vunpack.c.l.b16 %v268
  %v1025 = vunpack.c.l.b16 %v269
  %v1026 = vunpack.c.l.b16 %v270
  %v1027 = vunpack.c.l.b16 %v271
  %v1028 = vunpack.c.l.b16 %v272
  %v1029 = vunpack.c.l.b16 %v273
  %v1030 = vunpack.c.l.b16 %v274
  %v1031 = vunpack.c.l.b16 %v275
  %v1032 = vunpack.c.l.b16 %v276
  %v1033 = vunpack.c.l.b16 %v277
  %v1034 = vunpack.c.l.b16 %v278
  %v1035 = vunpack.c.l.b16 %v279
  %v1036 = vunpack.c.l.b16 %v280
  %v1037 = vunpack.c.l.b16 %v281
  %v1038 = vunpack.c.l.b16 %v282
  %v1039 = vunpack.c.l.b16 %v283
  %v1040 = vunpack.c.l.b16 %v284
  %v1041 = vunpack.c.l.b16 %v285
  %v1042 = vunpack.c.l.b16 %v286
  %v1043 = vpack.c.b16 %v828, %v827
  %v1044 = vpack.c.b16 %v830, %v829
  %v1045 = vpack.c.b16 %v832, %v831
  %v1046 = vpack.c.b16 %v834, %v833
  %v1047 = vpack.c.b16 %v836, %v835
  %v1048 = vpack.c.b16 %v838, %v837
  %v1049 = vpack.c.b16 %v840, %v839
  %v1050 = vpack.c.b16 %v842, %v841
  %v1051 = vpack.c.b16 %v844, %v843
  %v1052 = vpack.c.b16 %v846, %v845
  %v1053 = vpack.c.b16 %v848, %v847
  %v1054 = vpack.c.b16 %v850, %v849
  %v1055 = vpack.c.b16 %v852, %v851
  %v1056 = vpack.c.b16 %v854, %v853
  %v1057 = vpack.c.b16 %v856, %v855
  %v1058 = vpack.c.b16 %v858, %v857
  %v1059 = vpack.c.b16 %v860, %v859
  %v1060 = vpack.c.b16 %v862, %v861
  %v1061 = vpack.c.b16 %v864, %v863
  %v1062 = vpack.c.b16 %v866, %v865
  %v1063 = vpack.c.b16 %v868, %v867
  %v1064 = vpack.c.b16 %v870, %v869
  %v1065 = vpack.c.b16 %v872, %v871
  %v1066 = vpack.c.b16 %v874, %v873
  %v1067 = vpack.c.b16 %v876, %v875
  %v1068 = vpack.c.b16 %v878, %v877
  %v1069 = vpack.c.b16 %v880, %v879
  %v1070 = vpack.c.b16 %v882, %v881
  %v1071 = vpack.c.b16 %v884, %v883
  %v1072 = vpack.c.b16 %v886, %v885
  %v1073 = vpack.c.b16 %v888, %v887
  %v1074 = vpack.c.b16 %v890, %v889
  %v1075 = vpack.c.b16 %v892, %v891
  %v1076 = vpack.c.b16 %v894, %v893
  %v1077 = vpack.c.b16 %v896, %v895
  %v1078 = vpack.c.b16 %v898, %v897
  %v1079 = vpack.c.b16 %v900, %v899
  %v1080 = vpack.c.b16 %v902, %v901
  %v1081 = vpack.c.b16 %v904, %v903
  %v1082 = vpack.c.b16 %v906, %v905
  %v1083 = vpack.c.b16 %v908, %v907
  %v1084 = vpack.c.b16 %v910, %v909
  %v1085 = vpack.c.b16 %v912, %v911
  %v1086 = vpack.c.b16 %v914, %v913
  %v1087 = vpack.c.b16 %v916, %v915
  %v1088 = vpack.c.b16 %v918, %v917
  %v1089 = vpack.c.b16 %v920, %v919
  %v1090 = vpack.c.b16 %v922, %v921
  %v1091 = vpack.c.b16 %v924, %v923
  %v1092 = vpack.c.b16 %v926, %v925
  %v1093 = vpack.c.b16 %v928, %v927
  %v1094 = vpack.c.b16 %v930, %v929
  %v1095 = vpack.c.b16 %v932, %v931
  %v1096 = vpack.c.b16 %v934, %v933
  %v1097 = vpack.c.b16 %v936, %v935
  %v1098 = vpack.c.b16 %v938, %v937
  %v1099 = vpack.c.b16 %v940, %v939
  %v1100 = vpack.c.b16 %v942, %v941
  %v1101 = vpack.c.b16 %v944, %v943
  %v1102 = vpack.c.b16 %v946, %v945
  %v1103 = vpack.c.b16 %v948, %v947
  %v1104 = vpack.c.b16 %v950, %v949
  %v1105 = vpack.c.b16 %v952, %v951
  %v1106 = vpack.c.b16 %v954, %v953
  %v1107 = vpack.c.b16 %v956, %v955
  %v1108 = vpack.c.b16 %v958, %v957
  %v1109 = vpack.c.b16 %v960, %v959
  %v1110 = vpack.c.b16 %v962, %v961
  %v1111 = vpack.c.b16 %v964, %v963
  %v1112 = vpack.c.b16 %v966, %v965
  %v1113 = vpack.c.b16 %v968, %v967
  %v1114 = vpack.c.b16 %v970, %v969
  %v1115 = vpack.c.b16 %v972, %v971
  %v1116 = vpack.c.b16 %v974, %v973
  %v1117 = vpack.c.b16 %v976, %v975
  %v1118 = vpack.c.b16 %v978, %v977
  %v1119 = vpack.c.b16 %v980, %v979
  %v1120 = vpack.c.b16 %v982, %v981
  %v1121 = vpack.c.b16 %v984, %v983
  %v1122 = vpack.c.b16 %v986, %v985
  %v1123 = vpack.c.b16 %v988, %v987
  %v1124 = vpack.c.b16 %v990, %v989
  %v1125 = vpack.c.b16 %v992, %v991
  %v1126 = vpack.c.b16 %v994, %v993
  %v1127 = vpack.c.b16 %v996, %v995
  %v1128 = vpack.c.b16 %v998, %v997
  %v1129 = vpack.c.b16 %v1000, %v999
  %v1130 = vpack.c.b16 %v1002, %v1001
  %v1131 = vpack.c.b16 %v1004, %v1003
  %v1132 = vpack.c.b16 %v1006, %v1005
  %v1133 = vpack.c.b16 %v1008, %v1007
  %v1134 = vpack.c.b16 %v1010, %v1009
  %v1135 = vpack.c.b16 %v1012, %v1011
  %v1136 = vpack.c.b16 %v1014, %v1013
  %v1137 = vpack.c.b16 %v1016, %v1015
  %v1138 = vpack.c.b16 %v1018, %v1017
  %v1139 = vpack.c.b16 %v1020, %v1019
  %v1140 = vpack.c.b16 %v1022, %v1021
  %v1141 = vpack.c.b16 %v1024, %v1023
  %v1142 = vpack.c.b16 %v1026, %v1025
  %v1143 = vpack.c.b16 %v1028, %v1027
  %v1144 = vpack.c.b16 %v1030, %v1029
  %v1145 = vpack.c.b16 %v1032, %v1031
  %v1146 = vpack.c.b16 %v1034, %v1033
  %v1147 = vpack.c.b16 %v1036, %v1035
  %v1148 = vpack.c.b16 %v1038, %v1037
  %v1149 = vpack.c.b16 %v1040, %v1039
  %v1150 = vpack.c.b16 %v1042, %v1041
  %vm1259 = vcmask 523264
  %v1261 = vsel %vm1259, %v516, 0
  %v1264 = vsel %vm1259, %v530, 0
  %v1267 = vsel %vm1259, %v544, 0
  %v1270 = vsel %vm1259, %v558, 0
  %1272 = vmatprep.subr.bf16.mxu0 0
  %1273 = vmatpush1.bf16.msra.mxu0 %v1043
  %1274 = vmatprep.subr.bf16.mxu0 0
  %1275 = vmatpush1.bf16.msra.mxu0 %v1044
  %1276 = vmatprep.subr.bf16.mxu0 0
  %1277 = vmatpush1.bf16.msra.mxu0 %v1045
  %1278 = vmatprep.subr.bf16.mxu0 0
  %1279 = vmatpush1.bf16.msra.mxu0 %v1046
  %1280 = vmatprep.subr.bf16.mxu0 0
  %1281 = vmatpush1.bf16.msra.mxu0 %v1047
  %1282 = vmatprep.subr.bf16.mxu0 0
  %1283 = vmatpush1.bf16.msra.mxu0 %v1048
  %1284 = vmatprep.subr.bf16.mxu0 0
  %1285 = vmatpush1.bf16.msra.mxu0 %v1049
  %1286 = vmatprep.subr.bf16.mxu0 0
  %1287 = vmatpush1.bf16.msra.mxu0 %v1050
  %1288 = vmatprep.subr.bf16.mxu0 0
  %1289 = vmatpush1.bf16.msra.mxu0 %v1051
  %1290 = vmatprep.subr.bf16.mxu0 0
  %1291 = vmatpush1.bf16.msra.mxu0 %v1052
  %1292 = vmatprep.subr.bf16.mxu0 0
  %1293 = vmatpush1.bf16.msra.mxu0 %v1053
  %1294 = vmatprep.subr.bf16.mxu0 0
  %1295 = vmatpush1.bf16.msra.mxu0 %v1054
  %1296 = vmatprep.subr.bf16.mxu0 0
  %1297 = vmatpush1.bf16.msra.mxu0 %v1055
  %1298 = vmatprep.subr.bf16.mxu0 0
  %1299 = vmatpush1.bf16.msra.mxu0 %v1056
  %1300 = vmatprep.subr.bf16.mxu0 0
  %1301 = vmatpush1.bf16.msra.mxu0 %v1057
  %1302 = vmatprep.subr.bf16.mxu0 0
  %1303 = vmatpush1.bf16.msra.mxu0 %v1058
  %1304 = vmatprep.mubr.bf16.mxu0 %v504
  %1305 = vmatmul.mubr.bf16.gmra.mrb[0].mxu0 %v503
  %v1306 = vpop.f32.mrb[0].mxu0
  %v1307 = vadd.f32 %v298, %v1306
  %v1308 = vpop.f32.mrb[0].mxu0
  %v1309 = vpop.f32.mrb[0].mxu0
  %v1310 = vadd.f32 %v303, %v1309
  %v1311 = vpop.f32.mrb[0].mxu0
  %1312 = vmatprep.mubr.bf16.mxu0 %v518
  %1313 = vmatmul.mubr.bf16.gmra.mrb[0].mxu0 %v517
  %v1314 = vpop.f32.mrb[0].mxu0
  %v1315 = vadd.f32 %v308, %v1314
  %v1316 = vpop.f32.mrb[0].mxu0
  %v1317 = vpop.f32.mrb[0].mxu0
  %v1318 = vadd.f32 %v313, %v1317
  %v1319 = vpop.f32.mrb[0].mxu0
  %1320 = vmatprep.mubr.bf16.mxu0 %v532
  %1321 = vmatmul.mubr.bf16.gmra.mrb[0].mxu0 %v531
  %v1322 = vpop.f32.mrb[0].mxu0
  %v1323 = vadd.f32 %v318, %v1322
  %v1324 = vpop.f32.mrb[0].mxu0
  %v1325 = vpop.f32.mrb[0].mxu0
  %v1326 = vadd.f32 %v323, %v1325
  %v1327 = vpop.f32.mrb[0].mxu0
  %1328 = vmatprep.mubr.bf16.mxu0 %v546
  %1329 = vmatmul.mubr.bf16.gmra.mrb[0].mxu0 %v545
  %v1330 = vpop.f32.mrb[0].mxu0
  %v1331 = vadd.f32 %v328, %v1330
  %v1332 = vpop.f32.mrb[0].mxu0
  %v1333 = vpop.f32.mrb[0].mxu0
  %v1334 = vadd.f32 %v333, %v1333
  %v1335 = vpop.f32.mrb[0].mxu0
  %1336 = vdwg.mxu0
  %1337 = vmatprep.subr.bf16.mxu0 0
  %1338 = vmatpush1.bf16.msra.mxu0 %v1059
  %1339 = vmatprep.subr.bf16.mxu0 0
  %1340 = vmatpush1.bf16.msra.mxu0 %v1060
  %1341 = vmatprep.subr.bf16.mxu0 0
  %1342 = vmatpush1.bf16.msra.mxu0 %v1061
  %1343 = vmatprep.subr.bf16.mxu0 0
  %1344 = vmatpush1.bf16.msra.mxu0 %v1062
  %1345 = vmatprep.subr.bf16.mxu0 0
  %1346 = vmatpush1.bf16.msra.mxu0 %v1063
  %1347 = vmatprep.subr.bf16.mxu0 0
  %1348 = vmatpush1.bf16.msra.mxu0 %v1064
  %1349 = vmatprep.subr.bf16.mxu0 0
  %1350 = vmatpush1.bf16.msra.mxu0 %v1065
  %1351 = vmatprep.subr.bf16.mxu0 0
  %1352 = vmatpush1.bf16.msra.mxu0 %v1066
  %1353 = vmatprep.subr.bf16.mxu0 0
  %1354 = vmatpush1.bf16.msra.mxu0 %v1067
  %1355 = vmatprep.subr.bf16.mxu0 0
  %1356 = vmatpush1.bf16.msra.mxu0 %v1068
  %1357 = vmatprep.subr.bf16.mxu0 0
  %1358 = vmatpush1.bf16.msra.mxu0 %v1069
  %1359 = vmatprep.subr.bf16.mxu0 0
  %1360 = vmatpush1.bf16.msra.mxu0 %v1070
  %1361 = vmatprep.subr.bf16.mxu0 0
  %1362 = vmatpush1.bf16.msra.mxu0 %v1071
  %1363 = vmatprep.subr.bf16.mxu0 0
  %1364 = vmatpush1.bf16.msra.mxu0 %v1072
  %1365 = vmatprep.subr.bf16.mxu0 0
  %1366 = vmatpush1.bf16.msra.mxu0 %v1073
  %1367 = vmatprep.subr.bf16.mxu0 0
  %1368 = vmatpush1.bf16.msra.mxu0 %v1074
  %1369 = vmatprep.mubr.bf16.mxu0 %v506
  %1370 = vmatmul.mubr.bf16.gmra.mrb[0].mxu0 %v505
  %v1371 = vpop.f32.mrb[0].mxu0
  %v1372 = vadd.f32 %v1307, %v1371
  %v1373 = vpop.f32.mrb[0].mxu0
  %v1374 = vpop.f32.mrb[0].mxu0
  %v1375 = vadd.f32 %v1310, %v1374
  %v1376 = vpop.f32.mrb[0].mxu0
  %1377 = vmatprep.mubr.bf16.mxu0 %v520
  %1378 = vmatmul.mubr.bf16.gmra.mrb[0].mxu0 %v519
  %v1379 = vpop.f32.mrb[0].mxu0
  %v1380 = vadd.f32 %v1315, %v1379
  %v1381 = vpop.f32.mrb[0].mxu0
  %v1382 = vpop.f32.mrb[0].mxu0
  %v1383 = vadd.f32 %v1318, %v1382
  %v1384 = vpop.f32.mrb[0].mxu0
  %1385 = vmatprep.mubr.bf16.mxu0 %v534
  %1386 = vmatmul.mubr.bf16.gmra.mrb[0].mxu0 %v533
  %v1387 = vpop.f32.mrb[0].mxu0
  %v1388 = vadd.f32 %v1323, %v1387
  %v1389 = vpop.f32.mrb[0].mxu0
  %v1390 = vpop.f32.mrb[0].mxu0
  %v1391 = vadd.f32 %v1326, %v1390
  %v1392 = vpop.f32.mrb[0].mxu0
  %1393 = vmatprep.mubr.bf16.mxu0 %v548
  %1394 = vmatmul.mubr.bf16.gmra.mrb[0].mxu0 %v547
  %v1395 = vpop.f32.mrb[0].mxu0
  %v1396 = vadd.f32 %v1331, %v1395
  %v1397 = vpop.f32.mrb[0].mxu0
  %v1398 = vpop.f32.mrb[0].mxu0
  %v1399 = vadd.f32 %v1334, %v1398
  %v1400 = vpop.f32.mrb[0].mxu0
  %1401 = vdwg.mxu0
  %1402 = vmatprep.subr.bf16.mxu0 0
  %1403 = vmatpush1.bf16.msra.mxu0 %v1075
  %1404 = vmatprep.subr.bf16.mxu0 0
  %1405 = vmatpush1.bf16.msra.mxu0 %v1076
  %1406 = vmatprep.subr.bf16.mxu0 0
  %1407 = vmatpush1.bf16.msra.mxu0 %v1077
  %1408 = vmatprep.subr.bf16.mxu0 0
  %1409 = vmatpush1.bf16.msra.mxu0 %v1078
  %1410 = vmatprep.subr.bf16.mxu0 0
  %1411 = vmatpush1.bf16.msra.mxu0 %v1079
  %1412 = vmatprep.subr.bf16.mxu0 0
  %1413 = vmatpush1.bf16.msra.mxu0 %v1080
  %1414 = vmatprep.subr.bf16.mxu0 0
  %1415 = vmatpush1.bf16.msra.mxu0 %v1081
  %1416 = vmatprep.subr.bf16.mxu0 0
  %1417 = vmatpush1.bf16.msra.mxu0 %v1082
  %1418 = vmatprep.subr.bf16.mxu0 0
  %1419 = vmatpush1.bf16.msra.mxu0 %v1083
  %1420 = vmatprep.subr.bf16.mxu0 0
  %1421 = vmatpush1.bf16.msra.mxu0 %v1084
  %1422 = vmatprep.subr.bf16.mxu0 0
  %1423 = vmatpush1.bf16.msra.mxu0 %v1085
  %1424 = vmatprep.subr.bf16.mxu0 0
  %1425 = vmatpush1.bf16.msra.mxu0 %v1086
  %1426 = vmatprep.subr.bf16.mxu0 0
  %1427 = vmatpush1.bf16.msra.mxu0 %v1087
  %1428 = vmatprep.subr.bf16.mxu0 0
  %1429 = vmatpush1.bf16.msra.mxu0 %v1088
  %1430 = vmatprep.subr.bf16.mxu0 0
  %1431 = vmatpush1.bf16.msra.mxu0 %v1089
  %1432 = vmatprep.subr.bf16.mxu0 0
  %1433 = vmatpush1.bf16.msra.mxu0 %v1090
  %1434 = vmatprep.mubr.bf16.mxu0 %v508
  %1435 = vmatmul.mubr.bf16.gmra.mrb[0].mxu0 %v507
  %v1436 = vpop.f32.mrb[0].mxu0
  %v1437 = vadd.f32 %v1372, %v1436
  %v1438 = vpop.f32.mrb[0].mxu0
  %v1439 = vpop.f32.mrb[0].mxu0
  %v1440 = vadd.f32 %v1375, %v1439
  %v1441 = vpop.f32.mrb[0].mxu0
  %1442 = vmatprep.mubr.bf16.mxu0 %v522
  %1443 = vmatmul.mubr.bf16.gmra.mrb[0].mxu0 %v521
  %v1444 = vpop.f32.mrb[0].mxu0
  %v1445 = vadd.f32 %v1380, %v1444
  %v1446 = vpop.f32.mrb[0].mxu0
  %v1447 = vpop.f32.mrb[0].mxu0
  %v1448 = vadd.f32 %v1383, %v1447
  %v1449 = vpop.f32.mrb[0].mxu0
  %1450 = vmatprep.mubr.bf16.mxu0 %v536
  %1451 = vmatmul.mubr.bf16.gmra.mrb[0].mxu0 %v535
  %v1452 = vpop.f32.mrb[0].mxu0
  %v1453 = vadd.f32 %v1388, %v1452
  %v1454 = vpop.f32.mrb[0].mxu0
  %v1455 = vpop.f32.mrb[0].mxu0
  %v1456 = vadd.f32 %v1391, %v1455
  %v1457 = vpop.f32.mrb[0].mxu0
  %1458 = vmatprep.mubr.bf16.mxu0 %v550
  %1459 = vmatmul.mubr.bf16.gmra.mrb[0].mxu0 %v549
  %v1460 = vpop.f32.mrb[0].mxu0
  %v1461 = vadd.f32 %v1396, %v1460
  %v1462 = vpop.f32.mrb[0].mxu0
  %v1463 = vpop.f32.mrb[0].mxu0
  %v1464 = vadd.f32 %v1399, %v1463
  %v1465 = vpop.f32.mrb[0].mxu0
  %1466 = vdwg.mxu0
  %1467 = vmatprep.subr.bf16.mxu0 0
  %1468 = vmatpush1.bf16.msra.mxu0 %v1091
  %1469 = vmatprep.subr.bf16.mxu0 0
  %1470 = vmatpush1.bf16.msra.mxu0 %v1092
  %1471 = vmatprep.subr.bf16.mxu0 0
  %1472 = vmatpush1.bf16.msra.mxu0 %v1093
  %1473 = vmatprep.subr.bf16.mxu0 0
  %1474 = vmatpush1.bf16.msra.mxu0 %v1094
  %1475 = vmatprep.subr.bf16.mxu0 0
  %1476 = vmatpush1.bf16.msra.mxu0 %v1095
  %1477 = vmatprep.subr.bf16.mxu0 0
  %1478 = vmatpush1.bf16.msra.mxu0 %v1096
  %1479 = vmatprep.subr.bf16.mxu0 0
  %1480 = vmatpush1.bf16.msra.mxu0 %v1097
  %1481 = vmatprep.subr.bf16.mxu0 0
  %1482 = vmatpush1.bf16.msra.mxu0 %v1098
  %1483 = vmatprep.subr.bf16.mxu0 0
  %1484 = vmatpush1.bf16.msra.mxu0 %v1099
  %1485 = vmatprep.subr.bf16.mxu0 0
  %1486 = vmatpush1.bf16.msra.mxu0 %v1100
  %1487 = vmatprep.subr.bf16.mxu0 0
  %1488 = vmatpush1.bf16.msra.mxu0 %v1101
  %1489 = vmatprep.subr.bf16.mxu0 0
  %1490 = vmatpush1.bf16.msra.mxu0 %v1102
  %1491 = vmatprep.subr.bf16.mxu0 0
  %1492 = vmatpush1.bf16.msra.mxu0 %v1103
  %1493 = vmatprep.subr.bf16.mxu0 0
  %1494 = vmatpush1.bf16.msra.mxu0 %v1104
  %1495 = vmatprep.subr.bf16.mxu0 0
  %1496 = vmatpush1.bf16.msra.mxu0 %v1105
  %1497 = vmatprep.subr.bf16.mxu0 0
  %1498 = vmatpush1.bf16.msra.mxu0 %v1106
  %1499 = vmatprep.mubr.bf16.mxu0 %v510
  %1500 = vmatmul.mubr.bf16.gmra.mrb[0].mxu0 %v509
  %v1501 = vpop.f32.mrb[0].mxu0
  %v1502 = vadd.f32 %v1437, %v1501
  %v1503 = vpop.f32.mrb[0].mxu0
  %v1504 = vpop.f32.mrb[0].mxu0
  %v1505 = vadd.f32 %v1440, %v1504
  %v1506 = vpop.f32.mrb[0].mxu0
  %1507 = vmatprep.mubr.bf16.mxu0 %v524
  %1508 = vmatmul.mubr.bf16.gmra.mrb[0].mxu0 %v523
  %v1509 = vpop.f32.mrb[0].mxu0
  %v1510 = vadd.f32 %v1445, %v1509
  %v1511 = vpop.f32.mrb[0].mxu0
  %v1512 = vpop.f32.mrb[0].mxu0
  %v1513 = vadd.f32 %v1448, %v1512
  %v1514 = vpop.f32.mrb[0].mxu0
  %1515 = vmatprep.mubr.bf16.mxu0 %v538
  %1516 = vmatmul.mubr.bf16.gmra.mrb[0].mxu0 %v537
  %v1517 = vpop.f32.mrb[0].mxu0
  %v1518 = vadd.f32 %v1453, %v1517
  %v1519 = vpop.f32.mrb[0].mxu0
  %v1520 = vpop.f32.mrb[0].mxu0
  %v1521 = vadd.f32 %v1456, %v1520
  %v1522 = vpop.f32.mrb[0].mxu0
  %1523 = vmatprep.mubr.bf16.mxu0 %v552
  %1524 = vmatmul.mubr.bf16.gmra.mrb[0].mxu0 %v551
  %v1525 = vpop.f32.mrb[0].mxu0
  %v1526 = vadd.f32 %v1461, %v1525
  %v1527 = vpop.f32.mrb[0].mxu0
  %v1528 = vpop.f32.mrb[0].mxu0
  %v1529 = vadd.f32 %v1464, %v1528
  %v1530 = vpop.f32.mrb[0].mxu0
  %1531 = vdwg.mxu0
  %1532 = vmatprep.subr.bf16.mxu0 0
  %1533 = vmatpush1.bf16.msra.mxu0 %v1107
  %1534 = vmatprep.subr.bf16.mxu0 0
  %1535 = vmatpush1.bf16.msra.mxu0 %v1108
  %1536 = vmatprep.subr.bf16.mxu0 0
  %1537 = vmatpush1.bf16.msra.mxu0 %v1109
  %1538 = vmatprep.subr.bf16.mxu0 0
  %1539 = vmatpush1.bf16.msra.mxu0 %v1110
  %1540 = vmatprep.subr.bf16.mxu0 0
  %1541 = vmatpush1.bf16.msra.mxu0 %v1111
  %1542 = vmatprep.subr.bf16.mxu0 0
  %1543 = vmatpush1.bf16.msra.mxu0 %v1112
  %1544 = vmatprep.subr.bf16.mxu0 0
  %1545 = vmatpush1.bf16.msra.mxu0 %v1113
  %1546 = vmatprep.subr.bf16.mxu0 0
  %1547 = vmatpush1.bf16.msra.mxu0 %v1114
  %1548 = vmatprep.subr.bf16.mxu0 0
  %1549 = vmatpush1.bf16.msra.mxu0 %v1115
  %1550 = vmatprep.subr.bf16.mxu0 0
  %1551 = vmatpush1.bf16.msra.mxu0 %v1116
  %1552 = vmatprep.subr.bf16.mxu0 0
  %1553 = vmatpush1.bf16.msra.mxu0 %v1117
  %1554 = vmatprep.subr.bf16.mxu0 0
  %1555 = vmatpush1.bf16.msra.mxu0 %v1118
  %1556 = vmatprep.subr.bf16.mxu0 0
  %1557 = vmatpush1.bf16.msra.mxu0 %v1119
  %1558 = vmatprep.subr.bf16.mxu0 0
  %1559 = vmatpush1.bf16.msra.mxu0 %v1120
  %1560 = vmatprep.subr.bf16.mxu0 0
  %1561 = vmatpush1.bf16.msra.mxu0 %v1121
  %1562 = vmatprep.subr.bf16.mxu0 0
  %1563 = vmatpush1.bf16.msra.mxu0 %v1122
  %1564 = vmatprep.mubr.bf16.mxu0 %v512
  %1565 = vmatmul.mubr.bf16.gmra.mrb[0].mxu0 %v511
  %v1566 = vpop.f32.mrb[0].mxu0
  %v1567 = vadd.f32 %v1502, %v1566
  %v1568 = vpop.f32.mrb[0].mxu0
  %v1569 = vpop.f32.mrb[0].mxu0
  %v1570 = vadd.f32 %v1505, %v1569
  %v1571 = vpop.f32.mrb[0].mxu0
  %1572 = vmatprep.mubr.bf16.mxu0 %v526
  %1573 = vmatmul.mubr.bf16.gmra.mrb[0].mxu0 %v525
  %v1574 = vpop.f32.mrb[0].mxu0
  %v1575 = vadd.f32 %v1510, %v1574
  %v1576 = vpop.f32.mrb[0].mxu0
  %v1577 = vpop.f32.mrb[0].mxu0
  %v1578 = vadd.f32 %v1513, %v1577
  %v1579 = vpop.f32.mrb[0].mxu0
  %1580 = vmatprep.mubr.bf16.mxu0 %v540
  %1581 = vmatmul.mubr.bf16.gmra.mrb[0].mxu0 %v539
  %v1582 = vpop.f32.mrb[0].mxu0
  %v1583 = vadd.f32 %v1518, %v1582
  %v1584 = vpop.f32.mrb[0].mxu0
  %v1585 = vpop.f32.mrb[0].mxu0
  %v1586 = vadd.f32 %v1521, %v1585
  %v1587 = vpop.f32.mrb[0].mxu0
  %1588 = vmatprep.mubr.bf16.mxu0 %v554
  %1589 = vmatmul.mubr.bf16.gmra.mrb[0].mxu0 %v553
  %v1590 = vpop.f32.mrb[0].mxu0
  %v1591 = vadd.f32 %v1526, %v1590
  %v1592 = vpop.f32.mrb[0].mxu0
  %v1593 = vpop.f32.mrb[0].mxu0
  %v1594 = vadd.f32 %v1529, %v1593
  %v1595 = vpop.f32.mrb[0].mxu0
  %1596 = vdwg.mxu0
  %1597 = vmatprep.subr.bf16.mxu0 0
  %1598 = vmatpush1.bf16.msra.mxu0 %v1123
  %1599 = vmatprep.subr.bf16.mxu0 0
  %1600 = vmatpush1.bf16.msra.mxu0 %v1124
  %1601 = vmatprep.subr.bf16.mxu0 0
  %1602 = vmatpush1.bf16.msra.mxu0 %v1125
  %1603 = vmatprep.subr.bf16.mxu0 0
  %1604 = vmatpush1.bf16.msra.mxu0 %v1126
  %1605 = vmatprep.subr.bf16.mxu0 0
  %1606 = vmatpush1.bf16.msra.mxu0 %v1127
  %1607 = vmatprep.subr.bf16.mxu0 0
  %1608 = vmatpush1.bf16.msra.mxu0 %v1128
  %1609 = vmatprep.subr.bf16.mxu0 0
  %1610 = vmatpush1.bf16.msra.mxu0 %v1129
  %1611 = vmatprep.subr.bf16.mxu0 0
  %1612 = vmatpush1.bf16.msra.mxu0 %v1130
  %1613 = vmatprep.subr.bf16.mxu0 0
  %1614 = vmatpush1.bf16.msra.mxu0 %v1131
  %1615 = vmatprep.subr.bf16.mxu0 0
  %1616 = vmatpush1.bf16.msra.mxu0 %v1132
  %1617 = vmatprep.subr.bf16.mxu0 0
  %1618 = vmatpush1.bf16.msra.mxu0 %v1133
  %1619 = vmatprep.subr.bf16.mxu0 0
  %1620 = vmatpush1.bf16.msra.mxu0 %v1134
  %1621 = vmatprep.subr.bf16.mxu0 0
  %1622 = vmatpush1.bf16.msra.mxu0 %v1135
  %1623 = vmatprep.subr.bf16.mxu0 0
  %1624 = vmatpush1.bf16.msra.mxu0 %v1136
  %1625 = vmatprep.subr.bf16.mxu0 0
  %1626 = vmatpush1.bf16.msra.mxu0 %v1137
  %1627 = vmatprep.subr.bf16.mxu0 0
  %1628 = vmatpush1.bf16.msra.mxu0 %v1138
  %1629 = vmatprep.mubr.bf16.mxu0 %v514
  %1630 = vmatmul.mubr.bf16.gmra.mrb[0].mxu0 %v513
  %v1631 = vpop.f32.mrb[0].mxu0
  %v1632 = vadd.f32 %v1567, %v1631
  %v1633 = vpop.f32.mrb[0].mxu0
  %v1634 = vpop.f32.mrb[0].mxu0
  %v1635 = vadd.f32 %v1570, %v1634
  %v1636 = vpop.f32.mrb[0].mxu0
  %1637 = vmatprep.mubr.bf16.mxu0 %v528
  %1638 = vmatmul.mubr.bf16.gmra.mrb[0].mxu0 %v527
  %v1639 = vpop.f32.mrb[0].mxu0
  %v1640 = vadd.f32 %v1575, %v1639
  %v1641 = vpop.f32.mrb[0].mxu0
  %v1642 = vpop.f32.mrb[0].mxu0
  %v1643 = vadd.f32 %v1578, %v1642
  %v1644 = vpop.f32.mrb[0].mxu0
  %1645 = vmatprep.mubr.bf16.mxu0 %v542
  %1646 = vmatmul.mubr.bf16.gmra.mrb[0].mxu0 %v541
  %v1647 = vpop.f32.mrb[0].mxu0
  %v1648 = vadd.f32 %v1583, %v1647
  %v1649 = vpop.f32.mrb[0].mxu0
  %v1650 = vpop.f32.mrb[0].mxu0
  %v1651 = vadd.f32 %v1586, %v1650
  %v1652 = vpop.f32.mrb[0].mxu0
  %1653 = vmatprep.mubr.bf16.mxu0 %v556
  %1654 = vmatmul.mubr.bf16.gmra.mrb[0].mxu0 %v555
  %v1655 = vpop.f32.mrb[0].mxu0
  %v1656 = vadd.f32 %v1591, %v1655
  %v1657 = vpop.f32.mrb[0].mxu0
  %v1658 = vpop.f32.mrb[0].mxu0
  %v1659 = vadd.f32 %v1594, %v1658
  %v1660 = vpop.f32.mrb[0].mxu0
  %1661 = vdwg.mxu0
  %1662 = vmatprep.subr.bf16.mxu0 0
  %1663 = vmatpush1.bf16.msra.mxu0 %v1139
  %1664 = vmatprep.subr.bf16.mxu0 0
  %1665 = vmatpush1.bf16.msra.mxu0 %v1140
  %1666 = vmatprep.subr.bf16.mxu0 0
  %1667 = vmatpush1.bf16.msra.mxu0 %v1141
  %1668 = vmatprep.subr.bf16.mxu0 0
  %1669 = vmatpush1.bf16.msra.mxu0 %v1142
  %1670 = vmatprep.subr.bf16.mxu0 0
  %1671 = vmatpush1.bf16.msra.mxu0 %v1143
  %1672 = vmatprep.subr.bf16.mxu0 0
  %1673 = vmatpush1.bf16.msra.mxu0 %v1144
  %1674 = vmatprep.subr.bf16.mxu0 0
  %1675 = vmatpush1.bf16.msra.mxu0 %v1145
  %1676 = vmatprep.subr.bf16.mxu0 0
  %1677 = vmatpush1.bf16.msra.mxu0 %v1146
  %1678 = vmatprep.subr.bf16.mxu0 0
  %1679 = vmatpush1.bf16.msra.mxu0 %v1147
  %1680 = vmatprep.subr.bf16.mxu0 0
  %1681 = vmatpush1.bf16.msra.mxu0 %v1148
  %1682 = vmatprep.subr.bf16.mxu0 0
  %1683 = vmatpush1.bf16.msra.mxu0 %v1149
  %1684 = vmatprep.subr.bf16.mxu0 0
  %1685 = vmatpush1.bf16.msra.mxu0 %v1150
  %1686 = vmatprep.subr.bf16.mxu0 0
  %1687 = vmatpush1.bf16.msra.mxu0 0
  %1688 = vmatprep.subr.bf16.mxu0 0
  %1689 = vmatpush1.bf16.msra.mxu0 0
  %1690 = vmatprep.subr.bf16.mxu0 0
  %1691 = vmatpush1.bf16.msra.mxu0 0
  %1692 = vmatprep.subr.bf16.mxu0 0
  %1693 = vmatpush1.bf16.msra.mxu0 0
  %1694 = vmatprep.mubr.bf16.mxu0 %v1261
  %1695 = vmatmul.mubr.bf16.gmra.mrb[0].mxu0 %v515
  %v1696 = vpop.f32.mrb[0].mxu0
  %v1697 = vadd.f32 %v1632, %v1696
  %v1698 = vpop.f32.mrb[0].mxu0
  %v1699 = vpop.f32.mrb[0].mxu0
  %v1700 = vadd.f32 %v1635, %v1699
  %v1701 = vpop.f32.mrb[0].mxu0
  %1702 = vmatprep.mubr.bf16.mxu0 %v1264
  %1703 = vmatmul.mubr.bf16.gmra.mrb[0].mxu0 %v529
  %v1704 = vpop.f32.mrb[0].mxu0
  %v1705 = vadd.f32 %v1640, %v1704
  %v1706 = vpop.f32.mrb[0].mxu0
  %v1707 = vpop.f32.mrb[0].mxu0
  %v1708 = vadd.f32 %v1643, %v1707
  %v1709 = vpop.f32.mrb[0].mxu0
  %1710 = vmatprep.mubr.bf16.mxu0 %v1267
  %1711 = vmatmul.mubr.bf16.gmra.mrb[0].mxu0 %v543
  %v1712 = vpop.f32.mrb[0].mxu0
  %v1713 = vadd.f32 %v1648, %v1712
  %v1714 = vpop.f32.mrb[0].mxu0
  %v1715 = vpop.f32.mrb[0].mxu0
  %v1716 = vadd.f32 %v1651, %v1715
  %v1717 = vpop.f32.mrb[0].mxu0
  %1718 = vmatprep.mubr.bf16.mxu0 %v1270
  %1719 = vmatmul.mubr.bf16.gmra.mrb[0].mxu0 %v557
  %v1720 = vpop.f32.mrb[0].mxu0
  %v1721 = vadd.f32 %v1656, %v1720
  %v1722 = vpop.f32.mrb[0].mxu0
  %v1723 = vpop.f32.mrb[0].mxu0
  %v1724 = vadd.f32 %v1659, %v1723
  %v1725 = vpop.f32.mrb[0].mxu0
  %1726 = vdwg.mxu0
  %v1727 = vmax.f32 %v1697, 0.0
  %v1728 = vmax.f32 %v1700, 0.0
  %v1729 = vmax.f32 %v1705, 0.0
  %v1730 = vmax.f32 %v1708, 0.0
  %v1731 = vmax.f32 %v1713, 0.0
  %v1732 = vmax.f32 %v1716, 0.0
  %v1733 = vmax.f32 %v1721, 0.0
  %v1734 = vmax.f32 %v1724, 0.0
  %v1735 = vpack.c.bf16 %v1728, %v1727
  %v1736 = vpack.c.bf16 %v1730, %v1729
  %v1737 = vpack.c.bf16 %v1732, %v1731
  %v1738 = vpack.c.bf16 %v1734, %v1733
  %v1743 = vunpack.c.l.b16 %v1735
  %v1744 = vunpack.c.h.b16 %v1735
  %v1745 = vunpack.c.l.b16 %v1736
  %v1746 = vunpack.c.h.b16 %v1736
  %v1747 = vunpack.c.l.b16 %v1737
  %v1748 = vunpack.c.h.b16 %v1737
  %v1749 = vunpack.c.l.b16 %v1738
  %v1750 = vunpack.c.h.b16 %v1738
  %v1751 = vpack.c.b16 %v1743, %v1743
  %v1752 = vpack.c.b16 %v1744, %v1744
  %v1753 = vpack.c.b16 %v1745, %v1745
  %v1754 = vpack.c.b16 %v1746, %v1746
  %v1755 = vpack.c.b16 %v1747, %v1747
  %v1756 = vpack.c.b16 %v1748, %v1748
  %v1757 = vpack.c.b16 %v1749, %v1749
  %v1758 = vpack.c.b16 %v1750, %v1750
  %vm1767 = vcmask 125952
  %1768 = vst.msk [vmem:[%s3] sm:$0xf] %vm1767, %v1751
  %1769 = vst.msk [vmem:[%s3 + $0x4] sm:$0xf] %vm1767, %v1752
  %1770 = vst.msk [vmem:[%s3 + $0x8] sm:$0xf] %vm1767, %v1753
  %1771 = vst.msk [vmem:[%s3 + $0xc] sm:$0xf] %vm1767, %v1754
  %1772 = vst.msk [vmem:[%s3 + $0x10] sm:$0xf] %vm1767, %v1755
  %1773 = vst.msk [vmem:[%s3 + $0x14] sm:$0xf] %vm1767, %v1756
  %1774 = vst.msk [vmem:[%s3 + $0x18] sm:$0xf] %vm1767, %v1757
  %1775 = vst.msk [vmem:[%s3 + $0x1c] sm:$0xf] %vm1767, %v1758
  // Predicated region
  $region14: #{unet_sim3d_srd2.13} parent=0 // pred_check
    _
  $region15: #{unet_sim3d_srd2.13} parent=0 // pred_check_branch
    %1777 = sbr.rel (0) target = $region17
  $region16: #{unet_sim3d_srd2.13} parent=0 // pred_region
    _
  $region17: #{unet_sim3d_srd2.13} parent=0 // pred_fallthru
    _
  // Predicated region
  $region18: #{unet_sim3d_srd2.13} parent=0 // pred_check
    _
  $region19: #{unet_sim3d_srd2.13} parent=0 // pred_check_branch
    %1779 = sbr.rel (0) target = $region21
  $region20: #{unet_sim3d_srd2.13} parent=0 // pred_region
    _
  $region21: #{unet_sim3d_srd2.13} parent=0 // pred_fallthru
    _

// kernel: unet_sim3d_srd2.17
$region0: #{unet_sim3d_srd2.17}
  #allocation0 [shape = 'u32[]', space=smem, size = 0x4, offset = 0x4, fixed_abs, tag = 'smem constant byte address 0x4 - core index']
  #allocation1 [shape = 'u32[144,128]{1,0:T(1,128)}', space=vmem, size = 0x12000, scoped, tag = 'internal scratch']
  %s0 = inlined_call_operand.vmem [shape: bf16[64,64], index: 0, kind: input, shape index: {}]
  %s1 = inlined_call_operand.vmem [shape: bf16[64,16], index: 1, kind: input, shape index: {}]
  %s2 = inlined_call_operand.vmem [shape: f32[64,1], index: 2, kind: input, shape index: {}]
  %s3 = inlined_call_operand.vmem [shape: bf16[64,16], index: 3, kind: output, shape index: {}]
  %s4 = sld [smem:[#allocation0]]
  $region22: #{unet_sim3d_srd2.17} parent=0
    _
  %s6 = ssub.s32 1, %s4
  %s7 = scalar_select 0, %s6, %s4
  // Predicated region
  $region2: #{unet_sim3d_srd2.17} parent=0 // pred_check
    _
  $region3: #{unet_sim3d_srd2.17} parent=0 // pred_check_branch
    %9 = sbr.rel (0) target = $region5
  $region4: #{unet_sim3d_srd2.17} parent=0 // pred_region
    _
  $region5: #{unet_sim3d_srd2.17} parent=0 // pred_fallthru
    _
  // Predicated region
  $region6: #{unet_sim3d_srd2.17} parent=0 // pred_check
    _
  $region7: #{unet_sim3d_srd2.17} parent=0 // pred_check_branch
    %11 = sbr.rel (0) target = $region9
  $region8: #{unet_sim3d_srd2.17} parent=0 // pred_region
    _
  $region9: #{unet_sim3d_srd2.17} parent=0 // pred_fallthru
    _
  // Predicated region
  $region10: #{unet_sim3d_srd2.17} parent=0 // pred_check
    _
  $region11: #{unet_sim3d_srd2.17} parent=0 // pred_check_branch
    %13 = sbr.rel (0) target = $region13
  $region12: #{unet_sim3d_srd2.17} parent=0 // pred_region
    _
  $region13: #{unet_sim3d_srd2.17} parent=0 // pred_fallthru
    _
  %v15 = vld [vmem:[%s0] sm:$0xf]
  %v16 = vld [vmem:[%s0 + $0x4] sm:$0xf]
  %v17 = vld [vmem:[%s0 + $0x8] sm:$0xf]
  %v18 = vld [vmem:[%s0 + $0xc] sm:$0xf]
  %v19 = vld [vmem:[%s0 + $0x10] sm:$0xf]
  %v20 = vld [vmem:[%s0 + $0x14] sm:$0xf]
  %v21 = vld [vmem:[%s0 + $0x18] sm:$0xf]
  %v22 = vld [vmem:[%s0 + $0x1c] sm:$0xf]
  %v23 = vld [vmem:[%s1] sm:$0xf]
  %v24 = vld [vmem:[%s1 + $0x4] sm:$0xf]
  %v25 = vld [vmem:[%s1 + $0x8] sm:$0xf]
  %v26 = vld [vmem:[%s1 + $0xc] sm:$0xf]
  %v27 = vld [vmem:[%s1 + $0x10] sm:$0xf]
  %v28 = vld [vmem:[%s1 + $0x14] sm:$0xf]
  %v29 = vld [vmem:[%s1 + $0x18] sm:$0xf]
  %v30 = vld [vmem:[%s1 + $0x1c] sm:$0xf]
  %v31 = vld [vmem:[%s2] sm:$0xff]
  %v32 = vld [vmem:[%s2 + $0x8] sm:$0xff]
  %v33 = vld [vmem:[%s2 + $0x10] sm:$0xff]
  %v34 = vld [vmem:[%s2 + $0x18] sm:$0xff]
  %v35 = vld [vmem:[%s2 + $0x20] sm:$0xff]
  %v36 = vld [vmem:[%s2 + $0x28] sm:$0xff]
  %v37 = vld [vmem:[%s2 + $0x30] sm:$0xff]
  %v38 = vld [vmem:[%s2 + $0x38] sm:$0xff]
  %40 = vset.pattern.permute.xlu0 0
  %41 = vperm.xlu0 %40, %v31
  %v42 = vpop.permute.xlu0 %41
  %45 = vset.pattern.permute.xlu0 0
  %46 = vperm.xlu0 %45, %v32
  %v47 = vpop.permute.xlu0 %46
  %50 = vset.pattern.permute.xlu0 0
  %51 = vperm.xlu0 %50, %v33
  %v52 = vpop.permute.xlu0 %51
  %55 = vset.pattern.permute.xlu0 0
  %56 = vperm.xlu0 %55, %v34
  %v57 = vpop.permute.xlu0 %56
  %60 = vset.pattern.permute.xlu0 0
  %61 = vperm.xlu0 %60, %v35
  %v62 = vpop.permute.xlu0 %61
  %65 = vset.pattern.permute.xlu0 0
  %66 = vperm.xlu0 %65, %v36
  %v67 = vpop.permute.xlu0 %66
  %70 = vset.pattern.permute.xlu0 0
  %71 = vperm.xlu0 %70, %v37
  %v72 = vpop.permute.xlu0 %71
  %75 = vset.pattern.permute.xlu0 0
  %76 = vperm.xlu0 %75, %v38
  %v77 = vpop.permute.xlu0 %76
  %v87 = vunpack.c.l.b16 %v15
  %v88 = vunpack.c.l.b16 %v16
  %v89 = vunpack.c.l.b16 %v17
  %v90 = vunpack.c.l.b16 %v18
  %v91 = vunpack.c.l.b16 %v19
  %v92 = vunpack.c.l.b16 %v20
  %v93 = vunpack.c.l.b16 %v21
  %v94 = vunpack.c.l.b16 %v22
  %v95 = vpack.c.b16 %v88, %v87
  %v96 = vpack.c.b16 %v90, %v89
  %v97 = vpack.c.b16 %v92, %v91
  %v98 = vpack.c.b16 %v94, %v93
  %v107 = vunpack.c.l.b16 %v23
  %v108 = vunpack.c.l.b16 %v24
  %v109 = vunpack.c.l.b16 %v25
  %v110 = vunpack.c.l.b16 %v26
  %v111 = vunpack.c.l.b16 %v27
  %v112 = vunpack.c.l.b16 %v28
  %v113 = vunpack.c.l.b16 %v29
  %v114 = vunpack.c.l.b16 %v30
  %v115 = vpack.c.b16 %v108, %v107
  %v116 = vpack.c.b16 %v110, %v109
  %v117 = vpack.c.b16 %v112, %v111
  %v118 = vpack.c.b16 %v114, %v113
  %vm123 = vcmask 523264
  %v125 = vsel %vm123, %v95, 0
  %v128 = vsel %vm123, %v96, 0
  %v131 = vsel %vm123, %v97, 0
  %v134 = vsel %vm123, %v98, 0
  %136 = vmatprep.subr.bf16.mxu0 0
  %137 = vmatpush1.bf16.msra.mxu0 %v115
  %138 = vmatprep.subr.bf16.mxu0 0
  %139 = vmatpush1.bf16.msra.mxu0 %v116
  %140 = vmatprep.subr.bf16.mxu0 0
  %141 = vmatpush1.bf16.msra.mxu0 %v117
  %142 = vmatprep.subr.bf16.mxu0 0
  %143 = vmatpush1.bf16.msra.mxu0 %v118
  %144 = vmatprep.subr.bf16.mxu0 0
  %145 = vmatpush1.bf16.msra.mxu0 0
  %146 = vmatprep.subr.bf16.mxu0 0
  %147 = vmatpush1.bf16.msra.mxu0 0
  %148 = vmatprep.subr.bf16.mxu0 0
  %149 = vmatpush1.bf16.msra.mxu0 0
  %150 = vmatprep.subr.bf16.mxu0 0
  %151 = vmatpush1.bf16.msra.mxu0 0
  %152 = vmatprep.subr.bf16.mxu0 0
  %153 = vmatpush1.bf16.msra.mxu0 0
  %154 = vmatprep.subr.bf16.mxu0 0
  %155 = vmatpush1.bf16.msra.mxu0 0
  %156 = vmatprep.subr.bf16.mxu0 0
  %157 = vmatpush1.bf16.msra.mxu0 0
  %158 = vmatprep.subr.bf16.mxu0 0
  %159 = vmatpush1.bf16.msra.mxu0 0
  %160 = vmatprep.subr.bf16.mxu0 0
  %161 = vmatpush1.bf16.msra.mxu0 0
  %162 = vmatprep.subr.bf16.mxu0 0
  %163 = vmatpush1.bf16.msra.mxu0 0
  %164 = vmatprep.subr.bf16.mxu0 0
  %165 = vmatpush1.bf16.msra.mxu0 0
  %166 = vmatprep.subr.bf16.mxu0 0
  %167 = vmatpush1.bf16.msra.mxu0 0
  %168 = vmatprep.mubr.bf16.mxu0 0
  %169 = vmatmul.mubr.bf16.gmra.mrb[0].mxu0 %v125
  %v170 = vpop.f32.mrb[0].mxu0
  %v171 = vadd.f32 %v42, %v170
  %v172 = vpop.f32.mrb[0].mxu0
  %v173 = vpop.f32.mrb[0].mxu0
  %v174 = vadd.f32 %v47, %v173
  %v175 = vpop.f32.mrb[0].mxu0
  %176 = vmatprep.mubr.bf16.mxu0 0
  %177 = vmatmul.mubr.bf16.gmra.mrb[0].mxu0 %v128
  %v178 = vpop.f32.mrb[0].mxu0
  %v179 = vadd.f32 %v52, %v178
  %v180 = vpop.f32.mrb[0].mxu0
  %v181 = vpop.f32.mrb[0].mxu0
  %v182 = vadd.f32 %v57, %v181
  %v183 = vpop.f32.mrb[0].mxu0
  %184 = vmatprep.mubr.bf16.mxu0 0
  %185 = vmatmul.mubr.bf16.gmra.mrb[0].mxu0 %v131
  %v186 = vpop.f32.mrb[0].mxu0
  %v187 = vadd.f32 %v62, %v186
  %v188 = vpop.f32.mrb[0].mxu0
  %v189 = vpop.f32.mrb[0].mxu0
  %v190 = vadd.f32 %v67, %v189
  %v191 = vpop.f32.mrb[0].mxu0
  %192 = vmatprep.mubr.bf16.mxu0 0
  %193 = vmatmul.mubr.bf16.gmra.mrb[0].mxu0 %v134
  %v194 = vpop.f32.mrb[0].mxu0
  %v195 = vadd.f32 %v72, %v194
  %v196 = vpop.f32.mrb[0].mxu0
  %v197 = vpop.f32.mrb[0].mxu0
  %v198 = vadd.f32 %v77, %v197
  %v199 = vpop.f32.mrb[0].mxu0
  %200 = vdwg.mxu0
  %v201 = vmax.f32 %v171, 0.0
  %v202 = vmax.f32 %v174, 0.0
  %v203 = vmax.f32 %v179, 0.0
  %v204 = vmax.f32 %v182, 0.0
  %v205 = vmax.f32 %v187, 0.0
  %v206 = vmax.f32 %v190, 0.0
  %v207 = vmax.f32 %v195, 0.0
  %v208 = vmax.f32 %v198, 0.0
  %v209 = vpack.c.bf16 %v202, %v201
  %v210 = vpack.c.bf16 %v204, %v203
  %v211 = vpack.c.bf16 %v206, %v205
  %v212 = vpack.c.bf16 %v208, %v207
  %v217 = vunpack.c.l.b16 %v209
  %v218 = vunpack.c.h.b16 %v209
  %v219 = vunpack.c.l.b16 %v210
  %v220 = vunpack.c.h.b16 %v210
  %v221 = vunpack.c.l.b16 %v211
  %v222 = vunpack.c.h.b16 %v211
  %v223 = vunpack.c.l.b16 %v212
  %v224 = vunpack.c.h.b16 %v212
  %v225 = vpack.c.b16 %v217, %v217
  %v226 = vpack.c.b16 %v218, %v218
  %v227 = vpack.c.b16 %v219, %v219
  %v228 = vpack.c.b16 %v220, %v220
  %v229 = vpack.c.b16 %v221, %v221
  %v230 = vpack.c.b16 %v222, %v222
  %v231 = vpack.c.b16 %v223, %v223
  %v232 = vpack.c.b16 %v224, %v224
  %vm241 = vcmask 125952
  %242 = vst.msk [vmem:[%s3] sm:$0xf] %vm241, %v225
  %243 = vst.msk [vmem:[%s3 + $0x4] sm:$0xf] %vm241, %v226
  %244 = vst.msk [vmem:[%s3 + $0x8] sm:$0xf] %vm241, %v227
  %245 = vst.msk [vmem:[%s3 + $0xc] sm:$0xf] %vm241, %v228
  %246 = vst.msk [vmem:[%s3 + $0x10] sm:$0xf] %vm241, %v229
  %247 = vst.msk [vmem:[%s3 + $0x14] sm:$0xf] %vm241, %v230
  %248 = vst.msk [vmem:[%s3 + $0x18] sm:$0xf] %vm241, %v231
  %249 = vst.msk [vmem:[%s3 + $0x1c] sm:$0xf] %vm241, %v232
  // Predicated region
  $region14: #{unet_sim3d_srd2.17} parent=0 // pred_check
    _
  $region15: #{unet_sim3d_srd2.17} parent=0 // pred_check_branch
    %251 = sbr.rel (0) target = $region17
  $region16: #{unet_sim3d_srd2.17} parent=0 // pred_region
    _
  $region17: #{unet_sim3d_srd2.17} parent=0 // pred_fallthru
    _
  // Predicated region
  $region18: #{unet_sim3d_srd2.17} parent=0 // pred_check
    _
  $region19: #{unet_sim3d_srd2.17} parent=0 // pred_check_branch
    %253 = sbr.rel (0) target = $region21
  $region20: #{unet_sim3d_srd2.17} parent=0 // pred_region
    _
  $region21: #{unet_sim3d_srd2.17} parent=0 // pred_fallthru
    _

// kernel: unet_sim3d_srd2.16
$region0: #{unet_sim3d_srd2.16}
  #allocation0 [shape = 'u32[]', space=smem, size = 0x4, offset = 0x4, fixed_abs, tag = 'smem constant byte address 0x4 - core index']
  #allocation1 [shape = 'u32[144,128]{1,0:T(1,128)}', space=vmem, size = 0x12000, scoped, tag = 'internal scratch']
  %s0 = inlined_call_operand.vmem [shape: bf16[8,1944], index: 0, kind: input, shape index: {}]
  %s1 = inlined_call_operand.vmem [shape: bf16[1944,16], index: 1, kind: input, shape index: {}]
  %s2 = inlined_call_operand.vmem [shape: f32[8,1], index: 2, kind: input, shape index: {}]
  %s3 = inlined_call_operand.vmem [shape: bf16[8,16], index: 3, kind: output, shape index: {}]
  %s4 = sld [smem:[#allocation0]]
  $region22: #{unet_sim3d_srd2.16} parent=0
    _
  %s6 = ssub.s32 1, %s4
  %s7 = scalar_select 0, %s6, %s4
  // Predicated region
  $region2: #{unet_sim3d_srd2.16} parent=0 // pred_check
    _
  $region3: #{unet_sim3d_srd2.16} parent=0 // pred_check_branch
    %9 = sbr.rel (0) target = $region5
  $region4: #{unet_sim3d_srd2.16} parent=0 // pred_region
    _
  $region5: #{unet_sim3d_srd2.16} parent=0 // pred_fallthru
    _
  // Predicated region
  $region6: #{unet_sim3d_srd2.16} parent=0 // pred_check
    _
  $region7: #{unet_sim3d_srd2.16} parent=0 // pred_check_branch
    %11 = sbr.rel (0) target = $region9
  $region8: #{unet_sim3d_srd2.16} parent=0 // pred_region
    _
  $region9: #{unet_sim3d_srd2.16} parent=0 // pred_fallthru
    _
  // Predicated region
  $region10: #{unet_sim3d_srd2.16} parent=0 // pred_check
    _
  $region11: #{unet_sim3d_srd2.16} parent=0 // pred_check_branch
    %13 = sbr.rel (0) target = $region13
  $region12: #{unet_sim3d_srd2.16} parent=0 // pred_region
    _
  $region13: #{unet_sim3d_srd2.16} parent=0 // pred_fallthru
    _
  %v15 = vld [vmem:[%s0] sm:$0xff]
  %v16 = vld [vmem:[%s0 + $0x8] sm:$0xff]
  %v17 = vld [vmem:[%s0 + $0x10] sm:$0xff]
  %v18 = vld [vmem:[%s0 + $0x18] sm:$0xff]
  %v19 = vld [vmem:[%s0 + $0x20] sm:$0xff]
  %v20 = vld [vmem:[%s0 + $0x28] sm:$0xff]
  %v21 = vld [vmem:[%s0 + $0x30] sm:$0xff]
  %v22 = vld [vmem:[%s0 + $0x38] sm:$0xff]
  %v23 = vld [vmem:[%s1] sm:$0xf]
  %v24 = vld [vmem:[%s1 + $0x4] sm:$0xf]
  %v25 = vld [vmem:[%s1 + $0x8] sm:$0xf]
  %v26 = vld [vmem:[%s1 + $0xc] sm:$0xf]
  %v27 = vld [vmem:[%s1 + $0x10] sm:$0xf]
  %v28 = vld [vmem:[%s1 + $0x14] sm:$0xf]
  %v29 = vld [vmem:[%s1 + $0x18] sm:$0xf]
  %v30 = vld [vmem:[%s1 + $0x1c] sm:$0xf]
  %v31 = vld [vmem:[%s1 + $0x20] sm:$0xf]
  %v32 = vld [vmem:[%s1 + $0x24] sm:$0xf]
  %v33 = vld [vmem:[%s1 + $0x28] sm:$0xf]
  %v34 = vld [vmem:[%s1 + $0x2c] sm:$0xf]
  %v35 = vld [vmem:[%s1 + $0x30] sm:$0xf]
  %v36 = vld [vmem:[%s1 + $0x34] sm:$0xf]
  %v37 = vld [vmem:[%s1 + $0x38] sm:$0xf]
  %v38 = vld [vmem:[%s1 + $0x3c] sm:$0xf]
  %v39 = vld [vmem:[%s1 + $0x40] sm:$0xf]
  %v40 = vld [vmem:[%s1 + $0x44] sm:$0xf]
  %v41 = vld [vmem:[%s1 + $0x48] sm:$0xf]
  %v42 = vld [vmem:[%s1 + $0x4c] sm:$0xf]
  %v43 = vld [vmem:[%s1 + $0x50] sm:$0xf]
  %v44 = vld [vmem:[%s1 + $0x54] sm:$0xf]
  %v45 = vld [vmem:[%s1 + $0x58] sm:$0xf]
  %v46 = vld [vmem:[%s1 + $0x5c] sm:$0xf]
  %v47 = vld [vmem:[%s1 + $0x60] sm:$0xf]
  %v48 = vld [vmem:[%s1 + $0x64] sm:$0xf]
  %v49 = vld [vmem:[%s1 + $0x68] sm:$0xf]
  %v50 = vld [vmem:[%s1 + $0x6c] sm:$0xf]
  %v51 = vld [vmem:[%s1 + $0x70] sm:$0xf]
  %v52 = vld [vmem:[%s1 + $0x74] sm:$0xf]
  %v53 = vld [vmem:[%s1 + $0x78] sm:$0xf]
  %v54 = vld [vmem:[%s1 + $0x7c] sm:$0xf]
  %v55 = vld [vmem:[%s1 + $0x80] sm:$0xf]
  %v56 = vld [vmem:[%s1 + $0x84] sm:$0xf]
  %v57 = vld [vmem:[%s1 + $0x88] sm:$0xf]
  %v58 = vld [vmem:[%s1 + $0x8c] sm:$0xf]
  %v59 = vld [vmem:[%s1 + $0x90] sm:$0xf]
  %v60 = vld [vmem:[%s1 + $0x94] sm:$0xf]
  %v61 = vld [vmem:[%s1 + $0x98] sm:$0xf]
  %v62 = vld [vmem:[%s1 + $0x9c] sm:$0xf]
  %v63 = vld [vmem:[%s1 + $0xa0] sm:$0xf]
  %v64 = vld [vmem:[%s1 + $0xa4] sm:$0xf]
  %v65 = vld [vmem:[%s1 + $0xa8] sm:$0xf]
  %v66 = vld [vmem:[%s1 + $0xac] sm:$0xf]
  %v67 = vld [vmem:[%s1 + $0xb0] sm:$0xf]
  %v68 = vld [vmem:[%s1 + $0xb4] sm:$0xf]
  %v69 = vld [vmem:[%s1 + $0xb8] sm:$0xf]
  %v70 = vld [vmem:[%s1 + $0xbc] sm:$0xf]
  %v71 = vld [vmem:[%s1 + $0xc0] sm:$0xf]
  %v72 = vld [vmem:[%s1 + $0xc4] sm:$0xf]
  %v73 = vld [vmem:[%s1 + $0xc8] sm:$0xf]
  %v74 = vld [vmem:[%s1 + $0xcc] sm:$0xf]
  %v75 = vld [vmem:[%s1 + $0xd0] sm:$0xf]
  %v76 = vld [vmem:[%s1 + $0xd4] sm:$0xf]
  %v77 = vld [vmem:[%s1 + $0xd8] sm:$0xf]
  %v78 = vld [vmem:[%s1 + $0xdc] sm:$0xf]
  %v79 = vld [vmem:[%s1 + $0xe0] sm:$0xf]
  %v80 = vld [vmem:[%s1 + $0xe4] sm:$0xf]
  %v81 = vld [vmem:[%s1 + $0xe8] sm:$0xf]
  %v82 = vld [vmem:[%s1 + $0xec] sm:$0xf]
  %v83 = vld [vmem:[%s1 + $0xf0] sm:$0xf]
  %v84 = vld [vmem:[%s1 + $0xf4] sm:$0xf]
  %v85 = vld [vmem:[%s1 + $0xf8] sm:$0xf]
  %v86 = vld [vmem:[%s1 + $0xfc] sm:$0xf]
  %v87 = vld [vmem:[%s1 + $0x100] sm:$0xf]
  %v88 = vld [vmem:[%s1 + $0x104] sm:$0xf]
  %v89 = vld [vmem:[%s1 + $0x108] sm:$0xf]
  %v90 = vld [vmem:[%s1 + $0x10c] sm:$0xf]
  %v91 = vld [vmem:[%s1 + $0x110] sm:$0xf]
  %v92 = vld [vmem:[%s1 + $0x114] sm:$0xf]
  %v93 = vld [vmem:[%s1 + $0x118] sm:$0xf]
  %v94 = vld [vmem:[%s1 + $0x11c] sm:$0xf]
  %v95 = vld [vmem:[%s1 + $0x120] sm:$0xf]
  %v96 = vld [vmem:[%s1 + $0x124] sm:$0xf]
  %v97 = vld [vmem:[%s1 + $0x128] sm:$0xf]
  %v98 = vld [vmem:[%s1 + $0x12c] sm:$0xf]
  %v99 = vld [vmem:[%s1 + $0x130] sm:$0xf]
  %v100 = vld [vmem:[%s1 + $0x134] sm:$0xf]
  %v101 = vld [vmem:[%s1 + $0x138] sm:$0xf]
  %v102 = vld [vmem:[%s1 + $0x13c] sm:$0xf]
  %v103 = vld [vmem:[%s1 + $0x140] sm:$0xf]
  %v104 = vld [vmem:[%s1 + $0x144] sm:$0xf]
  %v105 = vld [vmem:[%s1 + $0x148] sm:$0xf]
  %v106 = vld [vmem:[%s1 + $0x14c] sm:$0xf]
  %v107 = vld [vmem:[%s1 + $0x150] sm:$0xf]
  %v108 = vld [vmem:[%s1 + $0x154] sm:$0xf]
  %v109 = vld [vmem:[%s1 + $0x158] sm:$0xf]
  %v110 = vld [vmem:[%s1 + $0x15c] sm:$0xf]
  %v111 = vld [vmem:[%s1 + $0x160] sm:$0xf]
  %v112 = vld [vmem:[%s1 + $0x164] sm:$0xf]
  %v113 = vld [vmem:[%s1 + $0x168] sm:$0xf]
  %v114 = vld [vmem:[%s1 + $0x16c] sm:$0xf]
  %v115 = vld [vmem:[%s1 + $0x170] sm:$0xf]
  %v116 = vld [vmem:[%s1 + $0x174] sm:$0xf]
  %v117 = vld [vmem:[%s1 + $0x178] sm:$0xf]
  %v118 = vld [vmem:[%s1 + $0x17c] sm:$0xf]
  %v119 = vld [vmem:[%s1 + $0x180] sm:$0xf]
  %v120 = vld [vmem:[%s1 + $0x184] sm:$0xf]
  %v121 = vld [vmem:[%s1 + $0x188] sm:$0xf]
  %v122 = vld [vmem:[%s1 + $0x18c] sm:$0xf]
  %v123 = vld [vmem:[%s1 + $0x190] sm:$0xf]
  %v124 = vld [vmem:[%s1 + $0x194] sm:$0xf]
  %v125 = vld [vmem:[%s1 + $0x198] sm:$0xf]
  %v126 = vld [vmem:[%s1 + $0x19c] sm:$0xf]
  %v127 = vld [vmem:[%s1 + $0x1a0] sm:$0xf]
  %v128 = vld [vmem:[%s1 + $0x1a4] sm:$0xf]
  %v129 = vld [vmem:[%s1 + $0x1a8] sm:$0xf]
  %v130 = vld [vmem:[%s1 + $0x1ac] sm:$0xf]
  %v131 = vld [vmem:[%s1 + $0x1b0] sm:$0xf]
  %v132 = vld [vmem:[%s1 + $0x1b4] sm:$0xf]
  %v133 = vld [vmem:[%s1 + $0x1b8] sm:$0xf]
  %v134 = vld [vmem:[%s1 + $0x1bc] sm:$0xf]
  %v135 = vld [vmem:[%s1 + $0x1c0] sm:$0xf]
  %v136 = vld [vmem:[%s1 + $0x1c4] sm:$0xf]
  %v137 = vld [vmem:[%s1 + $0x1c8] sm:$0xf]
  %v138 = vld [vmem:[%s1 + $0x1cc] sm:$0xf]
  %v139 = vld [vmem:[%s1 + $0x1d0] sm:$0xf]
  %v140 = vld [vmem:[%s1 + $0x1d4] sm:$0xf]
  %v141 = vld [vmem:[%s1 + $0x1d8] sm:$0xf]
  %v142 = vld [vmem:[%s1 + $0x1dc] sm:$0xf]
  %v143 = vld [vmem:[%s1 + $0x1e0] sm:$0xf]
  %v144 = vld [vmem:[%s1 + $0x1e4] sm:$0xf]
  %v145 = vld [vmem:[%s1 + $0x1e8] sm:$0xf]
  %v146 = vld [vmem:[%s1 + $0x1ec] sm:$0xf]
  %v147 = vld [vmem:[%s1 + $0x1f0] sm:$0xf]
  %v148 = vld [vmem:[%s1 + $0x1f4] sm:$0xf]
  %v149 = vld [vmem:[%s1 + $0x1f8] sm:$0xf]
  %v150 = vld [vmem:[%s1 + $0x1fc] sm:$0xf]
  %v151 = vld [vmem:[%s1 + $0x200] sm:$0xf]
  %v152 = vld [vmem:[%s1 + $0x204] sm:$0xf]
  %v153 = vld [vmem:[%s1 + $0x208] sm:$0xf]
  %v154 = vld [vmem:[%s1 + $0x20c] sm:$0xf]
  %v155 = vld [vmem:[%s1 + $0x210] sm:$0xf]
  %v156 = vld [vmem:[%s1 + $0x214] sm:$0xf]
  %v157 = vld [vmem:[%s1 + $0x218] sm:$0xf]
  %v158 = vld [vmem:[%s1 + $0x21c] sm:$0xf]
  %v159 = vld [vmem:[%s1 + $0x220] sm:$0xf]
  %v160 = vld [vmem:[%s1 + $0x224] sm:$0xf]
  %v161 = vld [vmem:[%s1 + $0x228] sm:$0xf]
  %v162 = vld [vmem:[%s1 + $0x22c] sm:$0xf]
  %v163 = vld [vmem:[%s1 + $0x230] sm:$0xf]
  %v164 = vld [vmem:[%s1 + $0x234] sm:$0xf]
  %v165 = vld [vmem:[%s1 + $0x238] sm:$0xf]
  %v166 = vld [vmem:[%s1 + $0x23c] sm:$0xf]
  %v167 = vld [vmem:[%s1 + $0x240] sm:$0xf]
  %v168 = vld [vmem:[%s1 + $0x244] sm:$0xf]
  %v169 = vld [vmem:[%s1 + $0x248] sm:$0xf]
  %v170 = vld [vmem:[%s1 + $0x24c] sm:$0xf]
  %v171 = vld [vmem:[%s1 + $0x250] sm:$0xf]
  %v172 = vld [vmem:[%s1 + $0x254] sm:$0xf]
  %v173 = vld [vmem:[%s1 + $0x258] sm:$0xf]
  %v174 = vld [vmem:[%s1 + $0x25c] sm:$0xf]
  %v175 = vld [vmem:[%s1 + $0x260] sm:$0xf]
  %v176 = vld [vmem:[%s1 + $0x264] sm:$0xf]
  %v177 = vld [vmem:[%s1 + $0x268] sm:$0xf]
  %v178 = vld [vmem:[%s1 + $0x26c] sm:$0xf]
  %v179 = vld [vmem:[%s1 + $0x270] sm:$0xf]
  %v180 = vld [vmem:[%s1 + $0x274] sm:$0xf]
  %v181 = vld [vmem:[%s1 + $0x278] sm:$0xf]
  %v182 = vld [vmem:[%s1 + $0x27c] sm:$0xf]
  %v183 = vld [vmem:[%s1 + $0x280] sm:$0xf]
  %v184 = vld [vmem:[%s1 + $0x284] sm:$0xf]
  %v185 = vld [vmem:[%s1 + $0x288] sm:$0xf]
  %v186 = vld [vmem:[%s1 + $0x28c] sm:$0xf]
  %v187 = vld [vmem:[%s1 + $0x290] sm:$0xf]
  %v188 = vld [vmem:[%s1 + $0x294] sm:$0xf]
  %v189 = vld [vmem:[%s1 + $0x298] sm:$0xf]
  %v190 = vld [vmem:[%s1 + $0x29c] sm:$0xf]
  %v191 = vld [vmem:[%s1 + $0x2a0] sm:$0xf]
  %v192 = vld [vmem:[%s1 + $0x2a4] sm:$0xf]
  %v193 = vld [vmem:[%s1 + $0x2a8] sm:$0xf]
  %v194 = vld [vmem:[%s1 + $0x2ac] sm:$0xf]
  %v195 = vld [vmem:[%s1 + $0x2b0] sm:$0xf]
  %v196 = vld [vmem:[%s1 + $0x2b4] sm:$0xf]
  %v197 = vld [vmem:[%s1 + $0x2b8] sm:$0xf]
  %v198 = vld [vmem:[%s1 + $0x2bc] sm:$0xf]
  %v199 = vld [vmem:[%s1 + $0x2c0] sm:$0xf]
  %v200 = vld [vmem:[%s1 + $0x2c4] sm:$0xf]
  %v201 = vld [vmem:[%s1 + $0x2c8] sm:$0xf]
  %v202 = vld [vmem:[%s1 + $0x2cc] sm:$0xf]
  %v203 = vld [vmem:[%s1 + $0x2d0] sm:$0xf]
  %v204 = vld [vmem:[%s1 + $0x2d4] sm:$0xf]
  %v205 = vld [vmem:[%s1 + $0x2d8] sm:$0xf]
  %v206 = vld [vmem:[%s1 + $0x2dc] sm:$0xf]
  %v207 = vld [vmem:[%s1 + $0x2e0] sm:$0xf]
  %v208 = vld [vmem:[%s1 + $0x2e4] sm:$0xf]
  %v209 = vld [vmem:[%s1 + $0x2e8] sm:$0xf]
  %v210 = vld [vmem:[%s1 + $0x2ec] sm:$0xf]
  %v211 = vld [vmem:[%s1 + $0x2f0] sm:$0xf]
  %v212 = vld [vmem:[%s1 + $0x2f4] sm:$0xf]
  %v213 = vld [vmem:[%s1 + $0x2f8] sm:$0xf]
  %v214 = vld [vmem:[%s1 + $0x2fc] sm:$0xf]
  %v215 = vld [vmem:[%s1 + $0x300] sm:$0xf]
  %v216 = vld [vmem:[%s1 + $0x304] sm:$0xf]
  %v217 = vld [vmem:[%s1 + $0x308] sm:$0xf]
  %v218 = vld [vmem:[%s1 + $0x30c] sm:$0xf]
  %v219 = vld [vmem:[%s1 + $0x310] sm:$0xf]
  %v220 = vld [vmem:[%s1 + $0x314] sm:$0xf]
  %v221 = vld [vmem:[%s1 + $0x318] sm:$0xf]
  %v222 = vld [vmem:[%s1 + $0x31c] sm:$0xf]
  %v223 = vld [vmem:[%s1 + $0x320] sm:$0xf]
  %v224 = vld [vmem:[%s1 + $0x324] sm:$0xf]
  %v225 = vld [vmem:[%s1 + $0x328] sm:$0xf]
  %v226 = vld [vmem:[%s1 + $0x32c] sm:$0xf]
  %v227 = vld [vmem:[%s1 + $0x330] sm:$0xf]
  %v228 = vld [vmem:[%s1 + $0x334] sm:$0xf]
  %v229 = vld [vmem:[%s1 + $0x338] sm:$0xf]
  %v230 = vld [vmem:[%s1 + $0x33c] sm:$0xf]
  %v231 = vld [vmem:[%s1 + $0x340] sm:$0xf]
  %v232 = vld [vmem:[%s1 + $0x344] sm:$0xf]
  %v233 = vld [vmem:[%s1 + $0x348] sm:$0xf]
  %v234 = vld [vmem:[%s1 + $0x34c] sm:$0xf]
  %v235 = vld [vmem:[%s1 + $0x350] sm:$0xf]
  %v236 = vld [vmem:[%s1 + $0x354] sm:$0xf]
  %v237 = vld [vmem:[%s1 + $0x358] sm:$0xf]
  %v238 = vld [vmem:[%s1 + $0x35c] sm:$0xf]
  %v239 = vld [vmem:[%s1 + $0x360] sm:$0xf]
  %v240 = vld [vmem:[%s1 + $0x364] sm:$0xf]
  %v241 = vld [vmem:[%s1 + $0x368] sm:$0xf]
  %v242 = vld [vmem:[%s1 + $0x36c] sm:$0xf]
  %v243 = vld [vmem:[%s1 + $0x370] sm:$0xf]
  %v244 = vld [vmem:[%s1 + $0x374] sm:$0xf]
  %v245 = vld [vmem:[%s1 + $0x378] sm:$0xf]
  %v246 = vld [vmem:[%s1 + $0x37c] sm:$0xf]
  %v247 = vld [vmem:[%s1 + $0x380] sm:$0xf]
  %v248 = vld [vmem:[%s1 + $0x384] sm:$0xf]
  %v249 = vld [vmem:[%s1 + $0x388] sm:$0xf]
  %v250 = vld [vmem:[%s1 + $0x38c] sm:$0xf]
  %v251 = vld [vmem:[%s1 + $0x390] sm:$0xf]
  %v252 = vld [vmem:[%s1 + $0x394] sm:$0xf]
  %v253 = vld [vmem:[%s1 + $0x398] sm:$0xf]
  %v254 = vld [vmem:[%s1 + $0x39c] sm:$0xf]
  %v255 = vld [vmem:[%s1 + $0x3a0] sm:$0xf]
  %v256 = vld [vmem:[%s1 + $0x3a4] sm:$0xf]
  %v257 = vld [vmem:[%s1 + $0x3a8] sm:$0xf]
  %v258 = vld [vmem:[%s1 + $0x3ac] sm:$0xf]
  %v259 = vld [vmem:[%s1 + $0x3b0] sm:$0xf]
  %v260 = vld [vmem:[%s1 + $0x3b4] sm:$0xf]
  %v261 = vld [vmem:[%s1 + $0x3b8] sm:$0xf]
  %v262 = vld [vmem:[%s1 + $0x3bc] sm:$0xf]
  %v263 = vld [vmem:[%s1 + $0x3c0] sm:$0xf]
  %v264 = vld [vmem:[%s1 + $0x3c4] sm:$0xf]
  %v265 = vld [vmem:[%s1 + $0x3c8] sm:$0xf]
  %v266 = vld [vmem:[%s2] sm:$0xff]
  %268 = vset.pattern.permute.xlu0 0
  %269 = vperm.xlu0 %268, %v266
  %v270 = vpop.permute.xlu0 %269
  %v280 = vunpack.c.l.b16 %v15
  %v281 = vunpack.c.h.b16 %v15
  %v282 = vunpack.c.l.b16 %v16
  %v283 = vunpack.c.h.b16 %v16
  %v284 = vunpack.c.l.b16 %v17
  %v285 = vunpack.c.h.b16 %v17
  %v286 = vunpack.c.l.b16 %v18
  %v287 = vunpack.c.h.b16 %v18
  %v288 = vunpack.c.l.b16 %v19
  %v289 = vunpack.c.h.b16 %v19
  %v290 = vunpack.c.l.b16 %v20
  %v291 = vunpack.c.h.b16 %v20
  %v292 = vunpack.c.l.b16 %v21
  %v293 = vunpack.c.h.b16 %v21
  %v294 = vunpack.c.l.b16 %v22
  %v295 = vunpack.c.h.b16 %v22
  %v296 = vpack.c.b16 %v280, %v280
  %v297 = vpack.c.b16 %v281, %v281
  %v298 = vpack.c.b16 %v282, %v282
  %v299 = vpack.c.b16 %v283, %v283
  %v300 = vpack.c.b16 %v284, %v284
  %v301 = vpack.c.b16 %v285, %v285
  %v302 = vpack.c.b16 %v286, %v286
  %v303 = vpack.c.b16 %v287, %v287
  %v304 = vpack.c.b16 %v288, %v288
  %v305 = vpack.c.b16 %v289, %v289
  %v306 = vpack.c.b16 %v290, %v290
  %v307 = vpack.c.b16 %v291, %v291
  %v308 = vpack.c.b16 %v292, %v292
  %v309 = vpack.c.b16 %v293, %v293
  %v310 = vpack.c.b16 %v294, %v294
  %v311 = vpack.c.b16 %v295, %v295
  %v570 = vunpack.c.l.b16 %v23
  %v571 = vunpack.c.l.b16 %v24
  %v572 = vunpack.c.l.b16 %v25
  %v573 = vunpack.c.l.b16 %v26
  %v574 = vunpack.c.l.b16 %v27
  %v575 = vunpack.c.l.b16 %v28
  %v576 = vunpack.c.l.b16 %v29
  %v577 = vunpack.c.l.b16 %v30
  %v578 = vunpack.c.l.b16 %v31
  %v579 = vunpack.c.l.b16 %v32
  %v580 = vunpack.c.l.b16 %v33
  %v581 = vunpack.c.l.b16 %v34
  %v582 = vunpack.c.l.b16 %v35
  %v583 = vunpack.c.l.b16 %v36
  %v584 = vunpack.c.l.b16 %v37
  %v585 = vunpack.c.l.b16 %v38
  %v586 = vunpack.c.l.b16 %v39
  %v587 = vunpack.c.l.b16 %v40
  %v588 = vunpack.c.l.b16 %v41
  %v589 = vunpack.c.l.b16 %v42
  %v590 = vunpack.c.l.b16 %v43
  %v591 = vunpack.c.l.b16 %v44
  %v592 = vunpack.c.l.b16 %v45
  %v593 = vunpack.c.l.b16 %v46
  %v594 = vunpack.c.l.b16 %v47
  %v595 = vunpack.c.l.b16 %v48
  %v596 = vunpack.c.l.b16 %v49
  %v597 = vunpack.c.l.b16 %v50
  %v598 = vunpack.c.l.b16 %v51
  %v599 = vunpack.c.l.b16 %v52
  %v600 = vunpack.c.l.b16 %v53
  %v601 = vunpack.c.l.b16 %v54
  %v602 = vunpack.c.l.b16 %v55
  %v603 = vunpack.c.l.b16 %v56
  %v604 = vunpack.c.l.b16 %v57
  %v605 = vunpack.c.l.b16 %v58
  %v606 = vunpack.c.l.b16 %v59
  %v607 = vunpack.c.l.b16 %v60
  %v608 = vunpack.c.l.b16 %v61
  %v609 = vunpack.c.l.b16 %v62
  %v610 = vunpack.c.l.b16 %v63
  %v611 = vunpack.c.l.b16 %v64
  %v612 = vunpack.c.l.b16 %v65
  %v613 = vunpack.c.l.b16 %v66
  %v614 = vunpack.c.l.b16 %v67
  %v615 = vunpack.c.l.b16 %v68
  %v616 = vunpack.c.l.b16 %v69
  %v617 = vunpack.c.l.b16 %v70
  %v618 = vunpack.c.l.b16 %v71
  %v619 = vunpack.c.l.b16 %v72
  %v620 = vunpack.c.l.b16 %v73
  %v621 = vunpack.c.l.b16 %v74
  %v622 = vunpack.c.l.b16 %v75
  %v623 = vunpack.c.l.b16 %v76
  %v624 = vunpack.c.l.b16 %v77
  %v625 = vunpack.c.l.b16 %v78
  %v626 = vunpack.c.l.b16 %v79
  %v627 = vunpack.c.l.b16 %v80
  %v628 = vunpack.c.l.b16 %v81
  %v629 = vunpack.c.l.b16 %v82
  %v630 = vunpack.c.l.b16 %v83
  %v631 = vunpack.c.l.b16 %v84
  %v632 = vunpack.c.l.b16 %v85
  %v633 = vunpack.c.l.b16 %v86
  %v634 = vunpack.c.l.b16 %v87
  %v635 = vunpack.c.l.b16 %v88
  %v636 = vunpack.c.l.b16 %v89
  %v637 = vunpack.c.l.b16 %v90
  %v638 = vunpack.c.l.b16 %v91
  %v639 = vunpack.c.l.b16 %v92
  %v640 = vunpack.c.l.b16 %v93
  %v641 = vunpack.c.l.b16 %v94
  %v642 = vunpack.c.l.b16 %v95
  %v643 = vunpack.c.l.b16 %v96
  %v644 = vunpack.c.l.b16 %v97
  %v645 = vunpack.c.l.b16 %v98
  %v646 = vunpack.c.l.b16 %v99
  %v647 = vunpack.c.l.b16 %v100
  %v648 = vunpack.c.l.b16 %v101
  %v649 = vunpack.c.l.b16 %v102
  %v650 = vunpack.c.l.b16 %v103
  %v651 = vunpack.c.l.b16 %v104
  %v652 = vunpack.c.l.b16 %v105
  %v653 = vunpack.c.l.b16 %v106
  %v654 = vunpack.c.l.b16 %v107
  %v655 = vunpack.c.l.b16 %v108
  %v656 = vunpack.c.l.b16 %v109
  %v657 = vunpack.c.l.b16 %v110
  %v658 = vunpack.c.l.b16 %v111
  %v659 = vunpack.c.l.b16 %v112
  %v660 = vunpack.c.l.b16 %v113
  %v661 = vunpack.c.l.b16 %v114
  %v662 = vunpack.c.l.b16 %v115
  %v663 = vunpack.c.l.b16 %v116
  %v664 = vunpack.c.l.b16 %v117
  %v665 = vunpack.c.l.b16 %v118
  %v666 = vunpack.c.l.b16 %v119
  %v667 = vunpack.c.l.b16 %v120
  %v668 = vunpack.c.l.b16 %v121
  %v669 = vunpack.c.l.b16 %v122
  %v670 = vunpack.c.l.b16 %v123
  %v671 = vunpack.c.l.b16 %v124
  %v672 = vunpack.c.l.b16 %v125
  %v673 = vunpack.c.l.b16 %v126
  %v674 = vunpack.c.l.b16 %v127
  %v675 = vunpack.c.l.b16 %v128
  %v676 = vunpack.c.l.b16 %v129
  %v677 = vunpack.c.l.b16 %v130
  %v678 = vunpack.c.l.b16 %v131
  %v679 = vunpack.c.l.b16 %v132
  %v680 = vunpack.c.l.b16 %v133
  %v681 = vunpack.c.l.b16 %v134
  %v682 = vunpack.c.l.b16 %v135
  %v683 = vunpack.c.l.b16 %v136
  %v684 = vunpack.c.l.b16 %v137
  %v685 = vunpack.c.l.b16 %v138
  %v686 = vunpack.c.l.b16 %v139
  %v687 = vunpack.c.l.b16 %v140
  %v688 = vunpack.c.l.b16 %v141
  %v689 = vunpack.c.l.b16 %v142
  %v690 = vunpack.c.l.b16 %v143
  %v691 = vunpack.c.l.b16 %v144
  %v692 = vunpack.c.l.b16 %v145
  %v693 = vunpack.c.l.b16 %v146
  %v694 = vunpack.c.l.b16 %v147
  %v695 = vunpack.c.l.b16 %v148
  %v696 = vunpack.c.l.b16 %v149
  %v697 = vunpack.c.l.b16 %v150
  %v698 = vunpack.c.l.b16 %v151
  %v699 = vunpack.c.l.b16 %v152
  %v700 = vunpack.c.l.b16 %v153
  %v701 = vunpack.c.l.b16 %v154
  %v702 = vunpack.c.l.b16 %v155
  %v703 = vunpack.c.l.b16 %v156
  %v704 = vunpack.c.l.b16 %v157
  %v705 = vunpack.c.l.b16 %v158
  %v706 = vunpack.c.l.b16 %v159
  %v707 = vunpack.c.l.b16 %v160
  %v708 = vunpack.c.l.b16 %v161
  %v709 = vunpack.c.l.b16 %v162
  %v710 = vunpack.c.l.b16 %v163
  %v711 = vunpack.c.l.b16 %v164
  %v712 = vunpack.c.l.b16 %v165
  %v713 = vunpack.c.l.b16 %v166
  %v714 = vunpack.c.l.b16 %v167
  %v715 = vunpack.c.l.b16 %v168
  %v716 = vunpack.c.l.b16 %v169
  %v717 = vunpack.c.l.b16 %v170
  %v718 = vunpack.c.l.b16 %v171
  %v719 = vunpack.c.l.b16 %v172
  %v720 = vunpack.c.l.b16 %v173
  %v721 = vunpack.c.l.b16 %v174
  %v722 = vunpack.c.l.b16 %v175
  %v723 = vunpack.c.l.b16 %v176
  %v724 = vunpack.c.l.b16 %v177
  %v725 = vunpack.c.l.b16 %v178
  %v726 = vunpack.c.l.b16 %v179
  %v727 = vunpack.c.l.b16 %v180
  %v728 = vunpack.c.l.b16 %v181
  %v729 = vunpack.c.l.b16 %v182
  %v730 = vunpack.c.l.b16 %v183
  %v731 = vunpack.c.l.b16 %v184
  %v732 = vunpack.c.l.b16 %v185
  %v733 = vunpack.c.l.b16 %v186
  %v734 = vunpack.c.l.b16 %v187
  %v735 = vunpack.c.l.b16 %v188
  %v736 = vunpack.c.l.b16 %v189
  %v737 = vunpack.c.l.b16 %v190
  %v738 = vunpack.c.l.b16 %v191
  %v739 = vunpack.c.l.b16 %v192
  %v740 = vunpack.c.l.b16 %v193
  %v741 = vunpack.c.l.b16 %v194
  %v742 = vunpack.c.l.b16 %v195
  %v743 = vunpack.c.l.b16 %v196
  %v744 = vunpack.c.l.b16 %v197
  %v745 = vunpack.c.l.b16 %v198
  %v746 = vunpack.c.l.b16 %v199
  %v747 = vunpack.c.l.b16 %v200
  %v748 = vunpack.c.l.b16 %v201
  %v749 = vunpack.c.l.b16 %v202
  %v750 = vunpack.c.l.b16 %v203
  %v751 = vunpack.c.l.b16 %v204
  %v752 = vunpack.c.l.b16 %v205
  %v753 = vunpack.c.l.b16 %v206
  %v754 = vunpack.c.l.b16 %v207
  %v755 = vunpack.c.l.b16 %v208
  %v756 = vunpack.c.l.b16 %v209
  %v757 = vunpack.c.l.b16 %v210
  %v758 = vunpack.c.l.b16 %v211
  %v759 = vunpack.c.l.b16 %v212
  %v760 = vunpack.c.l.b16 %v213
  %v761 = vunpack.c.l.b16 %v214
  %v762 = vunpack.c.l.b16 %v215
  %v763 = vunpack.c.l.b16 %v216
  %v764 = vunpack.c.l.b16 %v217
  %v765 = vunpack.c.l.b16 %v218
  %v766 = vunpack.c.l.b16 %v219
  %v767 = vunpack.c.l.b16 %v220
  %v768 = vunpack.c.l.b16 %v221
  %v769 = vunpack.c.l.b16 %v222
  %v770 = vunpack.c.l.b16 %v223
  %v771 = vunpack.c.l.b16 %v224
  %v772 = vunpack.c.l.b16 %v225
  %v773 = vunpack.c.l.b16 %v226
  %v774 = vunpack.c.l.b16 %v227
  %v775 = vunpack.c.l.b16 %v228
  %v776 = vunpack.c.l.b16 %v229
  %v777 = vunpack.c.l.b16 %v230
  %v778 = vunpack.c.l.b16 %v231
  %v779 = vunpack.c.l.b16 %v232
  %v780 = vunpack.c.l.b16 %v233
  %v781 = vunpack.c.l.b16 %v234
  %v782 = vunpack.c.l.b16 %v235
  %v783 = vunpack.c.l.b16 %v236
  %v784 = vunpack.c.l.b16 %v237
  %v785 = vunpack.c.l.b16 %v238
  %v786 = vunpack.c.l.b16 %v239
  %v787 = vunpack.c.l.b16 %v240
  %v788 = vunpack.c.l.b16 %v241
  %v789 = vunpack.c.l.b16 %v242
  %v790 = vunpack.c.l.b16 %v243
  %v791 = vunpack.c.l.b16 %v244
  %v792 = vunpack.c.l.b16 %v245
  %v793 = vunpack.c.l.b16 %v246
  %v794 = vunpack.c.l.b16 %v247
  %v795 = vunpack.c.l.b16 %v248
  %v796 = vunpack.c.l.b16 %v249
  %v797 = vunpack.c.l.b16 %v250
  %v798 = vunpack.c.l.b16 %v251
  %v799 = vunpack.c.l.b16 %v252
  %v800 = vunpack.c.l.b16 %v253
  %v801 = vunpack.c.l.b16 %v254
  %v802 = vunpack.c.l.b16 %v255
  %v803 = vunpack.c.l.b16 %v256
  %v804 = vunpack.c.l.b16 %v257
  %v805 = vunpack.c.l.b16 %v258
  %v806 = vunpack.c.l.b16 %v259
  %v807 = vunpack.c.l.b16 %v260
  %v808 = vunpack.c.l.b16 %v261
  %v809 = vunpack.c.l.b16 %v262
  %v810 = vunpack.c.l.b16 %v263
  %v811 = vunpack.c.l.b16 %v264
  %v812 = vunpack.c.l.b16 %v265
  %v813 = vpack.c.b16 %v571, %v570
  %v814 = vpack.c.b16 %v573, %v572
  %v815 = vpack.c.b16 %v575, %v574
  %v816 = vpack.c.b16 %v577, %v576
  %v817 = vpack.c.b16 %v579, %v578
  %v818 = vpack.c.b16 %v581, %v580
  %v819 = vpack.c.b16 %v583, %v582
  %v820 = vpack.c.b16 %v585, %v584
  %v821 = vpack.c.b16 %v587, %v586
  %v822 = vpack.c.b16 %v589, %v588
  %v823 = vpack.c.b16 %v591, %v590
  %v824 = vpack.c.b16 %v593, %v592
  %v825 = vpack.c.b16 %v595, %v594
  %v826 = vpack.c.b16 %v597, %v596
  %v827 = vpack.c.b16 %v599, %v598
  %v828 = vpack.c.b16 %v601, %v600
  %v829 = vpack.c.b16 %v603, %v602
  %v830 = vpack.c.b16 %v605, %v604
  %v831 = vpack.c.b16 %v607, %v606
  %v832 = vpack.c.b16 %v609, %v608
  %v833 = vpack.c.b16 %v611, %v610
  %v834 = vpack.c.b16 %v613, %v612
  %v835 = vpack.c.b16 %v615, %v614
  %v836 = vpack.c.b16 %v617, %v616
  %v837 = vpack.c.b16 %v619, %v618
  %v838 = vpack.c.b16 %v621, %v620
  %v839 = vpack.c.b16 %v623, %v622
  %v840 = vpack.c.b16 %v625, %v624
  %v841 = vpack.c.b16 %v627, %v626
  %v842 = vpack.c.b16 %v629, %v628
  %v843 = vpack.c.b16 %v631, %v630
  %v844 = vpack.c.b16 %v633, %v632
  %v845 = vpack.c.b16 %v635, %v634
  %v846 = vpack.c.b16 %v637, %v636
  %v847 = vpack.c.b16 %v639, %v638
  %v848 = vpack.c.b16 %v641, %v640
  %v849 = vpack.c.b16 %v643, %v642
  %v850 = vpack.c.b16 %v645, %v644
  %v851 = vpack.c.b16 %v647, %v646
  %v852 = vpack.c.b16 %v649, %v648
  %v853 = vpack.c.b16 %v651, %v650
  %v854 = vpack.c.b16 %v653, %v652
  %v855 = vpack.c.b16 %v655, %v654
  %v856 = vpack.c.b16 %v657, %v656
  %v857 = vpack.c.b16 %v659, %v658
  %v858 = vpack.c.b16 %v661, %v660
  %v859 = vpack.c.b16 %v663, %v662
  %v860 = vpack.c.b16 %v665, %v664
  %v861 = vpack.c.b16 %v667, %v666
  %v862 = vpack.c.b16 %v669, %v668
  %v863 = vpack.c.b16 %v671, %v670
  %v864 = vpack.c.b16 %v673, %v672
  %v865 = vpack.c.b16 %v675, %v674
  %v866 = vpack.c.b16 %v677, %v676
  %v867 = vpack.c.b16 %v679, %v678
  %v868 = vpack.c.b16 %v681, %v680
  %v869 = vpack.c.b16 %v683, %v682
  %v870 = vpack.c.b16 %v685, %v684
  %v871 = vpack.c.b16 %v687, %v686
  %v872 = vpack.c.b16 %v689, %v688
  %v873 = vpack.c.b16 %v691, %v690
  %v874 = vpack.c.b16 %v693, %v692
  %v875 = vpack.c.b16 %v695, %v694
  %v876 = vpack.c.b16 %v697, %v696
  %v877 = vpack.c.b16 %v699, %v698
  %v878 = vpack.c.b16 %v701, %v700
  %v879 = vpack.c.b16 %v703, %v702
  %v880 = vpack.c.b16 %v705, %v704
  %v881 = vpack.c.b16 %v707, %v706
  %v882 = vpack.c.b16 %v709, %v708
  %v883 = vpack.c.b16 %v711, %v710
  %v884 = vpack.c.b16 %v713, %v712
  %v885 = vpack.c.b16 %v715, %v714
  %v886 = vpack.c.b16 %v717, %v716
  %v887 = vpack.c.b16 %v719, %v718
  %v888 = vpack.c.b16 %v721, %v720
  %v889 = vpack.c.b16 %v723, %v722
  %v890 = vpack.c.b16 %v725, %v724
  %v891 = vpack.c.b16 %v727, %v726
  %v892 = vpack.c.b16 %v729, %v728
  %v893 = vpack.c.b16 %v731, %v730
  %v894 = vpack.c.b16 %v733, %v732
  %v895 = vpack.c.b16 %v735, %v734
  %v896 = vpack.c.b16 %v737, %v736
  %v897 = vpack.c.b16 %v739, %v738
  %v898 = vpack.c.b16 %v741, %v740
  %v899 = vpack.c.b16 %v743, %v742
  %v900 = vpack.c.b16 %v745, %v744
  %v901 = vpack.c.b16 %v747, %v746
  %v902 = vpack.c.b16 %v749, %v748
  %v903 = vpack.c.b16 %v751, %v750
  %v904 = vpack.c.b16 %v753, %v752
  %v905 = vpack.c.b16 %v755, %v754
  %v906 = vpack.c.b16 %v757, %v756
  %v907 = vpack.c.b16 %v759, %v758
  %v908 = vpack.c.b16 %v761, %v760
  %v909 = vpack.c.b16 %v763, %v762
  %v910 = vpack.c.b16 %v765, %v764
  %v911 = vpack.c.b16 %v767, %v766
  %v912 = vpack.c.b16 %v769, %v768
  %v913 = vpack.c.b16 %v771, %v770
  %v914 = vpack.c.b16 %v773, %v772
  %v915 = vpack.c.b16 %v775, %v774
  %v916 = vpack.c.b16 %v777, %v776
  %v917 = vpack.c.b16 %v779, %v778
  %v918 = vpack.c.b16 %v781, %v780
  %v919 = vpack.c.b16 %v783, %v782
  %v920 = vpack.c.b16 %v785, %v784
  %v921 = vpack.c.b16 %v787, %v786
  %v922 = vpack.c.b16 %v789, %v788
  %v923 = vpack.c.b16 %v791, %v790
  %v924 = vpack.c.b16 %v793, %v792
  %v925 = vpack.c.b16 %v795, %v794
  %v926 = vpack.c.b16 %v797, %v796
  %v927 = vpack.c.b16 %v799, %v798
  %v928 = vpack.c.b16 %v801, %v800
  %v929 = vpack.c.b16 %v803, %v802
  %v930 = vpack.c.b16 %v805, %v804
  %v931 = vpack.c.b16 %v807, %v806
  %v932 = vpack.c.b16 %v809, %v808
  %v933 = vpack.c.b16 %v811, %v810
  %v934 = vpack.c.b16 %v812, %v812
  %vm1056 = vcmask 195584
  %v1058 = vsel %vm1056, %v311, 0
  %vm1060 = vcmask 1043456
  %v1062 = vsel %vm1060, %v934, 0
  %1064 = vmatprep.subr.bf16.mxu0 0
  %1065 = vmatpush1.bf16.msra.mxu0 %v813
  %1066 = vmatprep.subr.bf16.mxu0 0
  %1067 = vmatpush1.bf16.msra.mxu0 %v814
  %1068 = vmatprep.subr.bf16.mxu0 0
  %1069 = vmatpush1.bf16.msra.mxu0 %v815
  %1070 = vmatprep.subr.bf16.mxu0 0
  %1071 = vmatpush1.bf16.msra.mxu0 %v816
  %1072 = vmatprep.subr.bf16.mxu0 0
  %1073 = vmatpush1.bf16.msra.mxu0 %v817
  %1074 = vmatprep.subr.bf16.mxu0 0
  %1075 = vmatpush1.bf16.msra.mxu0 %v818
  %1076 = vmatprep.subr.bf16.mxu0 0
  %1077 = vmatpush1.bf16.msra.mxu0 %v819
  %1078 = vmatprep.subr.bf16.mxu0 0
  %1079 = vmatpush1.bf16.msra.mxu0 %v820
  %1080 = vmatprep.subr.bf16.mxu0 0
  %1081 = vmatpush1.bf16.msra.mxu0 %v821
  %1082 = vmatprep.subr.bf16.mxu0 0
  %1083 = vmatpush1.bf16.msra.mxu0 %v822
  %1084 = vmatprep.subr.bf16.mxu0 0
  %1085 = vmatpush1.bf16.msra.mxu0 %v823
  %1086 = vmatprep.subr.bf16.mxu0 0
  %1087 = vmatpush1.bf16.msra.mxu0 %v824
  %1088 = vmatprep.subr.bf16.mxu0 0
  %1089 = vmatpush1.bf16.msra.mxu0 %v825
  %1090 = vmatprep.subr.bf16.mxu0 0
  %1091 = vmatpush1.bf16.msra.mxu0 %v826
  %1092 = vmatprep.subr.bf16.mxu0 0
  %1093 = vmatpush1.bf16.msra.mxu0 %v827
  %1094 = vmatprep.subr.bf16.mxu0 0
  %1095 = vmatpush1.bf16.msra.mxu0 %v828
  %1096 = vmatprep.mubr.bf16.mxu0 %v297
  %1097 = vmatmul.mubr.bf16.gmra.mrb[0].mxu0 %v296
  %v1098 = vpop.f32.mrb[0].mxu0
  %v1099 = vadd.f32 %v270, %v1098
  %v1100 = vpop.f32.mrb[0].mxu0
  %v1101 = vpop.f32.mrb[0].mxu0
  %v1102 = vpop.f32.mrb[0].mxu0
  %1103 = vdwg.mxu0
  %1104 = vmatprep.subr.bf16.mxu0 0
  %1105 = vmatpush1.bf16.msra.mxu0 %v829
  %1106 = vmatprep.subr.bf16.mxu0 0
  %1107 = vmatpush1.bf16.msra.mxu0 %v830
  %1108 = vmatprep.subr.bf16.mxu0 0
  %1109 = vmatpush1.bf16.msra.mxu0 %v831
  %1110 = vmatprep.subr.bf16.mxu0 0
  %1111 = vmatpush1.bf16.msra.mxu0 %v832
  %1112 = vmatprep.subr.bf16.mxu0 0
  %1113 = vmatpush1.bf16.msra.mxu0 %v833
  %1114 = vmatprep.subr.bf16.mxu0 0
  %1115 = vmatpush1.bf16.msra.mxu0 %v834
  %1116 = vmatprep.subr.bf16.mxu0 0
  %1117 = vmatpush1.bf16.msra.mxu0 %v835
  %1118 = vmatprep.subr.bf16.mxu0 0
  %1119 = vmatpush1.bf16.msra.mxu0 %v836
  %1120 = vmatprep.subr.bf16.mxu0 0
  %1121 = vmatpush1.bf16.msra.mxu0 %v837
  %1122 = vmatprep.subr.bf16.mxu0 0
  %1123 = vmatpush1.bf16.msra.mxu0 %v838
  %1124 = vmatprep.subr.bf16.mxu0 0
  %1125 = vmatpush1.bf16.msra.mxu0 %v839
  %1126 = vmatprep.subr.bf16.mxu0 0
  %1127 = vmatpush1.bf16.msra.mxu0 %v840
  %1128 = vmatprep.subr.bf16.mxu0 0
  %1129 = vmatpush1.bf16.msra.mxu0 %v841
  %1130 = vmatprep.subr.bf16.mxu0 0
  %1131 = vmatpush1.bf16.msra.mxu0 %v842
  %1132 = vmatprep.subr.bf16.mxu0 0
  %1133 = vmatpush1.bf16.msra.mxu0 %v843
  %1134 = vmatprep.subr.bf16.mxu0 0
  %1135 = vmatpush1.bf16.msra.mxu0 %v844
  %1136 = vmatprep.mubr.bf16.mxu0 %v299
  %1137 = vmatmul.mubr.bf16.gmra.mrb[0].mxu0 %v298
  %v1138 = vpop.f32.mrb[0].mxu0
  %v1139 = vadd.f32 %v1099, %v1138
  %v1140 = vpop.f32.mrb[0].mxu0
  %v1141 = vpop.f32.mrb[0].mxu0
  %v1142 = vpop.f32.mrb[0].mxu0
  %1143 = vdwg.mxu0
  %1144 = vmatprep.subr.bf16.mxu0 0
  %1145 = vmatpush1.bf16.msra.mxu0 %v845
  %1146 = vmatprep.subr.bf16.mxu0 0
  %1147 = vmatpush1.bf16.msra.mxu0 %v846
  %1148 = vmatprep.subr.bf16.mxu0 0
  %1149 = vmatpush1.bf16.msra.mxu0 %v847
  %1150 = vmatprep.subr.bf16.mxu0 0
  %1151 = vmatpush1.bf16.msra.mxu0 %v848
  %1152 = vmatprep.subr.bf16.mxu0 0
  %1153 = vmatpush1.bf16.msra.mxu0 %v849
  %1154 = vmatprep.subr.bf16.mxu0 0
  %1155 = vmatpush1.bf16.msra.mxu0 %v850
  %1156 = vmatprep.subr.bf16.mxu0 0
  %1157 = vmatpush1.bf16.msra.mxu0 %v851
  %1158 = vmatprep.subr.bf16.mxu0 0
  %1159 = vmatpush1.bf16.msra.mxu0 %v852
  %1160 = vmatprep.subr.bf16.mxu0 0
  %1161 = vmatpush1.bf16.msra.mxu0 %v853
  %1162 = vmatprep.subr.bf16.mxu0 0
  %1163 = vmatpush1.bf16.msra.mxu0 %v854
  %1164 = vmatprep.subr.bf16.mxu0 0
  %1165 = vmatpush1.bf16.msra.mxu0 %v855
  %1166 = vmatprep.subr.bf16.mxu0 0
  %1167 = vmatpush1.bf16.msra.mxu0 %v856
  %1168 = vmatprep.subr.bf16.mxu0 0
  %1169 = vmatpush1.bf16.msra.mxu0 %v857
  %1170 = vmatprep.subr.bf16.mxu0 0
  %1171 = vmatpush1.bf16.msra.mxu0 %v858
  %1172 = vmatprep.subr.bf16.mxu0 0
  %1173 = vmatpush1.bf16.msra.mxu0 %v859
  %1174 = vmatprep.subr.bf16.mxu0 0
  %1175 = vmatpush1.bf16.msra.mxu0 %v860
  %1176 = vmatprep.mubr.bf16.mxu0 %v301
  %1177 = vmatmul.mubr.bf16.gmra.mrb[0].mxu0 %v300
  %v1178 = vpop.f32.mrb[0].mxu0
  %v1179 = vadd.f32 %v1139, %v1178
  %v1180 = vpop.f32.mrb[0].mxu0
  %v1181 = vpop.f32.mrb[0].mxu0
  %v1182 = vpop.f32.mrb[0].mxu0
  %1183 = vdwg.mxu0
  %1184 = vmatprep.subr.bf16.mxu0 0
  %1185 = vmatpush1.bf16.msra.mxu0 %v861
  %1186 = vmatprep.subr.bf16.mxu0 0
  %1187 = vmatpush1.bf16.msra.mxu0 %v862
  %1188 = vmatprep.subr.bf16.mxu0 0
  %1189 = vmatpush1.bf16.msra.mxu0 %v863
  %1190 = vmatprep.subr.bf16.mxu0 0
  %1191 = vmatpush1.bf16.msra.mxu0 %v864
  %1192 = vmatprep.subr.bf16.mxu0 0
  %1193 = vmatpush1.bf16.msra.mxu0 %v865
  %1194 = vmatprep.subr.bf16.mxu0 0
  %1195 = vmatpush1.bf16.msra.mxu0 %v866
  %1196 = vmatprep.subr.bf16.mxu0 0
  %1197 = vmatpush1.bf16.msra.mxu0 %v867
  %1198 = vmatprep.subr.bf16.mxu0 0
  %1199 = vmatpush1.bf16.msra.mxu0 %v868
  %1200 = vmatprep.subr.bf16.mxu0 0
  %1201 = vmatpush1.bf16.msra.mxu0 %v869
  %1202 = vmatprep.subr.bf16.mxu0 0
  %1203 = vmatpush1.bf16.msra.mxu0 %v870
  %1204 = vmatprep.subr.bf16.mxu0 0
  %1205 = vmatpush1.bf16.msra.mxu0 %v871
  %1206 = vmatprep.subr.bf16.mxu0 0
  %1207 = vmatpush1.bf16.msra.mxu0 %v872
  %1208 = vmatprep.subr.bf16.mxu0 0
  %1209 = vmatpush1.bf16.msra.mxu0 %v873
  %1210 = vmatprep.subr.bf16.mxu0 0
  %1211 = vmatpush1.bf16.msra.mxu0 %v874
  %1212 = vmatprep.subr.bf16.mxu0 0
  %1213 = vmatpush1.bf16.msra.mxu0 %v875
  %1214 = vmatprep.subr.bf16.mxu0 0
  %1215 = vmatpush1.bf16.msra.mxu0 %v876
  %1216 = vmatprep.mubr.bf16.mxu0 %v303
  %1217 = vmatmul.mubr.bf16.gmra.mrb[0].mxu0 %v302
  %v1218 = vpop.f32.mrb[0].mxu0
  %v1219 = vadd.f32 %v1179, %v1218
  %v1220 = vpop.f32.mrb[0].mxu0
  %v1221 = vpop.f32.mrb[0].mxu0
  %v1222 = vpop.f32.mrb[0].mxu0
  %1223 = vdwg.mxu0
  %1224 = vmatprep.subr.bf16.mxu0 0
  %1225 = vmatpush1.bf16.msra.mxu0 %v877
  %1226 = vmatprep.subr.bf16.mxu0 0
  %1227 = vmatpush1.bf16.msra.mxu0 %v878
  %1228 = vmatprep.subr.bf16.mxu0 0
  %1229 = vmatpush1.bf16.msra.mxu0 %v879
  %1230 = vmatprep.subr.bf16.mxu0 0
  %1231 = vmatpush1.bf16.msra.mxu0 %v880
  %1232 = vmatprep.subr.bf16.mxu0 0
  %1233 = vmatpush1.bf16.msra.mxu0 %v881
  %1234 = vmatprep.subr.bf16.mxu0 0
  %1235 = vmatpush1.bf16.msra.mxu0 %v882
  %1236 = vmatprep.subr.bf16.mxu0 0
  %1237 = vmatpush1.bf16.msra.mxu0 %v883
  %1238 = vmatprep.subr.bf16.mxu0 0
  %1239 = vmatpush1.bf16.msra.mxu0 %v884
  %1240 = vmatprep.subr.bf16.mxu0 0
  %1241 = vmatpush1.bf16.msra.mxu0 %v885
  %1242 = vmatprep.subr.bf16.mxu0 0
  %1243 = vmatpush1.bf16.msra.mxu0 %v886
  %1244 = vmatprep.subr.bf16.mxu0 0
  %1245 = vmatpush1.bf16.msra.mxu0 %v887
  %1246 = vmatprep.subr.bf16.mxu0 0
  %1247 = vmatpush1.bf16.msra.mxu0 %v888
  %1248 = vmatprep.subr.bf16.mxu0 0
  %1249 = vmatpush1.bf16.msra.mxu0 %v889
  %1250 = vmatprep.subr.bf16.mxu0 0
  %1251 = vmatpush1.bf16.msra.mxu0 %v890
  %1252 = vmatprep.subr.bf16.mxu0 0
  %1253 = vmatpush1.bf16.msra.mxu0 %v891
  %1254 = vmatprep.subr.bf16.mxu0 0
  %1255 = vmatpush1.bf16.msra.mxu0 %v892
  %1256 = vmatprep.mubr.bf16.mxu0 %v305
  %1257 = vmatmul.mubr.bf16.gmra.mrb[0].mxu0 %v304
  %v1258 = vpop.f32.mrb[0].mxu0
  %v1259 = vadd.f32 %v1219, %v1258
  %v1260 = vpop.f32.mrb[0].mxu0
  %v1261 = vpop.f32.mrb[0].mxu0
  %v1262 = vpop.f32.mrb[0].mxu0
  %1263 = vdwg.mxu0
  %1264 = vmatprep.subr.bf16.mxu0 0
  %1265 = vmatpush1.bf16.msra.mxu0 %v893
  %1266 = vmatprep.subr.bf16.mxu0 0
  %1267 = vmatpush1.bf16.msra.mxu0 %v894
  %1268 = vmatprep.subr.bf16.mxu0 0
  %1269 = vmatpush1.bf16.msra.mxu0 %v895
  %1270 = vmatprep.subr.bf16.mxu0 0
  %1271 = vmatpush1.bf16.msra.mxu0 %v896
  %1272 = vmatprep.subr.bf16.mxu0 0
  %1273 = vmatpush1.bf16.msra.mxu0 %v897
  %1274 = vmatprep.subr.bf16.mxu0 0
  %1275 = vmatpush1.bf16.msra.mxu0 %v898
  %1276 = vmatprep.subr.bf16.mxu0 0
  %1277 = vmatpush1.bf16.msra.mxu0 %v899
  %1278 = vmatprep.subr.bf16.mxu0 0
  %1279 = vmatpush1.bf16.msra.mxu0 %v900
  %1280 = vmatprep.subr.bf16.mxu0 0
  %1281 = vmatpush1.bf16.msra.mxu0 %v901
  %1282 = vmatprep.subr.bf16.mxu0 0
  %1283 = vmatpush1.bf16.msra.mxu0 %v902
  %1284 = vmatprep.subr.bf16.mxu0 0
  %1285 = vmatpush1.bf16.msra.mxu0 %v903
  %1286 = vmatprep.subr.bf16.mxu0 0
  %1287 = vmatpush1.bf16.msra.mxu0 %v904
  %1288 = vmatprep.subr.bf16.mxu0 0
  %1289 = vmatpush1.bf16.msra.mxu0 %v905
  %1290 = vmatprep.subr.bf16.mxu0 0
  %1291 = vmatpush1.bf16.msra.mxu0 %v906
  %1292 = vmatprep.subr.bf16.mxu0 0
  %1293 = vmatpush1.bf16.msra.mxu0 %v907
  %1294 = vmatprep.subr.bf16.mxu0 0
  %1295 = vmatpush1.bf16.msra.mxu0 %v908
  %1296 = vmatprep.mubr.bf16.mxu0 %v307
  %1297 = vmatmul.mubr.bf16.gmra.mrb[0].mxu0 %v306
  %v1298 = vpop.f32.mrb[0].mxu0
  %v1299 = vadd.f32 %v1259, %v1298
  %v1300 = vpop.f32.mrb[0].mxu0
  %v1301 = vpop.f32.mrb[0].mxu0
  %v1302 = vpop.f32.mrb[0].mxu0
  %1303 = vdwg.mxu0
  %1304 = vmatprep.subr.bf16.mxu0 0
  %1305 = vmatpush1.bf16.msra.mxu0 %v909
  %1306 = vmatprep.subr.bf16.mxu0 0
  %1307 = vmatpush1.bf16.msra.mxu0 %v910
  %1308 = vmatprep.subr.bf16.mxu0 0
  %1309 = vmatpush1.bf16.msra.mxu0 %v911
  %1310 = vmatprep.subr.bf16.mxu0 0
  %1311 = vmatpush1.bf16.msra.mxu0 %v912
  %1312 = vmatprep.subr.bf16.mxu0 0
  %1313 = vmatpush1.bf16.msra.mxu0 %v913
  %1314 = vmatprep.subr.bf16.mxu0 0
  %1315 = vmatpush1.bf16.msra.mxu0 %v914
  %1316 = vmatprep.subr.bf16.mxu0 0
  %1317 = vmatpush1.bf16.msra.mxu0 %v915
  %1318 = vmatprep.subr.bf16.mxu0 0
  %1319 = vmatpush1.bf16.msra.mxu0 %v916
  %1320 = vmatprep.subr.bf16.mxu0 0
  %1321 = vmatpush1.bf16.msra.mxu0 %v917
  %1322 = vmatprep.subr.bf16.mxu0 0
  %1323 = vmatpush1.bf16.msra.mxu0 %v918
  %1324 = vmatprep.subr.bf16.mxu0 0
  %1325 = vmatpush1.bf16.msra.mxu0 %v919
  %1326 = vmatprep.subr.bf16.mxu0 0
  %1327 = vmatpush1.bf16.msra.mxu0 %v920
  %1328 = vmatprep.subr.bf16.mxu0 0
  %1329 = vmatpush1.bf16.msra.mxu0 %v921
  %1330 = vmatprep.subr.bf16.mxu0 0
  %1331 = vmatpush1.bf16.msra.mxu0 %v922
  %1332 = vmatprep.subr.bf16.mxu0 0
  %1333 = vmatpush1.bf16.msra.mxu0 %v923
  %1334 = vmatprep.subr.bf16.mxu0 0
  %1335 = vmatpush1.bf16.msra.mxu0 %v924
  %1336 = vmatprep.mubr.bf16.mxu0 %v309
  %1337 = vmatmul.mubr.bf16.gmra.mrb[0].mxu0 %v308
  %v1338 = vpop.f32.mrb[0].mxu0
  %v1339 = vadd.f32 %v1299, %v1338
  %v1340 = vpop.f32.mrb[0].mxu0
  %v1341 = vpop.f32.mrb[0].mxu0
  %v1342 = vpop.f32.mrb[0].mxu0
  %1343 = vdwg.mxu0
  %1344 = vmatprep.subr.bf16.mxu0 0
  %1345 = vmatpush1.bf16.msra.mxu0 %v925
  %1346 = vmatprep.subr.bf16.mxu0 0
  %1347 = vmatpush1.bf16.msra.mxu0 %v926
  %1348 = vmatprep.subr.bf16.mxu0 0
  %1349 = vmatpush1.bf16.msra.mxu0 %v927
  %1350 = vmatprep.subr.bf16.mxu0 0
  %1351 = vmatpush1.bf16.msra.mxu0 %v928
  %1352 = vmatprep.subr.bf16.mxu0 0
  %1353 = vmatpush1.bf16.msra.mxu0 %v929
  %1354 = vmatprep.subr.bf16.mxu0 0
  %1355 = vmatpush1.bf16.msra.mxu0 %v930
  %1356 = vmatprep.subr.bf16.mxu0 0
  %1357 = vmatpush1.bf16.msra.mxu0 %v931
  %1358 = vmatprep.subr.bf16.mxu0 0
  %1359 = vmatpush1.bf16.msra.mxu0 %v932
  %1360 = vmatprep.subr.bf16.mxu0 0
  %1361 = vmatpush1.bf16.msra.mxu0 %v933
  %1362 = vmatprep.subr.bf16.mxu0 0
  %1363 = vmatpush1.bf16.msra.mxu0 %v1062
  %1364 = vmatprep.subr.bf16.mxu0 0
  %1365 = vmatpush1.bf16.msra.mxu0 0
  %1366 = vmatprep.subr.bf16.mxu0 0
  %1367 = vmatpush1.bf16.msra.mxu0 0
  %1368 = vmatprep.subr.bf16.mxu0 0
  %1369 = vmatpush1.bf16.msra.mxu0 0
  %1370 = vmatprep.subr.bf16.mxu0 0
  %1371 = vmatpush1.bf16.msra.mxu0 0
  %1372 = vmatprep.subr.bf16.mxu0 0
  %1373 = vmatpush1.bf16.msra.mxu0 0
  %1374 = vmatprep.subr.bf16.mxu0 0
  %1375 = vmatpush1.bf16.msra.mxu0 0
  %1376 = vmatprep.mubr.bf16.mxu0 %v1058
  %1377 = vmatmul.mubr.bf16.gmra.mrb[0].mxu0 %v310
  %v1378 = vpop.f32.mrb[0].mxu0
  %v1379 = vadd.f32 %v1339, %v1378
  %v1380 = vpop.f32.mrb[0].mxu0
  %v1381 = vpop.f32.mrb[0].mxu0
  %v1382 = vpop.f32.mrb[0].mxu0
  %1383 = vdwg.mxu0
  %v1384 = vmax.f32 %v1379, 0.0
  %v1385 = vpack.c.bf16 %v1384, %v1384
  %vm1386 = vcmask 125952
  %1387 = vst.msk [vmem:[%s3] sm:$0xf] %vm1386, %v1385
  // Predicated region
  $region14: #{unet_sim3d_srd2.16} parent=0 // pred_check
    _
  $region15: #{unet_sim3d_srd2.16} parent=0 // pred_check_branch
    %1389 = sbr.rel (0) target = $region17
  $region16: #{unet_sim3d_srd2.16} parent=0 // pred_region
    _
  $region17: #{unet_sim3d_srd2.16} parent=0 // pred_fallthru
    _
  // Predicated region
  $region18: #{unet_sim3d_srd2.16} parent=0 // pred_check
    _
  $region19: #{unet_sim3d_srd2.16} parent=0 // pred_check_branch
    %1391 = sbr.rel (0) target = $region21
  $region20: #{unet_sim3d_srd2.16} parent=0 // pred_region
    _
  $region21: #{unet_sim3d_srd2.16} parent=0 // pred_fallthru
    _

// kernel: unet_sim3d_srd2.19
$region0: #{unet_sim3d_srd2.19}
  #allocation0 [shape = 'u32[]', space=smem, size = 0x4, offset = 0x4, fixed_abs, tag = 'smem constant byte address 0x4 - core index']
  #allocation1 [shape = 'u32[144,128]{1,0:T(1,128)}', space=vmem, size = 0x12000, scoped, tag = 'internal scratch']
  #allocation2 [shape = 'f32[1,1]{1,0:T(1,128)S(1)}', space=vmem, size = 0x200, scoped, tag = 'scoped memory for unet_sim3d_srd2.19']
  %s0 = inlined_call_operand.vmem [shape: bf16[1,4], index: 0, kind: input, shape index: {}]
  %s1 = inlined_call_operand.vmem [shape: bf16[4,128], index: 1, kind: input, shape index: {}]
  %s2 = inlined_call_operand.<no memory space> [shape: f32[1,1], index: 2, kind: input, shape index: {}]
  %s3 = inlined_call_operand.vmem [shape: f32[1,128], index: 3, kind: output, shape index: {}]
  %s4 = sld [smem:[#allocation0]]
  $region22: #{unet_sim3d_srd2.19} parent=0
    _
  %s6 = ssub.s32 1, %s4
  %s7 = scalar_select 0, %s6, %s4
  %v8 = vstv %s2
  %9 = vst [vmem:[#allocation2] sm:$0x1] %v8
  // Predicated region
  $region2: #{unet_sim3d_srd2.19} parent=0 // pred_check
    _
  $region3: #{unet_sim3d_srd2.19} parent=0 // pred_check_branch
    %11 = sbr.rel (0) target = $region5
  $region4: #{unet_sim3d_srd2.19} parent=0 // pred_region
    _
  $region5: #{unet_sim3d_srd2.19} parent=0 // pred_fallthru
    _
  // Predicated region
  $region6: #{unet_sim3d_srd2.19} parent=0 // pred_check
    _
  $region7: #{unet_sim3d_srd2.19} parent=0 // pred_check_branch
    %13 = sbr.rel (0) target = $region9
  $region8: #{unet_sim3d_srd2.19} parent=0 // pred_region
    _
  $region9: #{unet_sim3d_srd2.19} parent=0 // pred_fallthru
    _
  // Predicated region
  $region10: #{unet_sim3d_srd2.19} parent=0 // pred_check
    _
  $region11: #{unet_sim3d_srd2.19} parent=0 // pred_check_branch
    %15 = sbr.rel (0) target = $region13
  $region12: #{unet_sim3d_srd2.19} parent=0 // pred_region
    _
  $region13: #{unet_sim3d_srd2.19} parent=0 // pred_fallthru
    _
  %v17 = vld [vmem:[%s0] sm:$0x1]
  %v18 = vld [vmem:[%s1] sm:$0x3]
  %v19 = vld [vmem:[#allocation2] sm:$0x1]
  %21 = vset.pattern.permute.xlu0 0
  %22 = vperm.xlu0 %21, %v19
  %v23 = vpop.permute.xlu0 %22
  %v25 = vlaneseq
  %v26 = vshrl.u32 %v25, 7
  %v27 = vsub.s32 0, %v26
  %v28 = vrot.slane %v23, %v27
  %vm29 = vcmask 31744
  %v31 = vsel %vm29, %v17, 0
  %vm33 = vcmask 1041408
  %v35 = vsel %vm33, %v18, 0
  %37 = vmatprep.subr.bf16.mxu0 0
  %38 = vmatpush1.bf16.msra.mxu0 %v35
  %39 = vmatprep.subr.bf16.mxu0 0
  %40 = vmatpush1.bf16.msra.mxu0 0
  %41 = vmatprep.subr.bf16.mxu0 0
  %42 = vmatpush1.bf16.msra.mxu0 0
  %43 = vmatprep.subr.bf16.mxu0 0
  %44 = vmatpush1.bf16.msra.mxu0 0
  %45 = vmatprep.subr.bf16.mxu0 0
  %46 = vmatpush1.bf16.msra.mxu0 0
  %47 = vmatprep.subr.bf16.mxu0 0
  %48 = vmatpush1.bf16.msra.mxu0 0
  %49 = vmatprep.subr.bf16.mxu0 0
  %50 = vmatpush1.bf16.msra.mxu0 0
  %51 = vmatprep.subr.bf16.mxu0 0
  %52 = vmatpush1.bf16.msra.mxu0 0
  %53 = vmatprep.subr.bf16.mxu0 0
  %54 = vmatpush1.bf16.msra.mxu0 0
  %55 = vmatprep.subr.bf16.mxu0 0
  %56 = vmatpush1.bf16.msra.mxu0 0
  %57 = vmatprep.subr.bf16.mxu0 0
  %58 = vmatpush1.bf16.msra.mxu0 0
  %59 = vmatprep.subr.bf16.mxu0 0
  %60 = vmatpush1.bf16.msra.mxu0 0
  %61 = vmatprep.subr.bf16.mxu0 0
  %62 = vmatpush1.bf16.msra.mxu0 0
  %63 = vmatprep.subr.bf16.mxu0 0
  %64 = vmatpush1.bf16.msra.mxu0 0
  %65 = vmatprep.subr.bf16.mxu0 0
  %66 = vmatpush1.bf16.msra.mxu0 0
  %67 = vmatprep.subr.bf16.mxu0 0
  %68 = vmatpush1.bf16.msra.mxu0 0
  %69 = vmatprep.mubr.bf16.mxu0 0
  %70 = vmatmul.mubr.bf16.gmra.mrb[0].mxu0 %v31
  %v71 = vpop.f32.mrb[0].mxu0
  %v72 = vadd.f32 %v28, %v71
  %v73 = vpop.f32.mrb[0].mxu0
  %v74 = vpop.f32.mrb[0].mxu0
  %v75 = vpop.f32.mrb[0].mxu0
  %76 = vdwg.mxu0
  %77 = vst [vmem:[%s3] sm:$0x1] %v72
  // Predicated region
  $region14: #{unet_sim3d_srd2.19} parent=0 // pred_check
    _
  $region15: #{unet_sim3d_srd2.19} parent=0 // pred_check_branch
    %79 = sbr.rel (0) target = $region17
  $region16: #{unet_sim3d_srd2.19} parent=0 // pred_region
    _
  $region17: #{unet_sim3d_srd2.19} parent=0 // pred_fallthru
    _
  // Predicated region
  $region18: #{unet_sim3d_srd2.19} parent=0 // pred_check
    _
  $region19: #{unet_sim3d_srd2.19} parent=0 // pred_check_branch
    %81 = sbr.rel (0) target = $region21
  $region20: #{unet_sim3d_srd2.19} parent=0 // pred_region
    _
  $region21: #{unet_sim3d_srd2.19} parent=0 // pred_fallthru
    _

// kernel: unet_sim3d_srd2.18
$region0: #{unet_sim3d_srd2.18}
  #allocation0 [shape = 'u32[]', space=smem, size = 0x4, offset = 0x4, fixed_abs, tag = 'smem constant byte address 0x4 - core index']
  #allocation1 [shape = 'u32[144,128]{1,0:T(1,128)}', space=vmem, size = 0x12000, scoped, tag = 'internal scratch']
  %s0 = inlined_call_operand.vmem [shape: bf16[4,1080], index: 0, kind: input, shape index: {}]
  %s1 = inlined_call_operand.vmem [shape: bf16[1080,128], index: 1, kind: input, shape index: {}]
  %s2 = inlined_call_operand.vmem [shape: f32[4,1], index: 2, kind: input, shape index: {}]
  %s3 = inlined_call_operand.vmem [shape: bf16[4,128], index: 3, kind: output, shape index: {}]
  %s4 = sld [smem:[#allocation0]]
  $region22: #{unet_sim3d_srd2.18} parent=0
    _
  %s6 = ssub.s32 1, %s4
  %s7 = scalar_select 0, %s6, %s4
  // Predicated region
  $region2: #{unet_sim3d_srd2.18} parent=0 // pred_check
    _
  $region3: #{unet_sim3d_srd2.18} parent=0 // pred_check_branch
    %9 = sbr.rel (0) target = $region5
  $region4: #{unet_sim3d_srd2.18} parent=0 // pred_region
    _
  $region5: #{unet_sim3d_srd2.18} parent=0 // pred_fallthru
    _
  // Predicated region
  $region6: #{unet_sim3d_srd2.18} parent=0 // pred_check
    _
  $region7: #{unet_sim3d_srd2.18} parent=0 // pred_check_branch
    %11 = sbr.rel (0) target = $region9
  $region8: #{unet_sim3d_srd2.18} parent=0 // pred_region
    _
  $region9: #{unet_sim3d_srd2.18} parent=0 // pred_fallthru
    _
  // Predicated region
  $region10: #{unet_sim3d_srd2.18} parent=0 // pred_check
    _
  $region11: #{unet_sim3d_srd2.18} parent=0 // pred_check_branch
    %13 = sbr.rel (0) target = $region13
  $region12: #{unet_sim3d_srd2.18} parent=0 // pred_region
    _
  $region13: #{unet_sim3d_srd2.18} parent=0 // pred_fallthru
    _
  %v15 = vld [vmem:[%s0] sm:$0xff]
  %v16 = vld [vmem:[%s0 + $0x8] sm:$0xff]
  %v17 = vld [vmem:[%s0 + $0x10] sm:$0x3]
  %v18 = vld [vmem:[%s1] sm:$0xf]
  %v19 = vld [vmem:[%s1 + $0x4] sm:$0xf]
  %v20 = vld [vmem:[%s1 + $0x8] sm:$0xf]
  %v21 = vld [vmem:[%s1 + $0xc] sm:$0xf]
  %v22 = vld [vmem:[%s1 + $0x10] sm:$0xf]
  %v23 = vld [vmem:[%s1 + $0x14] sm:$0xf]
  %v24 = vld [vmem:[%s1 + $0x18] sm:$0xf]
  %v25 = vld [vmem:[%s1 + $0x1c] sm:$0xf]
  %v26 = vld [vmem:[%s1 + $0x20] sm:$0xf]
  %v27 = vld [vmem:[%s1 + $0x24] sm:$0xf]
  %v28 = vld [vmem:[%s1 + $0x28] sm:$0xf]
  %v29 = vld [vmem:[%s1 + $0x2c] sm:$0xf]
  %v30 = vld [vmem:[%s1 + $0x30] sm:$0xf]
  %v31 = vld [vmem:[%s1 + $0x34] sm:$0xf]
  %v32 = vld [vmem:[%s1 + $0x38] sm:$0xf]
  %v33 = vld [vmem:[%s1 + $0x3c] sm:$0xf]
  %v34 = vld [vmem:[%s1 + $0x40] sm:$0xf]
  %v35 = vld [vmem:[%s1 + $0x44] sm:$0xf]
  %v36 = vld [vmem:[%s1 + $0x48] sm:$0xf]
  %v37 = vld [vmem:[%s1 + $0x4c] sm:$0xf]
  %v38 = vld [vmem:[%s1 + $0x50] sm:$0xf]
  %v39 = vld [vmem:[%s1 + $0x54] sm:$0xf]
  %v40 = vld [vmem:[%s1 + $0x58] sm:$0xf]
  %v41 = vld [vmem:[%s1 + $0x5c] sm:$0xf]
  %v42 = vld [vmem:[%s1 + $0x60] sm:$0xf]
  %v43 = vld [vmem:[%s1 + $0x64] sm:$0xf]
  %v44 = vld [vmem:[%s1 + $0x68] sm:$0xf]
  %v45 = vld [vmem:[%s1 + $0x6c] sm:$0xf]
  %v46 = vld [vmem:[%s1 + $0x70] sm:$0xf]
  %v47 = vld [vmem:[%s1 + $0x74] sm:$0xf]
  %v48 = vld [vmem:[%s1 + $0x78] sm:$0xf]
  %v49 = vld [vmem:[%s1 + $0x7c] sm:$0xf]
  %v50 = vld [vmem:[%s1 + $0x80] sm:$0xf]
  %v51 = vld [vmem:[%s1 + $0x84] sm:$0xf]
  %v52 = vld [vmem:[%s1 + $0x88] sm:$0xf]
  %v53 = vld [vmem:[%s1 + $0x8c] sm:$0xf]
  %v54 = vld [vmem:[%s1 + $0x90] sm:$0xf]
  %v55 = vld [vmem:[%s1 + $0x94] sm:$0xf]
  %v56 = vld [vmem:[%s1 + $0x98] sm:$0xf]
  %v57 = vld [vmem:[%s1 + $0x9c] sm:$0xf]
  %v58 = vld [vmem:[%s1 + $0xa0] sm:$0xf]
  %v59 = vld [vmem:[%s1 + $0xa4] sm:$0xf]
  %v60 = vld [vmem:[%s1 + $0xa8] sm:$0xf]
  %v61 = vld [vmem:[%s1 + $0xac] sm:$0xf]
  %v62 = vld [vmem:[%s1 + $0xb0] sm:$0xf]
  %v63 = vld [vmem:[%s1 + $0xb4] sm:$0xf]
  %v64 = vld [vmem:[%s1 + $0xb8] sm:$0xf]
  %v65 = vld [vmem:[%s1 + $0xbc] sm:$0xf]
  %v66 = vld [vmem:[%s1 + $0xc0] sm:$0xf]
  %v67 = vld [vmem:[%s1 + $0xc4] sm:$0xf]
  %v68 = vld [vmem:[%s1 + $0xc8] sm:$0xf]
  %v69 = vld [vmem:[%s1 + $0xcc] sm:$0xf]
  %v70 = vld [vmem:[%s1 + $0xd0] sm:$0xf]
  %v71 = vld [vmem:[%s1 + $0xd4] sm:$0xf]
  %v72 = vld [vmem:[%s1 + $0xd8] sm:$0xf]
  %v73 = vld [vmem:[%s1 + $0xdc] sm:$0xf]
  %v74 = vld [vmem:[%s1 + $0xe0] sm:$0xf]
  %v75 = vld [vmem:[%s1 + $0xe4] sm:$0xf]
  %v76 = vld [vmem:[%s1 + $0xe8] sm:$0xf]
  %v77 = vld [vmem:[%s1 + $0xec] sm:$0xf]
  %v78 = vld [vmem:[%s1 + $0xf0] sm:$0xf]
  %v79 = vld [vmem:[%s1 + $0xf4] sm:$0xf]
  %v80 = vld [vmem:[%s1 + $0xf8] sm:$0xf]
  %v81 = vld [vmem:[%s1 + $0xfc] sm:$0xf]
  %v82 = vld [vmem:[%s1 + $0x100] sm:$0xf]
  %v83 = vld [vmem:[%s1 + $0x104] sm:$0xf]
  %v84 = vld [vmem:[%s1 + $0x108] sm:$0xf]
  %v85 = vld [vmem:[%s1 + $0x10c] sm:$0xf]
  %v86 = vld [vmem:[%s1 + $0x110] sm:$0xf]
  %v87 = vld [vmem:[%s1 + $0x114] sm:$0xf]
  %v88 = vld [vmem:[%s1 + $0x118] sm:$0xf]
  %v89 = vld [vmem:[%s1 + $0x11c] sm:$0xf]
  %v90 = vld [vmem:[%s1 + $0x120] sm:$0xf]
  %v91 = vld [vmem:[%s1 + $0x124] sm:$0xf]
  %v92 = vld [vmem:[%s1 + $0x128] sm:$0xf]
  %v93 = vld [vmem:[%s1 + $0x12c] sm:$0xf]
  %v94 = vld [vmem:[%s1 + $0x130] sm:$0xf]
  %v95 = vld [vmem:[%s1 + $0x134] sm:$0xf]
  %v96 = vld [vmem:[%s1 + $0x138] sm:$0xf]
  %v97 = vld [vmem:[%s1 + $0x13c] sm:$0xf]
  %v98 = vld [vmem:[%s1 + $0x140] sm:$0xf]
  %v99 = vld [vmem:[%s1 + $0x144] sm:$0xf]
  %v100 = vld [vmem:[%s1 + $0x148] sm:$0xf]
  %v101 = vld [vmem:[%s1 + $0x14c] sm:$0xf]
  %v102 = vld [vmem:[%s1 + $0x150] sm:$0xf]
  %v103 = vld [vmem:[%s1 + $0x154] sm:$0xf]
  %v104 = vld [vmem:[%s1 + $0x158] sm:$0xf]
  %v105 = vld [vmem:[%s1 + $0x15c] sm:$0xf]
  %v106 = vld [vmem:[%s1 + $0x160] sm:$0xf]
  %v107 = vld [vmem:[%s1 + $0x164] sm:$0xf]
  %v108 = vld [vmem:[%s1 + $0x168] sm:$0xf]
  %v109 = vld [vmem:[%s1 + $0x16c] sm:$0xf]
  %v110 = vld [vmem:[%s1 + $0x170] sm:$0xf]
  %v111 = vld [vmem:[%s1 + $0x174] sm:$0xf]
  %v112 = vld [vmem:[%s1 + $0x178] sm:$0xf]
  %v113 = vld [vmem:[%s1 + $0x17c] sm:$0xf]
  %v114 = vld [vmem:[%s1 + $0x180] sm:$0xf]
  %v115 = vld [vmem:[%s1 + $0x184] sm:$0xf]
  %v116 = vld [vmem:[%s1 + $0x188] sm:$0xf]
  %v117 = vld [vmem:[%s1 + $0x18c] sm:$0xf]
  %v118 = vld [vmem:[%s1 + $0x190] sm:$0xf]
  %v119 = vld [vmem:[%s1 + $0x194] sm:$0xf]
  %v120 = vld [vmem:[%s1 + $0x198] sm:$0xf]
  %v121 = vld [vmem:[%s1 + $0x19c] sm:$0xf]
  %v122 = vld [vmem:[%s1 + $0x1a0] sm:$0xf]
  %v123 = vld [vmem:[%s1 + $0x1a4] sm:$0xf]
  %v124 = vld [vmem:[%s1 + $0x1a8] sm:$0xf]
  %v125 = vld [vmem:[%s1 + $0x1ac] sm:$0xf]
  %v126 = vld [vmem:[%s1 + $0x1b0] sm:$0xf]
  %v127 = vld [vmem:[%s1 + $0x1b4] sm:$0xf]
  %v128 = vld [vmem:[%s1 + $0x1b8] sm:$0xf]
  %v129 = vld [vmem:[%s1 + $0x1bc] sm:$0xf]
  %v130 = vld [vmem:[%s1 + $0x1c0] sm:$0xf]
  %v131 = vld [vmem:[%s1 + $0x1c4] sm:$0xf]
  %v132 = vld [vmem:[%s1 + $0x1c8] sm:$0xf]
  %v133 = vld [vmem:[%s1 + $0x1cc] sm:$0xf]
  %v134 = vld [vmem:[%s1 + $0x1d0] sm:$0xf]
  %v135 = vld [vmem:[%s1 + $0x1d4] sm:$0xf]
  %v136 = vld [vmem:[%s1 + $0x1d8] sm:$0xf]
  %v137 = vld [vmem:[%s1 + $0x1dc] sm:$0xf]
  %v138 = vld [vmem:[%s1 + $0x1e0] sm:$0xf]
  %v139 = vld [vmem:[%s1 + $0x1e4] sm:$0xf]
  %v140 = vld [vmem:[%s1 + $0x1e8] sm:$0xf]
  %v141 = vld [vmem:[%s1 + $0x1ec] sm:$0xf]
  %v142 = vld [vmem:[%s1 + $0x1f0] sm:$0xf]
  %v143 = vld [vmem:[%s1 + $0x1f4] sm:$0xf]
  %v144 = vld [vmem:[%s1 + $0x1f8] sm:$0xf]
  %v145 = vld [vmem:[%s1 + $0x1fc] sm:$0xf]
  %v146 = vld [vmem:[%s1 + $0x200] sm:$0xf]
  %v147 = vld [vmem:[%s1 + $0x204] sm:$0xf]
  %v148 = vld [vmem:[%s1 + $0x208] sm:$0xf]
  %v149 = vld [vmem:[%s1 + $0x20c] sm:$0xf]
  %v150 = vld [vmem:[%s1 + $0x210] sm:$0xf]
  %v151 = vld [vmem:[%s1 + $0x214] sm:$0xf]
  %v152 = vld [vmem:[%s1 + $0x218] sm:$0xf]
  %v153 = vld [vmem:[%s2] sm:$0xf]
  %155 = vset.pattern.permute.xlu0 0
  %156 = vperm.xlu0 %155, %v153
  %v157 = vpop.permute.xlu0 %156
  %v162 = vcombine.high %v15, %v15
  %v164 = vunpack.c.l.s4 1983009808
  %v165 = vunpack.c.0.s8 %v164
  %v166 = vlaneseq
  %v167 = vshrl.u32 %v166, 7
  %v168 = vsub.s32 %v165, %v167
  %v169 = vrot.slane %v15, %v168
  %v171 = vunpack.c.l.s4 1983009808
  %v172 = vunpack.c.0.s8 %v171
  %v173 = vlaneseq
  %v174 = vshrl.u32 %v173, 7
  %v175 = vsub.s32 %v172, %v174
  %v176 = vrot.slane %v162, %v175
  %v177 = vcombine.high %v169, %v169
  %v178 = vcombine.high %v176, %v176
  %v179 = vcombine.high %v16, %v16
  %v181 = vunpack.c.l.s4 1983009808
  %v182 = vunpack.c.0.s8 %v181
  %v183 = vlaneseq
  %v184 = vshrl.u32 %v183, 7
  %v185 = vsub.s32 %v182, %v184
  %v186 = vrot.slane %v16, %v185
  %v188 = vunpack.c.l.s4 1983009808
  %v189 = vunpack.c.0.s8 %v188
  %v190 = vlaneseq
  %v191 = vshrl.u32 %v190, 7
  %v192 = vsub.s32 %v189, %v191
  %v193 = vrot.slane %v179, %v192
  %v194 = vcombine.high %v186, %v186
  %v195 = vcombine.high %v193, %v193
  %v197 = vunpack.c.l.s4 1983009808
  %v198 = vunpack.c.0.s8 %v197
  %v199 = vlaneseq
  %v200 = vshrl.u32 %v199, 7
  %v201 = vsub.s32 %v198, %v200
  %v202 = vrot.slane %v17, %v201
  %v346 = vunpack.c.l.b16 %v18
  %v347 = vunpack.c.l.b16 %v19
  %v348 = vunpack.c.l.b16 %v20
  %v349 = vunpack.c.l.b16 %v21
  %v350 = vunpack.c.l.b16 %v22
  %v351 = vunpack.c.l.b16 %v23
  %v352 = vunpack.c.l.b16 %v24
  %v353 = vunpack.c.l.b16 %v25
  %v354 = vunpack.c.l.b16 %v26
  %v355 = vunpack.c.l.b16 %v27
  %v356 = vunpack.c.l.b16 %v28
  %v357 = vunpack.c.l.b16 %v29
  %v358 = vunpack.c.l.b16 %v30
  %v359 = vunpack.c.l.b16 %v31
  %v360 = vunpack.c.l.b16 %v32
  %v361 = vunpack.c.l.b16 %v33
  %v362 = vunpack.c.l.b16 %v34
  %v363 = vunpack.c.l.b16 %v35
  %v364 = vunpack.c.l.b16 %v36
  %v365 = vunpack.c.l.b16 %v37
  %v366 = vunpack.c.l.b16 %v38
  %v367 = vunpack.c.l.b16 %v39
  %v368 = vunpack.c.l.b16 %v40
  %v369 = vunpack.c.l.b16 %v41
  %v370 = vunpack.c.l.b16 %v42
  %v371 = vunpack.c.l.b16 %v43
  %v372 = vunpack.c.l.b16 %v44
  %v373 = vunpack.c.l.b16 %v45
  %v374 = vunpack.c.l.b16 %v46
  %v375 = vunpack.c.l.b16 %v47
  %v376 = vunpack.c.l.b16 %v48
  %v377 = vunpack.c.l.b16 %v49
  %v378 = vunpack.c.l.b16 %v50
  %v379 = vunpack.c.l.b16 %v51
  %v380 = vunpack.c.l.b16 %v52
  %v381 = vunpack.c.l.b16 %v53
  %v382 = vunpack.c.l.b16 %v54
  %v383 = vunpack.c.l.b16 %v55
  %v384 = vunpack.c.l.b16 %v56
  %v385 = vunpack.c.l.b16 %v57
  %v386 = vunpack.c.l.b16 %v58
  %v387 = vunpack.c.l.b16 %v59
  %v388 = vunpack.c.l.b16 %v60
  %v389 = vunpack.c.l.b16 %v61
  %v390 = vunpack.c.l.b16 %v62
  %v391 = vunpack.c.l.b16 %v63
  %v392 = vunpack.c.l.b16 %v64
  %v393 = vunpack.c.l.b16 %v65
  %v394 = vunpack.c.l.b16 %v66
  %v395 = vunpack.c.l.b16 %v67
  %v396 = vunpack.c.l.b16 %v68
  %v397 = vunpack.c.l.b16 %v69
  %v398 = vunpack.c.l.b16 %v70
  %v399 = vunpack.c.l.b16 %v71
  %v400 = vunpack.c.l.b16 %v72
  %v401 = vunpack.c.l.b16 %v73
  %v402 = vunpack.c.l.b16 %v74
  %v403 = vunpack.c.l.b16 %v75
  %v404 = vunpack.c.l.b16 %v76
  %v405 = vunpack.c.l.b16 %v77
  %v406 = vunpack.c.l.b16 %v78
  %v407 = vunpack.c.l.b16 %v79
  %v408 = vunpack.c.l.b16 %v80
  %v409 = vunpack.c.l.b16 %v81
  %v410 = vunpack.c.l.b16 %v82
  %v411 = vunpack.c.l.b16 %v83
  %v412 = vunpack.c.l.b16 %v84
  %v413 = vunpack.c.l.b16 %v85
  %v414 = vunpack.c.l.b16 %v86
  %v415 = vunpack.c.l.b16 %v87
  %v416 = vunpack.c.l.b16 %v88
  %v417 = vunpack.c.l.b16 %v89
  %v418 = vunpack.c.l.b16 %v90
  %v419 = vunpack.c.l.b16 %v91
  %v420 = vunpack.c.l.b16 %v92
  %v421 = vunpack.c.l.b16 %v93
  %v422 = vunpack.c.l.b16 %v94
  %v423 = vunpack.c.l.b16 %v95
  %v424 = vunpack.c.l.b16 %v96
  %v425 = vunpack.c.l.b16 %v97
  %v426 = vunpack.c.l.b16 %v98
  %v427 = vunpack.c.l.b16 %v99
  %v428 = vunpack.c.l.b16 %v100
  %v429 = vunpack.c.l.b16 %v101
  %v430 = vunpack.c.l.b16 %v102
  %v431 = vunpack.c.l.b16 %v103
  %v432 = vunpack.c.l.b16 %v104
  %v433 = vunpack.c.l.b16 %v105
  %v434 = vunpack.c.l.b16 %v106
  %v435 = vunpack.c.l.b16 %v107
  %v436 = vunpack.c.l.b16 %v108
  %v437 = vunpack.c.l.b16 %v109
  %v438 = vunpack.c.l.b16 %v110
  %v439 = vunpack.c.l.b16 %v111
  %v440 = vunpack.c.l.b16 %v112
  %v441 = vunpack.c.l.b16 %v113
  %v442 = vunpack.c.l.b16 %v114
  %v443 = vunpack.c.l.b16 %v115
  %v444 = vunpack.c.l.b16 %v116
  %v445 = vunpack.c.l.b16 %v117
  %v446 = vunpack.c.l.b16 %v118
  %v447 = vunpack.c.l.b16 %v119
  %v448 = vunpack.c.l.b16 %v120
  %v449 = vunpack.c.l.b16 %v121
  %v450 = vunpack.c.l.b16 %v122
  %v451 = vunpack.c.l.b16 %v123
  %v452 = vunpack.c.l.b16 %v124
  %v453 = vunpack.c.l.b16 %v125
  %v454 = vunpack.c.l.b16 %v126
  %v455 = vunpack.c.l.b16 %v127
  %v456 = vunpack.c.l.b16 %v128
  %v457 = vunpack.c.l.b16 %v129
  %v458 = vunpack.c.l.b16 %v130
  %v459 = vunpack.c.l.b16 %v131
  %v460 = vunpack.c.l.b16 %v132
  %v461 = vunpack.c.l.b16 %v133
  %v462 = vunpack.c.l.b16 %v134
  %v463 = vunpack.c.l.b16 %v135
  %v464 = vunpack.c.l.b16 %v136
  %v465 = vunpack.c.l.b16 %v137
  %v466 = vunpack.c.l.b16 %v138
  %v467 = vunpack.c.l.b16 %v139
  %v468 = vunpack.c.l.b16 %v140
  %v469 = vunpack.c.l.b16 %v141
  %v470 = vunpack.c.l.b16 %v142
  %v471 = vunpack.c.l.b16 %v143
  %v472 = vunpack.c.l.b16 %v144
  %v473 = vunpack.c.l.b16 %v145
  %v474 = vunpack.c.l.b16 %v146
  %v475 = vunpack.c.l.b16 %v147
  %v476 = vunpack.c.l.b16 %v148
  %v477 = vunpack.c.l.b16 %v149
  %v478 = vunpack.c.l.b16 %v150
  %v479 = vunpack.c.l.b16 %v151
  %v480 = vunpack.c.l.b16 %v152
  %v481 = vpack.c.b16 %v347, %v346
  %v482 = vpack.c.b16 %v349, %v348
  %v483 = vpack.c.b16 %v351, %v350
  %v484 = vpack.c.b16 %v353, %v352
  %v485 = vpack.c.b16 %v355, %v354
  %v486 = vpack.c.b16 %v357, %v356
  %v487 = vpack.c.b16 %v359, %v358
  %v488 = vpack.c.b16 %v361, %v360
  %v489 = vpack.c.b16 %v363, %v362
  %v490 = vpack.c.b16 %v365, %v364
  %v491 = vpack.c.b16 %v367, %v366
  %v492 = vpack.c.b16 %v369, %v368
  %v493 = vpack.c.b16 %v371, %v370
  %v494 = vpack.c.b16 %v373, %v372
  %v495 = vpack.c.b16 %v375, %v374
  %v496 = vpack.c.b16 %v377, %v376
  %v497 = vpack.c.b16 %v379, %v378
  %v498 = vpack.c.b16 %v381, %v380
  %v499 = vpack.c.b16 %v383, %v382
  %v500 = vpack.c.b16 %v385, %v384
  %v501 = vpack.c.b16 %v387, %v386
  %v502 = vpack.c.b16 %v389, %v388
  %v503 = vpack.c.b16 %v391, %v390
  %v504 = vpack.c.b16 %v393, %v392
  %v505 = vpack.c.b16 %v395, %v394
  %v506 = vpack.c.b16 %v397, %v396
  %v507 = vpack.c.b16 %v399, %v398
  %v508 = vpack.c.b16 %v401, %v400
  %v509 = vpack.c.b16 %v403, %v402
  %v510 = vpack.c.b16 %v405, %v404
  %v511 = vpack.c.b16 %v407, %v406
  %v512 = vpack.c.b16 %v409, %v408
  %v513 = vpack.c.b16 %v411, %v410
  %v514 = vpack.c.b16 %v413, %v412
  %v515 = vpack.c.b16 %v415, %v414
  %v516 = vpack.c.b16 %v417, %v416
  %v517 = vpack.c.b16 %v419, %v418
  %v518 = vpack.c.b16 %v421, %v420
  %v519 = vpack.c.b16 %v423, %v422
  %v520 = vpack.c.b16 %v425, %v424
  %v521 = vpack.c.b16 %v427, %v426
  %v522 = vpack.c.b16 %v429, %v428
  %v523 = vpack.c.b16 %v431, %v430
  %v524 = vpack.c.b16 %v433, %v432
  %v525 = vpack.c.b16 %v435, %v434
  %v526 = vpack.c.b16 %v437, %v436
  %v527 = vpack.c.b16 %v439, %v438
  %v528 = vpack.c.b16 %v441, %v440
  %v529 = vpack.c.b16 %v443, %v442
  %v530 = vpack.c.b16 %v445, %v444
  %v531 = vpack.c.b16 %v447, %v446
  %v532 = vpack.c.b16 %v449, %v448
  %v533 = vpack.c.b16 %v451, %v450
  %v534 = vpack.c.b16 %v453, %v452
  %v535 = vpack.c.b16 %v455, %v454
  %v536 = vpack.c.b16 %v457, %v456
  %v537 = vpack.c.b16 %v459, %v458
  %v538 = vpack.c.b16 %v461, %v460
  %v539 = vpack.c.b16 %v463, %v462
  %v540 = vpack.c.b16 %v465, %v464
  %v541 = vpack.c.b16 %v467, %v466
  %v542 = vpack.c.b16 %v469, %v468
  %v543 = vpack.c.b16 %v471, %v470
  %v544 = vpack.c.b16 %v473, %v472
  %v545 = vpack.c.b16 %v475, %v474
  %v546 = vpack.c.b16 %v477, %v476
  %v547 = vpack.c.b16 %v479, %v478
  %v548 = vpack.c.b16 %v480, %v480
  %vm616 = vcmask 457728
  %v618 = vsel %vm616, %v202, 0
  %vm620 = vcmask 1043456
  %v622 = vsel %vm620, %v548, 0
  %624 = vmatprep.subr.bf16.mxu0 0
  %625 = vmatpush1.bf16.msra.mxu0 %v481
  %626 = vmatprep.subr.bf16.mxu0 0
  %627 = vmatpush1.bf16.msra.mxu0 %v482
  %628 = vmatprep.subr.bf16.mxu0 0
  %629 = vmatpush1.bf16.msra.mxu0 %v483
  %630 = vmatprep.subr.bf16.mxu0 0
  %631 = vmatpush1.bf16.msra.mxu0 %v484
  %632 = vmatprep.subr.bf16.mxu0 0
  %633 = vmatpush1.bf16.msra.mxu0 %v485
  %634 = vmatprep.subr.bf16.mxu0 0
  %635 = vmatpush1.bf16.msra.mxu0 %v486
  %636 = vmatprep.subr.bf16.mxu0 0
  %637 = vmatpush1.bf16.msra.mxu0 %v487
  %638 = vmatprep.subr.bf16.mxu0 0
  %639 = vmatpush1.bf16.msra.mxu0 %v488
  %640 = vmatprep.subr.bf16.mxu0 0
  %641 = vmatpush1.bf16.msra.mxu0 %v489
  %642 = vmatprep.subr.bf16.mxu0 0
  %643 = vmatpush1.bf16.msra.mxu0 %v490
  %644 = vmatprep.subr.bf16.mxu0 0
  %645 = vmatpush1.bf16.msra.mxu0 %v491
  %646 = vmatprep.subr.bf16.mxu0 0
  %647 = vmatpush1.bf16.msra.mxu0 %v492
  %648 = vmatprep.subr.bf16.mxu0 0
  %649 = vmatpush1.bf16.msra.mxu0 %v493
  %650 = vmatprep.subr.bf16.mxu0 0
  %651 = vmatpush1.bf16.msra.mxu0 %v494
  %652 = vmatprep.subr.bf16.mxu0 0
  %653 = vmatpush1.bf16.msra.mxu0 %v495
  %654 = vmatprep.subr.bf16.mxu0 0
  %655 = vmatpush1.bf16.msra.mxu0 %v496
  %656 = vmatprep.mubr.bf16.mxu0 %v177
  %657 = vmatmul.mubr.bf16.gmra.mrb[0].mxu0 %v169
  %v658 = vpop.f32.mrb[0].mxu0
  %v659 = vadd.f32 %v157, %v658
  %v660 = vpop.f32.mrb[0].mxu0
  %v661 = vpop.f32.mrb[0].mxu0
  %v662 = vpop.f32.mrb[0].mxu0
  %663 = vdwg.mxu0
  %664 = vmatprep.subr.bf16.mxu0 0
  %665 = vmatpush1.bf16.msra.mxu0 %v497
  %666 = vmatprep.subr.bf16.mxu0 0
  %667 = vmatpush1.bf16.msra.mxu0 %v498
  %668 = vmatprep.subr.bf16.mxu0 0
  %669 = vmatpush1.bf16.msra.mxu0 %v499
  %670 = vmatprep.subr.bf16.mxu0 0
  %671 = vmatpush1.bf16.msra.mxu0 %v500
  %672 = vmatprep.subr.bf16.mxu0 0
  %673 = vmatpush1.bf16.msra.mxu0 %v501
  %674 = vmatprep.subr.bf16.mxu0 0
  %675 = vmatpush1.bf16.msra.mxu0 %v502
  %676 = vmatprep.subr.bf16.mxu0 0
  %677 = vmatpush1.bf16.msra.mxu0 %v503
  %678 = vmatprep.subr.bf16.mxu0 0
  %679 = vmatpush1.bf16.msra.mxu0 %v504
  %680 = vmatprep.subr.bf16.mxu0 0
  %681 = vmatpush1.bf16.msra.mxu0 %v505
  %682 = vmatprep.subr.bf16.mxu0 0
  %683 = vmatpush1.bf16.msra.mxu0 %v506
  %684 = vmatprep.subr.bf16.mxu0 0
  %685 = vmatpush1.bf16.msra.mxu0 %v507
  %686 = vmatprep.subr.bf16.mxu0 0
  %687 = vmatpush1.bf16.msra.mxu0 %v508
  %688 = vmatprep.subr.bf16.mxu0 0
  %689 = vmatpush1.bf16.msra.mxu0 %v509
  %690 = vmatprep.subr.bf16.mxu0 0
  %691 = vmatpush1.bf16.msra.mxu0 %v510
  %692 = vmatprep.subr.bf16.mxu0 0
  %693 = vmatpush1.bf16.msra.mxu0 %v511
  %694 = vmatprep.subr.bf16.mxu0 0
  %695 = vmatpush1.bf16.msra.mxu0 %v512
  %696 = vmatprep.mubr.bf16.mxu0 %v178
  %697 = vmatmul.mubr.bf16.gmra.mrb[0].mxu0 %v176
  %v698 = vpop.f32.mrb[0].mxu0
  %v699 = vadd.f32 %v659, %v698
  %v700 = vpop.f32.mrb[0].mxu0
  %v701 = vpop.f32.mrb[0].mxu0
  %v702 = vpop.f32.mrb[0].mxu0
  %703 = vdwg.mxu0
  %704 = vmatprep.subr.bf16.mxu0 0
  %705 = vmatpush1.bf16.msra.mxu0 %v513
  %706 = vmatprep.subr.bf16.mxu0 0
  %707 = vmatpush1.bf16.msra.mxu0 %v514
  %708 = vmatprep.subr.bf16.mxu0 0
  %709 = vmatpush1.bf16.msra.mxu0 %v515
  %710 = vmatprep.subr.bf16.mxu0 0
  %711 = vmatpush1.bf16.msra.mxu0 %v516
  %712 = vmatprep.subr.bf16.mxu0 0
  %713 = vmatpush1.bf16.msra.mxu0 %v517
  %714 = vmatprep.subr.bf16.mxu0 0
  %715 = vmatpush1.bf16.msra.mxu0 %v518
  %716 = vmatprep.subr.bf16.mxu0 0
  %717 = vmatpush1.bf16.msra.mxu0 %v519
  %718 = vmatprep.subr.bf16.mxu0 0
  %719 = vmatpush1.bf16.msra.mxu0 %v520
  %720 = vmatprep.subr.bf16.mxu0 0
  %721 = vmatpush1.bf16.msra.mxu0 %v521
  %722 = vmatprep.subr.bf16.mxu0 0
  %723 = vmatpush1.bf16.msra.mxu0 %v522
  %724 = vmatprep.subr.bf16.mxu0 0
  %725 = vmatpush1.bf16.msra.mxu0 %v523
  %726 = vmatprep.subr.bf16.mxu0 0
  %727 = vmatpush1.bf16.msra.mxu0 %v524
  %728 = vmatprep.subr.bf16.mxu0 0
  %729 = vmatpush1.bf16.msra.mxu0 %v525
  %730 = vmatprep.subr.bf16.mxu0 0
  %731 = vmatpush1.bf16.msra.mxu0 %v526
  %732 = vmatprep.subr.bf16.mxu0 0
  %733 = vmatpush1.bf16.msra.mxu0 %v527
  %734 = vmatprep.subr.bf16.mxu0 0
  %735 = vmatpush1.bf16.msra.mxu0 %v528
  %736 = vmatprep.mubr.bf16.mxu0 %v194
  %737 = vmatmul.mubr.bf16.gmra.mrb[0].mxu0 %v186
  %v738 = vpop.f32.mrb[0].mxu0
  %v739 = vadd.f32 %v699, %v738
  %v740 = vpop.f32.mrb[0].mxu0
  %v741 = vpop.f32.mrb[0].mxu0
  %v742 = vpop.f32.mrb[0].mxu0
  %743 = vdwg.mxu0
  %744 = vmatprep.subr.bf16.mxu0 0
  %745 = vmatpush1.bf16.msra.mxu0 %v529
  %746 = vmatprep.subr.bf16.mxu0 0
  %747 = vmatpush1.bf16.msra.mxu0 %v530
  %748 = vmatprep.subr.bf16.mxu0 0
  %749 = vmatpush1.bf16.msra.mxu0 %v531
  %750 = vmatprep.subr.bf16.mxu0 0
  %751 = vmatpush1.bf16.msra.mxu0 %v532
  %752 = vmatprep.subr.bf16.mxu0 0
  %753 = vmatpush1.bf16.msra.mxu0 %v533
  %754 = vmatprep.subr.bf16.mxu0 0
  %755 = vmatpush1.bf16.msra.mxu0 %v534
  %756 = vmatprep.subr.bf16.mxu0 0
  %757 = vmatpush1.bf16.msra.mxu0 %v535
  %758 = vmatprep.subr.bf16.mxu0 0
  %759 = vmatpush1.bf16.msra.mxu0 %v536
  %760 = vmatprep.subr.bf16.mxu0 0
  %761 = vmatpush1.bf16.msra.mxu0 %v537
  %762 = vmatprep.subr.bf16.mxu0 0
  %763 = vmatpush1.bf16.msra.mxu0 %v538
  %764 = vmatprep.subr.bf16.mxu0 0
  %765 = vmatpush1.bf16.msra.mxu0 %v539
  %766 = vmatprep.subr.bf16.mxu0 0
  %767 = vmatpush1.bf16.msra.mxu0 %v540
  %768 = vmatprep.subr.bf16.mxu0 0
  %769 = vmatpush1.bf16.msra.mxu0 %v541
  %770 = vmatprep.subr.bf16.mxu0 0
  %771 = vmatpush1.bf16.msra.mxu0 %v542
  %772 = vmatprep.subr.bf16.mxu0 0
  %773 = vmatpush1.bf16.msra.mxu0 %v543
  %774 = vmatprep.subr.bf16.mxu0 0
  %775 = vmatpush1.bf16.msra.mxu0 %v544
  %776 = vmatprep.mubr.bf16.mxu0 %v195
  %777 = vmatmul.mubr.bf16.gmra.mrb[0].mxu0 %v193
  %v778 = vpop.f32.mrb[0].mxu0
  %v779 = vadd.f32 %v739, %v778
  %v780 = vpop.f32.mrb[0].mxu0
  %v781 = vpop.f32.mrb[0].mxu0
  %v782 = vpop.f32.mrb[0].mxu0
  %783 = vdwg.mxu0
  %784 = vmatprep.subr.bf16.mxu0 0
  %785 = vmatpush1.bf16.msra.mxu0 %v545
  %786 = vmatprep.subr.bf16.mxu0 0
  %787 = vmatpush1.bf16.msra.mxu0 %v546
  %788 = vmatprep.subr.bf16.mxu0 0
  %789 = vmatpush1.bf16.msra.mxu0 %v547
  %790 = vmatprep.subr.bf16.mxu0 0
  %791 = vmatpush1.bf16.msra.mxu0 %v622
  %792 = vmatprep.subr.bf16.mxu0 0
  %793 = vmatpush1.bf16.msra.mxu0 0
  %794 = vmatprep.subr.bf16.mxu0 0
  %795 = vmatpush1.bf16.msra.mxu0 0
  %796 = vmatprep.subr.bf16.mxu0 0
  %797 = vmatpush1.bf16.msra.mxu0 0
  %798 = vmatprep.subr.bf16.mxu0 0
  %799 = vmatpush1.bf16.msra.mxu0 0
  %800 = vmatprep.subr.bf16.mxu0 0
  %801 = vmatpush1.bf16.msra.mxu0 0
  %802 = vmatprep.subr.bf16.mxu0 0
  %803 = vmatpush1.bf16.msra.mxu0 0
  %804 = vmatprep.subr.bf16.mxu0 0
  %805 = vmatpush1.bf16.msra.mxu0 0
  %806 = vmatprep.subr.bf16.mxu0 0
  %807 = vmatpush1.bf16.msra.mxu0 0
  %808 = vmatprep.subr.bf16.mxu0 0
  %809 = vmatpush1.bf16.msra.mxu0 0
  %810 = vmatprep.subr.bf16.mxu0 0
  %811 = vmatpush1.bf16.msra.mxu0 0
  %812 = vmatprep.subr.bf16.mxu0 0
  %813 = vmatpush1.bf16.msra.mxu0 0
  %814 = vmatprep.subr.bf16.mxu0 0
  %815 = vmatpush1.bf16.msra.mxu0 0
  %816 = vmatprep.mubr.bf16.mxu0 0
  %817 = vmatmul.mubr.bf16.gmra.mrb[0].mxu0 %v618
  %v818 = vpop.f32.mrb[0].mxu0
  %v819 = vadd.f32 %v779, %v818
  %v820 = vpop.f32.mrb[0].mxu0
  %v821 = vpop.f32.mrb[0].mxu0
  %v822 = vpop.f32.mrb[0].mxu0
  %823 = vdwg.mxu0
  %v824 = vmax.f32 %v819, 0.0
  %v825 = vpack.c.bf16 %v824, %v824
  %826 = vst [vmem:[%s3] sm:$0x3] %v825
  // Predicated region
  $region14: #{unet_sim3d_srd2.18} parent=0 // pred_check
    _
  $region15: #{unet_sim3d_srd2.18} parent=0 // pred_check_branch
    %828 = sbr.rel (0) target = $region17
  $region16: #{unet_sim3d_srd2.18} parent=0 // pred_region
    _
  $region17: #{unet_sim3d_srd2.18} parent=0 // pred_fallthru
    _
  // Predicated region
  $region18: #{unet_sim3d_srd2.18} parent=0 // pred_check
    _
  $region19: #{unet_sim3d_srd2.18} parent=0 // pred_check_branch
    %830 = sbr.rel (0) target = $region21
  $region20: #{unet_sim3d_srd2.18} parent=0 // pred_region
    _
  $region21: #{unet_sim3d_srd2.18} parent=0 // pred_fallthru
    _

</llo_original>
